<compile_context>
chip_gen: v6e
topology: v6e:2x2x1
jax: 0.10.0
libtpu: 0.0.40
codegen_flags: <defaults>
</compile_context>

<pallas_src>
import functools

import jax
import jax.numpy as jnp
from jax import lax
from jax.experimental import pallas as pl
from jax.experimental.pallas import tpu as pltpu

EPS = 1e-5  # nn.BatchNorm2d default eps

# Matmul operand dtype.  jnp.float32 keeps bit-for-bit-like parity with the PyTorch/f32
# reference; switch to jnp.bfloat16 on v6e/v7x for ~4-8x MXU throughput (looser numerics,
# accumulation stays f32 via preferred_element_type).
_MXU_DTYPE = jnp.float32

# Above the 32 MiB default scoped limit, safely below physical VMEM on v5e/v6e (128 MiB)
# and v7x (64 MiB).
_VMEM_LIMIT_BYTES = 48 * 1024 * 1024
_LANE = 128


# ----------------------------- kernels -----------------------------
def _conv3x3_stats_kernel(x_ref, w_ref, scale_ref, shift_ref, y_ref, stats_ref,
                          xpad_sc, acc_sc, *, apply_input_bn_relu):
    """Per-image: (optional fused BN-apply+ReLU on the input) -> 3x3 conv -> partial BN stats.

    x_ref:     (1, H, W, Ci)   activation block (channel-padded, lane dense)
    w_ref:     (3, 3, Ci, Co)  HWIO weight (channel-padded)
    scale_ref: (1, Ci)         folded BN scale for the *input* (used iff apply_input_bn_relu)
    shift_ref: (1, Ci)         folded BN shift for the *input*
    y_ref:     (1, H, W, Co)   raw conv output (pre-BN)
    stats_ref: (1, 2, Co)      per-tile [sum, centered-M2] of the conv output
    xpad_sc:   (H+2, W+2, Ci)  VMEM scratch holding the zero-halo padded input
    acc_sc:    (H*W, Co) f32   VMEM conv accumulator
    """
    H, W, Ci = x_ref.shape[1], x_ref.shape[2], x_ref.shape[3]
    Co = w_ref.shape[-1]
    M = H * W

    # ---- input prep: optional fused BN-apply + ReLU (previous layer), then pad into VMEM ----
    x2 = x_ref[0].reshape(M, Ci).astype(jnp.float32)
    if apply_input_bn_relu:
        x2 = jnp.maximum(x2 * scale_ref[...] + shift_ref[...], 0.0)

    xpad_sc[...] = jnp.zeros(xpad_sc.shape, xpad_sc.dtype)        # zero halo
    xpad_sc[1:H + 1, 1:W + 1, :] = x2.reshape(H, W, Ci).astype(xpad_sc.dtype)

    # ---- 3x3 conv, stride 1: 9 shifted (M, Ci) x (Ci, Co) MXU matmuls, f32 accumulate ----
    first = True
    for kh in range(3):
        for kw in range(3):
            slab = xpad_sc[kh:kh + H, kw:kw + W, :].reshape(M, Ci)
            prod = jnp.dot(slab.astype(_MXU_DTYPE), w_ref[kh, kw].astype(_MXU_DTYPE),
                           preferred_element_type=jnp.float32)
            if first:
                acc_sc[...] = prod
                first = False
            else:
                acc_sc[...] += prod

    acc = acc_sc[...]
    y_ref[0] = acc.reshape(H, W, Co).astype(y_ref.dtype)

    # ---- per-tile BN partial stats: sum and centered second moment (stable) ----
    s = jnp.sum(acc, axis=0, keepdims=True)                # (1, Co)
    mu = s * (1.0 / M)
    d = acc - mu
    m2 = jnp.sum(d * d, axis=0, keepdims=True)             # (1, Co)
    stats_ref[0] = jnp.concatenate([s, m2], axis=0)        # (2, Co)


def _bn_residual_relu_kernel(y_ref, scale_ref, shift_ref, res_ref, out_ref):
    """out = relu(y * scale + shift + residual) for one image block."""
    H, W, Co = y_ref.shape[1], y_ref.shape[2], y_ref.shape[3]
    M = H * W
    y2 = y_ref[0].reshape(M, Co).astype(jnp.float32)
    r2 = res_ref[0].reshape(M, Co).astype(jnp.float32)
    o = y2 * scale_ref[...] + shift_ref[...] + r2
    out_ref[0] = jnp.maximum(o, 0.0).reshape(H, W, Co).astype(out_ref.dtype)


# ----------------------------- pallas_call wrappers -----------------------------
def _conv3x3_bn_stats(x_p, w_p, in_scale, in_shift, *, apply_input_bn_relu):
    N, H, W, Ci = x_p.shape
    Co = w_p.shape[-1]
    kern = functools.partial(_conv3x3_stats_kernel,
                             apply_input_bn_relu=apply_input_bn_relu)
    flops = 2 * N * H * W * 9 * Ci * Co
    bytes_accessed = 4 * (x_p.size + w_p.size + in_scale.size + in_shift.size
                          + N * H * W * Co + N * 2 * Co)
    return pl.pallas_call(
        kern,
        grid=(N,),
        in_specs=[
            pl.BlockSpec((1, H, W, Ci), lambda n: (n, 0, 0, 0)),
            pl.BlockSpec((3, 3, Ci, Co), lambda n: (0, 0, 0, 0)),
            pl.BlockSpec((1, Ci), lambda n: (0, 0)),
            pl.BlockSpec((1, Ci), lambda n: (0, 0)),
        ],
        out_specs=(
            pl.BlockSpec((1, H, W, Co), lambda n: (n, 0, 0, 0)),
            pl.BlockSpec((1, 2, Co), lambda n: (n, 0, 0)),
        ),
        out_shape=(
            jax.ShapeDtypeStruct((N, H, W, Co), jnp.float32),
            jax.ShapeDtypeStruct((N, 2, Co), jnp.float32),
        ),
        scratch_shapes=[
            pltpu.VMEM((H + 2, W + 2, Ci), jnp.float32),
            pltpu.VMEM((H * W, Co), jnp.float32),
        ],
        compiler_params=pltpu.CompilerParams(
            dimension_semantics=("parallel",),
            vmem_limit_bytes=_VMEM_LIMIT_BYTES,
        ),
        cost_estimate=pl.CostEstimate(flops=int(flops), transcendentals=0,
                                      bytes_accessed=int(bytes_accessed)),
    )(x_p, w_p, in_scale, in_shift)


def _bn_residual_relu(y, scale, shift, residual):
    N, H, W, Co = y.shape
    flops = 4 * N * H * W * Co
    bytes_accessed = 4 * (2 * y.size + residual.size + scale.size + shift.size)
    return pl.pallas_call(
        _bn_residual_relu_kernel,
        grid=(N,),
        in_specs=[
            pl.BlockSpec((1, H, W, Co), lambda n: (n, 0, 0, 0)),
            pl.BlockSpec((1, Co), lambda n: (0, 0)),
            pl.BlockSpec((1, Co), lambda n: (0, 0)),
            pl.BlockSpec((1, H, W, Co), lambda n: (n, 0, 0, 0)),
        ],
        out_specs=pl.BlockSpec((1, H, W, Co), lambda n: (n, 0, 0, 0)),
        out_shape=jax.ShapeDtypeStruct((N, H, W, Co), jnp.float32),
        compiler_params=pltpu.CompilerParams(
            dimension_semantics=("parallel",),
            vmem_limit_bytes=_VMEM_LIMIT_BYTES,
        ),
        cost_estimate=pl.CostEstimate(flops=int(flops), transcendentals=0,
                                      bytes_accessed=int(bytes_accessed)),
    )(y, scale, shift, residual)


# ----------------------------- glue helpers -----------------------------
def _round_up(v, m):
    return ((v + m - 1) // m) * m


def _pad_last(a, n):
    p = n - a.shape[-1]
    if p == 0:
        return a
    return jnp.pad(a, [(0, 0)] * (a.ndim - 1) + [(0, p)])


def _pad_hwio(w, ci_p, co_p):
    return jnp.pad(w, ((0, 0), (0, 0), (0, ci_p - w.shape[2]), (0, co_p - w.shape[3])))


def _fold_bn_stats(stats, m_tile, gamma, beta):
    """Combine per-tile [sum, centered M2] (Chan) -> folded BN scale/shift (training-mode,
    biased variance, matches nn.BatchNorm2d normalization)."""
    s = stats[:, 0, :]                     # (G, Cp)
    m2 = stats[:, 1, :]                    # (G, Cp)
    count = m_tile * stats.shape[0]
    total = jnp.sum(s, axis=0)
    mean = total / count
    tile_mean = s / m_tile
    m2_tot = jnp.sum(m2, axis=0) + m_tile * jnp.sum((tile_mean - mean[None, :]) ** 2, axis=0)
    var = m2_tot / count
    scale = gamma * lax.rsqrt(var + EPS)
    shift = beta - mean * scale
    return scale.reshape(1, -1), shift.reshape(1, -1)


# ----------------------------- forward pass -----------------------------
@jax.jit
def basic_block_forward_nhwc(x, w1, g1, b1, w2, g2, b2):
    """BasicBlock forward in NHWC / HWIO with Pallas kernels on the hot path."""
    N, H, W, Cin = x.shape
    Cout = w1.shape[-1]
    if Cin != Cout:
        # TODO(synk): stride>1 / downsample branch not implemented (default construction
        # has stride=1, downsample=None, which requires inplanes == planes).
        raise NotImplementedError("BasicBlock Pallas kernel requires inplanes == planes")

    ci_p = _round_up(Cin, _LANE)
    co_p = _round_up(Cout, _LANE)

    x_p = _pad_last(x.astype(jnp.float32), ci_p)
    w1_p = _pad_hwio(w1.astype(jnp.float32), ci_p, co_p)
    w2_p = _pad_hwio(w2.astype(jnp.float32), co_p, co_p)
    g1_p, b1_p = _pad_last(g1, co_p), _pad_last(b1, co_p)
    g2_p, b2_p = _pad_last(g2, co_p), _pad_last(b2, co_p)
    dummy = jnp.zeros((1, ci_p), jnp.float32)   # unused (conv1 applies no input affine/relu)

    m_tile = H * W  # BN elements contributed per grid tile (one image)

    # conv1 -> raw y1 + per-tile BN1 partial stats
    y1, st1 = _conv3x3_bn_stats(x_p, w1_p, dummy, dummy, apply_input_bn_relu=False)
    sc1, sh1 = _fold_bn_stats(st1, m_tile, g1_p, b1_p)

    # bn1-apply + relu fused into the conv2 pass (intermediate h never touches HBM)
    y2, st2 = _conv3x3_bn_stats(y1, w2_p, sc1, sh1, apply_input_bn_relu=True)
    sc2, sh2 = _fold_bn_stats(st2, m_tile, g2_p, b2_p)

    # bn2-apply + residual + relu
    out_p = _bn_residual_relu(y2, sc2, sh2, x_p)
    return out_p[..., :Cout]


def basic_block_forward_nchw(x_nchw, w1_oihw, g1, b1, w2_oihw, g2, b2):
    """PyTorch-convention wrapper: NCHW in/out, OIHW weights (glue only)."""
    x = jnp.transpose(x_nchw, (0, 2, 3, 1))          # NCHW -> NHWC
    w1 = jnp.transpose(w1_oihw, (2, 3, 1, 0))        # OIHW -> HWIO
    w2 = jnp.transpose(w2_oihw, (2, 3, 1, 0))
    out = basic_block_forward_nhwc(x, w1, g1, b1, w2, g2, b2)
    return jnp.transpose(out, (0, 3, 1, 2))          # NHWC -> NCHW


# ----------------------------- pure-JAX reference -----------------------------
def _ref_forward_nchw(x_nchw, w1, g1, b1, w2, g2, b2):
    def conv(x, w):  # NCHW / OIHW
        return lax.conv_general_dilated(
            x, w, window_strides=(1, 1), padding=((1, 1), (1, 1)),
            dimension_numbers=("NCHW", "OIHW", "NCHW"))

    def bn(x, g, b):  # training-mode batch stats, biased variance
        m = jnp.mean(x, axis=(0, 2, 3), keepdims=True)
        v = jnp.mean((x - m) ** 2, axis=(0, 2, 3), keepdims=True)
        return (x - m) / jnp.sqrt(v + EPS) * g[None, :, None, None] + b[None, :, None, None]

    h = jax.nn.relu(bn(conv(x_nchw, w1), g1, b1))
    o = bn(conv(h, w2), g2, b2) + x_nchw
    return jax.nn.relu(o)


if __name__ == "__main__":
    # Small shapes: BasicBlock(inplanes=8, planes=8), batch=2, spatial=16x16.
    N, C, H, W = 2, 8, 16, 16
    planes = C

    key = jax.random.PRNGKey(0)
    kx, kw1, kw2, kg1, kb1, kg2, kb2 = jax.random.split(key, 7)

    x_nchw = jax.random.normal(kx, (N, C, H, W), dtype=jnp.float32)
    # conv weights in PyTorch OIHW convention, no bias
    w1 = jax.random.normal(kw1, (planes, C, 3, 3), dtype=jnp.float32) * 0.1
    w2 = jax.random.normal(kw2, (planes, planes, 3, 3), dtype=jnp.float32) * 0.1
    # BN affine params (deterministic, non-trivial)
    g1 = 1.0 + 0.1 * jax.random.normal(kg1, (planes,), dtype=jnp.float32)
    b1 = 0.1 * jax.random.normal(kb1, (planes,), dtype=jnp.float32)
    g2 = 1.0 + 0.1 * jax.random.normal(kg2, (planes,), dtype=jnp.float32)
    b2 = 0.1 * jax.random.normal(kb2, (planes,), dtype=jnp.float32)

    out = basic_block_forward_nchw(x_nchw, w1, g1, b1, w2, g2, b2)
    out = jax.block_until_ready(out)

    ref = _ref_forward_nchw(x_nchw, w1, g1, b1, w2, g2, b2)
    ref = jax.block_until_ready(ref)

    assert out.shape == (N, planes, H, W), out.shape
    if not jnp.allclose(out, ref, atol=1e-4, rtol=1e-4):
        max_err = float(jnp.max(jnp.abs(out - ref)))
        raise AssertionError(f"mismatch vs reference, max abs err = {max_err}")

    print("KERNEL_OK")
</pallas_src>

<mosaic_0001>
module attributes {stable_mosaic.version = 11 : i64} {
  func.func @_conv3x3_stats_kernel(%arg0: i32, %arg1: memref<1x16x16x128xf32, #tpu.memory_space<vmem>>, %arg2: memref<3x3x128x128xf32, #tpu.memory_space<vmem>>, %arg3: memref<1x128xf32, #tpu.memory_space<vmem>>, %arg4: memref<1x128xf32, #tpu.memory_space<vmem>>, %arg5: memref<1x16x16x128xf32, #tpu.memory_space<vmem>>, %arg6: memref<1x2x128xf32, #tpu.memory_space<vmem>>, %arg7: memref<18x18x128xf32, #tpu.memory_space<vmem>>, %arg8: memref<256x128xf32, #tpu.memory_space<vmem>>) attributes {dimension_semantics = [#tpu.dimension_semantics<parallel>], iteration_bounds = array<i64: 2>, scalar_prefetch = 0 : i64, scratch_operands = 2 : i64, tpu.core_type = #tpu.core_type<tc>, window_params = [{transform_indices = @transform_0, window_bounds = array<i64: 1, 16, 16, 128>}, {pipeline_mode = #tpu.pipeline_mode<synchronous>, transform_indices = @transform_1, window_bounds = array<i64: 3, 3, 128, 128>}, {pipeline_mode = #tpu.pipeline_mode<synchronous>, transform_indices = @transform_2, window_bounds = array<i64: 1, 128>}, {pipeline_mode = #tpu.pipeline_mode<synchronous>, transform_indices = @transform_3, window_bounds = array<i64: 1, 128>}, {transform_indices = @transform_4, window_bounds = array<i64: 1, 16, 16, 128>}, {transform_indices = @transform_5, window_bounds = array<i64: 1, 2, 128>}]} {
    %c0 = arith.constant 0 : index
    %c0_0 = arith.constant 0 : index
    %c0_1 = arith.constant 0 : index
    %c0_2 = arith.constant 0 : index
    %0 = vector.load %arg1[%c0, %c0_0, %c0_1, %c0_2] : memref<1x16x16x128xf32, #tpu.memory_space<vmem>>, vector<1x16x16x128xf32>
    %1 = vector.shape_cast %0 : vector<1x16x16x128xf32> to vector<16x16x128xf32>
    %2 = vector.shape_cast %1 : vector<16x16x128xf32> to vector<256x128xf32>
    %cst = arith.constant 0.000000e+00 : f32
    %3 = vector.broadcast %cst : f32 to vector<18x18x128xf32>
    %c0_3 = arith.constant 0 : index
    %c0_4 = arith.constant 0 : index
    %c0_5 = arith.constant 0 : index
    %4 = vector.load %arg7[%c0_3, %c0_4, %c0_5] : memref<18x18x128xf32, #tpu.memory_space<vmem>>, vector<18x18x128xf32>
    tpu.vector_store %arg7[%c0_3, %c0_4, %c0_5], %3 {strides = array<i32>} : memref<18x18x128xf32, #tpu.memory_space<vmem>>, vector<18x18x128xf32>,
    %5 = vector.shape_cast %2 : vector<256x128xf32> to vector<16x16x128xf32>
    %c1 = arith.constant 1 : index
    %c1_6 = arith.constant 1 : index
    %c0_7 = arith.constant 0 : index
    %6 = vector.load %arg7[%c1, %c1_6, %c0_7] : memref<18x18x128xf32, #tpu.memory_space<vmem>>, vector<16x16x128xf32>
    tpu.vector_store %arg7[%c1, %c1_6, %c0_7], %5 {strides = array<i32>} : memref<18x18x128xf32, #tpu.memory_space<vmem>>, vector<16x16x128xf32>,
    %c0_8 = arith.constant 0 : index
    %c0_9 = arith.constant 0 : index
    %c0_10 = arith.constant 0 : index
    %7 = vector.load %arg7[%c0_8, %c0_9, %c0_10] : memref<18x18x128xf32, #tpu.memory_space<vmem>>, vector<16x16x128xf32>
    %8 = vector.shape_cast %7 : vector<16x16x128xf32> to vector<256x128xf32>
    %c0_11 = arith.constant 0 : index
    %c0_12 = arith.constant 0 : index
    %c0_13 = arith.constant 0 : index
    %c0_14 = arith.constant 0 : index
    %9 = vector.load %arg2[%c0_11, %c0_12, %c0_13, %c0_14] : memref<3x3x128x128xf32, #tpu.memory_space<vmem>>, vector<1x1x128x128xf32>
    %10 = vector.shape_cast %9 : vector<1x1x128x128xf32> to vector<128x128xf32>
    %cst_15 = arith.constant dense<0.000000e+00> : vector<256x128xf32>
    %11 = tpu.matmul %8, %10, %cst_15 {dimension_numbers = #tpu.dot_dimension_numbers<[1], [0], [0], [1], [0, 0, 1, 1], [], []>} : vector<256x128xf32>, vector<128x128xf32>, vector<256x128xf32> -> vector<256x128xf32>
    %c0_16 = arith.constant 0 : index
    %c0_17 = arith.constant 0 : index
    %12 = vector.load %arg8[%c0_16, %c0_17] : memref<256x128xf32, #tpu.memory_space<vmem>>, vector<256x128xf32>
    tpu.vector_store %arg8[%c0_16, %c0_17], %11 {strides = array<i32>} : memref<256x128xf32, #tpu.memory_space<vmem>>, vector<256x128xf32>,
    %c0_18 = arith.constant 0 : index
    %c1_19 = arith.constant 1 : index
    %c0_20 = arith.constant 0 : index
    %13 = vector.load %arg7[%c0_18, %c1_19, %c0_20] : memref<18x18x128xf32, #tpu.memory_space<vmem>>, vector<16x16x128xf32>
    %14 = vector.shape_cast %13 : vector<16x16x128xf32> to vector<256x128xf32>
    %c0_21 = arith.constant 0 : index
    %c1_22 = arith.constant 1 : index
    %c0_23 = arith.constant 0 : index
    %c0_24 = arith.constant 0 : index
    %15 = vector.load %arg2[%c0_21, %c1_22, %c0_23, %c0_24] : memref<3x3x128x128xf32, #tpu.memory_space<vmem>>, vector<1x1x128x128xf32>
    %16 = vector.shape_cast %15 : vector<1x1x128x128xf32> to vector<128x128xf32>
    %cst_25 = arith.constant dense<0.000000e+00> : vector<256x128xf32>
    %17 = tpu.matmul %14, %16, %cst_25 {dimension_numbers = #tpu.dot_dimension_numbers<[1], [0], [0], [1], [0, 0, 1, 1], [], []>} : vector<256x128xf32>, vector<128x128xf32>, vector<256x128xf32> -> vector<256x128xf32>
    %c0_26 = arith.constant 0 : index
    %c0_27 = arith.constant 0 : index
    %18 = vector.load %arg8[%c0_26, %c0_27] : memref<256x128xf32, #tpu.memory_space<vmem>>, vector<256x128xf32>
    %19 = arith.addf %18, %17 : vector<256x128xf32>
    %c0_28 = arith.constant 0 : index
    %c0_29 = arith.constant 0 : index
    %20 = vector.load %arg8[%c0_28, %c0_29] : memref<256x128xf32, #tpu.memory_space<vmem>>, vector<256x128xf32>
    tpu.vector_store %arg8[%c0_28, %c0_29], %19 {strides = array<i32>} : memref<256x128xf32, #tpu.memory_space<vmem>>, vector<256x128xf32>,
    %c0_30 = arith.constant 0 : index
    %c2 = arith.constant 2 : index
    %c0_31 = arith.constant 0 : index
    %21 = vector.load %arg7[%c0_30, %c2, %c0_31] : memref<18x18x128xf32, #tpu.memory_space<vmem>>, vector<16x16x128xf32>
    %22 = vector.shape_cast %21 : vector<16x16x128xf32> to vector<256x128xf32>
    %c0_32 = arith.constant 0 : index
    %c2_33 = arith.constant 2 : index
    %c0_34 = arith.constant 0 : index
    %c0_35 = arith.constant 0 : index
    %23 = vector.load %arg2[%c0_32, %c2_33, %c0_34, %c0_35] : memref<3x3x128x128xf32, #tpu.memory_space<vmem>>, vector<1x1x128x128xf32>
    %24 = vector.shape_cast %23 : vector<1x1x128x128xf32> to vector<128x128xf32>
    %cst_36 = arith.constant dense<0.000000e+00> : vector<256x128xf32>
    %25 = tpu.matmul %22, %24, %cst_36 {dimension_numbers = #tpu.dot_dimension_numbers<[1], [0], [0], [1], [0, 0, 1, 1], [], []>} : vector<256x128xf32>, vector<128x128xf32>, vector<256x128xf32> -> vector<256x128xf32>
    %c0_37 = arith.constant 0 : index
    %c0_38 = arith.constant 0 : index
    %26 = vector.load %arg8[%c0_37, %c0_38] : memref<256x128xf32, #tpu.memory_space<vmem>>, vector<256x128xf32>
    %27 = arith.addf %26, %25 : vector<256x128xf32>
    %c0_39 = arith.constant 0 : index
    %c0_40 = arith.constant 0 : index
    %28 = vector.load %arg8[%c0_39, %c0_40] : memref<256x128xf32, #tpu.memory_space<vmem>>, vector<256x128xf32>
    tpu.vector_store %arg8[%c0_39, %c0_40], %27 {strides = array<i32>} : memref<256x128xf32, #tpu.memory_space<vmem>>, vector<256x128xf32>,
    %c1_41 = arith.constant 1 : index
    %c0_42 = arith.constant 0 : index
    %c0_43 = arith.constant 0 : index
    %29 = vector.load %arg7[%c1_41, %c0_42, %c0_43] : memref<18x18x128xf32, #tpu.memory_space<vmem>>, vector<16x16x128xf32>
    %30 = vector.shape_cast %29 : vector<16x16x128xf32> to vector<256x128xf32>
    %c1_44 = arith.constant 1 : index
    %c0_45 = arith.constant 0 : index
    %c0_46 = arith.constant 0 : index
    %c0_47 = arith.constant 0 : index
    %31 = vector.load %arg2[%c1_44, %c0_45, %c0_46, %c0_47] : memref<3x3x128x128xf32, #tpu.memory_space<vmem>>, vector<1x1x128x128xf32>
    %32 = vector.shape_cast %31 : vector<1x1x128x128xf32> to vector<128x128xf32>
    %cst_48 = arith.constant dense<0.000000e+00> : vector<256x128xf32>
    %33 = tpu.matmul %30, %32, %cst_48 {dimension_numbers = #tpu.dot_dimension_numbers<[1], [0], [0], [1], [0, 0, 1, 1], [], []>} : vector<256x128xf32>, vector<128x128xf32>, vector<256x128xf32> -> vector<256x128xf32>
    %c0_49 = arith.constant 0 : index
    %c0_50 = arith.constant 0 : index
    %34 = vector.load %arg8[%c0_49, %c0_50] : memref<256x128xf32, #tpu.memory_space<vmem>>, vector<256x128xf32>
    %35 = arith.addf %34, %33 : vector<256x128xf32>
    %c0_51 = arith.constant 0 : index
    %c0_52 = arith.constant 0 : index
    %36 = vector.load %arg8[%c0_51, %c0_52] : memref<256x128xf32, #tpu.memory_space<vmem>>, vector<256x128xf32>
    tpu.vector_store %arg8[%c0_51, %c0_52], %35 {strides = array<i32>} : memref<256x128xf32, #tpu.memory_space<vmem>>, vector<256x128xf32>,
    %c1_53 = arith.constant 1 : index
    %c1_54 = arith.constant 1 : index
    %c0_55 = arith.constant 0 : index
    %37 = vector.load %arg7[%c1_53, %c1_54, %c0_55] : memref<18x18x128xf32, #tpu.memory_space<vmem>>, vector<16x16x128xf32>
    %38 = vector.shape_cast %37 : vector<16x16x128xf32> to vector<256x128xf32>
    %c1_56 = arith.constant 1 : index
    %c1_57 = arith.constant 1 : index
    %c0_58 = arith.constant 0 : index
    %c0_59 = arith.constant 0 : index
    %39 = vector.load %arg2[%c1_56, %c1_57, %c0_58, %c0_59] : memref<3x3x128x128xf32, #tpu.memory_space<vmem>>, vector<1x1x128x128xf32>
    %40 = vector.shape_cast %39 : vector<1x1x128x128xf32> to vector<128x128xf32>
    %cst_60 = arith.constant dense<0.000000e+00> : vector<256x128xf32>
    %41 = tpu.matmul %38, %40, %cst_60 {dimension_numbers = #tpu.dot_dimension_numbers<[1], [0], [0], [1], [0, 0, 1, 1], [], []>} : vector<256x128xf32>, vector<128x128xf32>, vector<256x128xf32> -> vector<256x128xf32>
    %c0_61 = arith.constant 0 : index
    %c0_62 = arith.constant 0 : index
    %42 = vector.load %arg8[%c0_61, %c0_62] : memref<256x128xf32, #tpu.memory_space<vmem>>, vector<256x128xf32>
    %43 = arith.addf %42, %41 : vector<256x128xf32>
    %c0_63 = arith.constant 0 : index
    %c0_64 = arith.constant 0 : index
    %44 = vector.load %arg8[%c0_63, %c0_64] : memref<256x128xf32, #tpu.memory_space<vmem>>, vector<256x128xf32>
    tpu.vector_store %arg8[%c0_63, %c0_64], %43 {strides = array<i32>} : memref<256x128xf32, #tpu.memory_space<vmem>>, vector<256x128xf32>,
    %c1_65 = arith.constant 1 : index
    %c2_66 = arith.constant 2 : index
    %c0_67 = arith.constant 0 : index
    %45 = vector.load %arg7[%c1_65, %c2_66, %c0_67] : memref<18x18x128xf32, #tpu.memory_space<vmem>>, vector<16x16x128xf32>
    %46 = vector.shape_cast %45 : vector<16x16x128xf32> to vector<256x128xf32>
    %c1_68 = arith.constant 1 : index
    %c2_69 = arith.constant 2 : index
    %c0_70 = arith.constant 0 : index
    %c0_71 = arith.constant 0 : index
    %47 = vector.load %arg2[%c1_68, %c2_69, %c0_70, %c0_71] : memref<3x3x128x128xf32, #tpu.memory_space<vmem>>, vector<1x1x128x128xf32>
    %48 = vector.shape_cast %47 : vector<1x1x128x128xf32> to vector<128x128xf32>
    %cst_72 = arith.constant dense<0.000000e+00> : vector<256x128xf32>
    %49 = tpu.matmul %46, %48, %cst_72 {dimension_numbers = #tpu.dot_dimension_numbers<[1], [0], [0], [1], [0, 0, 1, 1], [], []>} : vector<256x128xf32>, vector<128x128xf32>, vector<256x128xf32> -> vector<256x128xf32>
    %c0_73 = arith.constant 0 : index
    %c0_74 = arith.constant 0 : index
    %50 = vector.load %arg8[%c0_73, %c0_74] : memref<256x128xf32, #tpu.memory_space<vmem>>, vector<256x128xf32>
    %51 = arith.addf %50, %49 : vector<256x128xf32>
    %c0_75 = arith.constant 0 : index
    %c0_76 = arith.constant 0 : index
    %52 = vector.load %arg8[%c0_75, %c0_76] : memref<256x128xf32, #tpu.memory_space<vmem>>, vector<256x128xf32>
    tpu.vector_store %arg8[%c0_75, %c0_76], %51 {strides = array<i32>} : memref<256x128xf32, #tpu.memory_space<vmem>>, vector<256x128xf32>,
    %c2_77 = arith.constant 2 : index
    %c0_78 = arith.constant 0 : index
    %c0_79 = arith.constant 0 : index
    %53 = vector.load %arg7[%c2_77, %c0_78, %c0_79] : memref<18x18x128xf32, #tpu.memory_space<vmem>>, vector<16x16x128xf32>
    %54 = vector.shape_cast %53 : vector<16x16x128xf32> to vector<256x128xf32>
    %c2_80 = arith.constant 2 : index
    %c0_81 = arith.constant 0 : index
    %c0_82 = arith.constant 0 : index
    %c0_83 = arith.constant 0 : index
    %55 = vector.load %arg2[%c2_80, %c0_81, %c0_82, %c0_83] : memref<3x3x128x128xf32, #tpu.memory_space<vmem>>, vector<1x1x128x128xf32>
    %56 = vector.shape_cast %55 : vector<1x1x128x128xf32> to vector<128x128xf32>
    %cst_84 = arith.constant dense<0.000000e+00> : vector<256x128xf32>
    %57 = tpu.matmul %54, %56, %cst_84 {dimension_numbers = #tpu.dot_dimension_numbers<[1], [0], [0], [1], [0, 0, 1, 1], [], []>} : vector<256x128xf32>, vector<128x128xf32>, vector<256x128xf32> -> vector<256x128xf32>
    %c0_85 = arith.constant 0 : index
    %c0_86 = arith.constant 0 : index
    %58 = vector.load %arg8[%c0_85, %c0_86] : memref<256x128xf32, #tpu.memory_space<vmem>>, vector<256x128xf32>
    %59 = arith.addf %58, %57 : vector<256x128xf32>
    %c0_87 = arith.constant 0 : index
    %c0_88 = arith.constant 0 : index
    %60 = vector.load %arg8[%c0_87, %c0_88] : memref<256x128xf32, #tpu.memory_space<vmem>>, vector<256x128xf32>
    tpu.vector_store %arg8[%c0_87, %c0_88], %59 {strides = array<i32>} : memref<256x128xf32, #tpu.memory_space<vmem>>, vector<256x128xf32>,
    %c2_89 = arith.constant 2 : index
    %c1_90 = arith.constant 1 : index
    %c0_91 = arith.constant 0 : index
    %61 = vector.load %arg7[%c2_89, %c1_90, %c0_91] : memref<18x18x128xf32, #tpu.memory_space<vmem>>, vector<16x16x128xf32>
    %62 = vector.shape_cast %61 : vector<16x16x128xf32> to vector<256x128xf32>
    %c2_92 = arith.constant 2 : index
    %c1_93 = arith.constant 1 : index
    %c0_94 = arith.constant 0 : index
    %c0_95 = arith.constant 0 : index
    %63 = vector.load %arg2[%c2_92, %c1_93, %c0_94, %c0_95] : memref<3x3x128x128xf32, #tpu.memory_space<vmem>>, vector<1x1x128x128xf32>
    %64 = vector.shape_cast %63 : vector<1x1x128x128xf32> to vector<128x128xf32>
    %cst_96 = arith.constant dense<0.000000e+00> : vector<256x128xf32>
    %65 = tpu.matmul %62, %64, %cst_96 {dimension_numbers = #tpu.dot_dimension_numbers<[1], [0], [0], [1], [0, 0, 1, 1], [], []>} : vector<256x128xf32>, vector<128x128xf32>, vector<256x128xf32> -> vector<256x128xf32>
    %c0_97 = arith.constant 0 : index
    %c0_98 = arith.constant 0 : index
    %66 = vector.load %arg8[%c0_97, %c0_98] : memref<256x128xf32, #tpu.memory_space<vmem>>, vector<256x128xf32>
    %67 = arith.addf %66, %65 : vector<256x128xf32>
    %c0_99 = arith.constant 0 : index
    %c0_100 = arith.constant 0 : index
    %68 = vector.load %arg8[%c0_99, %c0_100] : memref<256x128xf32, #tpu.memory_space<vmem>>, vector<256x128xf32>
    tpu.vector_store %arg8[%c0_99, %c0_100], %67 {strides = array<i32>} : memref<256x128xf32, #tpu.memory_space<vmem>>, vector<256x128xf32>,
    %c2_101 = arith.constant 2 : index
    %c2_102 = arith.constant 2 : index
    %c0_103 = arith.constant 0 : index
    %69 = vector.load %arg7[%c2_101, %c2_102, %c0_103] : memref<18x18x128xf32, #tpu.memory_space<vmem>>, vector<16x16x128xf32>
    %70 = vector.shape_cast %69 : vector<16x16x128xf32> to vector<256x128xf32>
    %c2_104 = arith.constant 2 : index
    %c2_105 = arith.constant 2 : index
    %c0_106 = arith.constant 0 : index
    %c0_107 = arith.constant 0 : index
    %71 = vector.load %arg2[%c2_104, %c2_105, %c0_106, %c0_107] : memref<3x3x128x128xf32, #tpu.memory_space<vmem>>, vector<1x1x128x128xf32>
    %72 = vector.shape_cast %71 : vector<1x1x128x128xf32> to vector<128x128xf32>
    %cst_108 = arith.constant dense<0.000000e+00> : vector<256x128xf32>
    %73 = tpu.matmul %70, %72, %cst_108 {dimension_numbers = #tpu.dot_dimension_numbers<[1], [0], [0], [1], [0, 0, 1, 1], [], []>} : vector<256x128xf32>, vector<128x128xf32>, vector<256x128xf32> -> vector<256x128xf32>
    %c0_109 = arith.constant 0 : index
    %c0_110 = arith.constant 0 : index
    %74 = vector.load %arg8[%c0_109, %c0_110] : memref<256x128xf32, #tpu.memory_space<vmem>>, vector<256x128xf32>
    %75 = arith.addf %74, %73 : vector<256x128xf32>
    %c0_111 = arith.constant 0 : index
    %c0_112 = arith.constant 0 : index
    %76 = vector.load %arg8[%c0_111, %c0_112] : memref<256x128xf32, #tpu.memory_space<vmem>>, vector<256x128xf32>
    tpu.vector_store %arg8[%c0_111, %c0_112], %75 {strides = array<i32>} : memref<256x128xf32, #tpu.memory_space<vmem>>, vector<256x128xf32>,
    %c0_113 = arith.constant 0 : index
    %c0_114 = arith.constant 0 : index
    %77 = vector.load %arg8[%c0_113, %c0_114] : memref<256x128xf32, #tpu.memory_space<vmem>>, vector<256x128xf32>
    %78 = vector.shape_cast %77 : vector<256x128xf32> to vector<16x16x128xf32>
    %c0_115 = arith.constant 0 : index
    %c0_116 = arith.constant 0 : index
    %c0_117 = arith.constant 0 : index
    %c0_118 = arith.constant 0 : index
    %79 = vector.load %arg5[%c0_115, %c0_116, %c0_117, %c0_118] : memref<1x16x16x128xf32, #tpu.memory_space<vmem>>, vector<1x16x16x128xf32>
    %80 = vector.shape_cast %79 : vector<1x16x16x128xf32> to vector<16x16x128xf32>
    %81 = vector.shape_cast %78 : vector<16x16x128xf32> to vector<1x16x16x128xf32>
    tpu.vector_store %arg5[%c0_115, %c0_116, %c0_117, %c0_118], %81 {strides = array<i32>} : memref<1x16x16x128xf32, #tpu.memory_space<vmem>>, vector<1x16x16x128xf32>,
    %cst_119 = arith.constant dense<0.000000e+00> : vector<128xf32>
    %82 = vector.multi_reduction <add>, %77, %cst_119 [0] : vector<256x128xf32> to vector<128xf32>
    %83 = vector.shape_cast %82 : vector<128xf32> to vector<1x128xf32>
    %cst_120 = arith.constant 3.906250e-03 : f32
    %84 = vector.broadcast %cst_120 : f32 to vector<1x128xf32>
    %85 = arith.mulf %83, %84 : vector<1x128xf32>
    %86 = vector.broadcast %85 : vector<1x128xf32> to vector<256x128xf32>
    %87 = arith.subf %77, %86 : vector<256x128xf32>
    %88 = arith.mulf %87, %87 : vector<256x128xf32>
    %cst_121 = arith.constant dense<0.000000e+00> : vector<128xf32>
    %89 = vector.multi_reduction <add>, %88, %cst_121 [0] : vector<256x128xf32> to vector<128xf32>
    %90 = vector.shape_cast %89 : vector<128xf32> to vector<1x128xf32>
    %91 = tpu.concatenate %83, %90 in 0 : vector<1x128xf32>, vector<1x128xf32> -> vector<2x128xf32>
    %c0_122 = arith.constant 0 : index
    %c0_123 = arith.constant 0 : index
    %c0_124 = arith.constant 0 : index
    %92 = vector.load %arg6[%c0_122, %c0_123, %c0_124] : memref<1x2x128xf32, #tpu.memory_space<vmem>>, vector<1x2x128xf32>
    %93 = vector.shape_cast %92 : vector<1x2x128xf32> to vector<2x128xf32>
    %94 = vector.shape_cast %91 : vector<2x128xf32> to vector<1x2x128xf32>
    tpu.vector_store %arg6[%c0_122, %c0_123, %c0_124], %94 {strides = array<i32>} : memref<1x2x128xf32, #tpu.memory_space<vmem>>, vector<1x2x128xf32>,
    return
  }
  func.func @transform_0(%arg0: i32) -> (i32, i32, i32, i32) {
    %c0_i32 = arith.constant 0 : i32
    %c0_i32_0 = arith.constant 0 : i32
    %c0_i32_1 = arith.constant 0 : i32
    %c0_i32_2 = arith.constant 0 : i32
    return %arg0, %c0_i32, %c0_i32_0, %c0_i32_1 : i32, i32, i32, i32
  }
  func.func @transform_1(%arg0: i32) -> (i32, i32, i32, i32) {
    %c0_i32 = arith.constant 0 : i32
    %c0_i32_0 = arith.constant 0 : i32
    %c0_i32_1 = arith.constant 0 : i32
    %c0_i32_2 = arith.constant 0 : i32
    %c0_i32_3 = arith.constant 0 : i32
    return %c0_i32, %c0_i32_0, %c0_i32_1, %c0_i32_2 : i32, i32, i32, i32
  }
  func.func @transform_2(%arg0: i32) -> (i32, i32) {
    %c0_i32 = arith.constant 0 : i32
    %c0_i32_0 = arith.constant 0 : i32
    %c0_i32_1 = arith.constant 0 : i32
    return %c0_i32, %c0_i32_0 : i32, i32
  }
  func.func @transform_3(%arg0: i32) -> (i32, i32) {
    %c0_i32 = arith.constant 0 : i32
    %c0_i32_0 = arith.constant 0 : i32
    %c0_i32_1 = arith.constant 0 : i32
    return %c0_i32, %c0_i32_0 : i32, i32
  }
  func.func @transform_4(%arg0: i32) -> (i32, i32, i32, i32) {
    %c0_i32 = arith.constant 0 : i32
    %c0_i32_0 = arith.constant 0 : i32
    %c0_i32_1 = arith.constant 0 : i32
    %c0_i32_2 = arith.constant 0 : i32
    return %arg0, %c0_i32, %c0_i32_0, %c0_i32_1 : i32, i32, i32, i32
  }
  func.func @transform_5(%arg0: i32) -> (i32, i32, i32) {
    %c0_i32 = arith.constant 0 : i32
    %c0_i32_0 = arith.constant 0 : i32
    %c0_i32_1 = arith.constant 0 : i32
    return %arg0, %c0_i32, %c0_i32_0 : i32, i32, i32
  }
}

module attributes {stable_mosaic.version = 11 : i64} {
  func.func @_bn_residual_relu_kernel(%arg0: i32, %arg1: memref<1x16x16x128xf32, #tpu.memory_space<vmem>>, %arg2: memref<1x128xf32, #tpu.memory_space<vmem>>, %arg3: memref<1x128xf32, #tpu.memory_space<vmem>>, %arg4: memref<1x16x16x128xf32, #tpu.memory_space<vmem>>, %arg5: memref<1x16x16x128xf32, #tpu.memory_space<vmem>>) attributes {dimension_semantics = [#tpu.dimension_semantics<parallel>], iteration_bounds = array<i64: 2>, scalar_prefetch = 0 : i64, scratch_operands = 0 : i64, tpu.core_type = #tpu.core_type<tc>, window_params = [{transform_indices = @transform_0, window_bounds = array<i64: 1, 16, 16, 128>}, {pipeline_mode = #tpu.pipeline_mode<synchronous>, transform_indices = @transform_1, window_bounds = array<i64: 1, 128>}, {pipeline_mode = #tpu.pipeline_mode<synchronous>, transform_indices = @transform_2, window_bounds = array<i64: 1, 128>}, {transform_indices = @transform_3, window_bounds = array<i64: 1, 16, 16, 128>}, {transform_indices = @transform_4, window_bounds = array<i64: 1, 16, 16, 128>}]} {
    %c0 = arith.constant 0 : index
    %c0_0 = arith.constant 0 : index
    %c0_1 = arith.constant 0 : index
    %c0_2 = arith.constant 0 : index
    %0 = vector.load %arg1[%c0, %c0_0, %c0_1, %c0_2] : memref<1x16x16x128xf32, #tpu.memory_space<vmem>>, vector<1x16x16x128xf32>
    %1 = vector.shape_cast %0 : vector<1x16x16x128xf32> to vector<16x16x128xf32>
    %2 = vector.shape_cast %1 : vector<16x16x128xf32> to vector<256x128xf32>
    %c0_3 = arith.constant 0 : index
    %c0_4 = arith.constant 0 : index
    %c0_5 = arith.constant 0 : index
    %c0_6 = arith.constant 0 : index
    %3 = vector.load %arg4[%c0_3, %c0_4, %c0_5, %c0_6] : memref<1x16x16x128xf32, #tpu.memory_space<vmem>>, vector<1x16x16x128xf32>
    %4 = vector.shape_cast %3 : vector<1x16x16x128xf32> to vector<16x16x128xf32>
    %5 = vector.shape_cast %4 : vector<16x16x128xf32> to vector<256x128xf32>
    %c0_7 = arith.constant 0 : index
    %c0_8 = arith.constant 0 : index
    %6 = vector.load %arg2[%c0_7, %c0_8] : memref<1x128xf32, #tpu.memory_space<vmem>>, vector<1x128xf32>
    %7 = vector.broadcast %6 : vector<1x128xf32> to vector<256x128xf32>
    %8 = arith.mulf %2, %7 : vector<256x128xf32>
    %c0_9 = arith.constant 0 : index
    %c0_10 = arith.constant 0 : index
    %9 = vector.load %arg3[%c0_9, %c0_10] : memref<1x128xf32, #tpu.memory_space<vmem>>, vector<1x128xf32>
    %10 = vector.broadcast %9 : vector<1x128xf32> to vector<256x128xf32>
    %11 = arith.addf %8, %10 : vector<256x128xf32>
    %12 = arith.addf %11, %5 : vector<256x128xf32>
    %cst = arith.constant 0.000000e+00 : f32
    %13 = vector.broadcast %cst : f32 to vector<256x128xf32>
    %14 = arith.maximumf %12, %13 : vector<256x128xf32>
    %15 = vector.shape_cast %14 : vector<256x128xf32> to vector<16x16x128xf32>
    %c0_11 = arith.constant 0 : index
    %c0_12 = arith.constant 0 : index
    %c0_13 = arith.constant 0 : index
    %c0_14 = arith.constant 0 : index
    %16 = vector.load %arg5[%c0_11, %c0_12, %c0_13, %c0_14] : memref<1x16x16x128xf32, #tpu.memory_space<vmem>>, vector<1x16x16x128xf32>
    %17 = vector.shape_cast %16 : vector<1x16x16x128xf32> to vector<16x16x128xf32>
    %18 = vector.shape_cast %15 : vector<16x16x128xf32> to vector<1x16x16x128xf32>
    tpu.vector_store %arg5[%c0_11, %c0_12, %c0_13, %c0_14], %18 {strides = array<i32>} : memref<1x16x16x128xf32, #tpu.memory_space<vmem>>, vector<1x16x16x128xf32>,
    return
  }
  func.func @transform_0(%arg0: i32) -> (i32, i32, i32, i32) {
    %c0_i32 = arith.constant 0 : i32
    %c0_i32_0 = arith.constant 0 : i32
    %c0_i32_1 = arith.constant 0 : i32
    %c0_i32_2 = arith.constant 0 : i32
    return %arg0, %c0_i32, %c0_i32_0, %c0_i32_1 : i32, i32, i32, i32
  }
  func.func @transform_1(%arg0: i32) -> (i32, i32) {
    %c0_i32 = arith.constant 0 : i32
    %c0_i32_0 = arith.constant 0 : i32
    %c0_i32_1 = arith.constant 0 : i32
    return %c0_i32, %c0_i32_0 : i32, i32
  }
  func.func @transform_2(%arg0: i32) -> (i32, i32) {
    %c0_i32 = arith.constant 0 : i32
    %c0_i32_0 = arith.constant 0 : i32
    %c0_i32_1 = arith.constant 0 : i32
    return %c0_i32, %c0_i32_0 : i32, i32
  }
  func.func @transform_3(%arg0: i32) -> (i32, i32, i32, i32) {
    %c0_i32 = arith.constant 0 : i32
    %c0_i32_0 = arith.constant 0 : i32
    %c0_i32_1 = arith.constant 0 : i32
    %c0_i32_2 = arith.constant 0 : i32
    return %arg0, %c0_i32, %c0_i32_0, %c0_i32_1 : i32, i32, i32, i32
  }
  func.func @transform_4(%arg0: i32) -> (i32, i32, i32, i32) {
    %c0_i32 = arith.constant 0 : i32
    %c0_i32_0 = arith.constant 0 : i32
    %c0_i32_1 = arith.constant 0 : i32
    %c0_i32_2 = arith.constant 0 : i32
    return %arg0, %c0_i32, %c0_i32_0, %c0_i32_1 : i32, i32, i32, i32
  }
}

module attributes {stable_mosaic.version = 11 : i64} {
  func.func @_conv3x3_stats_kernel(%arg0: i32, %arg1: memref<1x16x16x128xf32, #tpu.memory_space<vmem>>, %arg2: memref<3x3x128x128xf32, #tpu.memory_space<vmem>>, %arg3: memref<1x128xf32, #tpu.memory_space<vmem>>, %arg4: memref<1x128xf32, #tpu.memory_space<vmem>>, %arg5: memref<1x16x16x128xf32, #tpu.memory_space<vmem>>, %arg6: memref<1x2x128xf32, #tpu.memory_space<vmem>>, %arg7: memref<18x18x128xf32, #tpu.memory_space<vmem>>, %arg8: memref<256x128xf32, #tpu.memory_space<vmem>>) attributes {dimension_semantics = [#tpu.dimension_semantics<parallel>], iteration_bounds = array<i64: 2>, scalar_prefetch = 0 : i64, scratch_operands = 2 : i64, tpu.core_type = #tpu.core_type<tc>, window_params = [{transform_indices = @transform_0, window_bounds = array<i64: 1, 16, 16, 128>}, {pipeline_mode = #tpu.pipeline_mode<synchronous>, transform_indices = @transform_1, window_bounds = array<i64: 3, 3, 128, 128>}, {pipeline_mode = #tpu.pipeline_mode<synchronous>, transform_indices = @transform_2, window_bounds = array<i64: 1, 128>}, {pipeline_mode = #tpu.pipeline_mode<synchronous>, transform_indices = @transform_3, window_bounds = array<i64: 1, 128>}, {transform_indices = @transform_4, window_bounds = array<i64: 1, 16, 16, 128>}, {transform_indices = @transform_5, window_bounds = array<i64: 1, 2, 128>}]} {
    %c0 = arith.constant 0 : index
    %c0_0 = arith.constant 0 : index
    %c0_1 = arith.constant 0 : index
    %c0_2 = arith.constant 0 : index
    %0 = vector.load %arg1[%c0, %c0_0, %c0_1, %c0_2] : memref<1x16x16x128xf32, #tpu.memory_space<vmem>>, vector<1x16x16x128xf32>
    %1 = vector.shape_cast %0 : vector<1x16x16x128xf32> to vector<16x16x128xf32>
    %2 = vector.shape_cast %1 : vector<16x16x128xf32> to vector<256x128xf32>
    %c0_3 = arith.constant 0 : index
    %c0_4 = arith.constant 0 : index
    %3 = vector.load %arg3[%c0_3, %c0_4] : memref<1x128xf32, #tpu.memory_space<vmem>>, vector<1x128xf32>
    %4 = vector.broadcast %3 : vector<1x128xf32> to vector<256x128xf32>
    %5 = arith.mulf %2, %4 : vector<256x128xf32>
    %c0_5 = arith.constant 0 : index
    %c0_6 = arith.constant 0 : index
    %6 = vector.load %arg4[%c0_5, %c0_6] : memref<1x128xf32, #tpu.memory_space<vmem>>, vector<1x128xf32>
    %7 = vector.broadcast %6 : vector<1x128xf32> to vector<256x128xf32>
    %8 = arith.addf %5, %7 : vector<256x128xf32>
    %cst = arith.constant 0.000000e+00 : f32
    %9 = vector.broadcast %cst : f32 to vector<256x128xf32>
    %10 = arith.maximumf %8, %9 : vector<256x128xf32>
    %cst_7 = arith.constant 0.000000e+00 : f32
    %11 = vector.broadcast %cst_7 : f32 to vector<18x18x128xf32>
    %c0_8 = arith.constant 0 : index
    %c0_9 = arith.constant 0 : index
    %c0_10 = arith.constant 0 : index
    %12 = vector.load %arg7[%c0_8, %c0_9, %c0_10] : memref<18x18x128xf32, #tpu.memory_space<vmem>>, vector<18x18x128xf32>
    tpu.vector_store %arg7[%c0_8, %c0_9, %c0_10], %11 {strides = array<i32>} : memref<18x18x128xf32, #tpu.memory_space<vmem>>, vector<18x18x128xf32>,
    %13 = vector.shape_cast %10 : vector<256x128xf32> to vector<16x16x128xf32>
    %c1 = arith.constant 1 : index
    %c1_11 = arith.constant 1 : index
    %c0_12 = arith.constant 0 : index
    %14 = vector.load %arg7[%c1, %c1_11, %c0_12] : memref<18x18x128xf32, #tpu.memory_space<vmem>>, vector<16x16x128xf32>
    tpu.vector_store %arg7[%c1, %c1_11, %c0_12], %13 {strides = array<i32>} : memref<18x18x128xf32, #tpu.memory_space<vmem>>, vector<16x16x128xf32>,
    %c0_13 = arith.constant 0 : index
    %c0_14 = arith.constant 0 : index
    %c0_15 = arith.constant 0 : index
    %15 = vector.load %arg7[%c0_13, %c0_14, %c0_15] : memref<18x18x128xf32, #tpu.memory_space<vmem>>, vector<16x16x128xf32>
    %16 = vector.shape_cast %15 : vector<16x16x128xf32> to vector<256x128xf32>
    %c0_16 = arith.constant 0 : index
    %c0_17 = arith.constant 0 : index
    %c0_18 = arith.constant 0 : index
    %c0_19 = arith.constant 0 : index
    %17 = vector.load %arg2[%c0_16, %c0_17, %c0_18, %c0_19] : memref<3x3x128x128xf32, #tpu.memory_space<vmem>>, vector<1x1x128x128xf32>
    %18 = vector.shape_cast %17 : vector<1x1x128x128xf32> to vector<128x128xf32>
    %cst_20 = arith.constant dense<0.000000e+00> : vector<256x128xf32>
    %19 = tpu.matmul %16, %18, %cst_20 {dimension_numbers = #tpu.dot_dimension_numbers<[1], [0], [0], [1], [0, 0, 1, 1], [], []>} : vector<256x128xf32>, vector<128x128xf32>, vector<256x128xf32> -> vector<256x128xf32>
    %c0_21 = arith.constant 0 : index
    %c0_22 = arith.constant 0 : index
    %20 = vector.load %arg8[%c0_21, %c0_22] : memref<256x128xf32, #tpu.memory_space<vmem>>, vector<256x128xf32>
    tpu.vector_store %arg8[%c0_21, %c0_22], %19 {strides = array<i32>} : memref<256x128xf32, #tpu.memory_space<vmem>>, vector<256x128xf32>,
    %c0_23 = arith.constant 0 : index
    %c1_24 = arith.constant 1 : index
    %c0_25 = arith.constant 0 : index
    %21 = vector.load %arg7[%c0_23, %c1_24, %c0_25] : memref<18x18x128xf32, #tpu.memory_space<vmem>>, vector<16x16x128xf32>
    %22 = vector.shape_cast %21 : vector<16x16x128xf32> to vector<256x128xf32>
    %c0_26 = arith.constant 0 : index
    %c1_27 = arith.constant 1 : index
    %c0_28 = arith.constant 0 : index
    %c0_29 = arith.constant 0 : index
    %23 = vector.load %arg2[%c0_26, %c1_27, %c0_28, %c0_29] : memref<3x3x128x128xf32, #tpu.memory_space<vmem>>, vector<1x1x128x128xf32>
    %24 = vector.shape_cast %23 : vector<1x1x128x128xf32> to vector<128x128xf32>
    %cst_30 = arith.constant dense<0.000000e+00> : vector<256x128xf32>
    %25 = tpu.matmul %22, %24, %cst_30 {dimension_numbers = #tpu.dot_dimension_numbers<[1], [0], [0], [1], [0, 0, 1, 1], [], []>} : vector<256x128xf32>, vector<128x128xf32>, vector<256x128xf32> -> vector<256x128xf32>
    %c0_31 = arith.constant 0 : index
    %c0_32 = arith.constant 0 : index
    %26 = vector.load %arg8[%c0_31, %c0_32] : memref<256x128xf32, #tpu.memory_space<vmem>>, vector<256x128xf32>
    %27 = arith.addf %26, %25 : vector<256x128xf32>
    %c0_33 = arith.constant 0 : index
    %c0_34 = arith.constant 0 : index
    %28 = vector.load %arg8[%c0_33, %c0_34] : memref<256x128xf32, #tpu.memory_space<vmem>>, vector<256x128xf32>
    tpu.vector_store %arg8[%c0_33, %c0_34], %27 {strides = array<i32>} : memref<256x128xf32, #tpu.memory_space<vmem>>, vector<256x128xf32>,
    %c0_35 = arith.constant 0 : index
    %c2 = arith.constant 2 : index
    %c0_36 = arith.constant 0 : index
    %29 = vector.load %arg7[%c0_35, %c2, %c0_36] : memref<18x18x128xf32, #tpu.memory_space<vmem>>, vector<16x16x128xf32>
    %30 = vector.shape_cast %29 : vector<16x16x128xf32> to vector<256x128xf32>
    %c0_37 = arith.constant 0 : index
    %c2_38 = arith.constant 2 : index
    %c0_39 = arith.constant 0 : index
    %c0_40 = arith.constant 0 : index
    %31 = vector.load %arg2[%c0_37, %c2_38, %c0_39, %c0_40] : memref<3x3x128x128xf32, #tpu.memory_space<vmem>>, vector<1x1x128x128xf32>
    %32 = vector.shape_cast %31 : vector<1x1x128x128xf32> to vector<128x128xf32>
    %cst_41 = arith.constant dense<0.000000e+00> : vector<256x128xf32>
    %33 = tpu.matmul %30, %32, %cst_41 {dimension_numbers = #tpu.dot_dimension_numbers<[1], [0], [0], [1], [0, 0, 1, 1], [], []>} : vector<256x128xf32>, vector<128x128xf32>, vector<256x128xf32> -> vector<256x128xf32>
    %c0_42 = arith.constant 0 : index
    %c0_43 = arith.constant 0 : index
    %34 = vector.load %arg8[%c0_42, %c0_43] : memref<256x128xf32, #tpu.memory_space<vmem>>, vector<256x128xf32>
    %35 = arith.addf %34, %33 : vector<256x128xf32>
    %c0_44 = arith.constant 0 : index
    %c0_45 = arith.constant 0 : index
    %36 = vector.load %arg8[%c0_44, %c0_45] : memref<256x128xf32, #tpu.memory_space<vmem>>, vector<256x128xf32>
    tpu.vector_store %arg8[%c0_44, %c0_45], %35 {strides = array<i32>} : memref<256x128xf32, #tpu.memory_space<vmem>>, vector<256x128xf32>,
    %c1_46 = arith.constant 1 : index
    %c0_47 = arith.constant 0 : index
    %c0_48 = arith.constant 0 : index
    %37 = vector.load %arg7[%c1_46, %c0_47, %c0_48] : memref<18x18x128xf32, #tpu.memory_space<vmem>>, vector<16x16x128xf32>
    %38 = vector.shape_cast %37 : vector<16x16x128xf32> to vector<256x128xf32>
    %c1_49 = arith.constant 1 : index
    %c0_50 = arith.constant 0 : index
    %c0_51 = arith.constant 0 : index
    %c0_52 = arith.constant 0 : index
    %39 = vector.load %arg2[%c1_49, %c0_50, %c0_51, %c0_52] : memref<3x3x128x128xf32, #tpu.memory_space<vmem>>, vector<1x1x128x128xf32>
    %40 = vector.shape_cast %39 : vector<1x1x128x128xf32> to vector<128x128xf32>
    %cst_53 = arith.constant dense<0.000000e+00> : vector<256x128xf32>
    %41 = tpu.matmul %38, %40, %cst_53 {dimension_numbers = #tpu.dot_dimension_numbers<[1], [0], [0], [1], [0, 0, 1, 1], [], []>} : vector<256x128xf32>, vector<128x128xf32>, vector<256x128xf32> -> vector<256x128xf32>
    %c0_54 = arith.constant 0 : index
    %c0_55 = arith.constant 0 : index
    %42 = vector.load %arg8[%c0_54, %c0_55] : memref<256x128xf32, #tpu.memory_space<vmem>>, vector<256x128xf32>
    %43 = arith.addf %42, %41 : vector<256x128xf32>
    %c0_56 = arith.constant 0 : index
    %c0_57 = arith.constant 0 : index
    %44 = vector.load %arg8[%c0_56, %c0_57] : memref<256x128xf32, #tpu.memory_space<vmem>>, vector<256x128xf32>
    tpu.vector_store %arg8[%c0_56, %c0_57], %43 {strides = array<i32>} : memref<256x128xf32, #tpu.memory_space<vmem>>, vector<256x128xf32>,
    %c1_58 = arith.constant 1 : index
    %c1_59 = arith.constant 1 : index
    %c0_60 = arith.constant 0 : index
    %45 = vector.load %arg7[%c1_58, %c1_59, %c0_60] : memref<18x18x128xf32, #tpu.memory_space<vmem>>, vector<16x16x128xf32>
    %46 = vector.shape_cast %45 : vector<16x16x128xf32> to vector<256x128xf32>
    %c1_61 = arith.constant 1 : index
    %c1_62 = arith.constant 1 : index
    %c0_63 = arith.constant 0 : index
    %c0_64 = arith.constant 0 : index
    %47 = vector.load %arg2[%c1_61, %c1_62, %c0_63, %c0_64] : memref<3x3x128x128xf32, #tpu.memory_space<vmem>>, vector<1x1x128x128xf32>
    %48 = vector.shape_cast %47 : vector<1x1x128x128xf32> to vector<128x128xf32>
    %cst_65 = arith.constant dense<0.000000e+00> : vector<256x128xf32>
    %49 = tpu.matmul %46, %48, %cst_65 {dimension_numbers = #tpu.dot_dimension_numbers<[1], [0], [0], [1], [0, 0, 1, 1], [], []>} : vector<256x128xf32>, vector<128x128xf32>, vector<256x128xf32> -> vector<256x128xf32>
    %c0_66 = arith.constant 0 : index
    %c0_67 = arith.constant 0 : index
    %50 = vector.load %arg8[%c0_66, %c0_67] : memref<256x128xf32, #tpu.memory_space<vmem>>, vector<256x128xf32>
    %51 = arith.addf %50, %49 : vector<256x128xf32>
    %c0_68 = arith.constant 0 : index
    %c0_69 = arith.constant 0 : index
    %52 = vector.load %arg8[%c0_68, %c0_69] : memref<256x128xf32, #tpu.memory_space<vmem>>, vector<256x128xf32>
    tpu.vector_store %arg8[%c0_68, %c0_69], %51 {strides = array<i32>} : memref<256x128xf32, #tpu.memory_space<vmem>>, vector<256x128xf32>,
    %c1_70 = arith.constant 1 : index
    %c2_71 = arith.constant 2 : index
    %c0_72 = arith.constant 0 : index
    %53 = vector.load %arg7[%c1_70, %c2_71, %c0_72] : memref<18x18x128xf32, #tpu.memory_space<vmem>>, vector<16x16x128xf32>
    %54 = vector.shape_cast %53 : vector<16x16x128xf32> to vector<256x128xf32>
    %c1_73 = arith.constant 1 : index
    %c2_74 = arith.constant 2 : index
    %c0_75 = arith.constant 0 : index
    %c0_76 = arith.constant 0 : index
    %55 = vector.load %arg2[%c1_73, %c2_74, %c0_75, %c0_76] : memref<3x3x128x128xf32, #tpu.memory_space<vmem>>, vector<1x1x128x128xf32>
    %56 = vector.shape_cast %55 : vector<1x1x128x128xf32> to vector<128x128xf32>
    %cst_77 = arith.constant dense<0.000000e+00> : vector<256x128xf32>
    %57 = tpu.matmul %54, %56, %cst_77 {dimension_numbers = #tpu.dot_dimension_numbers<[1], [0], [0], [1], [0, 0, 1, 1], [], []>} : vector<256x128xf32>, vector<128x128xf32>, vector<256x128xf32> -> vector<256x128xf32>
    %c0_78 = arith.constant 0 : index
    %c0_79 = arith.constant 0 : index
    %58 = vector.load %arg8[%c0_78, %c0_79] : memref<256x128xf32, #tpu.memory_space<vmem>>, vector<256x128xf32>
    %59 = arith.addf %58, %57 : vector<256x128xf32>
    %c0_80 = arith.constant 0 : index
    %c0_81 = arith.constant 0 : index
    %60 = vector.load %arg8[%c0_80, %c0_81] : memref<256x128xf32, #tpu.memory_space<vmem>>, vector<256x128xf32>
    tpu.vector_store %arg8[%c0_80, %c0_81], %59 {strides = array<i32>} : memref<256x128xf32, #tpu.memory_space<vmem>>, vector<256x128xf32>,
    %c2_82 = arith.constant 2 : index
    %c0_83 = arith.constant 0 : index
    %c0_84 = arith.constant 0 : index
    %61 = vector.load %arg7[%c2_82, %c0_83, %c0_84] : memref<18x18x128xf32, #tpu.memory_space<vmem>>, vector<16x16x128xf32>
    %62 = vector.shape_cast %61 : vector<16x16x128xf32> to vector<256x128xf32>
    %c2_85 = arith.constant 2 : index
    %c0_86 = arith.constant 0 : index
    %c0_87 = arith.constant 0 : index
    %c0_88 = arith.constant 0 : index
    %63 = vector.load %arg2[%c2_85, %c0_86, %c0_87, %c0_88] : memref<3x3x128x128xf32, #tpu.memory_space<vmem>>, vector<1x1x128x128xf32>
    %64 = vector.shape_cast %63 : vector<1x1x128x128xf32> to vector<128x128xf32>
    %cst_89 = arith.constant dense<0.000000e+00> : vector<256x128xf32>
    %65 = tpu.matmul %62, %64, %cst_89 {dimension_numbers = #tpu.dot_dimension_numbers<[1], [0], [0], [1], [0, 0, 1, 1], [], []>} : vector<256x128xf32>, vector<128x128xf32>, vector<256x128xf32> -> vector<256x128xf32>
    %c0_90 = arith.constant 0 : index
    %c0_91 = arith.constant 0 : index
    %66 = vector.load %arg8[%c0_90, %c0_91] : memref<256x128xf32, #tpu.memory_space<vmem>>, vector<256x128xf32>
    %67 = arith.addf %66, %65 : vector<256x128xf32>
    %c0_92 = arith.constant 0 : index
    %c0_93 = arith.constant 0 : index
    %68 = vector.load %arg8[%c0_92, %c0_93] : memref<256x128xf32, #tpu.memory_space<vmem>>, vector<256x128xf32>
    tpu.vector_store %arg8[%c0_92, %c0_93], %67 {strides = array<i32>} : memref<256x128xf32, #tpu.memory_space<vmem>>, vector<256x128xf32>,
    %c2_94 = arith.constant 2 : index
    %c1_95 = arith.constant 1 : index
    %c0_96 = arith.constant 0 : index
    %69 = vector.load %arg7[%c2_94, %c1_95, %c0_96] : memref<18x18x128xf32, #tpu.memory_space<vmem>>, vector<16x16x128xf32>
    %70 = vector.shape_cast %69 : vector<16x16x128xf32> to vector<256x128xf32>
    %c2_97 = arith.constant 2 : index
    %c1_98 = arith.constant 1 : index
    %c0_99 = arith.constant 0 : index
    %c0_100 = arith.constant 0 : index
    %71 = vector.load %arg2[%c2_97, %c1_98, %c0_99, %c0_100] : memref<3x3x128x128xf32, #tpu.memory_space<vmem>>, vector<1x1x128x128xf32>
    %72 = vector.shape_cast %71 : vector<1x1x128x128xf32> to vector<128x128xf32>
    %cst_101 = arith.constant dense<0.000000e+00> : vector<256x128xf32>
    %73 = tpu.matmul %70, %72, %cst_101 {dimension_numbers = #tpu.dot_dimension_numbers<[1], [0], [0], [1], [0, 0, 1, 1], [], []>} : vector<256x128xf32>, vector<128x128xf32>, vector<256x128xf32> -> vector<256x128xf32>
    %c0_102 = arith.constant 0 : index
    %c0_103 = arith.constant 0 : index
    %74 = vector.load %arg8[%c0_102, %c0_103] : memref<256x128xf32, #tpu.memory_space<vmem>>, vector<256x128xf32>
    %75 = arith.addf %74, %73 : vector<256x128xf32>
    %c0_104 = arith.constant 0 : index
    %c0_105 = arith.constant 0 : index
    %76 = vector.load %arg8[%c0_104, %c0_105] : memref<256x128xf32, #tpu.memory_space<vmem>>, vector<256x128xf32>
    tpu.vector_store %arg8[%c0_104, %c0_105], %75 {strides = array<i32>} : memref<256x128xf32, #tpu.memory_space<vmem>>, vector<256x128xf32>,
    %c2_106 = arith.constant 2 : index
    %c2_107 = arith.constant 2 : index
    %c0_108 = arith.constant 0 : index
    %77 = vector.load %arg7[%c2_106, %c2_107, %c0_108] : memref<18x18x128xf32, #tpu.memory_space<vmem>>, vector<16x16x128xf32>
    %78 = vector.shape_cast %77 : vector<16x16x128xf32> to vector<256x128xf32>
    %c2_109 = arith.constant 2 : index
    %c2_110 = arith.constant 2 : index
    %c0_111 = arith.constant 0 : index
    %c0_112 = arith.constant 0 : index
    %79 = vector.load %arg2[%c2_109, %c2_110, %c0_111, %c0_112] : memref<3x3x128x128xf32, #tpu.memory_space<vmem>>, vector<1x1x128x128xf32>
    %80 = vector.shape_cast %79 : vector<1x1x128x128xf32> to vector<128x128xf32>
    %cst_113 = arith.constant dense<0.000000e+00> : vector<256x128xf32>
    %81 = tpu.matmul %78, %80, %cst_113 {dimension_numbers = #tpu.dot_dimension_numbers<[1], [0], [0], [1], [0, 0, 1, 1], [], []>} : vector<256x128xf32>, vector<128x128xf32>, vector<256x128xf32> -> vector<256x128xf32>
    %c0_114 = arith.constant 0 : index
    %c0_115 = arith.constant 0 : index
    %82 = vector.load %arg8[%c0_114, %c0_115] : memref<256x128xf32, #tpu.memory_space<vmem>>, vector<256x128xf32>
    %83 = arith.addf %82, %81 : vector<256x128xf32>
    %c0_116 = arith.constant 0 : index
    %c0_117 = arith.constant 0 : index
    %84 = vector.load %arg8[%c0_116, %c0_117] : memref<256x128xf32, #tpu.memory_space<vmem>>, vector<256x128xf32>
    tpu.vector_store %arg8[%c0_116, %c0_117], %83 {strides = array<i32>} : memref<256x128xf32, #tpu.memory_space<vmem>>, vector<256x128xf32>,
    %c0_118 = arith.constant 0 : index
    %c0_119 = arith.constant 0 : index
    %85 = vector.load %arg8[%c0_118, %c0_119] : memref<256x128xf32, #tpu.memory_space<vmem>>, vector<256x128xf32>
    %86 = vector.shape_cast %85 : vector<256x128xf32> to vector<16x16x128xf32>
    %c0_120 = arith.constant 0 : index
    %c0_121 = arith.constant 0 : index
    %c0_122 = arith.constant 0 : index
    %c0_123 = arith.constant 0 : index
    %87 = vector.load %arg5[%c0_120, %c0_121, %c0_122, %c0_123] : memref<1x16x16x128xf32, #tpu.memory_space<vmem>>, vector<1x16x16x128xf32>
    %88 = vector.shape_cast %87 : vector<1x16x16x128xf32> to vector<16x16x128xf32>
    %89 = vector.shape_cast %86 : vector<16x16x128xf32> to vector<1x16x16x128xf32>
    tpu.vector_store %arg5[%c0_120, %c0_121, %c0_122, %c0_123], %89 {strides = array<i32>} : memref<1x16x16x128xf32, #tpu.memory_space<vmem>>, vector<1x16x16x128xf32>,
    %cst_124 = arith.constant dense<0.000000e+00> : vector<128xf32>
    %90 = vector.multi_reduction <add>, %85, %cst_124 [0] : vector<256x128xf32> to vector<128xf32>
    %91 = vector.shape_cast %90 : vector<128xf32> to vector<1x128xf32>
    %cst_125 = arith.constant 3.906250e-03 : f32
    %92 = vector.broadcast %cst_125 : f32 to vector<1x128xf32>
    %93 = arith.mulf %91, %92 : vector<1x128xf32>
    %94 = vector.broadcast %93 : vector<1x128xf32> to vector<256x128xf32>
    %95 = arith.subf %85, %94 : vector<256x128xf32>
    %96 = arith.mulf %95, %95 : vector<256x128xf32>
    %cst_126 = arith.constant dense<0.000000e+00> : vector<128xf32>
    %97 = vector.multi_reduction <add>, %96, %cst_126 [0] : vector<256x128xf32> to vector<128xf32>
    %98 = vector.shape_cast %97 : vector<128xf32> to vector<1x128xf32>
    %99 = tpu.concatenate %91, %98 in 0 : vector<1x128xf32>, vector<1x128xf32> -> vector<2x128xf32>
    %c0_127 = arith.constant 0 : index
    %c0_128 = arith.constant 0 : index
    %c0_129 = arith.constant 0 : index
    %100 = vector.load %arg6[%c0_127, %c0_128, %c0_129] : memref<1x2x128xf32, #tpu.memory_space<vmem>>, vector<1x2x128xf32>
    %101 = vector.shape_cast %100 : vector<1x2x128xf32> to vector<2x128xf32>
    %102 = vector.shape_cast %99 : vector<2x128xf32> to vector<1x2x128xf32>
    tpu.vector_store %arg6[%c0_127, %c0_128, %c0_129], %102 {strides = array<i32>} : memref<1x2x128xf32, #tpu.memory_space<vmem>>, vector<1x2x128xf32>,
    return
  }
  func.func @transform_0(%arg0: i32) -> (i32, i32, i32, i32) {
    %c0_i32 = arith.constant 0 : i32
    %c0_i32_0 = arith.constant 0 : i32
    %c0_i32_1 = arith.constant 0 : i32
    %c0_i32_2 = arith.constant 0 : i32
    return %arg0, %c0_i32, %c0_i32_0, %c0_i32_1 : i32, i32, i32, i32
  }
  func.func @transform_1(%arg0: i32) -> (i32, i32, i32, i32) {
    %c0_i32 = arith.constant 0 : i32
    %c0_i32_0 = arith.constant 0 : i32
    %c0_i32_1 = arith.constant 0 : i32
    %c0_i32_2 = arith.constant 0 : i32
    %c0_i32_3 = arith.constant 0 : i32
    return %c0_i32, %c0_i32_0, %c0_i32_1, %c0_i32_2 : i32, i32, i32, i32
  }
  func.func @transform_2(%arg0: i32) -> (i32, i32) {
    %c0_i32 = arith.constant 0 : i32
    %c0_i32_0 = arith.constant 0 : i32
    %c0_i32_1 = arith.constant 0 : i32
    return %c0_i32, %c0_i32_0 : i32, i32
  }
  func.func @transform_3(%arg0: i32) -> (i32, i32) {
    %c0_i32 = arith.constant 0 : i32
    %c0_i32_0 = arith.constant 0 : i32
    %c0_i32_1 = arith.constant 0 : i32
    return %c0_i32, %c0_i32_0 : i32, i32
  }
  func.func @transform_4(%arg0: i32) -> (i32, i32, i32, i32) {
    %c0_i32 = arith.constant 0 : i32
    %c0_i32_0 = arith.constant 0 : i32
    %c0_i32_1 = arith.constant 0 : i32
    %c0_i32_2 = arith.constant 0 : i32
    return %arg0, %c0_i32, %c0_i32_0, %c0_i32_1 : i32, i32, i32, i32
  }
  func.func @transform_5(%arg0: i32) -> (i32, i32, i32) {
    %c0_i32 = arith.constant 0 : i32
    %c0_i32_0 = arith.constant 0 : i32
    %c0_i32_1 = arith.constant 0 : i32
    return %arg0, %c0_i32, %c0_i32_0 : i32, i32, i32
  }
}

</mosaic_0001>

<llo_original>
// kernel: basic_block_forward_nhwc.5
$region0: #{basic_block_forward_nhwc.5}
  #allocation0 [shape = 'u32[]', space=smem, size = 0x4, offset = 0x4, fixed_abs, tag = 'smem constant byte address 0x4 - core index']
  #allocation1 [shape = 'u32[144,128]{1,0:T(1,128)}', space=vmem, size = 0x12000, scoped, tag = 'internal scratch']
  %s0 = inlined_call_operand.vmem [shape: f32[2,16,16,128], index: 0, kind: input, shape index: {}]
  %s1 = inlined_call_operand.vmem [shape: f32[1,128], index: 1, kind: input, shape index: {}]
  %s2 = inlined_call_operand.vmem [shape: f32[1,128], index: 2, kind: input, shape index: {}]
  %s3 = inlined_call_operand.vmem [shape: f32[2,16,16,128], index: 3, kind: input, shape index: {}]
  %s4 = inlined_call_operand.vmem [shape: f32[2,16,16,128], index: 4, kind: output, shape index: {}]
  %s5 = sld [smem:[#allocation0]]
  $region49: #{basic_block_forward_nhwc.5} parent=0
    _
  %s7 = ssub.s32 1, %s5
  %s8 = scalar_select 0, %s7, %s5
  loop: start=0, step=1, limit=4
  $region2: #{basic_block_forward_nhwc.5} parent=0 // loop_pre_header
    _
  $region3: #{basic_block_forward_nhwc.5} parent=0 // loop_header
    %s10 = sphi 0, %s14
    %p11 = scmp.ge.s32.totalorder %s10, 4
    %s20 = sphi 0, %s22
    %s23 = sphi 0, %s20
    %s24 = sphi 0, %s23
    %s40 = sphi 0, %s24
    %s44 = sphi 0, %s44
    %s46 = sphi 0, %s44
    %s47 = sphi 0, %s46
    %s61 = sphi 0, %s47
    %s65 = sphi 0, %s65
    %s67 = sphi 0, %s65
    %s68 = sphi 0, %s67
    %s82 = sphi 0, %s68
    %s88 = sphi 0, %s90
    %s91 = sphi 0, %s88
    %s92 = sphi 0, %s91
    %s108 = sphi 0, %s92
    %s114 = sphi 0, %s116
    %s117 = sphi 0, %s114
    %s118 = sphi 0, %s117
    %s134 = sphi 0, %s118
  $region4: #{basic_block_forward_nhwc.5} parent=0 // loop_header_branch
    %13 = sbr.rel (%p11) target = $region8
  $region5: #{basic_block_forward_nhwc.5} parent=0 // loop_body
    %s15 = ssub.s32 %s10, 1
    %s16 = ssub.s32 %s10, 2
    %s17 = sadd.s32 %s10, 1
    %s18 = ssub.s32 %s10, %s17
    %p19 = scmp.eq.s32.totalorder %s18, 0
    %s21 = sadd.s32 %s20, 1
    %s22 = scalar_select %p19, %s20, %s21
    %p25 = pneg %p19
    %p26 = scmp.eq.s32.totalorder %s10, 1
    %p27 = por %p25, %p26
    %p28 = scmp.ne.s32.totalorder %s20, %s23
    %p29 = scmp.eq.s32.totalorder %s10, 0
    %p30 = por %p28, %p29
    %p31 = scmp.ne.s32.totalorder %s20, %s23
    %p32 = scmp.eq.s32.totalorder %s15, 1
    %p33 = por %p31, %p32
    %p34 = scmp.ne.s32.totalorder %s23, %s24
    %p35 = scmp.eq.s32.totalorder %s15, 0
    %p36 = por %p34, %p35
    %p37 = scmp.ne.s32.totalorder %s23, %s24
    %p38 = scmp.eq.s32.totalorder %s16, 1
    %p39 = por %p37, %p38
    %p41 = scmp.ne.s32.totalorder %s24, %s40
    %p42 = scmp.eq.s32.totalorder %s16, 0
    %p43 = por %p41, %p42
    %s45 = sadd.s32 %s44, 1
    %p48 = scmp.eq.s32.totalorder %s10, 1
    %p49 = scmp.ne.s32.totalorder %s44, %s46
    %p50 = scmp.eq.s32.totalorder %s10, 0
    %p51 = por %p49, %p50
    %p52 = scmp.ne.s32.totalorder %s44, %s46
    %p53 = scmp.eq.s32.totalorder %s15, 1
    %p54 = por %p52, %p53
    %p55 = scmp.ne.s32.totalorder %s46, %s47
    %p56 = scmp.eq.s32.totalorder %s15, 0
    %p57 = por %p55, %p56
    %p58 = scmp.ne.s32.totalorder %s46, %s47
    %p59 = scmp.eq.s32.totalorder %s16, 1
    %p60 = por %p58, %p59
    %p62 = scmp.ne.s32.totalorder %s47, %s61
    %p63 = scmp.eq.s32.totalorder %s16, 0
    %p64 = por %p62, %p63
    %s66 = sadd.s32 %s65, 1
    %p69 = scmp.eq.s32.totalorder %s10, 1
    %p70 = scmp.ne.s32.totalorder %s65, %s67
    %p71 = scmp.eq.s32.totalorder %s10, 0
    %p72 = por %p70, %p71
    %p73 = scmp.ne.s32.totalorder %s65, %s67
    %p74 = scmp.eq.s32.totalorder %s15, 1
    %p75 = por %p73, %p74
    %p76 = scmp.ne.s32.totalorder %s67, %s68
    %p77 = scmp.eq.s32.totalorder %s15, 0
    %p78 = por %p76, %p77
    %p79 = scmp.ne.s32.totalorder %s67, %s68
    %p80 = scmp.eq.s32.totalorder %s16, 1
    %p81 = por %p79, %p80
    %p83 = scmp.ne.s32.totalorder %s68, %s82
    %p84 = scmp.eq.s32.totalorder %s16, 0
    %p85 = por %p83, %p84
    %s86 = ssub.s32 %s10, %s17
    %p87 = scmp.eq.s32.totalorder %s86, 0
    %s89 = sadd.s32 %s88, 1
    %s90 = scalar_select %p87, %s88, %s89
    %p93 = pneg %p87
    %p94 = scmp.eq.s32.totalorder %s10, 1
    %p95 = por %p93, %p94
    %p96 = scmp.ne.s32.totalorder %s88, %s91
    %p97 = scmp.eq.s32.totalorder %s10, 0
    %p98 = por %p96, %p97
    %p99 = scmp.ne.s32.totalorder %s88, %s91
    %p100 = scmp.eq.s32.totalorder %s15, 1
    %p101 = por %p99, %p100
    %p102 = scmp.ne.s32.totalorder %s91, %s92
    %p103 = scmp.eq.s32.totalorder %s15, 0
    %p104 = por %p102, %p103
    %p105 = scmp.ne.s32.totalorder %s91, %s92
    %p106 = scmp.eq.s32.totalorder %s16, 1
    %p107 = por %p105, %p106
    %p109 = scmp.ne.s32.totalorder %s92, %s108
    %p110 = scmp.eq.s32.totalorder %s16, 0
    %p111 = por %p109, %p110
    %s112 = ssub.s32 %s10, %s17
    %p113 = scmp.eq.s32.totalorder %s112, 0
    %s115 = sadd.s32 %s114, 1
    %s116 = scalar_select %p113, %s114, %s115
    %p119 = pneg %p113
    %p120 = scmp.eq.s32.totalorder %s10, 1
    %p121 = por %p119, %p120
    %p122 = scmp.ne.s32.totalorder %s114, %s117
    %p123 = scmp.eq.s32.totalorder %s10, 0
    %p124 = por %p122, %p123
    %p125 = scmp.ne.s32.totalorder %s114, %s117
    %p126 = scmp.eq.s32.totalorder %s15, 1
    %p127 = por %p125, %p126
    %p128 = scmp.ne.s32.totalorder %s117, %s118
    %p129 = scmp.eq.s32.totalorder %s15, 0
    %p130 = por %p128, %p129
    %p131 = scmp.ne.s32.totalorder %s117, %s118
    %p132 = scmp.eq.s32.totalorder %s16, 1
    %p133 = por %p131, %p132
    %p135 = scmp.ne.s32.totalorder %s118, %s134
    %p136 = scmp.eq.s32.totalorder %s16, 0
    %p137 = por %p135, %p136
    %p138 = scmp.le.s32.totalorder 1, %s10
    %p139 = scmp.lt.s32.totalorder %s10, 3
    %p140 = pnand %p138, %p139
    %p141 = pneg %p140
    // Predicated region
    $region9: #{basic_block_forward_nhwc.5} parent=5 // pred_check
      _
    $region10: #{basic_block_forward_nhwc.5} parent=5 // pred_check_branch
      %143 = sbr.rel (%p140) target = $region12
    $region11: #{basic_block_forward_nhwc.5} parent=5 // pred_region
      %s144 = ssub.s32 %s10, 1
      // Predicated region
      $region13: #{basic_block_forward_nhwc.5} parent=11 // pred_check
        %p145 = pneg %p57
      $region14: #{basic_block_forward_nhwc.5} parent=11 // pred_check_branch
        %147 = sbr.rel (%p145) target = $region16
      $region15: #{basic_block_forward_nhwc.5} parent=11 // pred_region
        _
      $region16: #{basic_block_forward_nhwc.5} parent=11 // pred_fallthru
        _
      // Predicated region
      $region17: #{basic_block_forward_nhwc.5} parent=11 // pred_check
        %p148 = pneg %p78
      $region18: #{basic_block_forward_nhwc.5} parent=11 // pred_check_branch
        %150 = sbr.rel (%p148) target = $region20
      $region19: #{basic_block_forward_nhwc.5} parent=11 // pred_region
        _
      $region20: #{basic_block_forward_nhwc.5} parent=11 // pred_fallthru
        _
    $region12: #{basic_block_forward_nhwc.5} parent=5 // pred_fallthru
      _
    %p151 = scmp.lt.s32.totalorder %s10, 2
    // Predicated region
    $region21: #{basic_block_forward_nhwc.5} parent=5 // pred_check
      %p152 = pneg %p151
    $region22: #{basic_block_forward_nhwc.5} parent=5 // pred_check_branch
      %154 = sbr.rel (%p152) target = $region24
    $region23: #{basic_block_forward_nhwc.5} parent=5 // pred_region
      // Predicated region
      $region25: #{basic_block_forward_nhwc.5} parent=23 // pred_check
        %p155 = pneg %p30
      $region26: #{basic_block_forward_nhwc.5} parent=23 // pred_check_branch
        %157 = sbr.rel (%p155) target = $region28
      $region27: #{basic_block_forward_nhwc.5} parent=23 // pred_region
        %p158 = scmp.lt.s32.totalorder %s10, 1
        %s159 = scalar_select %p158, %s10, 1
        %s160 = smul.addr %s159, 32
        %s161 = smul.addr %s160, 8
        %s162 = scalar_lea.vmem %s0, %s161
      $region28: #{basic_block_forward_nhwc.5} parent=23 // pred_fallthru
        _
      // Predicated region
      $region29: #{basic_block_forward_nhwc.5} parent=23 // pred_check
        %p163 = pneg %p98
      $region30: #{basic_block_forward_nhwc.5} parent=23 // pred_check_branch
        %165 = sbr.rel (%p163) target = $region32
      $region31: #{basic_block_forward_nhwc.5} parent=23 // pred_region
        %p166 = scmp.lt.s32.totalorder %s10, 1
        %s167 = scalar_select %p166, %s10, 1
        %s168 = smul.addr %s167, 32
        %s169 = smul.addr %s168, 8
        %s170 = scalar_lea.vmem %s3, %s169
      $region32: #{basic_block_forward_nhwc.5} parent=23 // pred_fallthru
        _
    $region24: #{basic_block_forward_nhwc.5} parent=5 // pred_fallthru
      _
    %p171 = scmp.le.s32.totalorder 1, %s10
    %p172 = scmp.lt.s32.totalorder %s10, 3
    %p173 = pnand %p171, %p172
    %p174 = pneg %p173
    // Predicated region
    $region33: #{basic_block_forward_nhwc.5} parent=5 // pred_check
      _
    $region34: #{basic_block_forward_nhwc.5} parent=5 // pred_check_branch
      %176 = sbr.rel (%p173) target = $region36
    $region35: #{basic_block_forward_nhwc.5} parent=5 // pred_region
      %s177 = ssub.s32 %s10, 1
      %p178 = scmp.lt.s32.totalorder %s15, 1
      %s179 = scalar_select %p178, %s15, 1
      %s180 = smul.addr %s179, 32
      %s181 = smul.addr %s180, 8
      %s182 = scalar_lea.vmem %s0, %s181
      %p183 = pneg %p36
      %p184 = pneg %p33
      %p185 = pneg %p57
      %p186 = pneg %p54
      %p187 = pneg %p78
      %p188 = pneg %p75
      %p189 = scmp.lt.s32.totalorder %s15, 1
      %s190 = scalar_select %p189, %s15, 1
      %s191 = smul.addr %s190, 32
      %s192 = smul.addr %s191, 8
      %s193 = scalar_lea.vmem %s3, %s192
      %p194 = pneg %p104
      %p195 = pneg %p101
      %p196 = pneg %p130
      %p197 = pneg %p127
      %p198 = scmp.lt.s32.totalorder %s15, 1
      %s199 = scalar_select %p198, %s15, 1
      %s200 = smul.addr %s199, 32
      %s201 = smul.addr %s200, 8
      %s202 = scalar_lea.vmem %s4, %s201
      %p203 = scmp.lt.s32.totalorder %s15, 1
      %s204 = scalar_select %p203, %s15, 1
      %s205 = smul.addr %s204, 32
      %s206 = smul.addr %s205, 8
      %s207 = scalar_lea.vmem %s0, %s206
      %p208 = scmp.lt.s32.totalorder %s15, 1
      %s209 = scalar_select %p208, %s15, 1
      %s210 = smul.addr %s209, 32
      %s211 = smul.addr %s210, 8
      %s212 = scalar_lea.vmem %s3, %s211
      %p213 = scmp.lt.s32.totalorder %s15, 1
      %s214 = scalar_select %p213, %s15, 1
      %s215 = smul.addr %s214, 32
      %s216 = smul.addr %s215, 8
      %s217 = scalar_lea.vmem %s4, %s216
      %v218 = vld [vmem:[%s207] sm:$0xff]
      %v219 = vld [vmem:[%s207 + $0x8] sm:$0xff]
      %v220 = vld [vmem:[%s207 + $0x10] sm:$0xff]
      %v221 = vld [vmem:[%s207 + $0x18] sm:$0xff]
      %v222 = vld [vmem:[%s207 + $0x20] sm:$0xff]
      %v223 = vld [vmem:[%s207 + $0x28] sm:$0xff]
      %v224 = vld [vmem:[%s207 + $0x30] sm:$0xff]
      %v225 = vld [vmem:[%s207 + $0x38] sm:$0xff]
      %v226 = vld [vmem:[%s207 + $0x40] sm:$0xff]
      %v227 = vld [vmem:[%s207 + $0x48] sm:$0xff]
      %v228 = vld [vmem:[%s207 + $0x50] sm:$0xff]
      %v229 = vld [vmem:[%s207 + $0x58] sm:$0xff]
      %v230 = vld [vmem:[%s207 + $0x60] sm:$0xff]
      %v231 = vld [vmem:[%s207 + $0x68] sm:$0xff]
      %v232 = vld [vmem:[%s207 + $0x70] sm:$0xff]
      %v233 = vld [vmem:[%s207 + $0x78] sm:$0xff]
      %v234 = vld [vmem:[%s207 + $0x80] sm:$0xff]
      %v235 = vld [vmem:[%s207 + $0x88] sm:$0xff]
      %v236 = vld [vmem:[%s207 + $0x90] sm:$0xff]
      %v237 = vld [vmem:[%s207 + $0x98] sm:$0xff]
      %v238 = vld [vmem:[%s207 + $0xa0] sm:$0xff]
      %v239 = vld [vmem:[%s207 + $0xa8] sm:$0xff]
      %v240 = vld [vmem:[%s207 + $0xb0] sm:$0xff]
      %v241 = vld [vmem:[%s207 + $0xb8] sm:$0xff]
      %v242 = vld [vmem:[%s207 + $0xc0] sm:$0xff]
      %v243 = vld [vmem:[%s207 + $0xc8] sm:$0xff]
      %v244 = vld [vmem:[%s207 + $0xd0] sm:$0xff]
      %v245 = vld [vmem:[%s207 + $0xd8] sm:$0xff]
      %v246 = vld [vmem:[%s207 + $0xe0] sm:$0xff]
      %v247 = vld [vmem:[%s207 + $0xe8] sm:$0xff]
      %v248 = vld [vmem:[%s207 + $0xf0] sm:$0xff]
      %v249 = vld [vmem:[%s207 + $0xf8] sm:$0xff]
      %v250 = vld [vmem:[%s212] sm:$0xff]
      %v251 = vld [vmem:[%s212 + $0x8] sm:$0xff]
      %v252 = vld [vmem:[%s212 + $0x10] sm:$0xff]
      %v253 = vld [vmem:[%s212 + $0x18] sm:$0xff]
      %v254 = vld [vmem:[%s212 + $0x20] sm:$0xff]
      %v255 = vld [vmem:[%s212 + $0x28] sm:$0xff]
      %v256 = vld [vmem:[%s212 + $0x30] sm:$0xff]
      %v257 = vld [vmem:[%s212 + $0x38] sm:$0xff]
      %v258 = vld [vmem:[%s212 + $0x40] sm:$0xff]
      %v259 = vld [vmem:[%s212 + $0x48] sm:$0xff]
      %v260 = vld [vmem:[%s212 + $0x50] sm:$0xff]
      %v261 = vld [vmem:[%s212 + $0x58] sm:$0xff]
      %v262 = vld [vmem:[%s212 + $0x60] sm:$0xff]
      %v263 = vld [vmem:[%s212 + $0x68] sm:$0xff]
      %v264 = vld [vmem:[%s212 + $0x70] sm:$0xff]
      %v265 = vld [vmem:[%s212 + $0x78] sm:$0xff]
      %v266 = vld [vmem:[%s212 + $0x80] sm:$0xff]
      %v267 = vld [vmem:[%s212 + $0x88] sm:$0xff]
      %v268 = vld [vmem:[%s212 + $0x90] sm:$0xff]
      %v269 = vld [vmem:[%s212 + $0x98] sm:$0xff]
      %v270 = vld [vmem:[%s212 + $0xa0] sm:$0xff]
      %v271 = vld [vmem:[%s212 + $0xa8] sm:$0xff]
      %v272 = vld [vmem:[%s212 + $0xb0] sm:$0xff]
      %v273 = vld [vmem:[%s212 + $0xb8] sm:$0xff]
      %v274 = vld [vmem:[%s212 + $0xc0] sm:$0xff]
      %v275 = vld [vmem:[%s212 + $0xc8] sm:$0xff]
      %v276 = vld [vmem:[%s212 + $0xd0] sm:$0xff]
      %v277 = vld [vmem:[%s212 + $0xd8] sm:$0xff]
      %v278 = vld [vmem:[%s212 + $0xe0] sm:$0xff]
      %v279 = vld [vmem:[%s212 + $0xe8] sm:$0xff]
      %v280 = vld [vmem:[%s212 + $0xf0] sm:$0xff]
      %v281 = vld [vmem:[%s212 + $0xf8] sm:$0xff]
      %v282 = vld [vmem:[%s1] sm:$0x1]
      %v284 = vlaneseq
      %v285 = vshrl.u32 %v284, 7
      %v286 = vsub.s32 0, %v285
      %v287 = vrot.slane %v282, %v286
      %v289 = vmul.f32 %v218, %v287
      %v290 = vmul.f32 %v219, %v287
      %v291 = vmul.f32 %v220, %v287
      %v292 = vmul.f32 %v221, %v287
      %v293 = vmul.f32 %v222, %v287
      %v294 = vmul.f32 %v223, %v287
      %v295 = vmul.f32 %v224, %v287
      %v296 = vmul.f32 %v225, %v287
      %v297 = vmul.f32 %v226, %v287
      %v298 = vmul.f32 %v227, %v287
      %v299 = vmul.f32 %v228, %v287
      %v300 = vmul.f32 %v229, %v287
      %v301 = vmul.f32 %v230, %v287
      %v302 = vmul.f32 %v231, %v287
      %v303 = vmul.f32 %v232, %v287
      %v304 = vmul.f32 %v233, %v287
      %v305 = vmul.f32 %v234, %v287
      %v306 = vmul.f32 %v235, %v287
      %v307 = vmul.f32 %v236, %v287
      %v308 = vmul.f32 %v237, %v287
      %v309 = vmul.f32 %v238, %v287
      %v310 = vmul.f32 %v239, %v287
      %v311 = vmul.f32 %v240, %v287
      %v312 = vmul.f32 %v241, %v287
      %v313 = vmul.f32 %v242, %v287
      %v314 = vmul.f32 %v243, %v287
      %v315 = vmul.f32 %v244, %v287
      %v316 = vmul.f32 %v245, %v287
      %v317 = vmul.f32 %v246, %v287
      %v318 = vmul.f32 %v247, %v287
      %v319 = vmul.f32 %v248, %v287
      %v320 = vmul.f32 %v249, %v287
      %v321 = vld [vmem:[%s2] sm:$0x1]
      %v323 = vlaneseq
      %v324 = vshrl.u32 %v323, 7
      %v325 = vsub.s32 0, %v324
      %v326 = vrot.slane %v321, %v325
      %v328 = vadd.f32 %v289, %v326
      %v329 = vadd.f32 %v290, %v326
      %v330 = vadd.f32 %v291, %v326
      %v331 = vadd.f32 %v292, %v326
      %v332 = vadd.f32 %v293, %v326
      %v333 = vadd.f32 %v294, %v326
      %v334 = vadd.f32 %v295, %v326
      %v335 = vadd.f32 %v296, %v326
      %v336 = vadd.f32 %v297, %v326
      %v337 = vadd.f32 %v298, %v326
      %v338 = vadd.f32 %v299, %v326
      %v339 = vadd.f32 %v300, %v326
      %v340 = vadd.f32 %v301, %v326
      %v341 = vadd.f32 %v302, %v326
      %v342 = vadd.f32 %v303, %v326
      %v343 = vadd.f32 %v304, %v326
      %v344 = vadd.f32 %v305, %v326
      %v345 = vadd.f32 %v306, %v326
      %v346 = vadd.f32 %v307, %v326
      %v347 = vadd.f32 %v308, %v326
      %v348 = vadd.f32 %v309, %v326
      %v349 = vadd.f32 %v310, %v326
      %v350 = vadd.f32 %v311, %v326
      %v351 = vadd.f32 %v312, %v326
      %v352 = vadd.f32 %v313, %v326
      %v353 = vadd.f32 %v314, %v326
      %v354 = vadd.f32 %v315, %v326
      %v355 = vadd.f32 %v316, %v326
      %v356 = vadd.f32 %v317, %v326
      %v357 = vadd.f32 %v318, %v326
      %v358 = vadd.f32 %v319, %v326
      %v359 = vadd.f32 %v320, %v326
      %v360 = vadd.f32 %v328, %v250
      %v361 = vadd.f32 %v329, %v251
      %v362 = vadd.f32 %v330, %v252
      %v363 = vadd.f32 %v331, %v253
      %v364 = vadd.f32 %v332, %v254
      %v365 = vadd.f32 %v333, %v255
      %v366 = vadd.f32 %v334, %v256
      %v367 = vadd.f32 %v335, %v257
      %v368 = vadd.f32 %v336, %v258
      %v369 = vadd.f32 %v337, %v259
      %v370 = vadd.f32 %v338, %v260
      %v371 = vadd.f32 %v339, %v261
      %v372 = vadd.f32 %v340, %v262
      %v373 = vadd.f32 %v341, %v263
      %v374 = vadd.f32 %v342, %v264
      %v375 = vadd.f32 %v343, %v265
      %v376 = vadd.f32 %v344, %v266
      %v377 = vadd.f32 %v345, %v267
      %v378 = vadd.f32 %v346, %v268
      %v379 = vadd.f32 %v347, %v269
      %v380 = vadd.f32 %v348, %v270
      %v381 = vadd.f32 %v349, %v271
      %v382 = vadd.f32 %v350, %v272
      %v383 = vadd.f32 %v351, %v273
      %v384 = vadd.f32 %v352, %v274
      %v385 = vadd.f32 %v353, %v275
      %v386 = vadd.f32 %v354, %v276
      %v387 = vadd.f32 %v355, %v277
      %v388 = vadd.f32 %v356, %v278
      %v389 = vadd.f32 %v357, %v279
      %v390 = vadd.f32 %v358, %v280
      %v391 = vadd.f32 %v359, %v281
      %v392 = vmax.f32 %v360, 0.0
      %v393 = vmax.f32 %v361, 0.0
      %v394 = vmax.f32 %v362, 0.0
      %v395 = vmax.f32 %v363, 0.0
      %v396 = vmax.f32 %v364, 0.0
      %v397 = vmax.f32 %v365, 0.0
      %v398 = vmax.f32 %v366, 0.0
      %v399 = vmax.f32 %v367, 0.0
      %v400 = vmax.f32 %v368, 0.0
      %v401 = vmax.f32 %v369, 0.0
      %v402 = vmax.f32 %v370, 0.0
      %v403 = vmax.f32 %v371, 0.0
      %v404 = vmax.f32 %v372, 0.0
      %v405 = vmax.f32 %v373, 0.0
      %v406 = vmax.f32 %v374, 0.0
      %v407 = vmax.f32 %v375, 0.0
      %v408 = vmax.f32 %v376, 0.0
      %v409 = vmax.f32 %v377, 0.0
      %v410 = vmax.f32 %v378, 0.0
      %v411 = vmax.f32 %v379, 0.0
      %v412 = vmax.f32 %v380, 0.0
      %v413 = vmax.f32 %v381, 0.0
      %v414 = vmax.f32 %v382, 0.0
      %v415 = vmax.f32 %v383, 0.0
      %v416 = vmax.f32 %v384, 0.0
      %v417 = vmax.f32 %v385, 0.0
      %v418 = vmax.f32 %v386, 0.0
      %v419 = vmax.f32 %v387, 0.0
      %v420 = vmax.f32 %v388, 0.0
      %v421 = vmax.f32 %v389, 0.0
      %v422 = vmax.f32 %v390, 0.0
      %v423 = vmax.f32 %v391, 0.0
      %424 = vst [vmem:[%s217] sm:$0xff] %v392
      %425 = vst [vmem:[%s217 + $0x8] sm:$0xff] %v393
      %426 = vst [vmem:[%s217 + $0x10] sm:$0xff] %v394
      %427 = vst [vmem:[%s217 + $0x18] sm:$0xff] %v395
      %428 = vst [vmem:[%s217 + $0x20] sm:$0xff] %v396
      %429 = vst [vmem:[%s217 + $0x28] sm:$0xff] %v397
      %430 = vst [vmem:[%s217 + $0x30] sm:$0xff] %v398
      %431 = vst [vmem:[%s217 + $0x38] sm:$0xff] %v399
      %432 = vst [vmem:[%s217 + $0x40] sm:$0xff] %v400
      %433 = vst [vmem:[%s217 + $0x48] sm:$0xff] %v401
      %434 = vst [vmem:[%s217 + $0x50] sm:$0xff] %v402
      %435 = vst [vmem:[%s217 + $0x58] sm:$0xff] %v403
      %436 = vst [vmem:[%s217 + $0x60] sm:$0xff] %v404
      %437 = vst [vmem:[%s217 + $0x68] sm:$0xff] %v405
      %438 = vst [vmem:[%s217 + $0x70] sm:$0xff] %v406
      %439 = vst [vmem:[%s217 + $0x78] sm:$0xff] %v407
      %440 = vst [vmem:[%s217 + $0x80] sm:$0xff] %v408
      %441 = vst [vmem:[%s217 + $0x88] sm:$0xff] %v409
      %442 = vst [vmem:[%s217 + $0x90] sm:$0xff] %v410
      %443 = vst [vmem:[%s217 + $0x98] sm:$0xff] %v411
      %444 = vst [vmem:[%s217 + $0xa0] sm:$0xff] %v412
      %445 = vst [vmem:[%s217 + $0xa8] sm:$0xff] %v413
      %446 = vst [vmem:[%s217 + $0xb0] sm:$0xff] %v414
      %447 = vst [vmem:[%s217 + $0xb8] sm:$0xff] %v415
      %448 = vst [vmem:[%s217 + $0xc0] sm:$0xff] %v416
      %449 = vst [vmem:[%s217 + $0xc8] sm:$0xff] %v417
      %450 = vst [vmem:[%s217 + $0xd0] sm:$0xff] %v418
      %451 = vst [vmem:[%s217 + $0xd8] sm:$0xff] %v419
      %452 = vst [vmem:[%s217 + $0xe0] sm:$0xff] %v420
      %453 = vst [vmem:[%s217 + $0xe8] sm:$0xff] %v421
      %454 = vst [vmem:[%s217 + $0xf0] sm:$0xff] %v422
      %455 = vst [vmem:[%s217 + $0xf8] sm:$0xff] %v423
      %p456 = scmp.lt.s32.totalorder %s15, 1
      %s457 = scalar_select %p456, %s15, 1
      %s458 = smul.addr %s457, 32
      %s459 = smul.addr %s458, 8
      %s460 = scalar_lea.vmem %s4, %s459
      // Predicated region
      $region37: #{basic_block_forward_nhwc.5} parent=35 // pred_check
        %p461 = pneg %p127
      $region38: #{basic_block_forward_nhwc.5} parent=35 // pred_check_branch
        %463 = sbr.rel (%p461) target = $region40
      $region39: #{basic_block_forward_nhwc.5} parent=35 // pred_region
        _
      $region40: #{basic_block_forward_nhwc.5} parent=35 // pred_fallthru
        _
    $region36: #{basic_block_forward_nhwc.5} parent=5 // pred_fallthru
      _
    %p464 = scmp.le.s32.totalorder 2, %s10
    // Predicated region
    $region41: #{basic_block_forward_nhwc.5} parent=5 // pred_check
      %p465 = pneg %p464
    $region42: #{basic_block_forward_nhwc.5} parent=5 // pred_check_branch
      %467 = sbr.rel (%p465) target = $region44
    $region43: #{basic_block_forward_nhwc.5} parent=5 // pred_region
      %s468 = ssub.s32 %s10, 2
      // Predicated region
      $region45: #{basic_block_forward_nhwc.5} parent=43 // pred_check
        %p469 = pneg %p133
      $region46: #{basic_block_forward_nhwc.5} parent=43 // pred_check_branch
        %471 = sbr.rel (%p469) target = $region48
      $region47: #{basic_block_forward_nhwc.5} parent=43 // pred_region
        %p472 = scmp.lt.s32.totalorder %s16, 1
        %s473 = scalar_select %p472, %s16, 1
        %s474 = smul.addr %s473, 32
        %s475 = smul.addr %s474, 8
        %s476 = scalar_lea.vmem %s4, %s475
      $region48: #{basic_block_forward_nhwc.5} parent=43 // pred_fallthru
        _
    $region44: #{basic_block_forward_nhwc.5} parent=5 // pred_fallthru
      _
  $region6: #{basic_block_forward_nhwc.5} parent=0 // loop_footer
    %s14 = sadd.s32 1, %s10
  $region7: #{basic_block_forward_nhwc.5} parent=0 // loop_footer_branch
    %9 = sbr.rel target = $region3
  $region8: #{basic_block_forward_nhwc.5} parent=0 // loop_exit
    _

// kernel: basic_block_forward_nhwc.3
$region0: #{basic_block_forward_nhwc.3}
  #allocation0 [shape = 'u32[]', space=smem, size = 0x4, offset = 0x4, fixed_abs, tag = 'smem constant byte address 0x4 - core index']
  #allocation1 [shape = 'u32[144,128]{1,0:T(1,128)}', space=vmem, size = 0x12000, scoped, tag = 'internal scratch']
  #allocation2 [shape = 'f32[18,18,128]{2,1,0:T(8,128)}', space=vmem, size = 0x36000, scoped, tag = 'scratch operand']
  #allocation3 [shape = 'f32[256,128]{1,0:T(8,128)}', space=vmem, size = 0x20000, scoped, tag = 'scratch operand']
  %s0 = inlined_call_operand.vmem [shape: f32[2,16,16,128], index: 0, kind: input, shape index: {}]
  %s1 = inlined_call_operand.vmem [shape: f32[3,3,128,128], index: 1, kind: input, shape index: {}]
  %s2 = inlined_call_operand.vmem [shape: f32[1,128], index: 2, kind: input, shape index: {}, may-alias: {2,3}]
  %s3 = inlined_call_operand.vmem [shape: f32[1,128], index: 3, kind: input, shape index: {}, may-alias: {2,3}]
  %s4 = inlined_call_operand.vmem [shape: f32[2,16,16,128], index: 4, kind: output, shape index: {0}]
  %s5 = inlined_call_operand.vmem [shape: f32[2,2,128], index: 5, kind: output, shape index: {1}]
  %6 = xla_tuple %s4, %s5
  %s7 = sld [smem:[#allocation0]]
  $region57: #{basic_block_forward_nhwc.3} parent=0
    _
  %s9 = ssub.s32 1, %s7
  %s10 = scalar_select 0, %s9, %s7
  loop: start=0, step=1, limit=4
  $region2: #{basic_block_forward_nhwc.3} parent=0 // loop_pre_header
    _
  $region3: #{basic_block_forward_nhwc.3} parent=0 // loop_header
    %s12 = sphi 0, %s16
    %p13 = scmp.ge.s32.totalorder %s12, 4
    %s22 = sphi 0, %s24
    %s25 = sphi 0, %s22
    %s26 = sphi 0, %s25
    %s42 = sphi 0, %s26
    %s46 = sphi 0, %s46
    %s48 = sphi 0, %s46
    %s49 = sphi 0, %s48
    %s63 = sphi 0, %s49
    %s67 = sphi 0, %s67
    %s69 = sphi 0, %s67
    %s70 = sphi 0, %s69
    %s84 = sphi 0, %s70
    %s88 = sphi 0, %s88
    %s90 = sphi 0, %s88
    %s91 = sphi 0, %s90
    %s105 = sphi 0, %s91
    %s111 = sphi 0, %s113
    %s114 = sphi 0, %s111
    %s115 = sphi 0, %s114
    %s131 = sphi 0, %s115
    %s137 = sphi 0, %s139
    %s140 = sphi 0, %s137
    %s141 = sphi 0, %s140
    %s157 = sphi 0, %s141
  $region4: #{basic_block_forward_nhwc.3} parent=0 // loop_header_branch
    %15 = sbr.rel (%p13) target = $region8
  $region5: #{basic_block_forward_nhwc.3} parent=0 // loop_body
    %s17 = ssub.s32 %s12, 1
    %s18 = ssub.s32 %s12, 2
    %s19 = sadd.s32 %s12, 1
    %s20 = ssub.s32 %s12, %s19
    %p21 = scmp.eq.s32.totalorder %s20, 0
    %s23 = sadd.s32 %s22, 1
    %s24 = scalar_select %p21, %s22, %s23
    %p27 = pneg %p21
    %p28 = scmp.eq.s32.totalorder %s12, 1
    %p29 = por %p27, %p28
    %p30 = scmp.ne.s32.totalorder %s22, %s25
    %p31 = scmp.eq.s32.totalorder %s12, 0
    %p32 = por %p30, %p31
    %p33 = scmp.ne.s32.totalorder %s22, %s25
    %p34 = scmp.eq.s32.totalorder %s17, 1
    %p35 = por %p33, %p34
    %p36 = scmp.ne.s32.totalorder %s25, %s26
    %p37 = scmp.eq.s32.totalorder %s17, 0
    %p38 = por %p36, %p37
    %p39 = scmp.ne.s32.totalorder %s25, %s26
    %p40 = scmp.eq.s32.totalorder %s18, 1
    %p41 = por %p39, %p40
    %p43 = scmp.ne.s32.totalorder %s26, %s42
    %p44 = scmp.eq.s32.totalorder %s18, 0
    %p45 = por %p43, %p44
    %s47 = sadd.s32 %s46, 1
    %p50 = scmp.eq.s32.totalorder %s12, 1
    %p51 = scmp.ne.s32.totalorder %s46, %s48
    %p52 = scmp.eq.s32.totalorder %s12, 0
    %p53 = por %p51, %p52
    %p54 = scmp.ne.s32.totalorder %s46, %s48
    %p55 = scmp.eq.s32.totalorder %s17, 1
    %p56 = por %p54, %p55
    %p57 = scmp.ne.s32.totalorder %s48, %s49
    %p58 = scmp.eq.s32.totalorder %s17, 0
    %p59 = por %p57, %p58
    %p60 = scmp.ne.s32.totalorder %s48, %s49
    %p61 = scmp.eq.s32.totalorder %s18, 1
    %p62 = por %p60, %p61
    %p64 = scmp.ne.s32.totalorder %s49, %s63
    %p65 = scmp.eq.s32.totalorder %s18, 0
    %p66 = por %p64, %p65
    %s68 = sadd.s32 %s67, 1
    %p71 = scmp.eq.s32.totalorder %s12, 1
    %p72 = scmp.ne.s32.totalorder %s67, %s69
    %p73 = scmp.eq.s32.totalorder %s12, 0
    %p74 = por %p72, %p73
    %p75 = scmp.ne.s32.totalorder %s67, %s69
    %p76 = scmp.eq.s32.totalorder %s17, 1
    %p77 = por %p75, %p76
    %p78 = scmp.ne.s32.totalorder %s69, %s70
    %p79 = scmp.eq.s32.totalorder %s17, 0
    %p80 = por %p78, %p79
    %p81 = scmp.ne.s32.totalorder %s69, %s70
    %p82 = scmp.eq.s32.totalorder %s18, 1
    %p83 = por %p81, %p82
    %p85 = scmp.ne.s32.totalorder %s70, %s84
    %p86 = scmp.eq.s32.totalorder %s18, 0
    %p87 = por %p85, %p86
    %s89 = sadd.s32 %s88, 1
    %p92 = scmp.eq.s32.totalorder %s12, 1
    %p93 = scmp.ne.s32.totalorder %s88, %s90
    %p94 = scmp.eq.s32.totalorder %s12, 0
    %p95 = por %p93, %p94
    %p96 = scmp.ne.s32.totalorder %s88, %s90
    %p97 = scmp.eq.s32.totalorder %s17, 1
    %p98 = por %p96, %p97
    %p99 = scmp.ne.s32.totalorder %s90, %s91
    %p100 = scmp.eq.s32.totalorder %s17, 0
    %p101 = por %p99, %p100
    %p102 = scmp.ne.s32.totalorder %s90, %s91
    %p103 = scmp.eq.s32.totalorder %s18, 1
    %p104 = por %p102, %p103
    %p106 = scmp.ne.s32.totalorder %s91, %s105
    %p107 = scmp.eq.s32.totalorder %s18, 0
    %p108 = por %p106, %p107
    %s109 = ssub.s32 %s12, %s19
    %p110 = scmp.eq.s32.totalorder %s109, 0
    %s112 = sadd.s32 %s111, 1
    %s113 = scalar_select %p110, %s111, %s112
    %p116 = pneg %p110
    %p117 = scmp.eq.s32.totalorder %s12, 1
    %p118 = por %p116, %p117
    %p119 = scmp.ne.s32.totalorder %s111, %s114
    %p120 = scmp.eq.s32.totalorder %s12, 0
    %p121 = por %p119, %p120
    %p122 = scmp.ne.s32.totalorder %s111, %s114
    %p123 = scmp.eq.s32.totalorder %s17, 1
    %p124 = por %p122, %p123
    %p125 = scmp.ne.s32.totalorder %s114, %s115
    %p126 = scmp.eq.s32.totalorder %s17, 0
    %p127 = por %p125, %p126
    %p128 = scmp.ne.s32.totalorder %s114, %s115
    %p129 = scmp.eq.s32.totalorder %s18, 1
    %p130 = por %p128, %p129
    %p132 = scmp.ne.s32.totalorder %s115, %s131
    %p133 = scmp.eq.s32.totalorder %s18, 0
    %p134 = por %p132, %p133
    %s135 = ssub.s32 %s12, %s19
    %p136 = scmp.eq.s32.totalorder %s135, 0
    %s138 = sadd.s32 %s137, 1
    %s139 = scalar_select %p136, %s137, %s138
    %p142 = pneg %p136
    %p143 = scmp.eq.s32.totalorder %s12, 1
    %p144 = por %p142, %p143
    %p145 = scmp.ne.s32.totalorder %s137, %s140
    %p146 = scmp.eq.s32.totalorder %s12, 0
    %p147 = por %p145, %p146
    %p148 = scmp.ne.s32.totalorder %s137, %s140
    %p149 = scmp.eq.s32.totalorder %s17, 1
    %p150 = por %p148, %p149
    %p151 = scmp.ne.s32.totalorder %s140, %s141
    %p152 = scmp.eq.s32.totalorder %s17, 0
    %p153 = por %p151, %p152
    %p154 = scmp.ne.s32.totalorder %s140, %s141
    %p155 = scmp.eq.s32.totalorder %s18, 1
    %p156 = por %p154, %p155
    %p158 = scmp.ne.s32.totalorder %s141, %s157
    %p159 = scmp.eq.s32.totalorder %s18, 0
    %p160 = por %p158, %p159
    %p161 = scmp.le.s32.totalorder 1, %s12
    %p162 = scmp.lt.s32.totalorder %s12, 3
    %p163 = pnand %p161, %p162
    %p164 = pneg %p163
    // Predicated region
    $region9: #{basic_block_forward_nhwc.3} parent=5 // pred_check
      _
    $region10: #{basic_block_forward_nhwc.3} parent=5 // pred_check_branch
      %166 = sbr.rel (%p163) target = $region12
    $region11: #{basic_block_forward_nhwc.3} parent=5 // pred_region
      %s167 = ssub.s32 %s12, 1
      // Predicated region
      $region13: #{basic_block_forward_nhwc.3} parent=11 // pred_check
        %p168 = pneg %p59
      $region14: #{basic_block_forward_nhwc.3} parent=11 // pred_check_branch
        %170 = sbr.rel (%p168) target = $region16
      $region15: #{basic_block_forward_nhwc.3} parent=11 // pred_region
        _
      $region16: #{basic_block_forward_nhwc.3} parent=11 // pred_fallthru
        _
      // Predicated region
      $region17: #{basic_block_forward_nhwc.3} parent=11 // pred_check
        %p171 = pneg %p80
      $region18: #{basic_block_forward_nhwc.3} parent=11 // pred_check_branch
        %173 = sbr.rel (%p171) target = $region20
      $region19: #{basic_block_forward_nhwc.3} parent=11 // pred_region
        _
      $region20: #{basic_block_forward_nhwc.3} parent=11 // pred_fallthru
        _
      // Predicated region
      $region21: #{basic_block_forward_nhwc.3} parent=11 // pred_check
        %p174 = pneg %p101
      $region22: #{basic_block_forward_nhwc.3} parent=11 // pred_check_branch
        %176 = sbr.rel (%p174) target = $region24
      $region23: #{basic_block_forward_nhwc.3} parent=11 // pred_region
        _
      $region24: #{basic_block_forward_nhwc.3} parent=11 // pred_fallthru
        _
    $region12: #{basic_block_forward_nhwc.3} parent=5 // pred_fallthru
      _
    %p177 = scmp.lt.s32.totalorder %s12, 2
    // Predicated region
    $region25: #{basic_block_forward_nhwc.3} parent=5 // pred_check
      %p178 = pneg %p177
    $region26: #{basic_block_forward_nhwc.3} parent=5 // pred_check_branch
      %180 = sbr.rel (%p178) target = $region28
    $region27: #{basic_block_forward_nhwc.3} parent=5 // pred_region
      // Predicated region
      $region29: #{basic_block_forward_nhwc.3} parent=27 // pred_check
        %p181 = pneg %p32
      $region30: #{basic_block_forward_nhwc.3} parent=27 // pred_check_branch
        %183 = sbr.rel (%p181) target = $region32
      $region31: #{basic_block_forward_nhwc.3} parent=27 // pred_region
        %p184 = scmp.lt.s32.totalorder %s12, 1
        %s185 = scalar_select %p184, %s12, 1
        %s186 = smul.addr %s185, 32
        %s187 = smul.addr %s186, 8
        %s188 = scalar_lea.vmem %s0, %s187
      $region32: #{basic_block_forward_nhwc.3} parent=27 // pred_fallthru
        _
    $region28: #{basic_block_forward_nhwc.3} parent=5 // pred_fallthru
      _
    %p189 = scmp.le.s32.totalorder 1, %s12
    %p190 = scmp.lt.s32.totalorder %s12, 3
    %p191 = pnand %p189, %p190
    %p192 = pneg %p191
    // Predicated region
    $region33: #{basic_block_forward_nhwc.3} parent=5 // pred_check
      _
    $region34: #{basic_block_forward_nhwc.3} parent=5 // pred_check_branch
      %194 = sbr.rel (%p191) target = $region36
    $region35: #{basic_block_forward_nhwc.3} parent=5 // pred_region
      %s195 = ssub.s32 %s12, 1
      %p196 = scmp.lt.s32.totalorder %s17, 1
      %s197 = scalar_select %p196, %s17, 1
      %s198 = smul.addr %s197, 32
      %s199 = smul.addr %s198, 8
      %s200 = scalar_lea.vmem %s0, %s199
      %p201 = pneg %p38
      %p202 = pneg %p35
      %p203 = pneg %p59
      %p204 = pneg %p56
      %p205 = pneg %p80
      %p206 = pneg %p77
      %p207 = pneg %p101
      %p208 = pneg %p98
      %p209 = pneg %p127
      %p210 = pneg %p124
      %p211 = scmp.lt.s32.totalorder %s17, 1
      %s212 = scalar_select %p211, %s17, 1
      %s213 = smul.addr %s212, 32
      %s214 = smul.addr %s213, 8
      %s215 = scalar_lea.vmem %s4, %s214
      %p216 = pneg %p153
      %p217 = pneg %p150
      %p218 = scmp.lt.s32.totalorder %s17, 1
      %s219 = scalar_select %p218, %s17, 1
      %s220 = smul.addr %s219, 2
      %s221 = scalar_lea.vmem %s5, %s220
      %p222 = scmp.lt.s32.totalorder %s17, 1
      %s223 = scalar_select %p222, %s17, 1
      %s224 = smul.addr %s223, 32
      %s225 = smul.addr %s224, 8
      %s226 = scalar_lea.vmem %s0, %s225
      %p227 = scmp.lt.s32.totalorder %s17, 1
      %s228 = scalar_select %p227, %s17, 1
      %s229 = smul.addr %s228, 32
      %s230 = smul.addr %s229, 8
      %s231 = scalar_lea.vmem %s4, %s230
      %p232 = scmp.lt.s32.totalorder %s17, 1
      %s233 = scalar_select %p232, %s17, 1
      %s234 = smul.addr %s233, 2
      %s235 = scalar_lea.vmem %s5, %s234
      %v236 = vld [vmem:[%s226] sm:$0xff]
      %v237 = vld [vmem:[%s226 + $0x8] sm:$0xff]
      %v238 = vld [vmem:[%s226 + $0x10] sm:$0xff]
      %v239 = vld [vmem:[%s226 + $0x18] sm:$0xff]
      %v240 = vld [vmem:[%s226 + $0x20] sm:$0xff]
      %v241 = vld [vmem:[%s226 + $0x28] sm:$0xff]
      %v242 = vld [vmem:[%s226 + $0x30] sm:$0xff]
      %v243 = vld [vmem:[%s226 + $0x38] sm:$0xff]
      %v244 = vld [vmem:[%s226 + $0x40] sm:$0xff]
      %v245 = vld [vmem:[%s226 + $0x48] sm:$0xff]
      %v246 = vld [vmem:[%s226 + $0x50] sm:$0xff]
      %v247 = vld [vmem:[%s226 + $0x58] sm:$0xff]
      %v248 = vld [vmem:[%s226 + $0x60] sm:$0xff]
      %v249 = vld [vmem:[%s226 + $0x68] sm:$0xff]
      %v250 = vld [vmem:[%s226 + $0x70] sm:$0xff]
      %v251 = vld [vmem:[%s226 + $0x78] sm:$0xff]
      %v252 = vld [vmem:[%s226 + $0x80] sm:$0xff]
      %v253 = vld [vmem:[%s226 + $0x88] sm:$0xff]
      %v254 = vld [vmem:[%s226 + $0x90] sm:$0xff]
      %v255 = vld [vmem:[%s226 + $0x98] sm:$0xff]
      %v256 = vld [vmem:[%s226 + $0xa0] sm:$0xff]
      %v257 = vld [vmem:[%s226 + $0xa8] sm:$0xff]
      %v258 = vld [vmem:[%s226 + $0xb0] sm:$0xff]
      %v259 = vld [vmem:[%s226 + $0xb8] sm:$0xff]
      %v260 = vld [vmem:[%s226 + $0xc0] sm:$0xff]
      %v261 = vld [vmem:[%s226 + $0xc8] sm:$0xff]
      %v262 = vld [vmem:[%s226 + $0xd0] sm:$0xff]
      %v263 = vld [vmem:[%s226 + $0xd8] sm:$0xff]
      %v264 = vld [vmem:[%s226 + $0xe0] sm:$0xff]
      %v265 = vld [vmem:[%s226 + $0xe8] sm:$0xff]
      %v266 = vld [vmem:[%s226 + $0xf0] sm:$0xff]
      %v267 = vld [vmem:[%s226 + $0xf8] sm:$0xff]
      %268 = vst [vmem:[#allocation2] sm:$0xff] 0.0
      %269 = vst [vmem:[#allocation2 + $0x8] sm:$0xff] 0.0
      %270 = vst [vmem:[#allocation2 + $0x10] sm:$0x3] 0.0
      %271 = vst [vmem:[#allocation2 + $0x18] sm:$0xff] 0.0
      %272 = vst [vmem:[#allocation2 + $0x20] sm:$0xff] 0.0
      %273 = vst [vmem:[#allocation2 + $0x28] sm:$0x3] 0.0
      %274 = vst [vmem:[#allocation2 + $0x30] sm:$0xff] 0.0
      %275 = vst [vmem:[#allocation2 + $0x38] sm:$0xff] 0.0
      %276 = vst [vmem:[#allocation2 + $0x40] sm:$0x3] 0.0
      %277 = vst [vmem:[#allocation2 + $0x48] sm:$0xff] 0.0
      %278 = vst [vmem:[#allocation2 + $0x50] sm:$0xff] 0.0
      %279 = vst [vmem:[#allocation2 + $0x58] sm:$0x3] 0.0
      %280 = vst [vmem:[#allocation2 + $0x60] sm:$0xff] 0.0
      %281 = vst [vmem:[#allocation2 + $0x68] sm:$0xff] 0.0
      %282 = vst [vmem:[#allocation2 + $0x70] sm:$0x3] 0.0
      %283 = vst [vmem:[#allocation2 + $0x78] sm:$0xff] 0.0
      %284 = vst [vmem:[#allocation2 + $0x80] sm:$0xff] 0.0
      %285 = vst [vmem:[#allocation2 + $0x88] sm:$0x3] 0.0
      %286 = vst [vmem:[#allocation2 + $0x90] sm:$0xff] 0.0
      %287 = vst [vmem:[#allocation2 + $0x98] sm:$0xff] 0.0
      %288 = vst [vmem:[#allocation2 + $0xa0] sm:$0x3] 0.0
      %289 = vst [vmem:[#allocation2 + $0xa8] sm:$0xff] 0.0
      %290 = vst [vmem:[#allocation2 + $0xb0] sm:$0xff] 0.0
      %291 = vst [vmem:[#allocation2 + $0xb8] sm:$0x3] 0.0
      %292 = vst [vmem:[#allocation2 + $0xc0] sm:$0xff] 0.0
      %293 = vst [vmem:[#allocation2 + $0xc8] sm:$0xff] 0.0
      %294 = vst [vmem:[#allocation2 + $0xd0] sm:$0x3] 0.0
      %295 = vst [vmem:[#allocation2 + $0xd8] sm:$0xff] 0.0
      %296 = vst [vmem:[#allocation2 + $0xe0] sm:$0xff] 0.0
      %297 = vst [vmem:[#allocation2 + $0xe8] sm:$0x3] 0.0
      %298 = vst [vmem:[#allocation2 + $0xf0] sm:$0xff] 0.0
      %299 = vst [vmem:[#allocation2 + $0xf8] sm:$0xff] 0.0
      %300 = vst [vmem:[#allocation2 + $0x100] sm:$0x3] 0.0
      %301 = vst [vmem:[#allocation2 + $0x108] sm:$0xff] 0.0
      %302 = vst [vmem:[#allocation2 + $0x110] sm:$0xff] 0.0
      %303 = vst [vmem:[#allocation2 + $0x118] sm:$0x3] 0.0
      %304 = vst [vmem:[#allocation2 + $0x120] sm:$0xff] 0.0
      %305 = vst [vmem:[#allocation2 + $0x128] sm:$0xff] 0.0
      %306 = vst [vmem:[#allocation2 + $0x130] sm:$0x3] 0.0
      %307 = vst [vmem:[#allocation2 + $0x138] sm:$0xff] 0.0
      %308 = vst [vmem:[#allocation2 + $0x140] sm:$0xff] 0.0
      %309 = vst [vmem:[#allocation2 + $0x148] sm:$0x3] 0.0
      %310 = vst [vmem:[#allocation2 + $0x150] sm:$0xff] 0.0
      %311 = vst [vmem:[#allocation2 + $0x158] sm:$0xff] 0.0
      %312 = vst [vmem:[#allocation2 + $0x160] sm:$0x3] 0.0
      %313 = vst [vmem:[#allocation2 + $0x168] sm:$0xff] 0.0
      %314 = vst [vmem:[#allocation2 + $0x170] sm:$0xff] 0.0
      %315 = vst [vmem:[#allocation2 + $0x178] sm:$0x3] 0.0
      %316 = vst [vmem:[#allocation2 + $0x180] sm:$0xff] 0.0
      %317 = vst [vmem:[#allocation2 + $0x188] sm:$0xff] 0.0
      %318 = vst [vmem:[#allocation2 + $0x190] sm:$0x3] 0.0
      %319 = vst [vmem:[#allocation2 + $0x198] sm:$0xff] 0.0
      %320 = vst [vmem:[#allocation2 + $0x1a0] sm:$0xff] 0.0
      %321 = vst [vmem:[#allocation2 + $0x1a8] sm:$0x3] 0.0
      %s322 = scalar_lea.vmem [#allocation2], 24
      %323 = vst [vmem:[%s322 + $0x1] sm:$0xff] %v236
      %324 = vst [vmem:[%s322 + $0x9] sm:$0xff] %v237
      %325 = vst [vmem:[%s322 + $0x19] sm:$0xff] %v238
      %326 = vst [vmem:[%s322 + $0x21] sm:$0xff] %v239
      %327 = vst [vmem:[%s322 + $0x31] sm:$0xff] %v240
      %328 = vst [vmem:[%s322 + $0x39] sm:$0xff] %v241
      %329 = vst [vmem:[%s322 + $0x49] sm:$0xff] %v242
      %330 = vst [vmem:[%s322 + $0x51] sm:$0xff] %v243
      %331 = vst [vmem:[%s322 + $0x61] sm:$0xff] %v244
      %332 = vst [vmem:[%s322 + $0x69] sm:$0xff] %v245
      %333 = vst [vmem:[%s322 + $0x79] sm:$0xff] %v246
      %334 = vst [vmem:[%s322 + $0x81] sm:$0xff] %v247
      %335 = vst [vmem:[%s322 + $0x91] sm:$0xff] %v248
      %336 = vst [vmem:[%s322 + $0x99] sm:$0xff] %v249
      %337 = vst [vmem:[%s322 + $0xa9] sm:$0xff] %v250
      %338 = vst [vmem:[%s322 + $0xb1] sm:$0xff] %v251
      %339 = vst [vmem:[%s322 + $0xc1] sm:$0xff] %v252
      %340 = vst [vmem:[%s322 + $0xc9] sm:$0xff] %v253
      %341 = vst [vmem:[%s322 + $0xd9] sm:$0xff] %v254
      %342 = vst [vmem:[%s322 + $0xe1] sm:$0xff] %v255
      %343 = vst [vmem:[%s322 + $0xf1] sm:$0xff] %v256
      %344 = vst [vmem:[%s322 + $0xf9] sm:$0xff] %v257
      %345 = vst [vmem:[%s322 + $0x109] sm:$0xff] %v258
      %346 = vst [vmem:[%s322 + $0x111] sm:$0xff] %v259
      %347 = vst [vmem:[%s322 + $0x121] sm:$0xff] %v260
      %348 = vst [vmem:[%s322 + $0x129] sm:$0xff] %v261
      %349 = vst [vmem:[%s322 + $0x139] sm:$0xff] %v262
      %350 = vst [vmem:[%s322 + $0x141] sm:$0xff] %v263
      %351 = vst [vmem:[%s322 + $0x151] sm:$0xff] %v264
      %352 = vst [vmem:[%s322 + $0x159] sm:$0xff] %v265
      %353 = vst [vmem:[%s322 + $0x169] sm:$0xff] %v266
      %354 = vst [vmem:[%s322 + $0x171] sm:$0xff] %v267
      %v355 = vld [vmem:[#allocation2] sm:$0xff]
      %v356 = vld [vmem:[#allocation2 + $0x8] sm:$0xff]
      %v357 = vld [vmem:[#allocation2 + $0x18] sm:$0xff]
      %v358 = vld [vmem:[#allocation2 + $0x20] sm:$0xff]
      %v359 = vld [vmem:[#allocation2 + $0x30] sm:$0xff]
      %v360 = vld [vmem:[#allocation2 + $0x38] sm:$0xff]
      %v361 = vld [vmem:[#allocation2 + $0x48] sm:$0xff]
      %v362 = vld [vmem:[#allocation2 + $0x50] sm:$0xff]
      %v363 = vld [vmem:[#allocation2 + $0x60] sm:$0xff]
      %v364 = vld [vmem:[#allocation2 + $0x68] sm:$0xff]
      %v365 = vld [vmem:[#allocation2 + $0x78] sm:$0xff]
      %v366 = vld [vmem:[#allocation2 + $0x80] sm:$0xff]
      %v367 = vld [vmem:[#allocation2 + $0x90] sm:$0xff]
      %v368 = vld [vmem:[#allocation2 + $0x98] sm:$0xff]
      %v369 = vld [vmem:[#allocation2 + $0xa8] sm:$0xff]
      %v370 = vld [vmem:[#allocation2 + $0xb0] sm:$0xff]
      %v371 = vld [vmem:[#allocation2 + $0xc0] sm:$0xff]
      %v372 = vld [vmem:[#allocation2 + $0xc8] sm:$0xff]
      %v373 = vld [vmem:[#allocation2 + $0xd8] sm:$0xff]
      %v374 = vld [vmem:[#allocation2 + $0xe0] sm:$0xff]
      %v375 = vld [vmem:[#allocation2 + $0xf0] sm:$0xff]
      %v376 = vld [vmem:[#allocation2 + $0xf8] sm:$0xff]
      %v377 = vld [vmem:[#allocation2 + $0x108] sm:$0xff]
      %v378 = vld [vmem:[#allocation2 + $0x110] sm:$0xff]
      %v379 = vld [vmem:[#allocation2 + $0x120] sm:$0xff]
      %v380 = vld [vmem:[#allocation2 + $0x128] sm:$0xff]
      %v381 = vld [vmem:[#allocation2 + $0x138] sm:$0xff]
      %v382 = vld [vmem:[#allocation2 + $0x140] sm:$0xff]
      %v383 = vld [vmem:[#allocation2 + $0x150] sm:$0xff]
      %v384 = vld [vmem:[#allocation2 + $0x158] sm:$0xff]
      %v385 = vld [vmem:[#allocation2 + $0x168] sm:$0xff]
      %v386 = vld [vmem:[#allocation2 + $0x170] sm:$0xff]
      %v387 = vld [vmem:[%s1] sm:$0xff]
      %v388 = vld [vmem:[%s1 + $0x8] sm:$0xff]
      %v389 = vld [vmem:[%s1 + $0x10] sm:$0xff]
      %v390 = vld [vmem:[%s1 + $0x18] sm:$0xff]
      %v391 = vld [vmem:[%s1 + $0x20] sm:$0xff]
      %v392 = vld [vmem:[%s1 + $0x28] sm:$0xff]
      %v393 = vld [vmem:[%s1 + $0x30] sm:$0xff]
      %v394 = vld [vmem:[%s1 + $0x38] sm:$0xff]
      %v395 = vld [vmem:[%s1 + $0x40] sm:$0xff]
      %v396 = vld [vmem:[%s1 + $0x48] sm:$0xff]
      %v397 = vld [vmem:[%s1 + $0x50] sm:$0xff]
      %v398 = vld [vmem:[%s1 + $0x58] sm:$0xff]
      %v399 = vld [vmem:[%s1 + $0x60] sm:$0xff]
      %v400 = vld [vmem:[%s1 + $0x68] sm:$0xff]
      %v401 = vld [vmem:[%s1 + $0x70] sm:$0xff]
      %v402 = vld [vmem:[%s1 + $0x78] sm:$0xff]
      %403 = vmatprep.subr.mxu0 0.0
      %404 = vmatpush1.msra.mxu0 %v402
      %405 = vmatprep.subr.mxu0 0.0
      %406 = vmatpush1.msra.mxu0 %v401
      %407 = vmatprep.subr.mxu0 0.0
      %408 = vmatpush1.msra.mxu0 %v400
      %409 = vmatprep.subr.mxu0 0.0
      %410 = vmatpush1.msra.mxu0 %v399
      %411 = vmatprep.subr.mxu0 0.0
      %412 = vmatpush1.msra.mxu0 %v398
      %413 = vmatprep.subr.mxu0 0.0
      %414 = vmatpush1.msra.mxu0 %v397
      %415 = vmatprep.subr.mxu0 0.0
      %416 = vmatpush1.msra.mxu0 %v396
      %417 = vmatprep.subr.mxu0 0.0
      %418 = vmatpush1.msra.mxu0 %v395
      %419 = vmatprep.subr.mxu0 0.0
      %420 = vmatpush1.msra.mxu0 %v394
      %421 = vmatprep.subr.mxu0 0.0
      %422 = vmatpush1.msra.mxu0 %v393
      %423 = vmatprep.subr.mxu0 0.0
      %424 = vmatpush1.msra.mxu0 %v392
      %425 = vmatprep.subr.mxu0 0.0
      %426 = vmatpush1.msra.mxu0 %v391
      %427 = vmatprep.subr.mxu0 0.0
      %428 = vmatpush1.msra.mxu0 %v390
      %429 = vmatprep.subr.mxu0 0.0
      %430 = vmatpush1.msra.mxu0 %v389
      %431 = vmatprep.subr.mxu0 0.0
      %432 = vmatpush1.msra.mxu0 %v388
      %433 = vmatprep.subr.mxu0 0.0
      %434 = vmatpush1.msra.mxu0 %v387
      %435 = vmatprep.subr.mxu0 0.0
      %436 = vmatpush2.msra.mxu0 0.0
      %437 = vmatprep.subr.mxu0 0.0
      %438 = vmatpush2.msra.mxu0 0.0
      %439 = vmatprep.subr.mxu0 0.0
      %440 = vmatpush2.msra.mxu0 0.0
      %441 = vmatprep.subr.mxu0 0.0
      %442 = vmatpush2.msra.mxu0 0.0
      %443 = vmatprep.subr.mxu0 0.0
      %444 = vmatpush2.msra.mxu0 0.0
      %445 = vmatprep.subr.mxu0 0.0
      %446 = vmatpush2.msra.mxu0 0.0
      %447 = vmatprep.subr.mxu0 0.0
      %448 = vmatpush2.msra.mxu0 0.0
      %449 = vmatprep.subr.mxu0 0.0
      %450 = vmatpush2.msra.mxu0 0.0
      %451 = vmatprep.subr.mxu0 0.0
      %452 = vmatpush2.msra.mxu0 0.0
      %453 = vmatprep.subr.mxu0 0.0
      %454 = vmatpush2.msra.mxu0 0.0
      %455 = vmatprep.subr.mxu0 0.0
      %456 = vmatpush2.msra.mxu0 0.0
      %457 = vmatprep.subr.mxu0 0.0
      %458 = vmatpush2.msra.mxu0 0.0
      %459 = vmatprep.subr.mxu0 0.0
      %460 = vmatpush2.msra.mxu0 0.0
      %461 = vmatprep.subr.mxu0 0.0
      %462 = vmatpush2.msra.mxu0 0.0
      %463 = vmatprep.subr.mxu0 0.0
      %464 = vmatpush2.msra.mxu0 0.0
      %465 = vmatprep.subr.mxu0 0.0
      %466 = vmatpush2.msra.mxu0 0.0
      %467 = vmatprep.mubr.f32.mxu0 0.0
      %468 = vmatmul.mubr.f32.gmra.mxu0 %v355
      %v469 = vpop.f32.mrf.mxu0
      %v470 = vadd.f32 0.0, %v469
      %v471 = vpop.f32.mrf.mxu0
      %472 = vmatprep.mubr.f32.mxu0 0.0
      %473 = vmatmul.mubr.f32.gmra.mxu0 %v356
      %v474 = vpop.f32.mrf.mxu0
      %v475 = vadd.f32 0.0, %v474
      %v476 = vpop.f32.mrf.mxu0
      %477 = vmatprep.mubr.f32.mxu0 0.0
      %478 = vmatmul.mubr.f32.gmra.mxu0 %v357
      %v479 = vpop.f32.mrf.mxu0
      %v480 = vadd.f32 0.0, %v479
      %v481 = vpop.f32.mrf.mxu0
      %482 = vmatprep.mubr.f32.mxu0 0.0
      %483 = vmatmul.mubr.f32.gmra.mxu0 %v358
      %v484 = vpop.f32.mrf.mxu0
      %v485 = vadd.f32 0.0, %v484
      %v486 = vpop.f32.mrf.mxu0
      %487 = vmatprep.mubr.f32.mxu0 0.0
      %488 = vmatmul.mubr.f32.gmra.mxu0 %v359
      %v489 = vpop.f32.mrf.mxu0
      %v490 = vadd.f32 0.0, %v489
      %v491 = vpop.f32.mrf.mxu0
      %492 = vmatprep.mubr.f32.mxu0 0.0
      %493 = vmatmul.mubr.f32.gmra.mxu0 %v360
      %v494 = vpop.f32.mrf.mxu0
      %v495 = vadd.f32 0.0, %v494
      %v496 = vpop.f32.mrf.mxu0
      %497 = vmatprep.mubr.f32.mxu0 0.0
      %498 = vmatmul.mubr.f32.gmra.mxu0 %v361
      %v499 = vpop.f32.mrf.mxu0
      %v500 = vadd.f32 0.0, %v499
      %v501 = vpop.f32.mrf.mxu0
      %502 = vmatprep.mubr.f32.mxu0 0.0
      %503 = vmatmul.mubr.f32.gmra.mxu0 %v362
      %v504 = vpop.f32.mrf.mxu0
      %v505 = vadd.f32 0.0, %v504
      %v506 = vpop.f32.mrf.mxu0
      %507 = vmatprep.mubr.f32.mxu0 0.0
      %508 = vmatmul.mubr.f32.gmra.mxu0 %v363
      %v509 = vpop.f32.mrf.mxu0
      %v510 = vadd.f32 0.0, %v509
      %v511 = vpop.f32.mrf.mxu0
      %512 = vmatprep.mubr.f32.mxu0 0.0
      %513 = vmatmul.mubr.f32.gmra.mxu0 %v364
      %v514 = vpop.f32.mrf.mxu0
      %v515 = vadd.f32 0.0, %v514
      %v516 = vpop.f32.mrf.mxu0
      %517 = vmatprep.mubr.f32.mxu0 0.0
      %518 = vmatmul.mubr.f32.gmra.mxu0 %v365
      %v519 = vpop.f32.mrf.mxu0
      %v520 = vadd.f32 0.0, %v519
      %v521 = vpop.f32.mrf.mxu0
      %522 = vmatprep.mubr.f32.mxu0 0.0
      %523 = vmatmul.mubr.f32.gmra.mxu0 %v366
      %v524 = vpop.f32.mrf.mxu0
      %v525 = vadd.f32 0.0, %v524
      %v526 = vpop.f32.mrf.mxu0
      %527 = vmatprep.mubr.f32.mxu0 0.0
      %528 = vmatmul.mubr.f32.gmra.mxu0 %v367
      %v529 = vpop.f32.mrf.mxu0
      %v530 = vadd.f32 0.0, %v529
      %v531 = vpop.f32.mrf.mxu0
      %532 = vmatprep.mubr.f32.mxu0 0.0
      %533 = vmatmul.mubr.f32.gmra.mxu0 %v368
      %v534 = vpop.f32.mrf.mxu0
      %v535 = vadd.f32 0.0, %v534
      %v536 = vpop.f32.mrf.mxu0
      %537 = vmatprep.mubr.f32.mxu0 0.0
      %538 = vmatmul.mubr.f32.gmra.mxu0 %v369
      %v539 = vpop.f32.mrf.mxu0
      %v540 = vadd.f32 0.0, %v539
      %v541 = vpop.f32.mrf.mxu0
      %542 = vmatprep.mubr.f32.mxu0 0.0
      %543 = vmatmul.mubr.f32.gmra.mxu0 %v370
      %v544 = vpop.f32.mrf.mxu0
      %v545 = vadd.f32 0.0, %v544
      %v546 = vpop.f32.mrf.mxu0
      %547 = vmatprep.mubr.f32.mxu0 0.0
      %548 = vmatmul.mubr.f32.gmra.mxu0 %v371
      %v549 = vpop.f32.mrf.mxu0
      %v550 = vadd.f32 0.0, %v549
      %v551 = vpop.f32.mrf.mxu0
      %552 = vmatprep.mubr.f32.mxu0 0.0
      %553 = vmatmul.mubr.f32.gmra.mxu0 %v372
      %v554 = vpop.f32.mrf.mxu0
      %v555 = vadd.f32 0.0, %v554
      %v556 = vpop.f32.mrf.mxu0
      %557 = vmatprep.mubr.f32.mxu0 0.0
      %558 = vmatmul.mubr.f32.gmra.mxu0 %v373
      %v559 = vpop.f32.mrf.mxu0
      %v560 = vadd.f32 0.0, %v559
      %v561 = vpop.f32.mrf.mxu0
      %562 = vmatprep.mubr.f32.mxu0 0.0
      %563 = vmatmul.mubr.f32.gmra.mxu0 %v374
      %v564 = vpop.f32.mrf.mxu0
      %v565 = vadd.f32 0.0, %v564
      %v566 = vpop.f32.mrf.mxu0
      %567 = vmatprep.mubr.f32.mxu0 0.0
      %568 = vmatmul.mubr.f32.gmra.mxu0 %v375
      %v569 = vpop.f32.mrf.mxu0
      %v570 = vadd.f32 0.0, %v569
      %v571 = vpop.f32.mrf.mxu0
      %572 = vmatprep.mubr.f32.mxu0 0.0
      %573 = vmatmul.mubr.f32.gmra.mxu0 %v376
      %v574 = vpop.f32.mrf.mxu0
      %v575 = vadd.f32 0.0, %v574
      %v576 = vpop.f32.mrf.mxu0
      %577 = vmatprep.mubr.f32.mxu0 0.0
      %578 = vmatmul.mubr.f32.gmra.mxu0 %v377
      %v579 = vpop.f32.mrf.mxu0
      %v580 = vadd.f32 0.0, %v579
      %v581 = vpop.f32.mrf.mxu0
      %582 = vmatprep.mubr.f32.mxu0 0.0
      %583 = vmatmul.mubr.f32.gmra.mxu0 %v378
      %v584 = vpop.f32.mrf.mxu0
      %v585 = vadd.f32 0.0, %v584
      %v586 = vpop.f32.mrf.mxu0
      %587 = vmatprep.mubr.f32.mxu0 0.0
      %588 = vmatmul.mubr.f32.gmra.mxu0 %v379
      %v589 = vpop.f32.mrf.mxu0
      %v590 = vadd.f32 0.0, %v589
      %v591 = vpop.f32.mrf.mxu0
      %592 = vmatprep.mubr.f32.mxu0 0.0
      %593 = vmatmul.mubr.f32.gmra.mxu0 %v380
      %v594 = vpop.f32.mrf.mxu0
      %v595 = vadd.f32 0.0, %v594
      %v596 = vpop.f32.mrf.mxu0
      %597 = vmatprep.mubr.f32.mxu0 0.0
      %598 = vmatmul.mubr.f32.gmra.mxu0 %v381
      %v599 = vpop.f32.mrf.mxu0
      %v600 = vadd.f32 0.0, %v599
      %v601 = vpop.f32.mrf.mxu0
      %602 = vmatprep.mubr.f32.mxu0 0.0
      %603 = vmatmul.mubr.f32.gmra.mxu0 %v382
      %v604 = vpop.f32.mrf.mxu0
      %v605 = vadd.f32 0.0, %v604
      %v606 = vpop.f32.mrf.mxu0
      %607 = vmatprep.mubr.f32.mxu0 0.0
      %608 = vmatmul.mubr.f32.gmra.mxu0 %v383
      %v609 = vpop.f32.mrf.mxu0
      %v610 = vadd.f32 0.0, %v609
      %v611 = vpop.f32.mrf.mxu0
      %612 = vmatprep.mubr.f32.mxu0 0.0
      %613 = vmatmul.mubr.f32.gmra.mxu0 %v384
      %v614 = vpop.f32.mrf.mxu0
      %v615 = vadd.f32 0.0, %v614
      %v616 = vpop.f32.mrf.mxu0
      %617 = vmatprep.mubr.f32.mxu0 0.0
      %618 = vmatmul.mubr.f32.gmra.mxu0 %v385
      %v619 = vpop.f32.mrf.mxu0
      %v620 = vadd.f32 0.0, %v619
      %v621 = vpop.f32.mrf.mxu0
      %622 = vmatprep.mubr.f32.mxu0 0.0
      %623 = vmatmul.mubr.f32.gmra.mxu0 %v386
      %v624 = vpop.f32.mrf.mxu0
      %v625 = vadd.f32 0.0, %v624
      %v626 = vpop.f32.mrf.mxu0
      %627 = vdwg.mxu0
      %628 = vst [vmem:[#allocation3] sm:$0xff] %v470
      %629 = vst [vmem:[#allocation3 + $0x8] sm:$0xff] %v475
      %630 = vst [vmem:[#allocation3 + $0x10] sm:$0xff] %v480
      %631 = vst [vmem:[#allocation3 + $0x18] sm:$0xff] %v485
      %632 = vst [vmem:[#allocation3 + $0x20] sm:$0xff] %v490
      %633 = vst [vmem:[#allocation3 + $0x28] sm:$0xff] %v495
      %634 = vst [vmem:[#allocation3 + $0x30] sm:$0xff] %v500
      %635 = vst [vmem:[#allocation3 + $0x38] sm:$0xff] %v505
      %636 = vst [vmem:[#allocation3 + $0x40] sm:$0xff] %v510
      %637 = vst [vmem:[#allocation3 + $0x48] sm:$0xff] %v515
      %638 = vst [vmem:[#allocation3 + $0x50] sm:$0xff] %v520
      %639 = vst [vmem:[#allocation3 + $0x58] sm:$0xff] %v525
      %640 = vst [vmem:[#allocation3 + $0x60] sm:$0xff] %v530
      %641 = vst [vmem:[#allocation3 + $0x68] sm:$0xff] %v535
      %642 = vst [vmem:[#allocation3 + $0x70] sm:$0xff] %v540
      %643 = vst [vmem:[#allocation3 + $0x78] sm:$0xff] %v545
      %644 = vst [vmem:[#allocation3 + $0x80] sm:$0xff] %v550
      %645 = vst [vmem:[#allocation3 + $0x88] sm:$0xff] %v555
      %646 = vst [vmem:[#allocation3 + $0x90] sm:$0xff] %v560
      %647 = vst [vmem:[#allocation3 + $0x98] sm:$0xff] %v565
      %648 = vst [vmem:[#allocation3 + $0xa0] sm:$0xff] %v570
      %649 = vst [vmem:[#allocation3 + $0xa8] sm:$0xff] %v575
      %650 = vst [vmem:[#allocation3 + $0xb0] sm:$0xff] %v580
      %651 = vst [vmem:[#allocation3 + $0xb8] sm:$0xff] %v585
      %652 = vst [vmem:[#allocation3 + $0xc0] sm:$0xff] %v590
      %653 = vst [vmem:[#allocation3 + $0xc8] sm:$0xff] %v595
      %654 = vst [vmem:[#allocation3 + $0xd0] sm:$0xff] %v600
      %655 = vst [vmem:[#allocation3 + $0xd8] sm:$0xff] %v605
      %656 = vst [vmem:[#allocation3 + $0xe0] sm:$0xff] %v610
      %657 = vst [vmem:[#allocation3 + $0xe8] sm:$0xff] %v615
      %658 = vst [vmem:[#allocation3 + $0xf0] sm:$0xff] %v620
      %659 = vst [vmem:[#allocation3 + $0xf8] sm:$0xff] %v625
      %v660 = vld [vmem:[#allocation2 + $0x1] sm:$0xff]
      %v661 = vld [vmem:[#allocation2 + $0x9] sm:$0xff]
      %v662 = vld [vmem:[#allocation2 + $0x19] sm:$0xff]
      %v663 = vld [vmem:[#allocation2 + $0x21] sm:$0xff]
      %v664 = vld [vmem:[#allocation2 + $0x31] sm:$0xff]
      %v665 = vld [vmem:[#allocation2 + $0x39] sm:$0xff]
      %v666 = vld [vmem:[#allocation2 + $0x49] sm:$0xff]
      %v667 = vld [vmem:[#allocation2 + $0x51] sm:$0xff]
      %v668 = vld [vmem:[#allocation2 + $0x61] sm:$0xff]
      %v669 = vld [vmem:[#allocation2 + $0x69] sm:$0xff]
      %v670 = vld [vmem:[#allocation2 + $0x79] sm:$0xff]
      %v671 = vld [vmem:[#allocation2 + $0x81] sm:$0xff]
      %v672 = vld [vmem:[#allocation2 + $0x91] sm:$0xff]
      %v673 = vld [vmem:[#allocation2 + $0x99] sm:$0xff]
      %v674 = vld [vmem:[#allocation2 + $0xa9] sm:$0xff]
      %v675 = vld [vmem:[#allocation2 + $0xb1] sm:$0xff]
      %v676 = vld [vmem:[#allocation2 + $0xc1] sm:$0xff]
      %v677 = vld [vmem:[#allocation2 + $0xc9] sm:$0xff]
      %v678 = vld [vmem:[#allocation2 + $0xd9] sm:$0xff]
      %v679 = vld [vmem:[#allocation2 + $0xe1] sm:$0xff]
      %v680 = vld [vmem:[#allocation2 + $0xf1] sm:$0xff]
      %v681 = vld [vmem:[#allocation2 + $0xf9] sm:$0xff]
      %v682 = vld [vmem:[#allocation2 + $0x109] sm:$0xff]
      %v683 = vld [vmem:[#allocation2 + $0x111] sm:$0xff]
      %v684 = vld [vmem:[#allocation2 + $0x121] sm:$0xff]
      %v685 = vld [vmem:[#allocation2 + $0x129] sm:$0xff]
      %v686 = vld [vmem:[#allocation2 + $0x139] sm:$0xff]
      %v687 = vld [vmem:[#allocation2 + $0x141] sm:$0xff]
      %v688 = vld [vmem:[#allocation2 + $0x151] sm:$0xff]
      %v689 = vld [vmem:[#allocation2 + $0x159] sm:$0xff]
      %v690 = vld [vmem:[#allocation2 + $0x169] sm:$0xff]
      %v691 = vld [vmem:[#allocation2 + $0x171] sm:$0xff]
      %s692 = scalar_lea.vmem %s1, 128
      %v693 = vld [vmem:[%s692] sm:$0xff]
      %v694 = vld [vmem:[%s692 + $0x8] sm:$0xff]
      %v695 = vld [vmem:[%s692 + $0x10] sm:$0xff]
      %v696 = vld [vmem:[%s692 + $0x18] sm:$0xff]
      %v697 = vld [vmem:[%s692 + $0x20] sm:$0xff]
      %v698 = vld [vmem:[%s692 + $0x28] sm:$0xff]
      %v699 = vld [vmem:[%s692 + $0x30] sm:$0xff]
      %v700 = vld [vmem:[%s692 + $0x38] sm:$0xff]
      %v701 = vld [vmem:[%s692 + $0x40] sm:$0xff]
      %v702 = vld [vmem:[%s692 + $0x48] sm:$0xff]
      %v703 = vld [vmem:[%s692 + $0x50] sm:$0xff]
      %v704 = vld [vmem:[%s692 + $0x58] sm:$0xff]
      %v705 = vld [vmem:[%s692 + $0x60] sm:$0xff]
      %v706 = vld [vmem:[%s692 + $0x68] sm:$0xff]
      %v707 = vld [vmem:[%s692 + $0x70] sm:$0xff]
      %v708 = vld [vmem:[%s692 + $0x78] sm:$0xff]
      %709 = vmatprep.subr.mxu0 0.0
      %710 = vmatpush1.msra.mxu0 %v708
      %711 = vmatprep.subr.mxu0 0.0
      %712 = vmatpush1.msra.mxu0 %v707
      %713 = vmatprep.subr.mxu0 0.0
      %714 = vmatpush1.msra.mxu0 %v706
      %715 = vmatprep.subr.mxu0 0.0
      %716 = vmatpush1.msra.mxu0 %v705
      %717 = vmatprep.subr.mxu0 0.0
      %718 = vmatpush1.msra.mxu0 %v704
      %719 = vmatprep.subr.mxu0 0.0
      %720 = vmatpush1.msra.mxu0 %v703
      %721 = vmatprep.subr.mxu0 0.0
      %722 = vmatpush1.msra.mxu0 %v702
      %723 = vmatprep.subr.mxu0 0.0
      %724 = vmatpush1.msra.mxu0 %v701
      %725 = vmatprep.subr.mxu0 0.0
      %726 = vmatpush1.msra.mxu0 %v700
      %727 = vmatprep.subr.mxu0 0.0
      %728 = vmatpush1.msra.mxu0 %v699
      %729 = vmatprep.subr.mxu0 0.0
      %730 = vmatpush1.msra.mxu0 %v698
      %731 = vmatprep.subr.mxu0 0.0
      %732 = vmatpush1.msra.mxu0 %v697
      %733 = vmatprep.subr.mxu0 0.0
      %734 = vmatpush1.msra.mxu0 %v696
      %735 = vmatprep.subr.mxu0 0.0
      %736 = vmatpush1.msra.mxu0 %v695
      %737 = vmatprep.subr.mxu0 0.0
      %738 = vmatpush1.msra.mxu0 %v694
      %739 = vmatprep.subr.mxu0 0.0
      %740 = vmatpush1.msra.mxu0 %v693
      %741 = vmatprep.subr.mxu0 0.0
      %742 = vmatpush2.msra.mxu0 0.0
      %743 = vmatprep.subr.mxu0 0.0
      %744 = vmatpush2.msra.mxu0 0.0
      %745 = vmatprep.subr.mxu0 0.0
      %746 = vmatpush2.msra.mxu0 0.0
      %747 = vmatprep.subr.mxu0 0.0
      %748 = vmatpush2.msra.mxu0 0.0
      %749 = vmatprep.subr.mxu0 0.0
      %750 = vmatpush2.msra.mxu0 0.0
      %751 = vmatprep.subr.mxu0 0.0
      %752 = vmatpush2.msra.mxu0 0.0
      %753 = vmatprep.subr.mxu0 0.0
      %754 = vmatpush2.msra.mxu0 0.0
      %755 = vmatprep.subr.mxu0 0.0
      %756 = vmatpush2.msra.mxu0 0.0
      %757 = vmatprep.subr.mxu0 0.0
      %758 = vmatpush2.msra.mxu0 0.0
      %759 = vmatprep.subr.mxu0 0.0
      %760 = vmatpush2.msra.mxu0 0.0
      %761 = vmatprep.subr.mxu0 0.0
      %762 = vmatpush2.msra.mxu0 0.0
      %763 = vmatprep.subr.mxu0 0.0
      %764 = vmatpush2.msra.mxu0 0.0
      %765 = vmatprep.subr.mxu0 0.0
      %766 = vmatpush2.msra.mxu0 0.0
      %767 = vmatprep.subr.mxu0 0.0
      %768 = vmatpush2.msra.mxu0 0.0
      %769 = vmatprep.subr.mxu0 0.0
      %770 = vmatpush2.msra.mxu0 0.0
      %771 = vmatprep.subr.mxu0 0.0
      %772 = vmatpush2.msra.mxu0 0.0
      %773 = vmatprep.mubr.f32.mxu0 0.0
      %774 = vmatmul.mubr.f32.gmra.mxu0 %v660
      %v775 = vpop.f32.mrf.mxu0
      %v776 = vadd.f32 0.0, %v775
      %v777 = vpop.f32.mrf.mxu0
      %778 = vmatprep.mubr.f32.mxu0 0.0
      %779 = vmatmul.mubr.f32.gmra.mxu0 %v661
      %v780 = vpop.f32.mrf.mxu0
      %v781 = vadd.f32 0.0, %v780
      %v782 = vpop.f32.mrf.mxu0
      %783 = vmatprep.mubr.f32.mxu0 0.0
      %784 = vmatmul.mubr.f32.gmra.mxu0 %v662
      %v785 = vpop.f32.mrf.mxu0
      %v786 = vadd.f32 0.0, %v785
      %v787 = vpop.f32.mrf.mxu0
      %788 = vmatprep.mubr.f32.mxu0 0.0
      %789 = vmatmul.mubr.f32.gmra.mxu0 %v663
      %v790 = vpop.f32.mrf.mxu0
      %v791 = vadd.f32 0.0, %v790
      %v792 = vpop.f32.mrf.mxu0
      %793 = vmatprep.mubr.f32.mxu0 0.0
      %794 = vmatmul.mubr.f32.gmra.mxu0 %v664
      %v795 = vpop.f32.mrf.mxu0
      %v796 = vadd.f32 0.0, %v795
      %v797 = vpop.f32.mrf.mxu0
      %798 = vmatprep.mubr.f32.mxu0 0.0
      %799 = vmatmul.mubr.f32.gmra.mxu0 %v665
      %v800 = vpop.f32.mrf.mxu0
      %v801 = vadd.f32 0.0, %v800
      %v802 = vpop.f32.mrf.mxu0
      %803 = vmatprep.mubr.f32.mxu0 0.0
      %804 = vmatmul.mubr.f32.gmra.mxu0 %v666
      %v805 = vpop.f32.mrf.mxu0
      %v806 = vadd.f32 0.0, %v805
      %v807 = vpop.f32.mrf.mxu0
      %808 = vmatprep.mubr.f32.mxu0 0.0
      %809 = vmatmul.mubr.f32.gmra.mxu0 %v667
      %v810 = vpop.f32.mrf.mxu0
      %v811 = vadd.f32 0.0, %v810
      %v812 = vpop.f32.mrf.mxu0
      %813 = vmatprep.mubr.f32.mxu0 0.0
      %814 = vmatmul.mubr.f32.gmra.mxu0 %v668
      %v815 = vpop.f32.mrf.mxu0
      %v816 = vadd.f32 0.0, %v815
      %v817 = vpop.f32.mrf.mxu0
      %818 = vmatprep.mubr.f32.mxu0 0.0
      %819 = vmatmul.mubr.f32.gmra.mxu0 %v669
      %v820 = vpop.f32.mrf.mxu0
      %v821 = vadd.f32 0.0, %v820
      %v822 = vpop.f32.mrf.mxu0
      %823 = vmatprep.mubr.f32.mxu0 0.0
      %824 = vmatmul.mubr.f32.gmra.mxu0 %v670
      %v825 = vpop.f32.mrf.mxu0
      %v826 = vadd.f32 0.0, %v825
      %v827 = vpop.f32.mrf.mxu0
      %828 = vmatprep.mubr.f32.mxu0 0.0
      %829 = vmatmul.mubr.f32.gmra.mxu0 %v671
      %v830 = vpop.f32.mrf.mxu0
      %v831 = vadd.f32 0.0, %v830
      %v832 = vpop.f32.mrf.mxu0
      %833 = vmatprep.mubr.f32.mxu0 0.0
      %834 = vmatmul.mubr.f32.gmra.mxu0 %v672
      %v835 = vpop.f32.mrf.mxu0
      %v836 = vadd.f32 0.0, %v835
      %v837 = vpop.f32.mrf.mxu0
      %838 = vmatprep.mubr.f32.mxu0 0.0
      %839 = vmatmul.mubr.f32.gmra.mxu0 %v673
      %v840 = vpop.f32.mrf.mxu0
      %v841 = vadd.f32 0.0, %v840
      %v842 = vpop.f32.mrf.mxu0
      %843 = vmatprep.mubr.f32.mxu0 0.0
      %844 = vmatmul.mubr.f32.gmra.mxu0 %v674
      %v845 = vpop.f32.mrf.mxu0
      %v846 = vadd.f32 0.0, %v845
      %v847 = vpop.f32.mrf.mxu0
      %848 = vmatprep.mubr.f32.mxu0 0.0
      %849 = vmatmul.mubr.f32.gmra.mxu0 %v675
      %v850 = vpop.f32.mrf.mxu0
      %v851 = vadd.f32 0.0, %v850
      %v852 = vpop.f32.mrf.mxu0
      %853 = vmatprep.mubr.f32.mxu0 0.0
      %854 = vmatmul.mubr.f32.gmra.mxu0 %v676
      %v855 = vpop.f32.mrf.mxu0
      %v856 = vadd.f32 0.0, %v855
      %v857 = vpop.f32.mrf.mxu0
      %858 = vmatprep.mubr.f32.mxu0 0.0
      %859 = vmatmul.mubr.f32.gmra.mxu0 %v677
      %v860 = vpop.f32.mrf.mxu0
      %v861 = vadd.f32 0.0, %v860
      %v862 = vpop.f32.mrf.mxu0
      %863 = vmatprep.mubr.f32.mxu0 0.0
      %864 = vmatmul.mubr.f32.gmra.mxu0 %v678
      %v865 = vpop.f32.mrf.mxu0
      %v866 = vadd.f32 0.0, %v865
      %v867 = vpop.f32.mrf.mxu0
      %868 = vmatprep.mubr.f32.mxu0 0.0
      %869 = vmatmul.mubr.f32.gmra.mxu0 %v679
      %v870 = vpop.f32.mrf.mxu0
      %v871 = vadd.f32 0.0, %v870
      %v872 = vpop.f32.mrf.mxu0
      %873 = vmatprep.mubr.f32.mxu0 0.0
      %874 = vmatmul.mubr.f32.gmra.mxu0 %v680
      %v875 = vpop.f32.mrf.mxu0
      %v876 = vadd.f32 0.0, %v875
      %v877 = vpop.f32.mrf.mxu0
      %878 = vmatprep.mubr.f32.mxu0 0.0
      %879 = vmatmul.mubr.f32.gmra.mxu0 %v681
      %v880 = vpop.f32.mrf.mxu0
      %v881 = vadd.f32 0.0, %v880
      %v882 = vpop.f32.mrf.mxu0
      %883 = vmatprep.mubr.f32.mxu0 0.0
      %884 = vmatmul.mubr.f32.gmra.mxu0 %v682
      %v885 = vpop.f32.mrf.mxu0
      %v886 = vadd.f32 0.0, %v885
      %v887 = vpop.f32.mrf.mxu0
      %888 = vmatprep.mubr.f32.mxu0 0.0
      %889 = vmatmul.mubr.f32.gmra.mxu0 %v683
      %v890 = vpop.f32.mrf.mxu0
      %v891 = vadd.f32 0.0, %v890
      %v892 = vpop.f32.mrf.mxu0
      %893 = vmatprep.mubr.f32.mxu0 0.0
      %894 = vmatmul.mubr.f32.gmra.mxu0 %v684
      %v895 = vpop.f32.mrf.mxu0
      %v896 = vadd.f32 0.0, %v895
      %v897 = vpop.f32.mrf.mxu0
      %898 = vmatprep.mubr.f32.mxu0 0.0
      %899 = vmatmul.mubr.f32.gmra.mxu0 %v685
      %v900 = vpop.f32.mrf.mxu0
      %v901 = vadd.f32 0.0, %v900
      %v902 = vpop.f32.mrf.mxu0
      %903 = vmatprep.mubr.f32.mxu0 0.0
      %904 = vmatmul.mubr.f32.gmra.mxu0 %v686
      %v905 = vpop.f32.mrf.mxu0
      %v906 = vadd.f32 0.0, %v905
      %v907 = vpop.f32.mrf.mxu0
      %908 = vmatprep.mubr.f32.mxu0 0.0
      %909 = vmatmul.mubr.f32.gmra.mxu0 %v687
      %v910 = vpop.f32.mrf.mxu0
      %v911 = vadd.f32 0.0, %v910
      %v912 = vpop.f32.mrf.mxu0
      %913 = vmatprep.mubr.f32.mxu0 0.0
      %914 = vmatmul.mubr.f32.gmra.mxu0 %v688
      %v915 = vpop.f32.mrf.mxu0
      %v916 = vadd.f32 0.0, %v915
      %v917 = vpop.f32.mrf.mxu0
      %918 = vmatprep.mubr.f32.mxu0 0.0
      %919 = vmatmul.mubr.f32.gmra.mxu0 %v689
      %v920 = vpop.f32.mrf.mxu0
      %v921 = vadd.f32 0.0, %v920
      %v922 = vpop.f32.mrf.mxu0
      %923 = vmatprep.mubr.f32.mxu0 0.0
      %924 = vmatmul.mubr.f32.gmra.mxu0 %v690
      %v925 = vpop.f32.mrf.mxu0
      %v926 = vadd.f32 0.0, %v925
      %v927 = vpop.f32.mrf.mxu0
      %928 = vmatprep.mubr.f32.mxu0 0.0
      %929 = vmatmul.mubr.f32.gmra.mxu0 %v691
      %v930 = vpop.f32.mrf.mxu0
      %v931 = vadd.f32 0.0, %v930
      %v932 = vpop.f32.mrf.mxu0
      %933 = vdwg.mxu0
      %v934 = vld [vmem:[#allocation3] sm:$0xff]
      %v935 = vld [vmem:[#allocation3 + $0x8] sm:$0xff]
      %v936 = vld [vmem:[#allocation3 + $0x10] sm:$0xff]
      %v937 = vld [vmem:[#allocation3 + $0x18] sm:$0xff]
      %v938 = vld [vmem:[#allocation3 + $0x20] sm:$0xff]
      %v939 = vld [vmem:[#allocation3 + $0x28] sm:$0xff]
      %v940 = vld [vmem:[#allocation3 + $0x30] sm:$0xff]
      %v941 = vld [vmem:[#allocation3 + $0x38] sm:$0xff]
      %v942 = vld [vmem:[#allocation3 + $0x40] sm:$0xff]
      %v943 = vld [vmem:[#allocation3 + $0x48] sm:$0xff]
      %v944 = vld [vmem:[#allocation3 + $0x50] sm:$0xff]
      %v945 = vld [vmem:[#allocation3 + $0x58] sm:$0xff]
      %v946 = vld [vmem:[#allocation3 + $0x60] sm:$0xff]
      %v947 = vld [vmem:[#allocation3 + $0x68] sm:$0xff]
      %v948 = vld [vmem:[#allocation3 + $0x70] sm:$0xff]
      %v949 = vld [vmem:[#allocation3 + $0x78] sm:$0xff]
      %v950 = vld [vmem:[#allocation3 + $0x80] sm:$0xff]
      %v951 = vld [vmem:[#allocation3 + $0x88] sm:$0xff]
      %v952 = vld [vmem:[#allocation3 + $0x90] sm:$0xff]
      %v953 = vld [vmem:[#allocation3 + $0x98] sm:$0xff]
      %v954 = vld [vmem:[#allocation3 + $0xa0] sm:$0xff]
      %v955 = vld [vmem:[#allocation3 + $0xa8] sm:$0xff]
      %v956 = vld [vmem:[#allocation3 + $0xb0] sm:$0xff]
      %v957 = vld [vmem:[#allocation3 + $0xb8] sm:$0xff]
      %v958 = vld [vmem:[#allocation3 + $0xc0] sm:$0xff]
      %v959 = vld [vmem:[#allocation3 + $0xc8] sm:$0xff]
      %v960 = vld [vmem:[#allocation3 + $0xd0] sm:$0xff]
      %v961 = vld [vmem:[#allocation3 + $0xd8] sm:$0xff]
      %v962 = vld [vmem:[#allocation3 + $0xe0] sm:$0xff]
      %v963 = vld [vmem:[#allocation3 + $0xe8] sm:$0xff]
      %v964 = vld [vmem:[#allocation3 + $0xf0] sm:$0xff]
      %v965 = vld [vmem:[#allocation3 + $0xf8] sm:$0xff]
      %v966 = vadd.f32 %v934, %v776
      %v967 = vadd.f32 %v935, %v781
      %v968 = vadd.f32 %v936, %v786
      %v969 = vadd.f32 %v937, %v791
      %v970 = vadd.f32 %v938, %v796
      %v971 = vadd.f32 %v939, %v801
      %v972 = vadd.f32 %v940, %v806
      %v973 = vadd.f32 %v941, %v811
      %v974 = vadd.f32 %v942, %v816
      %v975 = vadd.f32 %v943, %v821
      %v976 = vadd.f32 %v944, %v826
      %v977 = vadd.f32 %v945, %v831
      %v978 = vadd.f32 %v946, %v836
      %v979 = vadd.f32 %v947, %v841
      %v980 = vadd.f32 %v948, %v846
      %v981 = vadd.f32 %v949, %v851
      %v982 = vadd.f32 %v950, %v856
      %v983 = vadd.f32 %v951, %v861
      %v984 = vadd.f32 %v952, %v866
      %v985 = vadd.f32 %v953, %v871
      %v986 = vadd.f32 %v954, %v876
      %v987 = vadd.f32 %v955, %v881
      %v988 = vadd.f32 %v956, %v886
      %v989 = vadd.f32 %v957, %v891
      %v990 = vadd.f32 %v958, %v896
      %v991 = vadd.f32 %v959, %v901
      %v992 = vadd.f32 %v960, %v906
      %v993 = vadd.f32 %v961, %v911
      %v994 = vadd.f32 %v962, %v916
      %v995 = vadd.f32 %v963, %v921
      %v996 = vadd.f32 %v964, %v926
      %v997 = vadd.f32 %v965, %v931
      %998 = vst [vmem:[#allocation3] sm:$0xff] %v966
      %999 = vst [vmem:[#allocation3 + $0x8] sm:$0xff] %v967
      %1000 = vst [vmem:[#allocation3 + $0x10] sm:$0xff] %v968
      %1001 = vst [vmem:[#allocation3 + $0x18] sm:$0xff] %v969
      %1002 = vst [vmem:[#allocation3 + $0x20] sm:$0xff] %v970
      %1003 = vst [vmem:[#allocation3 + $0x28] sm:$0xff] %v971
      %1004 = vst [vmem:[#allocation3 + $0x30] sm:$0xff] %v972
      %1005 = vst [vmem:[#allocation3 + $0x38] sm:$0xff] %v973
      %1006 = vst [vmem:[#allocation3 + $0x40] sm:$0xff] %v974
      %1007 = vst [vmem:[#allocation3 + $0x48] sm:$0xff] %v975
      %1008 = vst [vmem:[#allocation3 + $0x50] sm:$0xff] %v976
      %1009 = vst [vmem:[#allocation3 + $0x58] sm:$0xff] %v977
      %1010 = vst [vmem:[#allocation3 + $0x60] sm:$0xff] %v978
      %1011 = vst [vmem:[#allocation3 + $0x68] sm:$0xff] %v979
      %1012 = vst [vmem:[#allocation3 + $0x70] sm:$0xff] %v980
      %1013 = vst [vmem:[#allocation3 + $0x78] sm:$0xff] %v981
      %1014 = vst [vmem:[#allocation3 + $0x80] sm:$0xff] %v982
      %1015 = vst [vmem:[#allocation3 + $0x88] sm:$0xff] %v983
      %1016 = vst [vmem:[#allocation3 + $0x90] sm:$0xff] %v984
      %1017 = vst [vmem:[#allocation3 + $0x98] sm:$0xff] %v985
      %1018 = vst [vmem:[#allocation3 + $0xa0] sm:$0xff] %v986
      %1019 = vst [vmem:[#allocation3 + $0xa8] sm:$0xff] %v987
      %1020 = vst [vmem:[#allocation3 + $0xb0] sm:$0xff] %v988
      %1021 = vst [vmem:[#allocation3 + $0xb8] sm:$0xff] %v989
      %1022 = vst [vmem:[#allocation3 + $0xc0] sm:$0xff] %v990
      %1023 = vst [vmem:[#allocation3 + $0xc8] sm:$0xff] %v991
      %1024 = vst [vmem:[#allocation3 + $0xd0] sm:$0xff] %v992
      %1025 = vst [vmem:[#allocation3 + $0xd8] sm:$0xff] %v993
      %1026 = vst [vmem:[#allocation3 + $0xe0] sm:$0xff] %v994
      %1027 = vst [vmem:[#allocation3 + $0xe8] sm:$0xff] %v995
      %1028 = vst [vmem:[#allocation3 + $0xf0] sm:$0xff] %v996
      %1029 = vst [vmem:[#allocation3 + $0xf8] sm:$0xff] %v997
      %v1030 = vld [vmem:[#allocation2 + $0x2] sm:$0xff]
      %v1031 = vld [vmem:[#allocation2 + $0xa] sm:$0xff]
      %v1032 = vld [vmem:[#allocation2 + $0x1a] sm:$0xff]
      %v1033 = vld [vmem:[#allocation2 + $0x22] sm:$0xff]
      %v1034 = vld [vmem:[#allocation2 + $0x32] sm:$0xff]
      %v1035 = vld [vmem:[#allocation2 + $0x3a] sm:$0xff]
      %v1036 = vld [vmem:[#allocation2 + $0x4a] sm:$0xff]
      %v1037 = vld [vmem:[#allocation2 + $0x52] sm:$0xff]
      %v1038 = vld [vmem:[#allocation2 + $0x62] sm:$0xff]
      %v1039 = vld [vmem:[#allocation2 + $0x6a] sm:$0xff]
      %v1040 = vld [vmem:[#allocation2 + $0x7a] sm:$0xff]
      %v1041 = vld [vmem:[#allocation2 + $0x82] sm:$0xff]
      %v1042 = vld [vmem:[#allocation2 + $0x92] sm:$0xff]
      %v1043 = vld [vmem:[#allocation2 + $0x9a] sm:$0xff]
      %v1044 = vld [vmem:[#allocation2 + $0xaa] sm:$0xff]
      %v1045 = vld [vmem:[#allocation2 + $0xb2] sm:$0xff]
      %v1046 = vld [vmem:[#allocation2 + $0xc2] sm:$0xff]
      %v1047 = vld [vmem:[#allocation2 + $0xca] sm:$0xff]
      %v1048 = vld [vmem:[#allocation2 + $0xda] sm:$0xff]
      %v1049 = vld [vmem:[#allocation2 + $0xe2] sm:$0xff]
      %v1050 = vld [vmem:[#allocation2 + $0xf2] sm:$0xff]
      %v1051 = vld [vmem:[#allocation2 + $0xfa] sm:$0xff]
      %v1052 = vld [vmem:[#allocation2 + $0x10a] sm:$0xff]
      %v1053 = vld [vmem:[#allocation2 + $0x112] sm:$0xff]
      %v1054 = vld [vmem:[#allocation2 + $0x122] sm:$0xff]
      %v1055 = vld [vmem:[#allocation2 + $0x12a] sm:$0xff]
      %v1056 = vld [vmem:[#allocation2 + $0x13a] sm:$0xff]
      %v1057 = vld [vmem:[#allocation2 + $0x142] sm:$0xff]
      %v1058 = vld [vmem:[#allocation2 + $0x152] sm:$0xff]
      %v1059 = vld [vmem:[#allocation2 + $0x15a] sm:$0xff]
      %v1060 = vld [vmem:[#allocation2 + $0x16a] sm:$0xff]
      %v1061 = vld [vmem:[#allocation2 + $0x172] sm:$0xff]
      %s1062 = scalar_lea.vmem %s1, 256
      %v1063 = vld [vmem:[%s1062] sm:$0xff]
      %v1064 = vld [vmem:[%s1062 + $0x8] sm:$0xff]
      %v1065 = vld [vmem:[%s1062 + $0x10] sm:$0xff]
      %v1066 = vld [vmem:[%s1062 + $0x18] sm:$0xff]
      %v1067 = vld [vmem:[%s1062 + $0x20] sm:$0xff]
      %v1068 = vld [vmem:[%s1062 + $0x28] sm:$0xff]
      %v1069 = vld [vmem:[%s1062 + $0x30] sm:$0xff]
      %v1070 = vld [vmem:[%s1062 + $0x38] sm:$0xff]
      %v1071 = vld [vmem:[%s1062 + $0x40] sm:$0xff]
      %v1072 = vld [vmem:[%s1062 + $0x48] sm:$0xff]
      %v1073 = vld [vmem:[%s1062 + $0x50] sm:$0xff]
      %v1074 = vld [vmem:[%s1062 + $0x58] sm:$0xff]
      %v1075 = vld [vmem:[%s1062 + $0x60] sm:$0xff]
      %v1076 = vld [vmem:[%s1062 + $0x68] sm:$0xff]
      %v1077 = vld [vmem:[%s1062 + $0x70] sm:$0xff]
      %v1078 = vld [vmem:[%s1062 + $0x78] sm:$0xff]
      %1079 = vmatprep.subr.mxu0 0.0
      %1080 = vmatpush1.msra.mxu0 %v1078
      %1081 = vmatprep.subr.mxu0 0.0
      %1082 = vmatpush1.msra.mxu0 %v1077
      %1083 = vmatprep.subr.mxu0 0.0
      %1084 = vmatpush1.msra.mxu0 %v1076
      %1085 = vmatprep.subr.mxu0 0.0
      %1086 = vmatpush1.msra.mxu0 %v1075
      %1087 = vmatprep.subr.mxu0 0.0
      %1088 = vmatpush1.msra.mxu0 %v1074
      %1089 = vmatprep.subr.mxu0 0.0
      %1090 = vmatpush1.msra.mxu0 %v1073
      %1091 = vmatprep.subr.mxu0 0.0
      %1092 = vmatpush1.msra.mxu0 %v1072
      %1093 = vmatprep.subr.mxu0 0.0
      %1094 = vmatpush1.msra.mxu0 %v1071
      %1095 = vmatprep.subr.mxu0 0.0
      %1096 = vmatpush1.msra.mxu0 %v1070
      %1097 = vmatprep.subr.mxu0 0.0
      %1098 = vmatpush1.msra.mxu0 %v1069
      %1099 = vmatprep.subr.mxu0 0.0
      %1100 = vmatpush1.msra.mxu0 %v1068
      %1101 = vmatprep.subr.mxu0 0.0
      %1102 = vmatpush1.msra.mxu0 %v1067
      %1103 = vmatprep.subr.mxu0 0.0
      %1104 = vmatpush1.msra.mxu0 %v1066
      %1105 = vmatprep.subr.mxu0 0.0
      %1106 = vmatpush1.msra.mxu0 %v1065
      %1107 = vmatprep.subr.mxu0 0.0
      %1108 = vmatpush1.msra.mxu0 %v1064
      %1109 = vmatprep.subr.mxu0 0.0
      %1110 = vmatpush1.msra.mxu0 %v1063
      %1111 = vmatprep.subr.mxu0 0.0
      %1112 = vmatpush2.msra.mxu0 0.0
      %1113 = vmatprep.subr.mxu0 0.0
      %1114 = vmatpush2.msra.mxu0 0.0
      %1115 = vmatprep.subr.mxu0 0.0
      %1116 = vmatpush2.msra.mxu0 0.0
      %1117 = vmatprep.subr.mxu0 0.0
      %1118 = vmatpush2.msra.mxu0 0.0
      %1119 = vmatprep.subr.mxu0 0.0
      %1120 = vmatpush2.msra.mxu0 0.0
      %1121 = vmatprep.subr.mxu0 0.0
      %1122 = vmatpush2.msra.mxu0 0.0
      %1123 = vmatprep.subr.mxu0 0.0
      %1124 = vmatpush2.msra.mxu0 0.0
      %1125 = vmatprep.subr.mxu0 0.0
      %1126 = vmatpush2.msra.mxu0 0.0
      %1127 = vmatprep.subr.mxu0 0.0
      %1128 = vmatpush2.msra.mxu0 0.0
      %1129 = vmatprep.subr.mxu0 0.0
      %1130 = vmatpush2.msra.mxu0 0.0
      %1131 = vmatprep.subr.mxu0 0.0
      %1132 = vmatpush2.msra.mxu0 0.0
      %1133 = vmatprep.subr.mxu0 0.0
      %1134 = vmatpush2.msra.mxu0 0.0
      %1135 = vmatprep.subr.mxu0 0.0
      %1136 = vmatpush2.msra.mxu0 0.0
      %1137 = vmatprep.subr.mxu0 0.0
      %1138 = vmatpush2.msra.mxu0 0.0
      %1139 = vmatprep.subr.mxu0 0.0
      %1140 = vmatpush2.msra.mxu0 0.0
      %1141 = vmatprep.subr.mxu0 0.0
      %1142 = vmatpush2.msra.mxu0 0.0
      %1143 = vmatprep.mubr.f32.mxu0 0.0
      %1144 = vmatmul.mubr.f32.gmra.mxu0 %v1030
      %v1145 = vpop.f32.mrf.mxu0
      %v1146 = vadd.f32 0.0, %v1145
      %v1147 = vpop.f32.mrf.mxu0
      %1148 = vmatprep.mubr.f32.mxu0 0.0
      %1149 = vmatmul.mubr.f32.gmra.mxu0 %v1031
      %v1150 = vpop.f32.mrf.mxu0
      %v1151 = vadd.f32 0.0, %v1150
      %v1152 = vpop.f32.mrf.mxu0
      %1153 = vmatprep.mubr.f32.mxu0 0.0
      %1154 = vmatmul.mubr.f32.gmra.mxu0 %v1032
      %v1155 = vpop.f32.mrf.mxu0
      %v1156 = vadd.f32 0.0, %v1155
      %v1157 = vpop.f32.mrf.mxu0
      %1158 = vmatprep.mubr.f32.mxu0 0.0
      %1159 = vmatmul.mubr.f32.gmra.mxu0 %v1033
      %v1160 = vpop.f32.mrf.mxu0
      %v1161 = vadd.f32 0.0, %v1160
      %v1162 = vpop.f32.mrf.mxu0
      %1163 = vmatprep.mubr.f32.mxu0 0.0
      %1164 = vmatmul.mubr.f32.gmra.mxu0 %v1034
      %v1165 = vpop.f32.mrf.mxu0
      %v1166 = vadd.f32 0.0, %v1165
      %v1167 = vpop.f32.mrf.mxu0
      %1168 = vmatprep.mubr.f32.mxu0 0.0
      %1169 = vmatmul.mubr.f32.gmra.mxu0 %v1035
      %v1170 = vpop.f32.mrf.mxu0
      %v1171 = vadd.f32 0.0, %v1170
      %v1172 = vpop.f32.mrf.mxu0
      %1173 = vmatprep.mubr.f32.mxu0 0.0
      %1174 = vmatmul.mubr.f32.gmra.mxu0 %v1036
      %v1175 = vpop.f32.mrf.mxu0
      %v1176 = vadd.f32 0.0, %v1175
      %v1177 = vpop.f32.mrf.mxu0
      %1178 = vmatprep.mubr.f32.mxu0 0.0
      %1179 = vmatmul.mubr.f32.gmra.mxu0 %v1037
      %v1180 = vpop.f32.mrf.mxu0
      %v1181 = vadd.f32 0.0, %v1180
      %v1182 = vpop.f32.mrf.mxu0
      %1183 = vmatprep.mubr.f32.mxu0 0.0
      %1184 = vmatmul.mubr.f32.gmra.mxu0 %v1038
      %v1185 = vpop.f32.mrf.mxu0
      %v1186 = vadd.f32 0.0, %v1185
      %v1187 = vpop.f32.mrf.mxu0
      %1188 = vmatprep.mubr.f32.mxu0 0.0
      %1189 = vmatmul.mubr.f32.gmra.mxu0 %v1039
      %v1190 = vpop.f32.mrf.mxu0
      %v1191 = vadd.f32 0.0, %v1190
      %v1192 = vpop.f32.mrf.mxu0
      %1193 = vmatprep.mubr.f32.mxu0 0.0
      %1194 = vmatmul.mubr.f32.gmra.mxu0 %v1040
      %v1195 = vpop.f32.mrf.mxu0
      %v1196 = vadd.f32 0.0, %v1195
      %v1197 = vpop.f32.mrf.mxu0
      %1198 = vmatprep.mubr.f32.mxu0 0.0
      %1199 = vmatmul.mubr.f32.gmra.mxu0 %v1041
      %v1200 = vpop.f32.mrf.mxu0
      %v1201 = vadd.f32 0.0, %v1200
      %v1202 = vpop.f32.mrf.mxu0
      %1203 = vmatprep.mubr.f32.mxu0 0.0
      %1204 = vmatmul.mubr.f32.gmra.mxu0 %v1042
      %v1205 = vpop.f32.mrf.mxu0
      %v1206 = vadd.f32 0.0, %v1205
      %v1207 = vpop.f32.mrf.mxu0
      %1208 = vmatprep.mubr.f32.mxu0 0.0
      %1209 = vmatmul.mubr.f32.gmra.mxu0 %v1043
      %v1210 = vpop.f32.mrf.mxu0
      %v1211 = vadd.f32 0.0, %v1210
      %v1212 = vpop.f32.mrf.mxu0
      %1213 = vmatprep.mubr.f32.mxu0 0.0
      %1214 = vmatmul.mubr.f32.gmra.mxu0 %v1044
      %v1215 = vpop.f32.mrf.mxu0
      %v1216 = vadd.f32 0.0, %v1215
      %v1217 = vpop.f32.mrf.mxu0
      %1218 = vmatprep.mubr.f32.mxu0 0.0
      %1219 = vmatmul.mubr.f32.gmra.mxu0 %v1045
      %v1220 = vpop.f32.mrf.mxu0
      %v1221 = vadd.f32 0.0, %v1220
      %v1222 = vpop.f32.mrf.mxu0
      %1223 = vmatprep.mubr.f32.mxu0 0.0
      %1224 = vmatmul.mubr.f32.gmra.mxu0 %v1046
      %v1225 = vpop.f32.mrf.mxu0
      %v1226 = vadd.f32 0.0, %v1225
      %v1227 = vpop.f32.mrf.mxu0
      %1228 = vmatprep.mubr.f32.mxu0 0.0
      %1229 = vmatmul.mubr.f32.gmra.mxu0 %v1047
      %v1230 = vpop.f32.mrf.mxu0
      %v1231 = vadd.f32 0.0, %v1230
      %v1232 = vpop.f32.mrf.mxu0
      %1233 = vmatprep.mubr.f32.mxu0 0.0
      %1234 = vmatmul.mubr.f32.gmra.mxu0 %v1048
      %v1235 = vpop.f32.mrf.mxu0
      %v1236 = vadd.f32 0.0, %v1235
      %v1237 = vpop.f32.mrf.mxu0
      %1238 = vmatprep.mubr.f32.mxu0 0.0
      %1239 = vmatmul.mubr.f32.gmra.mxu0 %v1049
      %v1240 = vpop.f32.mrf.mxu0
      %v1241 = vadd.f32 0.0, %v1240
      %v1242 = vpop.f32.mrf.mxu0
      %1243 = vmatprep.mubr.f32.mxu0 0.0
      %1244 = vmatmul.mubr.f32.gmra.mxu0 %v1050
      %v1245 = vpop.f32.mrf.mxu0
      %v1246 = vadd.f32 0.0, %v1245
      %v1247 = vpop.f32.mrf.mxu0
      %1248 = vmatprep.mubr.f32.mxu0 0.0
      %1249 = vmatmul.mubr.f32.gmra.mxu0 %v1051
      %v1250 = vpop.f32.mrf.mxu0
      %v1251 = vadd.f32 0.0, %v1250
      %v1252 = vpop.f32.mrf.mxu0
      %1253 = vmatprep.mubr.f32.mxu0 0.0
      %1254 = vmatmul.mubr.f32.gmra.mxu0 %v1052
      %v1255 = vpop.f32.mrf.mxu0
      %v1256 = vadd.f32 0.0, %v1255
      %v1257 = vpop.f32.mrf.mxu0
      %1258 = vmatprep.mubr.f32.mxu0 0.0
      %1259 = vmatmul.mubr.f32.gmra.mxu0 %v1053
      %v1260 = vpop.f32.mrf.mxu0
      %v1261 = vadd.f32 0.0, %v1260
      %v1262 = vpop.f32.mrf.mxu0
      %1263 = vmatprep.mubr.f32.mxu0 0.0
      %1264 = vmatmul.mubr.f32.gmra.mxu0 %v1054
      %v1265 = vpop.f32.mrf.mxu0
      %v1266 = vadd.f32 0.0, %v1265
      %v1267 = vpop.f32.mrf.mxu0
      %1268 = vmatprep.mubr.f32.mxu0 0.0
      %1269 = vmatmul.mubr.f32.gmra.mxu0 %v1055
      %v1270 = vpop.f32.mrf.mxu0
      %v1271 = vadd.f32 0.0, %v1270
      %v1272 = vpop.f32.mrf.mxu0
      %1273 = vmatprep.mubr.f32.mxu0 0.0
      %1274 = vmatmul.mubr.f32.gmra.mxu0 %v1056
      %v1275 = vpop.f32.mrf.mxu0
      %v1276 = vadd.f32 0.0, %v1275
      %v1277 = vpop.f32.mrf.mxu0
      %1278 = vmatprep.mubr.f32.mxu0 0.0
      %1279 = vmatmul.mubr.f32.gmra.mxu0 %v1057
      %v1280 = vpop.f32.mrf.mxu0
      %v1281 = vadd.f32 0.0, %v1280
      %v1282 = vpop.f32.mrf.mxu0
      %1283 = vmatprep.mubr.f32.mxu0 0.0
      %1284 = vmatmul.mubr.f32.gmra.mxu0 %v1058
      %v1285 = vpop.f32.mrf.mxu0
      %v1286 = vadd.f32 0.0, %v1285
      %v1287 = vpop.f32.mrf.mxu0
      %1288 = vmatprep.mubr.f32.mxu0 0.0
      %1289 = vmatmul.mubr.f32.gmra.mxu0 %v1059
      %v1290 = vpop.f32.mrf.mxu0
      %v1291 = vadd.f32 0.0, %v1290
      %v1292 = vpop.f32.mrf.mxu0
      %1293 = vmatprep.mubr.f32.mxu0 0.0
      %1294 = vmatmul.mubr.f32.gmra.mxu0 %v1060
      %v1295 = vpop.f32.mrf.mxu0
      %v1296 = vadd.f32 0.0, %v1295
      %v1297 = vpop.f32.mrf.mxu0
      %1298 = vmatprep.mubr.f32.mxu0 0.0
      %1299 = vmatmul.mubr.f32.gmra.mxu0 %v1061
      %v1300 = vpop.f32.mrf.mxu0
      %v1301 = vadd.f32 0.0, %v1300
      %v1302 = vpop.f32.mrf.mxu0
      %1303 = vdwg.mxu0
      %v1304 = vld [vmem:[#allocation3] sm:$0xff]
      %v1305 = vld [vmem:[#allocation3 + $0x8] sm:$0xff]
      %v1306 = vld [vmem:[#allocation3 + $0x10] sm:$0xff]
      %v1307 = vld [vmem:[#allocation3 + $0x18] sm:$0xff]
      %v1308 = vld [vmem:[#allocation3 + $0x20] sm:$0xff]
      %v1309 = vld [vmem:[#allocation3 + $0x28] sm:$0xff]
      %v1310 = vld [vmem:[#allocation3 + $0x30] sm:$0xff]
      %v1311 = vld [vmem:[#allocation3 + $0x38] sm:$0xff]
      %v1312 = vld [vmem:[#allocation3 + $0x40] sm:$0xff]
      %v1313 = vld [vmem:[#allocation3 + $0x48] sm:$0xff]
      %v1314 = vld [vmem:[#allocation3 + $0x50] sm:$0xff]
      %v1315 = vld [vmem:[#allocation3 + $0x58] sm:$0xff]
      %v1316 = vld [vmem:[#allocation3 + $0x60] sm:$0xff]
      %v1317 = vld [vmem:[#allocation3 + $0x68] sm:$0xff]
      %v1318 = vld [vmem:[#allocation3 + $0x70] sm:$0xff]
      %v1319 = vld [vmem:[#allocation3 + $0x78] sm:$0xff]
      %v1320 = vld [vmem:[#allocation3 + $0x80] sm:$0xff]
      %v1321 = vld [vmem:[#allocation3 + $0x88] sm:$0xff]
      %v1322 = vld [vmem:[#allocation3 + $0x90] sm:$0xff]
      %v1323 = vld [vmem:[#allocation3 + $0x98] sm:$0xff]
      %v1324 = vld [vmem:[#allocation3 + $0xa0] sm:$0xff]
      %v1325 = vld [vmem:[#allocation3 + $0xa8] sm:$0xff]
      %v1326 = vld [vmem:[#allocation3 + $0xb0] sm:$0xff]
      %v1327 = vld [vmem:[#allocation3 + $0xb8] sm:$0xff]
      %v1328 = vld [vmem:[#allocation3 + $0xc0] sm:$0xff]
      %v1329 = vld [vmem:[#allocation3 + $0xc8] sm:$0xff]
      %v1330 = vld [vmem:[#allocation3 + $0xd0] sm:$0xff]
      %v1331 = vld [vmem:[#allocation3 + $0xd8] sm:$0xff]
      %v1332 = vld [vmem:[#allocation3 + $0xe0] sm:$0xff]
      %v1333 = vld [vmem:[#allocation3 + $0xe8] sm:$0xff]
      %v1334 = vld [vmem:[#allocation3 + $0xf0] sm:$0xff]
      %v1335 = vld [vmem:[#allocation3 + $0xf8] sm:$0xff]
      %v1336 = vadd.f32 %v1304, %v1146
      %v1337 = vadd.f32 %v1305, %v1151
      %v1338 = vadd.f32 %v1306, %v1156
      %v1339 = vadd.f32 %v1307, %v1161
      %v1340 = vadd.f32 %v1308, %v1166
      %v1341 = vadd.f32 %v1309, %v1171
      %v1342 = vadd.f32 %v1310, %v1176
      %v1343 = vadd.f32 %v1311, %v1181
      %v1344 = vadd.f32 %v1312, %v1186
      %v1345 = vadd.f32 %v1313, %v1191
      %v1346 = vadd.f32 %v1314, %v1196
      %v1347 = vadd.f32 %v1315, %v1201
      %v1348 = vadd.f32 %v1316, %v1206
      %v1349 = vadd.f32 %v1317, %v1211
      %v1350 = vadd.f32 %v1318, %v1216
      %v1351 = vadd.f32 %v1319, %v1221
      %v1352 = vadd.f32 %v1320, %v1226
      %v1353 = vadd.f32 %v1321, %v1231
      %v1354 = vadd.f32 %v1322, %v1236
      %v1355 = vadd.f32 %v1323, %v1241
      %v1356 = vadd.f32 %v1324, %v1246
      %v1357 = vadd.f32 %v1325, %v1251
      %v1358 = vadd.f32 %v1326, %v1256
      %v1359 = vadd.f32 %v1327, %v1261
      %v1360 = vadd.f32 %v1328, %v1266
      %v1361 = vadd.f32 %v1329, %v1271
      %v1362 = vadd.f32 %v1330, %v1276
      %v1363 = vadd.f32 %v1331, %v1281
      %v1364 = vadd.f32 %v1332, %v1286
      %v1365 = vadd.f32 %v1333, %v1291
      %v1366 = vadd.f32 %v1334, %v1296
      %v1367 = vadd.f32 %v1335, %v1301
      %1368 = vst [vmem:[#allocation3] sm:$0xff] %v1336
      %1369 = vst [vmem:[#allocation3 + $0x8] sm:$0xff] %v1337
      %1370 = vst [vmem:[#allocation3 + $0x10] sm:$0xff] %v1338
      %1371 = vst [vmem:[#allocation3 + $0x18] sm:$0xff] %v1339
      %1372 = vst [vmem:[#allocation3 + $0x20] sm:$0xff] %v1340
      %1373 = vst [vmem:[#allocation3 + $0x28] sm:$0xff] %v1341
      %1374 = vst [vmem:[#allocation3 + $0x30] sm:$0xff] %v1342
      %1375 = vst [vmem:[#allocation3 + $0x38] sm:$0xff] %v1343
      %1376 = vst [vmem:[#allocation3 + $0x40] sm:$0xff] %v1344
      %1377 = vst [vmem:[#allocation3 + $0x48] sm:$0xff] %v1345
      %1378 = vst [vmem:[#allocation3 + $0x50] sm:$0xff] %v1346
      %1379 = vst [vmem:[#allocation3 + $0x58] sm:$0xff] %v1347
      %1380 = vst [vmem:[#allocation3 + $0x60] sm:$0xff] %v1348
      %1381 = vst [vmem:[#allocation3 + $0x68] sm:$0xff] %v1349
      %1382 = vst [vmem:[#allocation3 + $0x70] sm:$0xff] %v1350
      %1383 = vst [vmem:[#allocation3 + $0x78] sm:$0xff] %v1351
      %1384 = vst [vmem:[#allocation3 + $0x80] sm:$0xff] %v1352
      %1385 = vst [vmem:[#allocation3 + $0x88] sm:$0xff] %v1353
      %1386 = vst [vmem:[#allocation3 + $0x90] sm:$0xff] %v1354
      %1387 = vst [vmem:[#allocation3 + $0x98] sm:$0xff] %v1355
      %1388 = vst [vmem:[#allocation3 + $0xa0] sm:$0xff] %v1356
      %1389 = vst [vmem:[#allocation3 + $0xa8] sm:$0xff] %v1357
      %1390 = vst [vmem:[#allocation3 + $0xb0] sm:$0xff] %v1358
      %1391 = vst [vmem:[#allocation3 + $0xb8] sm:$0xff] %v1359
      %1392 = vst [vmem:[#allocation3 + $0xc0] sm:$0xff] %v1360
      %1393 = vst [vmem:[#allocation3 + $0xc8] sm:$0xff] %v1361
      %1394 = vst [vmem:[#allocation3 + $0xd0] sm:$0xff] %v1362
      %1395 = vst [vmem:[#allocation3 + $0xd8] sm:$0xff] %v1363
      %1396 = vst [vmem:[#allocation3 + $0xe0] sm:$0xff] %v1364
      %1397 = vst [vmem:[#allocation3 + $0xe8] sm:$0xff] %v1365
      %1398 = vst [vmem:[#allocation3 + $0xf0] sm:$0xff] %v1366
      %1399 = vst [vmem:[#allocation3 + $0xf8] sm:$0xff] %v1367
      %v1400 = vld [vmem:[%s322] sm:$0xff]
      %v1401 = vld [vmem:[%s322 + $0x8] sm:$0xff]
      %v1402 = vld [vmem:[%s322 + $0x18] sm:$0xff]
      %v1403 = vld [vmem:[%s322 + $0x20] sm:$0xff]
      %v1404 = vld [vmem:[%s322 + $0x30] sm:$0xff]
      %v1405 = vld [vmem:[%s322 + $0x38] sm:$0xff]
      %v1406 = vld [vmem:[%s322 + $0x48] sm:$0xff]
      %v1407 = vld [vmem:[%s322 + $0x50] sm:$0xff]
      %v1408 = vld [vmem:[%s322 + $0x60] sm:$0xff]
      %v1409 = vld [vmem:[%s322 + $0x68] sm:$0xff]
      %v1410 = vld [vmem:[%s322 + $0x78] sm:$0xff]
      %v1411 = vld [vmem:[%s322 + $0x80] sm:$0xff]
      %v1412 = vld [vmem:[%s322 + $0x90] sm:$0xff]
      %v1413 = vld [vmem:[%s322 + $0x98] sm:$0xff]
      %v1414 = vld [vmem:[%s322 + $0xa8] sm:$0xff]
      %v1415 = vld [vmem:[%s322 + $0xb0] sm:$0xff]
      %v1416 = vld [vmem:[%s322 + $0xc0] sm:$0xff]
      %v1417 = vld [vmem:[%s322 + $0xc8] sm:$0xff]
      %v1418 = vld [vmem:[%s322 + $0xd8] sm:$0xff]
      %v1419 = vld [vmem:[%s322 + $0xe0] sm:$0xff]
      %v1420 = vld [vmem:[%s322 + $0xf0] sm:$0xff]
      %v1421 = vld [vmem:[%s322 + $0xf8] sm:$0xff]
      %v1422 = vld [vmem:[%s322 + $0x108] sm:$0xff]
      %v1423 = vld [vmem:[%s322 + $0x110] sm:$0xff]
      %v1424 = vld [vmem:[%s322 + $0x120] sm:$0xff]
      %v1425 = vld [vmem:[%s322 + $0x128] sm:$0xff]
      %v1426 = vld [vmem:[%s322 + $0x138] sm:$0xff]
      %v1427 = vld [vmem:[%s322 + $0x140] sm:$0xff]
      %v1428 = vld [vmem:[%s322 + $0x150] sm:$0xff]
      %v1429 = vld [vmem:[%s322 + $0x158] sm:$0xff]
      %v1430 = vld [vmem:[%s322 + $0x168] sm:$0xff]
      %v1431 = vld [vmem:[%s322 + $0x170] sm:$0xff]
      %s1432 = scalar_lea.vmem %s1, 384
      %v1433 = vld [vmem:[%s1432] sm:$0xff]
      %v1434 = vld [vmem:[%s1432 + $0x8] sm:$0xff]
      %v1435 = vld [vmem:[%s1432 + $0x10] sm:$0xff]
      %v1436 = vld [vmem:[%s1432 + $0x18] sm:$0xff]
      %v1437 = vld [vmem:[%s1432 + $0x20] sm:$0xff]
      %v1438 = vld [vmem:[%s1432 + $0x28] sm:$0xff]
      %v1439 = vld [vmem:[%s1432 + $0x30] sm:$0xff]
      %v1440 = vld [vmem:[%s1432 + $0x38] sm:$0xff]
      %v1441 = vld [vmem:[%s1432 + $0x40] sm:$0xff]
      %v1442 = vld [vmem:[%s1432 + $0x48] sm:$0xff]
      %v1443 = vld [vmem:[%s1432 + $0x50] sm:$0xff]
      %v1444 = vld [vmem:[%s1432 + $0x58] sm:$0xff]
      %v1445 = vld [vmem:[%s1432 + $0x60] sm:$0xff]
      %v1446 = vld [vmem:[%s1432 + $0x68] sm:$0xff]
      %v1447 = vld [vmem:[%s1432 + $0x70] sm:$0xff]
      %v1448 = vld [vmem:[%s1432 + $0x78] sm:$0xff]
      %1449 = vmatprep.subr.mxu0 0.0
      %1450 = vmatpush1.msra.mxu0 %v1448
      %1451 = vmatprep.subr.mxu0 0.0
      %1452 = vmatpush1.msra.mxu0 %v1447
      %1453 = vmatprep.subr.mxu0 0.0
      %1454 = vmatpush1.msra.mxu0 %v1446
      %1455 = vmatprep.subr.mxu0 0.0
      %1456 = vmatpush1.msra.mxu0 %v1445
      %1457 = vmatprep.subr.mxu0 0.0
      %1458 = vmatpush1.msra.mxu0 %v1444
      %1459 = vmatprep.subr.mxu0 0.0
      %1460 = vmatpush1.msra.mxu0 %v1443
      %1461 = vmatprep.subr.mxu0 0.0
      %1462 = vmatpush1.msra.mxu0 %v1442
      %1463 = vmatprep.subr.mxu0 0.0
      %1464 = vmatpush1.msra.mxu0 %v1441
      %1465 = vmatprep.subr.mxu0 0.0
      %1466 = vmatpush1.msra.mxu0 %v1440
      %1467 = vmatprep.subr.mxu0 0.0
      %1468 = vmatpush1.msra.mxu0 %v1439
      %1469 = vmatprep.subr.mxu0 0.0
      %1470 = vmatpush1.msra.mxu0 %v1438
      %1471 = vmatprep.subr.mxu0 0.0
      %1472 = vmatpush1.msra.mxu0 %v1437
      %1473 = vmatprep.subr.mxu0 0.0
      %1474 = vmatpush1.msra.mxu0 %v1436
      %1475 = vmatprep.subr.mxu0 0.0
      %1476 = vmatpush1.msra.mxu0 %v1435
      %1477 = vmatprep.subr.mxu0 0.0
      %1478 = vmatpush1.msra.mxu0 %v1434
      %1479 = vmatprep.subr.mxu0 0.0
      %1480 = vmatpush1.msra.mxu0 %v1433
      %1481 = vmatprep.subr.mxu0 0.0
      %1482 = vmatpush2.msra.mxu0 0.0
      %1483 = vmatprep.subr.mxu0 0.0
      %1484 = vmatpush2.msra.mxu0 0.0
      %1485 = vmatprep.subr.mxu0 0.0
      %1486 = vmatpush2.msra.mxu0 0.0
      %1487 = vmatprep.subr.mxu0 0.0
      %1488 = vmatpush2.msra.mxu0 0.0
      %1489 = vmatprep.subr.mxu0 0.0
      %1490 = vmatpush2.msra.mxu0 0.0
      %1491 = vmatprep.subr.mxu0 0.0
      %1492 = vmatpush2.msra.mxu0 0.0
      %1493 = vmatprep.subr.mxu0 0.0
      %1494 = vmatpush2.msra.mxu0 0.0
      %1495 = vmatprep.subr.mxu0 0.0
      %1496 = vmatpush2.msra.mxu0 0.0
      %1497 = vmatprep.subr.mxu0 0.0
      %1498 = vmatpush2.msra.mxu0 0.0
      %1499 = vmatprep.subr.mxu0 0.0
      %1500 = vmatpush2.msra.mxu0 0.0
      %1501 = vmatprep.subr.mxu0 0.0
      %1502 = vmatpush2.msra.mxu0 0.0
      %1503 = vmatprep.subr.mxu0 0.0
      %1504 = vmatpush2.msra.mxu0 0.0
      %1505 = vmatprep.subr.mxu0 0.0
      %1506 = vmatpush2.msra.mxu0 0.0
      %1507 = vmatprep.subr.mxu0 0.0
      %1508 = vmatpush2.msra.mxu0 0.0
      %1509 = vmatprep.subr.mxu0 0.0
      %1510 = vmatpush2.msra.mxu0 0.0
      %1511 = vmatprep.subr.mxu0 0.0
      %1512 = vmatpush2.msra.mxu0 0.0
      %1513 = vmatprep.mubr.f32.mxu0 0.0
      %1514 = vmatmul.mubr.f32.gmra.mxu0 %v1400
      %v1515 = vpop.f32.mrf.mxu0
      %v1516 = vadd.f32 0.0, %v1515
      %v1517 = vpop.f32.mrf.mxu0
      %1518 = vmatprep.mubr.f32.mxu0 0.0
      %1519 = vmatmul.mubr.f32.gmra.mxu0 %v1401
      %v1520 = vpop.f32.mrf.mxu0
      %v1521 = vadd.f32 0.0, %v1520
      %v1522 = vpop.f32.mrf.mxu0
      %1523 = vmatprep.mubr.f32.mxu0 0.0
      %1524 = vmatmul.mubr.f32.gmra.mxu0 %v1402
      %v1525 = vpop.f32.mrf.mxu0
      %v1526 = vadd.f32 0.0, %v1525
      %v1527 = vpop.f32.mrf.mxu0
      %1528 = vmatprep.mubr.f32.mxu0 0.0
      %1529 = vmatmul.mubr.f32.gmra.mxu0 %v1403
      %v1530 = vpop.f32.mrf.mxu0
      %v1531 = vadd.f32 0.0, %v1530
      %v1532 = vpop.f32.mrf.mxu0
      %1533 = vmatprep.mubr.f32.mxu0 0.0
      %1534 = vmatmul.mubr.f32.gmra.mxu0 %v1404
      %v1535 = vpop.f32.mrf.mxu0
      %v1536 = vadd.f32 0.0, %v1535
      %v1537 = vpop.f32.mrf.mxu0
      %1538 = vmatprep.mubr.f32.mxu0 0.0
      %1539 = vmatmul.mubr.f32.gmra.mxu0 %v1405
      %v1540 = vpop.f32.mrf.mxu0
      %v1541 = vadd.f32 0.0, %v1540
      %v1542 = vpop.f32.mrf.mxu0
      %1543 = vmatprep.mubr.f32.mxu0 0.0
      %1544 = vmatmul.mubr.f32.gmra.mxu0 %v1406
      %v1545 = vpop.f32.mrf.mxu0
      %v1546 = vadd.f32 0.0, %v1545
      %v1547 = vpop.f32.mrf.mxu0
      %1548 = vmatprep.mubr.f32.mxu0 0.0
      %1549 = vmatmul.mubr.f32.gmra.mxu0 %v1407
      %v1550 = vpop.f32.mrf.mxu0
      %v1551 = vadd.f32 0.0, %v1550
      %v1552 = vpop.f32.mrf.mxu0
      %1553 = vmatprep.mubr.f32.mxu0 0.0
      %1554 = vmatmul.mubr.f32.gmra.mxu0 %v1408
      %v1555 = vpop.f32.mrf.mxu0
      %v1556 = vadd.f32 0.0, %v1555
      %v1557 = vpop.f32.mrf.mxu0
      %1558 = vmatprep.mubr.f32.mxu0 0.0
      %1559 = vmatmul.mubr.f32.gmra.mxu0 %v1409
      %v1560 = vpop.f32.mrf.mxu0
      %v1561 = vadd.f32 0.0, %v1560
      %v1562 = vpop.f32.mrf.mxu0
      %1563 = vmatprep.mubr.f32.mxu0 0.0
      %1564 = vmatmul.mubr.f32.gmra.mxu0 %v1410
      %v1565 = vpop.f32.mrf.mxu0
      %v1566 = vadd.f32 0.0, %v1565
      %v1567 = vpop.f32.mrf.mxu0
      %1568 = vmatprep.mubr.f32.mxu0 0.0
      %1569 = vmatmul.mubr.f32.gmra.mxu0 %v1411
      %v1570 = vpop.f32.mrf.mxu0
      %v1571 = vadd.f32 0.0, %v1570
      %v1572 = vpop.f32.mrf.mxu0
      %1573 = vmatprep.mubr.f32.mxu0 0.0
      %1574 = vmatmul.mubr.f32.gmra.mxu0 %v1412
      %v1575 = vpop.f32.mrf.mxu0
      %v1576 = vadd.f32 0.0, %v1575
      %v1577 = vpop.f32.mrf.mxu0
      %1578 = vmatprep.mubr.f32.mxu0 0.0
      %1579 = vmatmul.mubr.f32.gmra.mxu0 %v1413
      %v1580 = vpop.f32.mrf.mxu0
      %v1581 = vadd.f32 0.0, %v1580
      %v1582 = vpop.f32.mrf.mxu0
      %1583 = vmatprep.mubr.f32.mxu0 0.0
      %1584 = vmatmul.mubr.f32.gmra.mxu0 %v1414
      %v1585 = vpop.f32.mrf.mxu0
      %v1586 = vadd.f32 0.0, %v1585
      %v1587 = vpop.f32.mrf.mxu0
      %1588 = vmatprep.mubr.f32.mxu0 0.0
      %1589 = vmatmul.mubr.f32.gmra.mxu0 %v1415
      %v1590 = vpop.f32.mrf.mxu0
      %v1591 = vadd.f32 0.0, %v1590
      %v1592 = vpop.f32.mrf.mxu0
      %1593 = vmatprep.mubr.f32.mxu0 0.0
      %1594 = vmatmul.mubr.f32.gmra.mxu0 %v1416
      %v1595 = vpop.f32.mrf.mxu0
      %v1596 = vadd.f32 0.0, %v1595
      %v1597 = vpop.f32.mrf.mxu0
      %1598 = vmatprep.mubr.f32.mxu0 0.0
      %1599 = vmatmul.mubr.f32.gmra.mxu0 %v1417
      %v1600 = vpop.f32.mrf.mxu0
      %v1601 = vadd.f32 0.0, %v1600
      %v1602 = vpop.f32.mrf.mxu0
      %1603 = vmatprep.mubr.f32.mxu0 0.0
      %1604 = vmatmul.mubr.f32.gmra.mxu0 %v1418
      %v1605 = vpop.f32.mrf.mxu0
      %v1606 = vadd.f32 0.0, %v1605
      %v1607 = vpop.f32.mrf.mxu0
      %1608 = vmatprep.mubr.f32.mxu0 0.0
      %1609 = vmatmul.mubr.f32.gmra.mxu0 %v1419
      %v1610 = vpop.f32.mrf.mxu0
      %v1611 = vadd.f32 0.0, %v1610
      %v1612 = vpop.f32.mrf.mxu0
      %1613 = vmatprep.mubr.f32.mxu0 0.0
      %1614 = vmatmul.mubr.f32.gmra.mxu0 %v1420
      %v1615 = vpop.f32.mrf.mxu0
      %v1616 = vadd.f32 0.0, %v1615
      %v1617 = vpop.f32.mrf.mxu0
      %1618 = vmatprep.mubr.f32.mxu0 0.0
      %1619 = vmatmul.mubr.f32.gmra.mxu0 %v1421
      %v1620 = vpop.f32.mrf.mxu0
      %v1621 = vadd.f32 0.0, %v1620
      %v1622 = vpop.f32.mrf.mxu0
      %1623 = vmatprep.mubr.f32.mxu0 0.0
      %1624 = vmatmul.mubr.f32.gmra.mxu0 %v1422
      %v1625 = vpop.f32.mrf.mxu0
      %v1626 = vadd.f32 0.0, %v1625
      %v1627 = vpop.f32.mrf.mxu0
      %1628 = vmatprep.mubr.f32.mxu0 0.0
      %1629 = vmatmul.mubr.f32.gmra.mxu0 %v1423
      %v1630 = vpop.f32.mrf.mxu0
      %v1631 = vadd.f32 0.0, %v1630
      %v1632 = vpop.f32.mrf.mxu0
      %1633 = vmatprep.mubr.f32.mxu0 0.0
      %1634 = vmatmul.mubr.f32.gmra.mxu0 %v1424
      %v1635 = vpop.f32.mrf.mxu0
      %v1636 = vadd.f32 0.0, %v1635
      %v1637 = vpop.f32.mrf.mxu0
      %1638 = vmatprep.mubr.f32.mxu0 0.0
      %1639 = vmatmul.mubr.f32.gmra.mxu0 %v1425
      %v1640 = vpop.f32.mrf.mxu0
      %v1641 = vadd.f32 0.0, %v1640
      %v1642 = vpop.f32.mrf.mxu0
      %1643 = vmatprep.mubr.f32.mxu0 0.0
      %1644 = vmatmul.mubr.f32.gmra.mxu0 %v1426
      %v1645 = vpop.f32.mrf.mxu0
      %v1646 = vadd.f32 0.0, %v1645
      %v1647 = vpop.f32.mrf.mxu0
      %1648 = vmatprep.mubr.f32.mxu0 0.0
      %1649 = vmatmul.mubr.f32.gmra.mxu0 %v1427
      %v1650 = vpop.f32.mrf.mxu0
      %v1651 = vadd.f32 0.0, %v1650
      %v1652 = vpop.f32.mrf.mxu0
      %1653 = vmatprep.mubr.f32.mxu0 0.0
      %1654 = vmatmul.mubr.f32.gmra.mxu0 %v1428
      %v1655 = vpop.f32.mrf.mxu0
      %v1656 = vadd.f32 0.0, %v1655
      %v1657 = vpop.f32.mrf.mxu0
      %1658 = vmatprep.mubr.f32.mxu0 0.0
      %1659 = vmatmul.mubr.f32.gmra.mxu0 %v1429
      %v1660 = vpop.f32.mrf.mxu0
      %v1661 = vadd.f32 0.0, %v1660
      %v1662 = vpop.f32.mrf.mxu0
      %1663 = vmatprep.mubr.f32.mxu0 0.0
      %1664 = vmatmul.mubr.f32.gmra.mxu0 %v1430
      %v1665 = vpop.f32.mrf.mxu0
      %v1666 = vadd.f32 0.0, %v1665
      %v1667 = vpop.f32.mrf.mxu0
      %1668 = vmatprep.mubr.f32.mxu0 0.0
      %1669 = vmatmul.mubr.f32.gmra.mxu0 %v1431
      %v1670 = vpop.f32.mrf.mxu0
      %v1671 = vadd.f32 0.0, %v1670
      %v1672 = vpop.f32.mrf.mxu0
      %1673 = vdwg.mxu0
      %v1674 = vld [vmem:[#allocation3] sm:$0xff]
      %v1675 = vld [vmem:[#allocation3 + $0x8] sm:$0xff]
      %v1676 = vld [vmem:[#allocation3 + $0x10] sm:$0xff]
      %v1677 = vld [vmem:[#allocation3 + $0x18] sm:$0xff]
      %v1678 = vld [vmem:[#allocation3 + $0x20] sm:$0xff]
      %v1679 = vld [vmem:[#allocation3 + $0x28] sm:$0xff]
      %v1680 = vld [vmem:[#allocation3 + $0x30] sm:$0xff]
      %v1681 = vld [vmem:[#allocation3 + $0x38] sm:$0xff]
      %v1682 = vld [vmem:[#allocation3 + $0x40] sm:$0xff]
      %v1683 = vld [vmem:[#allocation3 + $0x48] sm:$0xff]
      %v1684 = vld [vmem:[#allocation3 + $0x50] sm:$0xff]
      %v1685 = vld [vmem:[#allocation3 + $0x58] sm:$0xff]
      %v1686 = vld [vmem:[#allocation3 + $0x60] sm:$0xff]
      %v1687 = vld [vmem:[#allocation3 + $0x68] sm:$0xff]
      %v1688 = vld [vmem:[#allocation3 + $0x70] sm:$0xff]
      %v1689 = vld [vmem:[#allocation3 + $0x78] sm:$0xff]
      %v1690 = vld [vmem:[#allocation3 + $0x80] sm:$0xff]
      %v1691 = vld [vmem:[#allocation3 + $0x88] sm:$0xff]
      %v1692 = vld [vmem:[#allocation3 + $0x90] sm:$0xff]
      %v1693 = vld [vmem:[#allocation3 + $0x98] sm:$0xff]
      %v1694 = vld [vmem:[#allocation3 + $0xa0] sm:$0xff]
      %v1695 = vld [vmem:[#allocation3 + $0xa8] sm:$0xff]
      %v1696 = vld [vmem:[#allocation3 + $0xb0] sm:$0xff]
      %v1697 = vld [vmem:[#allocation3 + $0xb8] sm:$0xff]
      %v1698 = vld [vmem:[#allocation3 + $0xc0] sm:$0xff]
      %v1699 = vld [vmem:[#allocation3 + $0xc8] sm:$0xff]
      %v1700 = vld [vmem:[#allocation3 + $0xd0] sm:$0xff]
      %v1701 = vld [vmem:[#allocation3 + $0xd8] sm:$0xff]
      %v1702 = vld [vmem:[#allocation3 + $0xe0] sm:$0xff]
      %v1703 = vld [vmem:[#allocation3 + $0xe8] sm:$0xff]
      %v1704 = vld [vmem:[#allocation3 + $0xf0] sm:$0xff]
      %v1705 = vld [vmem:[#allocation3 + $0xf8] sm:$0xff]
      %v1706 = vadd.f32 %v1674, %v1516
      %v1707 = vadd.f32 %v1675, %v1521
      %v1708 = vadd.f32 %v1676, %v1526
      %v1709 = vadd.f32 %v1677, %v1531
      %v1710 = vadd.f32 %v1678, %v1536
      %v1711 = vadd.f32 %v1679, %v1541
      %v1712 = vadd.f32 %v1680, %v1546
      %v1713 = vadd.f32 %v1681, %v1551
      %v1714 = vadd.f32 %v1682, %v1556
      %v1715 = vadd.f32 %v1683, %v1561
      %v1716 = vadd.f32 %v1684, %v1566
      %v1717 = vadd.f32 %v1685, %v1571
      %v1718 = vadd.f32 %v1686, %v1576
      %v1719 = vadd.f32 %v1687, %v1581
      %v1720 = vadd.f32 %v1688, %v1586
      %v1721 = vadd.f32 %v1689, %v1591
      %v1722 = vadd.f32 %v1690, %v1596
      %v1723 = vadd.f32 %v1691, %v1601
      %v1724 = vadd.f32 %v1692, %v1606
      %v1725 = vadd.f32 %v1693, %v1611
      %v1726 = vadd.f32 %v1694, %v1616
      %v1727 = vadd.f32 %v1695, %v1621
      %v1728 = vadd.f32 %v1696, %v1626
      %v1729 = vadd.f32 %v1697, %v1631
      %v1730 = vadd.f32 %v1698, %v1636
      %v1731 = vadd.f32 %v1699, %v1641
      %v1732 = vadd.f32 %v1700, %v1646
      %v1733 = vadd.f32 %v1701, %v1651
      %v1734 = vadd.f32 %v1702, %v1656
      %v1735 = vadd.f32 %v1703, %v1661
      %v1736 = vadd.f32 %v1704, %v1666
      %v1737 = vadd.f32 %v1705, %v1671
      %1738 = vst [vmem:[#allocation3] sm:$0xff] %v1706
      %1739 = vst [vmem:[#allocation3 + $0x8] sm:$0xff] %v1707
      %1740 = vst [vmem:[#allocation3 + $0x10] sm:$0xff] %v1708
      %1741 = vst [vmem:[#allocation3 + $0x18] sm:$0xff] %v1709
      %1742 = vst [vmem:[#allocation3 + $0x20] sm:$0xff] %v1710
      %1743 = vst [vmem:[#allocation3 + $0x28] sm:$0xff] %v1711
      %1744 = vst [vmem:[#allocation3 + $0x30] sm:$0xff] %v1712
      %1745 = vst [vmem:[#allocation3 + $0x38] sm:$0xff] %v1713
      %1746 = vst [vmem:[#allocation3 + $0x40] sm:$0xff] %v1714
      %1747 = vst [vmem:[#allocation3 + $0x48] sm:$0xff] %v1715
      %1748 = vst [vmem:[#allocation3 + $0x50] sm:$0xff] %v1716
      %1749 = vst [vmem:[#allocation3 + $0x58] sm:$0xff] %v1717
      %1750 = vst [vmem:[#allocation3 + $0x60] sm:$0xff] %v1718
      %1751 = vst [vmem:[#allocation3 + $0x68] sm:$0xff] %v1719
      %1752 = vst [vmem:[#allocation3 + $0x70] sm:$0xff] %v1720
      %1753 = vst [vmem:[#allocation3 + $0x78] sm:$0xff] %v1721
      %1754 = vst [vmem:[#allocation3 + $0x80] sm:$0xff] %v1722
      %1755 = vst [vmem:[#allocation3 + $0x88] sm:$0xff] %v1723
      %1756 = vst [vmem:[#allocation3 + $0x90] sm:$0xff] %v1724
      %1757 = vst [vmem:[#allocation3 + $0x98] sm:$0xff] %v1725
      %1758 = vst [vmem:[#allocation3 + $0xa0] sm:$0xff] %v1726
      %1759 = vst [vmem:[#allocation3 + $0xa8] sm:$0xff] %v1727
      %1760 = vst [vmem:[#allocation3 + $0xb0] sm:$0xff] %v1728
      %1761 = vst [vmem:[#allocation3 + $0xb8] sm:$0xff] %v1729
      %1762 = vst [vmem:[#allocation3 + $0xc0] sm:$0xff] %v1730
      %1763 = vst [vmem:[#allocation3 + $0xc8] sm:$0xff] %v1731
      %1764 = vst [vmem:[#allocation3 + $0xd0] sm:$0xff] %v1732
      %1765 = vst [vmem:[#allocation3 + $0xd8] sm:$0xff] %v1733
      %1766 = vst [vmem:[#allocation3 + $0xe0] sm:$0xff] %v1734
      %1767 = vst [vmem:[#allocation3 + $0xe8] sm:$0xff] %v1735
      %1768 = vst [vmem:[#allocation3 + $0xf0] sm:$0xff] %v1736
      %1769 = vst [vmem:[#allocation3 + $0xf8] sm:$0xff] %v1737
      %v1770 = vld [vmem:[%s322 + $0x1] sm:$0xff]
      %v1771 = vld [vmem:[%s322 + $0x9] sm:$0xff]
      %v1772 = vld [vmem:[%s322 + $0x19] sm:$0xff]
      %v1773 = vld [vmem:[%s322 + $0x21] sm:$0xff]
      %v1774 = vld [vmem:[%s322 + $0x31] sm:$0xff]
      %v1775 = vld [vmem:[%s322 + $0x39] sm:$0xff]
      %v1776 = vld [vmem:[%s322 + $0x49] sm:$0xff]
      %v1777 = vld [vmem:[%s322 + $0x51] sm:$0xff]
      %v1778 = vld [vmem:[%s322 + $0x61] sm:$0xff]
      %v1779 = vld [vmem:[%s322 + $0x69] sm:$0xff]
      %v1780 = vld [vmem:[%s322 + $0x79] sm:$0xff]
      %v1781 = vld [vmem:[%s322 + $0x81] sm:$0xff]
      %v1782 = vld [vmem:[%s322 + $0x91] sm:$0xff]
      %v1783 = vld [vmem:[%s322 + $0x99] sm:$0xff]
      %v1784 = vld [vmem:[%s322 + $0xa9] sm:$0xff]
      %v1785 = vld [vmem:[%s322 + $0xb1] sm:$0xff]
      %v1786 = vld [vmem:[%s322 + $0xc1] sm:$0xff]
      %v1787 = vld [vmem:[%s322 + $0xc9] sm:$0xff]
      %v1788 = vld [vmem:[%s322 + $0xd9] sm:$0xff]
      %v1789 = vld [vmem:[%s322 + $0xe1] sm:$0xff]
      %v1790 = vld [vmem:[%s322 + $0xf1] sm:$0xff]
      %v1791 = vld [vmem:[%s322 + $0xf9] sm:$0xff]
      %v1792 = vld [vmem:[%s322 + $0x109] sm:$0xff]
      %v1793 = vld [vmem:[%s322 + $0x111] sm:$0xff]
      %v1794 = vld [vmem:[%s322 + $0x121] sm:$0xff]
      %v1795 = vld [vmem:[%s322 + $0x129] sm:$0xff]
      %v1796 = vld [vmem:[%s322 + $0x139] sm:$0xff]
      %v1797 = vld [vmem:[%s322 + $0x141] sm:$0xff]
      %v1798 = vld [vmem:[%s322 + $0x151] sm:$0xff]
      %v1799 = vld [vmem:[%s322 + $0x159] sm:$0xff]
      %v1800 = vld [vmem:[%s322 + $0x169] sm:$0xff]
      %v1801 = vld [vmem:[%s322 + $0x171] sm:$0xff]
      %s1802 = scalar_lea.vmem %s1, 512
      %v1803 = vld [vmem:[%s1802] sm:$0xff]
      %v1804 = vld [vmem:[%s1802 + $0x8] sm:$0xff]
      %v1805 = vld [vmem:[%s1802 + $0x10] sm:$0xff]
      %v1806 = vld [vmem:[%s1802 + $0x18] sm:$0xff]
      %v1807 = vld [vmem:[%s1802 + $0x20] sm:$0xff]
      %v1808 = vld [vmem:[%s1802 + $0x28] sm:$0xff]
      %v1809 = vld [vmem:[%s1802 + $0x30] sm:$0xff]
      %v1810 = vld [vmem:[%s1802 + $0x38] sm:$0xff]
      %v1811 = vld [vmem:[%s1802 + $0x40] sm:$0xff]
      %v1812 = vld [vmem:[%s1802 + $0x48] sm:$0xff]
      %v1813 = vld [vmem:[%s1802 + $0x50] sm:$0xff]
      %v1814 = vld [vmem:[%s1802 + $0x58] sm:$0xff]
      %v1815 = vld [vmem:[%s1802 + $0x60] sm:$0xff]
      %v1816 = vld [vmem:[%s1802 + $0x68] sm:$0xff]
      %v1817 = vld [vmem:[%s1802 + $0x70] sm:$0xff]
      %v1818 = vld [vmem:[%s1802 + $0x78] sm:$0xff]
      %1819 = vmatprep.subr.mxu0 0.0
      %1820 = vmatpush1.msra.mxu0 %v1818
      %1821 = vmatprep.subr.mxu0 0.0
      %1822 = vmatpush1.msra.mxu0 %v1817
      %1823 = vmatprep.subr.mxu0 0.0
      %1824 = vmatpush1.msra.mxu0 %v1816
      %1825 = vmatprep.subr.mxu0 0.0
      %1826 = vmatpush1.msra.mxu0 %v1815
      %1827 = vmatprep.subr.mxu0 0.0
      %1828 = vmatpush1.msra.mxu0 %v1814
      %1829 = vmatprep.subr.mxu0 0.0
      %1830 = vmatpush1.msra.mxu0 %v1813
      %1831 = vmatprep.subr.mxu0 0.0
      %1832 = vmatpush1.msra.mxu0 %v1812
      %1833 = vmatprep.subr.mxu0 0.0
      %1834 = vmatpush1.msra.mxu0 %v1811
      %1835 = vmatprep.subr.mxu0 0.0
      %1836 = vmatpush1.msra.mxu0 %v1810
      %1837 = vmatprep.subr.mxu0 0.0
      %1838 = vmatpush1.msra.mxu0 %v1809
      %1839 = vmatprep.subr.mxu0 0.0
      %1840 = vmatpush1.msra.mxu0 %v1808
      %1841 = vmatprep.subr.mxu0 0.0
      %1842 = vmatpush1.msra.mxu0 %v1807
      %1843 = vmatprep.subr.mxu0 0.0
      %1844 = vmatpush1.msra.mxu0 %v1806
      %1845 = vmatprep.subr.mxu0 0.0
      %1846 = vmatpush1.msra.mxu0 %v1805
      %1847 = vmatprep.subr.mxu0 0.0
      %1848 = vmatpush1.msra.mxu0 %v1804
      %1849 = vmatprep.subr.mxu0 0.0
      %1850 = vmatpush1.msra.mxu0 %v1803
      %1851 = vmatprep.subr.mxu0 0.0
      %1852 = vmatpush2.msra.mxu0 0.0
      %1853 = vmatprep.subr.mxu0 0.0
      %1854 = vmatpush2.msra.mxu0 0.0
      %1855 = vmatprep.subr.mxu0 0.0
      %1856 = vmatpush2.msra.mxu0 0.0
      %1857 = vmatprep.subr.mxu0 0.0
      %1858 = vmatpush2.msra.mxu0 0.0
      %1859 = vmatprep.subr.mxu0 0.0
      %1860 = vmatpush2.msra.mxu0 0.0
      %1861 = vmatprep.subr.mxu0 0.0
      %1862 = vmatpush2.msra.mxu0 0.0
      %1863 = vmatprep.subr.mxu0 0.0
      %1864 = vmatpush2.msra.mxu0 0.0
      %1865 = vmatprep.subr.mxu0 0.0
      %1866 = vmatpush2.msra.mxu0 0.0
      %1867 = vmatprep.subr.mxu0 0.0
      %1868 = vmatpush2.msra.mxu0 0.0
      %1869 = vmatprep.subr.mxu0 0.0
      %1870 = vmatpush2.msra.mxu0 0.0
      %1871 = vmatprep.subr.mxu0 0.0
      %1872 = vmatpush2.msra.mxu0 0.0
      %1873 = vmatprep.subr.mxu0 0.0
      %1874 = vmatpush2.msra.mxu0 0.0
      %1875 = vmatprep.subr.mxu0 0.0
      %1876 = vmatpush2.msra.mxu0 0.0
      %1877 = vmatprep.subr.mxu0 0.0
      %1878 = vmatpush2.msra.mxu0 0.0
      %1879 = vmatprep.subr.mxu0 0.0
      %1880 = vmatpush2.msra.mxu0 0.0
      %1881 = vmatprep.subr.mxu0 0.0
      %1882 = vmatpush2.msra.mxu0 0.0
      %1883 = vmatprep.mubr.f32.mxu0 0.0
      %1884 = vmatmul.mubr.f32.gmra.mxu0 %v1770
      %v1885 = vpop.f32.mrf.mxu0
      %v1886 = vadd.f32 0.0, %v1885
      %v1887 = vpop.f32.mrf.mxu0
      %1888 = vmatprep.mubr.f32.mxu0 0.0
      %1889 = vmatmul.mubr.f32.gmra.mxu0 %v1771
      %v1890 = vpop.f32.mrf.mxu0
      %v1891 = vadd.f32 0.0, %v1890
      %v1892 = vpop.f32.mrf.mxu0
      %1893 = vmatprep.mubr.f32.mxu0 0.0
      %1894 = vmatmul.mubr.f32.gmra.mxu0 %v1772
      %v1895 = vpop.f32.mrf.mxu0
      %v1896 = vadd.f32 0.0, %v1895
      %v1897 = vpop.f32.mrf.mxu0
      %1898 = vmatprep.mubr.f32.mxu0 0.0
      %1899 = vmatmul.mubr.f32.gmra.mxu0 %v1773
      %v1900 = vpop.f32.mrf.mxu0
      %v1901 = vadd.f32 0.0, %v1900
      %v1902 = vpop.f32.mrf.mxu0
      %1903 = vmatprep.mubr.f32.mxu0 0.0
      %1904 = vmatmul.mubr.f32.gmra.mxu0 %v1774
      %v1905 = vpop.f32.mrf.mxu0
      %v1906 = vadd.f32 0.0, %v1905
      %v1907 = vpop.f32.mrf.mxu0
      %1908 = vmatprep.mubr.f32.mxu0 0.0
      %1909 = vmatmul.mubr.f32.gmra.mxu0 %v1775
      %v1910 = vpop.f32.mrf.mxu0
      %v1911 = vadd.f32 0.0, %v1910
      %v1912 = vpop.f32.mrf.mxu0
      %1913 = vmatprep.mubr.f32.mxu0 0.0
      %1914 = vmatmul.mubr.f32.gmra.mxu0 %v1776
      %v1915 = vpop.f32.mrf.mxu0
      %v1916 = vadd.f32 0.0, %v1915
      %v1917 = vpop.f32.mrf.mxu0
      %1918 = vmatprep.mubr.f32.mxu0 0.0
      %1919 = vmatmul.mubr.f32.gmra.mxu0 %v1777
      %v1920 = vpop.f32.mrf.mxu0
      %v1921 = vadd.f32 0.0, %v1920
      %v1922 = vpop.f32.mrf.mxu0
      %1923 = vmatprep.mubr.f32.mxu0 0.0
      %1924 = vmatmul.mubr.f32.gmra.mxu0 %v1778
      %v1925 = vpop.f32.mrf.mxu0
      %v1926 = vadd.f32 0.0, %v1925
      %v1927 = vpop.f32.mrf.mxu0
      %1928 = vmatprep.mubr.f32.mxu0 0.0
      %1929 = vmatmul.mubr.f32.gmra.mxu0 %v1779
      %v1930 = vpop.f32.mrf.mxu0
      %v1931 = vadd.f32 0.0, %v1930
      %v1932 = vpop.f32.mrf.mxu0
      %1933 = vmatprep.mubr.f32.mxu0 0.0
      %1934 = vmatmul.mubr.f32.gmra.mxu0 %v1780
      %v1935 = vpop.f32.mrf.mxu0
      %v1936 = vadd.f32 0.0, %v1935
      %v1937 = vpop.f32.mrf.mxu0
      %1938 = vmatprep.mubr.f32.mxu0 0.0
      %1939 = vmatmul.mubr.f32.gmra.mxu0 %v1781
      %v1940 = vpop.f32.mrf.mxu0
      %v1941 = vadd.f32 0.0, %v1940
      %v1942 = vpop.f32.mrf.mxu0
      %1943 = vmatprep.mubr.f32.mxu0 0.0
      %1944 = vmatmul.mubr.f32.gmra.mxu0 %v1782
      %v1945 = vpop.f32.mrf.mxu0
      %v1946 = vadd.f32 0.0, %v1945
      %v1947 = vpop.f32.mrf.mxu0
      %1948 = vmatprep.mubr.f32.mxu0 0.0
      %1949 = vmatmul.mubr.f32.gmra.mxu0 %v1783
      %v1950 = vpop.f32.mrf.mxu0
      %v1951 = vadd.f32 0.0, %v1950
      %v1952 = vpop.f32.mrf.mxu0
      %1953 = vmatprep.mubr.f32.mxu0 0.0
      %1954 = vmatmul.mubr.f32.gmra.mxu0 %v1784
      %v1955 = vpop.f32.mrf.mxu0
      %v1956 = vadd.f32 0.0, %v1955
      %v1957 = vpop.f32.mrf.mxu0
      %1958 = vmatprep.mubr.f32.mxu0 0.0
      %1959 = vmatmul.mubr.f32.gmra.mxu0 %v1785
      %v1960 = vpop.f32.mrf.mxu0
      %v1961 = vadd.f32 0.0, %v1960
      %v1962 = vpop.f32.mrf.mxu0
      %1963 = vmatprep.mubr.f32.mxu0 0.0
      %1964 = vmatmul.mubr.f32.gmra.mxu0 %v1786
      %v1965 = vpop.f32.mrf.mxu0
      %v1966 = vadd.f32 0.0, %v1965
      %v1967 = vpop.f32.mrf.mxu0
      %1968 = vmatprep.mubr.f32.mxu0 0.0
      %1969 = vmatmul.mubr.f32.gmra.mxu0 %v1787
      %v1970 = vpop.f32.mrf.mxu0
      %v1971 = vadd.f32 0.0, %v1970
      %v1972 = vpop.f32.mrf.mxu0
      %1973 = vmatprep.mubr.f32.mxu0 0.0
      %1974 = vmatmul.mubr.f32.gmra.mxu0 %v1788
      %v1975 = vpop.f32.mrf.mxu0
      %v1976 = vadd.f32 0.0, %v1975
      %v1977 = vpop.f32.mrf.mxu0
      %1978 = vmatprep.mubr.f32.mxu0 0.0
      %1979 = vmatmul.mubr.f32.gmra.mxu0 %v1789
      %v1980 = vpop.f32.mrf.mxu0
      %v1981 = vadd.f32 0.0, %v1980
      %v1982 = vpop.f32.mrf.mxu0
      %1983 = vmatprep.mubr.f32.mxu0 0.0
      %1984 = vmatmul.mubr.f32.gmra.mxu0 %v1790
      %v1985 = vpop.f32.mrf.mxu0
      %v1986 = vadd.f32 0.0, %v1985
      %v1987 = vpop.f32.mrf.mxu0
      %1988 = vmatprep.mubr.f32.mxu0 0.0
      %1989 = vmatmul.mubr.f32.gmra.mxu0 %v1791
      %v1990 = vpop.f32.mrf.mxu0
      %v1991 = vadd.f32 0.0, %v1990
      %v1992 = vpop.f32.mrf.mxu0
      %1993 = vmatprep.mubr.f32.mxu0 0.0
      %1994 = vmatmul.mubr.f32.gmra.mxu0 %v1792
      %v1995 = vpop.f32.mrf.mxu0
      %v1996 = vadd.f32 0.0, %v1995
      %v1997 = vpop.f32.mrf.mxu0
      %1998 = vmatprep.mubr.f32.mxu0 0.0
      %1999 = vmatmul.mubr.f32.gmra.mxu0 %v1793
      %v2000 = vpop.f32.mrf.mxu0
      %v2001 = vadd.f32 0.0, %v2000
      %v2002 = vpop.f32.mrf.mxu0
      %2003 = vmatprep.mubr.f32.mxu0 0.0
      %2004 = vmatmul.mubr.f32.gmra.mxu0 %v1794
      %v2005 = vpop.f32.mrf.mxu0
      %v2006 = vadd.f32 0.0, %v2005
      %v2007 = vpop.f32.mrf.mxu0
      %2008 = vmatprep.mubr.f32.mxu0 0.0
      %2009 = vmatmul.mubr.f32.gmra.mxu0 %v1795
      %v2010 = vpop.f32.mrf.mxu0
      %v2011 = vadd.f32 0.0, %v2010
      %v2012 = vpop.f32.mrf.mxu0
      %2013 = vmatprep.mubr.f32.mxu0 0.0
      %2014 = vmatmul.mubr.f32.gmra.mxu0 %v1796
      %v2015 = vpop.f32.mrf.mxu0
      %v2016 = vadd.f32 0.0, %v2015
      %v2017 = vpop.f32.mrf.mxu0
      %2018 = vmatprep.mubr.f32.mxu0 0.0
      %2019 = vmatmul.mubr.f32.gmra.mxu0 %v1797
      %v2020 = vpop.f32.mrf.mxu0
      %v2021 = vadd.f32 0.0, %v2020
      %v2022 = vpop.f32.mrf.mxu0
      %2023 = vmatprep.mubr.f32.mxu0 0.0
      %2024 = vmatmul.mubr.f32.gmra.mxu0 %v1798
      %v2025 = vpop.f32.mrf.mxu0
      %v2026 = vadd.f32 0.0, %v2025
      %v2027 = vpop.f32.mrf.mxu0
      %2028 = vmatprep.mubr.f32.mxu0 0.0
      %2029 = vmatmul.mubr.f32.gmra.mxu0 %v1799
      %v2030 = vpop.f32.mrf.mxu0
      %v2031 = vadd.f32 0.0, %v2030
      %v2032 = vpop.f32.mrf.mxu0
      %2033 = vmatprep.mubr.f32.mxu0 0.0
      %2034 = vmatmul.mubr.f32.gmra.mxu0 %v1800
      %v2035 = vpop.f32.mrf.mxu0
      %v2036 = vadd.f32 0.0, %v2035
      %v2037 = vpop.f32.mrf.mxu0
      %2038 = vmatprep.mubr.f32.mxu0 0.0
      %2039 = vmatmul.mubr.f32.gmra.mxu0 %v1801
      %v2040 = vpop.f32.mrf.mxu0
      %v2041 = vadd.f32 0.0, %v2040
      %v2042 = vpop.f32.mrf.mxu0
      %2043 = vdwg.mxu0
      %v2044 = vld [vmem:[#allocation3] sm:$0xff]
      %v2045 = vld [vmem:[#allocation3 + $0x8] sm:$0xff]
      %v2046 = vld [vmem:[#allocation3 + $0x10] sm:$0xff]
      %v2047 = vld [vmem:[#allocation3 + $0x18] sm:$0xff]
      %v2048 = vld [vmem:[#allocation3 + $0x20] sm:$0xff]
      %v2049 = vld [vmem:[#allocation3 + $0x28] sm:$0xff]
      %v2050 = vld [vmem:[#allocation3 + $0x30] sm:$0xff]
      %v2051 = vld [vmem:[#allocation3 + $0x38] sm:$0xff]
      %v2052 = vld [vmem:[#allocation3 + $0x40] sm:$0xff]
      %v2053 = vld [vmem:[#allocation3 + $0x48] sm:$0xff]
      %v2054 = vld [vmem:[#allocation3 + $0x50] sm:$0xff]
      %v2055 = vld [vmem:[#allocation3 + $0x58] sm:$0xff]
      %v2056 = vld [vmem:[#allocation3 + $0x60] sm:$0xff]
      %v2057 = vld [vmem:[#allocation3 + $0x68] sm:$0xff]
      %v2058 = vld [vmem:[#allocation3 + $0x70] sm:$0xff]
      %v2059 = vld [vmem:[#allocation3 + $0x78] sm:$0xff]
      %v2060 = vld [vmem:[#allocation3 + $0x80] sm:$0xff]
      %v2061 = vld [vmem:[#allocation3 + $0x88] sm:$0xff]
      %v2062 = vld [vmem:[#allocation3 + $0x90] sm:$0xff]
      %v2063 = vld [vmem:[#allocation3 + $0x98] sm:$0xff]
      %v2064 = vld [vmem:[#allocation3 + $0xa0] sm:$0xff]
      %v2065 = vld [vmem:[#allocation3 + $0xa8] sm:$0xff]
      %v2066 = vld [vmem:[#allocation3 + $0xb0] sm:$0xff]
      %v2067 = vld [vmem:[#allocation3 + $0xb8] sm:$0xff]
      %v2068 = vld [vmem:[#allocation3 + $0xc0] sm:$0xff]
      %v2069 = vld [vmem:[#allocation3 + $0xc8] sm:$0xff]
      %v2070 = vld [vmem:[#allocation3 + $0xd0] sm:$0xff]
      %v2071 = vld [vmem:[#allocation3 + $0xd8] sm:$0xff]
      %v2072 = vld [vmem:[#allocation3 + $0xe0] sm:$0xff]
      %v2073 = vld [vmem:[#allocation3 + $0xe8] sm:$0xff]
      %v2074 = vld [vmem:[#allocation3 + $0xf0] sm:$0xff]
      %v2075 = vld [vmem:[#allocation3 + $0xf8] sm:$0xff]
      %v2076 = vadd.f32 %v2044, %v1886
      %v2077 = vadd.f32 %v2045, %v1891
      %v2078 = vadd.f32 %v2046, %v1896
      %v2079 = vadd.f32 %v2047, %v1901
      %v2080 = vadd.f32 %v2048, %v1906
      %v2081 = vadd.f32 %v2049, %v1911
      %v2082 = vadd.f32 %v2050, %v1916
      %v2083 = vadd.f32 %v2051, %v1921
      %v2084 = vadd.f32 %v2052, %v1926
      %v2085 = vadd.f32 %v2053, %v1931
      %v2086 = vadd.f32 %v2054, %v1936
      %v2087 = vadd.f32 %v2055, %v1941
      %v2088 = vadd.f32 %v2056, %v1946
      %v2089 = vadd.f32 %v2057, %v1951
      %v2090 = vadd.f32 %v2058, %v1956
      %v2091 = vadd.f32 %v2059, %v1961
      %v2092 = vadd.f32 %v2060, %v1966
      %v2093 = vadd.f32 %v2061, %v1971
      %v2094 = vadd.f32 %v2062, %v1976
      %v2095 = vadd.f32 %v2063, %v1981
      %v2096 = vadd.f32 %v2064, %v1986
      %v2097 = vadd.f32 %v2065, %v1991
      %v2098 = vadd.f32 %v2066, %v1996
      %v2099 = vadd.f32 %v2067, %v2001
      %v2100 = vadd.f32 %v2068, %v2006
      %v2101 = vadd.f32 %v2069, %v2011
      %v2102 = vadd.f32 %v2070, %v2016
      %v2103 = vadd.f32 %v2071, %v2021
      %v2104 = vadd.f32 %v2072, %v2026
      %v2105 = vadd.f32 %v2073, %v2031
      %v2106 = vadd.f32 %v2074, %v2036
      %v2107 = vadd.f32 %v2075, %v2041
      %2108 = vst [vmem:[#allocation3] sm:$0xff] %v2076
      %2109 = vst [vmem:[#allocation3 + $0x8] sm:$0xff] %v2077
      %2110 = vst [vmem:[#allocation3 + $0x10] sm:$0xff] %v2078
      %2111 = vst [vmem:[#allocation3 + $0x18] sm:$0xff] %v2079
      %2112 = vst [vmem:[#allocation3 + $0x20] sm:$0xff] %v2080
      %2113 = vst [vmem:[#allocation3 + $0x28] sm:$0xff] %v2081
      %2114 = vst [vmem:[#allocation3 + $0x30] sm:$0xff] %v2082
      %2115 = vst [vmem:[#allocation3 + $0x38] sm:$0xff] %v2083
      %2116 = vst [vmem:[#allocation3 + $0x40] sm:$0xff] %v2084
      %2117 = vst [vmem:[#allocation3 + $0x48] sm:$0xff] %v2085
      %2118 = vst [vmem:[#allocation3 + $0x50] sm:$0xff] %v2086
      %2119 = vst [vmem:[#allocation3 + $0x58] sm:$0xff] %v2087
      %2120 = vst [vmem:[#allocation3 + $0x60] sm:$0xff] %v2088
      %2121 = vst [vmem:[#allocation3 + $0x68] sm:$0xff] %v2089
      %2122 = vst [vmem:[#allocation3 + $0x70] sm:$0xff] %v2090
      %2123 = vst [vmem:[#allocation3 + $0x78] sm:$0xff] %v2091
      %2124 = vst [vmem:[#allocation3 + $0x80] sm:$0xff] %v2092
      %2125 = vst [vmem:[#allocation3 + $0x88] sm:$0xff] %v2093
      %2126 = vst [vmem:[#allocation3 + $0x90] sm:$0xff] %v2094
      %2127 = vst [vmem:[#allocation3 + $0x98] sm:$0xff] %v2095
      %2128 = vst [vmem:[#allocation3 + $0xa0] sm:$0xff] %v2096
      %2129 = vst [vmem:[#allocation3 + $0xa8] sm:$0xff] %v2097
      %2130 = vst [vmem:[#allocation3 + $0xb0] sm:$0xff] %v2098
      %2131 = vst [vmem:[#allocation3 + $0xb8] sm:$0xff] %v2099
      %2132 = vst [vmem:[#allocation3 + $0xc0] sm:$0xff] %v2100
      %2133 = vst [vmem:[#allocation3 + $0xc8] sm:$0xff] %v2101
      %2134 = vst [vmem:[#allocation3 + $0xd0] sm:$0xff] %v2102
      %2135 = vst [vmem:[#allocation3 + $0xd8] sm:$0xff] %v2103
      %2136 = vst [vmem:[#allocation3 + $0xe0] sm:$0xff] %v2104
      %2137 = vst [vmem:[#allocation3 + $0xe8] sm:$0xff] %v2105
      %2138 = vst [vmem:[#allocation3 + $0xf0] sm:$0xff] %v2106
      %2139 = vst [vmem:[#allocation3 + $0xf8] sm:$0xff] %v2107
      %v2140 = vld [vmem:[%s322 + $0x2] sm:$0xff]
      %v2141 = vld [vmem:[%s322 + $0xa] sm:$0xff]
      %v2142 = vld [vmem:[%s322 + $0x1a] sm:$0xff]
      %v2143 = vld [vmem:[%s322 + $0x22] sm:$0xff]
      %v2144 = vld [vmem:[%s322 + $0x32] sm:$0xff]
      %v2145 = vld [vmem:[%s322 + $0x3a] sm:$0xff]
      %v2146 = vld [vmem:[%s322 + $0x4a] sm:$0xff]
      %v2147 = vld [vmem:[%s322 + $0x52] sm:$0xff]
      %v2148 = vld [vmem:[%s322 + $0x62] sm:$0xff]
      %v2149 = vld [vmem:[%s322 + $0x6a] sm:$0xff]
      %v2150 = vld [vmem:[%s322 + $0x7a] sm:$0xff]
      %v2151 = vld [vmem:[%s322 + $0x82] sm:$0xff]
      %v2152 = vld [vmem:[%s322 + $0x92] sm:$0xff]
      %v2153 = vld [vmem:[%s322 + $0x9a] sm:$0xff]
      %v2154 = vld [vmem:[%s322 + $0xaa] sm:$0xff]
      %v2155 = vld [vmem:[%s322 + $0xb2] sm:$0xff]
      %v2156 = vld [vmem:[%s322 + $0xc2] sm:$0xff]
      %v2157 = vld [vmem:[%s322 + $0xca] sm:$0xff]
      %v2158 = vld [vmem:[%s322 + $0xda] sm:$0xff]
      %v2159 = vld [vmem:[%s322 + $0xe2] sm:$0xff]
      %v2160 = vld [vmem:[%s322 + $0xf2] sm:$0xff]
      %v2161 = vld [vmem:[%s322 + $0xfa] sm:$0xff]
      %v2162 = vld [vmem:[%s322 + $0x10a] sm:$0xff]
      %v2163 = vld [vmem:[%s322 + $0x112] sm:$0xff]
      %v2164 = vld [vmem:[%s322 + $0x122] sm:$0xff]
      %v2165 = vld [vmem:[%s322 + $0x12a] sm:$0xff]
      %v2166 = vld [vmem:[%s322 + $0x13a] sm:$0xff]
      %v2167 = vld [vmem:[%s322 + $0x142] sm:$0xff]
      %v2168 = vld [vmem:[%s322 + $0x152] sm:$0xff]
      %v2169 = vld [vmem:[%s322 + $0x15a] sm:$0xff]
      %v2170 = vld [vmem:[%s322 + $0x16a] sm:$0xff]
      %v2171 = vld [vmem:[%s322 + $0x172] sm:$0xff]
      %s2172 = scalar_lea.vmem %s1, 640
      %v2173 = vld [vmem:[%s2172] sm:$0xff]
      %v2174 = vld [vmem:[%s2172 + $0x8] sm:$0xff]
      %v2175 = vld [vmem:[%s2172 + $0x10] sm:$0xff]
      %v2176 = vld [vmem:[%s2172 + $0x18] sm:$0xff]
      %v2177 = vld [vmem:[%s2172 + $0x20] sm:$0xff]
      %v2178 = vld [vmem:[%s2172 + $0x28] sm:$0xff]
      %v2179 = vld [vmem:[%s2172 + $0x30] sm:$0xff]
      %v2180 = vld [vmem:[%s2172 + $0x38] sm:$0xff]
      %v2181 = vld [vmem:[%s2172 + $0x40] sm:$0xff]
      %v2182 = vld [vmem:[%s2172 + $0x48] sm:$0xff]
      %v2183 = vld [vmem:[%s2172 + $0x50] sm:$0xff]
      %v2184 = vld [vmem:[%s2172 + $0x58] sm:$0xff]
      %v2185 = vld [vmem:[%s2172 + $0x60] sm:$0xff]
      %v2186 = vld [vmem:[%s2172 + $0x68] sm:$0xff]
      %v2187 = vld [vmem:[%s2172 + $0x70] sm:$0xff]
      %v2188 = vld [vmem:[%s2172 + $0x78] sm:$0xff]
      %2189 = vmatprep.subr.mxu0 0.0
      %2190 = vmatpush1.msra.mxu0 %v2188
      %2191 = vmatprep.subr.mxu0 0.0
      %2192 = vmatpush1.msra.mxu0 %v2187
      %2193 = vmatprep.subr.mxu0 0.0
      %2194 = vmatpush1.msra.mxu0 %v2186
      %2195 = vmatprep.subr.mxu0 0.0
      %2196 = vmatpush1.msra.mxu0 %v2185
      %2197 = vmatprep.subr.mxu0 0.0
      %2198 = vmatpush1.msra.mxu0 %v2184
      %2199 = vmatprep.subr.mxu0 0.0
      %2200 = vmatpush1.msra.mxu0 %v2183
      %2201 = vmatprep.subr.mxu0 0.0
      %2202 = vmatpush1.msra.mxu0 %v2182
      %2203 = vmatprep.subr.mxu0 0.0
      %2204 = vmatpush1.msra.mxu0 %v2181
      %2205 = vmatprep.subr.mxu0 0.0
      %2206 = vmatpush1.msra.mxu0 %v2180
      %2207 = vmatprep.subr.mxu0 0.0
      %2208 = vmatpush1.msra.mxu0 %v2179
      %2209 = vmatprep.subr.mxu0 0.0
      %2210 = vmatpush1.msra.mxu0 %v2178
      %2211 = vmatprep.subr.mxu0 0.0
      %2212 = vmatpush1.msra.mxu0 %v2177
      %2213 = vmatprep.subr.mxu0 0.0
      %2214 = vmatpush1.msra.mxu0 %v2176
      %2215 = vmatprep.subr.mxu0 0.0
      %2216 = vmatpush1.msra.mxu0 %v2175
      %2217 = vmatprep.subr.mxu0 0.0
      %2218 = vmatpush1.msra.mxu0 %v2174
      %2219 = vmatprep.subr.mxu0 0.0
      %2220 = vmatpush1.msra.mxu0 %v2173
      %2221 = vmatprep.subr.mxu0 0.0
      %2222 = vmatpush2.msra.mxu0 0.0
      %2223 = vmatprep.subr.mxu0 0.0
      %2224 = vmatpush2.msra.mxu0 0.0
      %2225 = vmatprep.subr.mxu0 0.0
      %2226 = vmatpush2.msra.mxu0 0.0
      %2227 = vmatprep.subr.mxu0 0.0
      %2228 = vmatpush2.msra.mxu0 0.0
      %2229 = vmatprep.subr.mxu0 0.0
      %2230 = vmatpush2.msra.mxu0 0.0
      %2231 = vmatprep.subr.mxu0 0.0
      %2232 = vmatpush2.msra.mxu0 0.0
      %2233 = vmatprep.subr.mxu0 0.0
      %2234 = vmatpush2.msra.mxu0 0.0
      %2235 = vmatprep.subr.mxu0 0.0
      %2236 = vmatpush2.msra.mxu0 0.0
      %2237 = vmatprep.subr.mxu0 0.0
      %2238 = vmatpush2.msra.mxu0 0.0
      %2239 = vmatprep.subr.mxu0 0.0
      %2240 = vmatpush2.msra.mxu0 0.0
      %2241 = vmatprep.subr.mxu0 0.0
      %2242 = vmatpush2.msra.mxu0 0.0
      %2243 = vmatprep.subr.mxu0 0.0
      %2244 = vmatpush2.msra.mxu0 0.0
      %2245 = vmatprep.subr.mxu0 0.0
      %2246 = vmatpush2.msra.mxu0 0.0
      %2247 = vmatprep.subr.mxu0 0.0
      %2248 = vmatpush2.msra.mxu0 0.0
      %2249 = vmatprep.subr.mxu0 0.0
      %2250 = vmatpush2.msra.mxu0 0.0
      %2251 = vmatprep.subr.mxu0 0.0
      %2252 = vmatpush2.msra.mxu0 0.0
      %2253 = vmatprep.mubr.f32.mxu0 0.0
      %2254 = vmatmul.mubr.f32.gmra.mxu0 %v2140
      %v2255 = vpop.f32.mrf.mxu0
      %v2256 = vadd.f32 0.0, %v2255
      %v2257 = vpop.f32.mrf.mxu0
      %2258 = vmatprep.mubr.f32.mxu0 0.0
      %2259 = vmatmul.mubr.f32.gmra.mxu0 %v2141
      %v2260 = vpop.f32.mrf.mxu0
      %v2261 = vadd.f32 0.0, %v2260
      %v2262 = vpop.f32.mrf.mxu0
      %2263 = vmatprep.mubr.f32.mxu0 0.0
      %2264 = vmatmul.mubr.f32.gmra.mxu0 %v2142
      %v2265 = vpop.f32.mrf.mxu0
      %v2266 = vadd.f32 0.0, %v2265
      %v2267 = vpop.f32.mrf.mxu0
      %2268 = vmatprep.mubr.f32.mxu0 0.0
      %2269 = vmatmul.mubr.f32.gmra.mxu0 %v2143
      %v2270 = vpop.f32.mrf.mxu0
      %v2271 = vadd.f32 0.0, %v2270
      %v2272 = vpop.f32.mrf.mxu0
      %2273 = vmatprep.mubr.f32.mxu0 0.0
      %2274 = vmatmul.mubr.f32.gmra.mxu0 %v2144
      %v2275 = vpop.f32.mrf.mxu0
      %v2276 = vadd.f32 0.0, %v2275
      %v2277 = vpop.f32.mrf.mxu0
      %2278 = vmatprep.mubr.f32.mxu0 0.0
      %2279 = vmatmul.mubr.f32.gmra.mxu0 %v2145
      %v2280 = vpop.f32.mrf.mxu0
      %v2281 = vadd.f32 0.0, %v2280
      %v2282 = vpop.f32.mrf.mxu0
      %2283 = vmatprep.mubr.f32.mxu0 0.0
      %2284 = vmatmul.mubr.f32.gmra.mxu0 %v2146
      %v2285 = vpop.f32.mrf.mxu0
      %v2286 = vadd.f32 0.0, %v2285
      %v2287 = vpop.f32.mrf.mxu0
      %2288 = vmatprep.mubr.f32.mxu0 0.0
      %2289 = vmatmul.mubr.f32.gmra.mxu0 %v2147
      %v2290 = vpop.f32.mrf.mxu0
      %v2291 = vadd.f32 0.0, %v2290
      %v2292 = vpop.f32.mrf.mxu0
      %2293 = vmatprep.mubr.f32.mxu0 0.0
      %2294 = vmatmul.mubr.f32.gmra.mxu0 %v2148
      %v2295 = vpop.f32.mrf.mxu0
      %v2296 = vadd.f32 0.0, %v2295
      %v2297 = vpop.f32.mrf.mxu0
      %2298 = vmatprep.mubr.f32.mxu0 0.0
      %2299 = vmatmul.mubr.f32.gmra.mxu0 %v2149
      %v2300 = vpop.f32.mrf.mxu0
      %v2301 = vadd.f32 0.0, %v2300
      %v2302 = vpop.f32.mrf.mxu0
      %2303 = vmatprep.mubr.f32.mxu0 0.0
      %2304 = vmatmul.mubr.f32.gmra.mxu0 %v2150
      %v2305 = vpop.f32.mrf.mxu0
      %v2306 = vadd.f32 0.0, %v2305
      %v2307 = vpop.f32.mrf.mxu0
      %2308 = vmatprep.mubr.f32.mxu0 0.0
      %2309 = vmatmul.mubr.f32.gmra.mxu0 %v2151
      %v2310 = vpop.f32.mrf.mxu0
      %v2311 = vadd.f32 0.0, %v2310
      %v2312 = vpop.f32.mrf.mxu0
      %2313 = vmatprep.mubr.f32.mxu0 0.0
      %2314 = vmatmul.mubr.f32.gmra.mxu0 %v2152
      %v2315 = vpop.f32.mrf.mxu0
      %v2316 = vadd.f32 0.0, %v2315
      %v2317 = vpop.f32.mrf.mxu0
      %2318 = vmatprep.mubr.f32.mxu0 0.0
      %2319 = vmatmul.mubr.f32.gmra.mxu0 %v2153
      %v2320 = vpop.f32.mrf.mxu0
      %v2321 = vadd.f32 0.0, %v2320
      %v2322 = vpop.f32.mrf.mxu0
      %2323 = vmatprep.mubr.f32.mxu0 0.0
      %2324 = vmatmul.mubr.f32.gmra.mxu0 %v2154
      %v2325 = vpop.f32.mrf.mxu0
      %v2326 = vadd.f32 0.0, %v2325
      %v2327 = vpop.f32.mrf.mxu0
      %2328 = vmatprep.mubr.f32.mxu0 0.0
      %2329 = vmatmul.mubr.f32.gmra.mxu0 %v2155
      %v2330 = vpop.f32.mrf.mxu0
      %v2331 = vadd.f32 0.0, %v2330
      %v2332 = vpop.f32.mrf.mxu0
      %2333 = vmatprep.mubr.f32.mxu0 0.0
      %2334 = vmatmul.mubr.f32.gmra.mxu0 %v2156
      %v2335 = vpop.f32.mrf.mxu0
      %v2336 = vadd.f32 0.0, %v2335
      %v2337 = vpop.f32.mrf.mxu0
      %2338 = vmatprep.mubr.f32.mxu0 0.0
      %2339 = vmatmul.mubr.f32.gmra.mxu0 %v2157
      %v2340 = vpop.f32.mrf.mxu0
      %v2341 = vadd.f32 0.0, %v2340
      %v2342 = vpop.f32.mrf.mxu0
      %2343 = vmatprep.mubr.f32.mxu0 0.0
      %2344 = vmatmul.mubr.f32.gmra.mxu0 %v2158
      %v2345 = vpop.f32.mrf.mxu0
      %v2346 = vadd.f32 0.0, %v2345
      %v2347 = vpop.f32.mrf.mxu0
      %2348 = vmatprep.mubr.f32.mxu0 0.0
      %2349 = vmatmul.mubr.f32.gmra.mxu0 %v2159
      %v2350 = vpop.f32.mrf.mxu0
      %v2351 = vadd.f32 0.0, %v2350
      %v2352 = vpop.f32.mrf.mxu0
      %2353 = vmatprep.mubr.f32.mxu0 0.0
      %2354 = vmatmul.mubr.f32.gmra.mxu0 %v2160
      %v2355 = vpop.f32.mrf.mxu0
      %v2356 = vadd.f32 0.0, %v2355
      %v2357 = vpop.f32.mrf.mxu0
      %2358 = vmatprep.mubr.f32.mxu0 0.0
      %2359 = vmatmul.mubr.f32.gmra.mxu0 %v2161
      %v2360 = vpop.f32.mrf.mxu0
      %v2361 = vadd.f32 0.0, %v2360
      %v2362 = vpop.f32.mrf.mxu0
      %2363 = vmatprep.mubr.f32.mxu0 0.0
      %2364 = vmatmul.mubr.f32.gmra.mxu0 %v2162
      %v2365 = vpop.f32.mrf.mxu0
      %v2366 = vadd.f32 0.0, %v2365
      %v2367 = vpop.f32.mrf.mxu0
      %2368 = vmatprep.mubr.f32.mxu0 0.0
      %2369 = vmatmul.mubr.f32.gmra.mxu0 %v2163
      %v2370 = vpop.f32.mrf.mxu0
      %v2371 = vadd.f32 0.0, %v2370
      %v2372 = vpop.f32.mrf.mxu0
      %2373 = vmatprep.mubr.f32.mxu0 0.0
      %2374 = vmatmul.mubr.f32.gmra.mxu0 %v2164
      %v2375 = vpop.f32.mrf.mxu0
      %v2376 = vadd.f32 0.0, %v2375
      %v2377 = vpop.f32.mrf.mxu0
      %2378 = vmatprep.mubr.f32.mxu0 0.0
      %2379 = vmatmul.mubr.f32.gmra.mxu0 %v2165
      %v2380 = vpop.f32.mrf.mxu0
      %v2381 = vadd.f32 0.0, %v2380
      %v2382 = vpop.f32.mrf.mxu0
      %2383 = vmatprep.mubr.f32.mxu0 0.0
      %2384 = vmatmul.mubr.f32.gmra.mxu0 %v2166
      %v2385 = vpop.f32.mrf.mxu0
      %v2386 = vadd.f32 0.0, %v2385
      %v2387 = vpop.f32.mrf.mxu0
      %2388 = vmatprep.mubr.f32.mxu0 0.0
      %2389 = vmatmul.mubr.f32.gmra.mxu0 %v2167
      %v2390 = vpop.f32.mrf.mxu0
      %v2391 = vadd.f32 0.0, %v2390
      %v2392 = vpop.f32.mrf.mxu0
      %2393 = vmatprep.mubr.f32.mxu0 0.0
      %2394 = vmatmul.mubr.f32.gmra.mxu0 %v2168
      %v2395 = vpop.f32.mrf.mxu0
      %v2396 = vadd.f32 0.0, %v2395
      %v2397 = vpop.f32.mrf.mxu0
      %2398 = vmatprep.mubr.f32.mxu0 0.0
      %2399 = vmatmul.mubr.f32.gmra.mxu0 %v2169
      %v2400 = vpop.f32.mrf.mxu0
      %v2401 = vadd.f32 0.0, %v2400
      %v2402 = vpop.f32.mrf.mxu0
      %2403 = vmatprep.mubr.f32.mxu0 0.0
      %2404 = vmatmul.mubr.f32.gmra.mxu0 %v2170
      %v2405 = vpop.f32.mrf.mxu0
      %v2406 = vadd.f32 0.0, %v2405
      %v2407 = vpop.f32.mrf.mxu0
      %2408 = vmatprep.mubr.f32.mxu0 0.0
      %2409 = vmatmul.mubr.f32.gmra.mxu0 %v2171
      %v2410 = vpop.f32.mrf.mxu0
      %v2411 = vadd.f32 0.0, %v2410
      %v2412 = vpop.f32.mrf.mxu0
      %2413 = vdwg.mxu0
      %v2414 = vld [vmem:[#allocation3] sm:$0xff]
      %v2415 = vld [vmem:[#allocation3 + $0x8] sm:$0xff]
      %v2416 = vld [vmem:[#allocation3 + $0x10] sm:$0xff]
      %v2417 = vld [vmem:[#allocation3 + $0x18] sm:$0xff]
      %v2418 = vld [vmem:[#allocation3 + $0x20] sm:$0xff]
      %v2419 = vld [vmem:[#allocation3 + $0x28] sm:$0xff]
      %v2420 = vld [vmem:[#allocation3 + $0x30] sm:$0xff]
      %v2421 = vld [vmem:[#allocation3 + $0x38] sm:$0xff]
      %v2422 = vld [vmem:[#allocation3 + $0x40] sm:$0xff]
      %v2423 = vld [vmem:[#allocation3 + $0x48] sm:$0xff]
      %v2424 = vld [vmem:[#allocation3 + $0x50] sm:$0xff]
      %v2425 = vld [vmem:[#allocation3 + $0x58] sm:$0xff]
      %v2426 = vld [vmem:[#allocation3 + $0x60] sm:$0xff]
      %v2427 = vld [vmem:[#allocation3 + $0x68] sm:$0xff]
      %v2428 = vld [vmem:[#allocation3 + $0x70] sm:$0xff]
      %v2429 = vld [vmem:[#allocation3 + $0x78] sm:$0xff]
      %v2430 = vld [vmem:[#allocation3 + $0x80] sm:$0xff]
      %v2431 = vld [vmem:[#allocation3 + $0x88] sm:$0xff]
      %v2432 = vld [vmem:[#allocation3 + $0x90] sm:$0xff]
      %v2433 = vld [vmem:[#allocation3 + $0x98] sm:$0xff]
      %v2434 = vld [vmem:[#allocation3 + $0xa0] sm:$0xff]
      %v2435 = vld [vmem:[#allocation3 + $0xa8] sm:$0xff]
      %v2436 = vld [vmem:[#allocation3 + $0xb0] sm:$0xff]
      %v2437 = vld [vmem:[#allocation3 + $0xb8] sm:$0xff]
      %v2438 = vld [vmem:[#allocation3 + $0xc0] sm:$0xff]
      %v2439 = vld [vmem:[#allocation3 + $0xc8] sm:$0xff]
      %v2440 = vld [vmem:[#allocation3 + $0xd0] sm:$0xff]
      %v2441 = vld [vmem:[#allocation3 + $0xd8] sm:$0xff]
      %v2442 = vld [vmem:[#allocation3 + $0xe0] sm:$0xff]
      %v2443 = vld [vmem:[#allocation3 + $0xe8] sm:$0xff]
      %v2444 = vld [vmem:[#allocation3 + $0xf0] sm:$0xff]
      %v2445 = vld [vmem:[#allocation3 + $0xf8] sm:$0xff]
      %v2446 = vadd.f32 %v2414, %v2256
      %v2447 = vadd.f32 %v2415, %v2261
      %v2448 = vadd.f32 %v2416, %v2266
      %v2449 = vadd.f32 %v2417, %v2271
      %v2450 = vadd.f32 %v2418, %v2276
      %v2451 = vadd.f32 %v2419, %v2281
      %v2452 = vadd.f32 %v2420, %v2286
      %v2453 = vadd.f32 %v2421, %v2291
      %v2454 = vadd.f32 %v2422, %v2296
      %v2455 = vadd.f32 %v2423, %v2301
      %v2456 = vadd.f32 %v2424, %v2306
      %v2457 = vadd.f32 %v2425, %v2311
      %v2458 = vadd.f32 %v2426, %v2316
      %v2459 = vadd.f32 %v2427, %v2321
      %v2460 = vadd.f32 %v2428, %v2326
      %v2461 = vadd.f32 %v2429, %v2331
      %v2462 = vadd.f32 %v2430, %v2336
      %v2463 = vadd.f32 %v2431, %v2341
      %v2464 = vadd.f32 %v2432, %v2346
      %v2465 = vadd.f32 %v2433, %v2351
      %v2466 = vadd.f32 %v2434, %v2356
      %v2467 = vadd.f32 %v2435, %v2361
      %v2468 = vadd.f32 %v2436, %v2366
      %v2469 = vadd.f32 %v2437, %v2371
      %v2470 = vadd.f32 %v2438, %v2376
      %v2471 = vadd.f32 %v2439, %v2381
      %v2472 = vadd.f32 %v2440, %v2386
      %v2473 = vadd.f32 %v2441, %v2391
      %v2474 = vadd.f32 %v2442, %v2396
      %v2475 = vadd.f32 %v2443, %v2401
      %v2476 = vadd.f32 %v2444, %v2406
      %v2477 = vadd.f32 %v2445, %v2411
      %2478 = vst [vmem:[#allocation3] sm:$0xff] %v2446
      %2479 = vst [vmem:[#allocation3 + $0x8] sm:$0xff] %v2447
      %2480 = vst [vmem:[#allocation3 + $0x10] sm:$0xff] %v2448
      %2481 = vst [vmem:[#allocation3 + $0x18] sm:$0xff] %v2449
      %2482 = vst [vmem:[#allocation3 + $0x20] sm:$0xff] %v2450
      %2483 = vst [vmem:[#allocation3 + $0x28] sm:$0xff] %v2451
      %2484 = vst [vmem:[#allocation3 + $0x30] sm:$0xff] %v2452
      %2485 = vst [vmem:[#allocation3 + $0x38] sm:$0xff] %v2453
      %2486 = vst [vmem:[#allocation3 + $0x40] sm:$0xff] %v2454
      %2487 = vst [vmem:[#allocation3 + $0x48] sm:$0xff] %v2455
      %2488 = vst [vmem:[#allocation3 + $0x50] sm:$0xff] %v2456
      %2489 = vst [vmem:[#allocation3 + $0x58] sm:$0xff] %v2457
      %2490 = vst [vmem:[#allocation3 + $0x60] sm:$0xff] %v2458
      %2491 = vst [vmem:[#allocation3 + $0x68] sm:$0xff] %v2459
      %2492 = vst [vmem:[#allocation3 + $0x70] sm:$0xff] %v2460
      %2493 = vst [vmem:[#allocation3 + $0x78] sm:$0xff] %v2461
      %2494 = vst [vmem:[#allocation3 + $0x80] sm:$0xff] %v2462
      %2495 = vst [vmem:[#allocation3 + $0x88] sm:$0xff] %v2463
      %2496 = vst [vmem:[#allocation3 + $0x90] sm:$0xff] %v2464
      %2497 = vst [vmem:[#allocation3 + $0x98] sm:$0xff] %v2465
      %2498 = vst [vmem:[#allocation3 + $0xa0] sm:$0xff] %v2466
      %2499 = vst [vmem:[#allocation3 + $0xa8] sm:$0xff] %v2467
      %2500 = vst [vmem:[#allocation3 + $0xb0] sm:$0xff] %v2468
      %2501 = vst [vmem:[#allocation3 + $0xb8] sm:$0xff] %v2469
      %2502 = vst [vmem:[#allocation3 + $0xc0] sm:$0xff] %v2470
      %2503 = vst [vmem:[#allocation3 + $0xc8] sm:$0xff] %v2471
      %2504 = vst [vmem:[#allocation3 + $0xd0] sm:$0xff] %v2472
      %2505 = vst [vmem:[#allocation3 + $0xd8] sm:$0xff] %v2473
      %2506 = vst [vmem:[#allocation3 + $0xe0] sm:$0xff] %v2474
      %2507 = vst [vmem:[#allocation3 + $0xe8] sm:$0xff] %v2475
      %2508 = vst [vmem:[#allocation3 + $0xf0] sm:$0xff] %v2476
      %2509 = vst [vmem:[#allocation3 + $0xf8] sm:$0xff] %v2477
      %s2510 = scalar_lea.vmem [#allocation2], 48
      %v2511 = vld [vmem:[%s2510] sm:$0xff]
      %v2512 = vld [vmem:[%s2510 + $0x8] sm:$0xff]
      %v2513 = vld [vmem:[%s2510 + $0x18] sm:$0xff]
      %v2514 = vld [vmem:[%s2510 + $0x20] sm:$0xff]
      %v2515 = vld [vmem:[%s2510 + $0x30] sm:$0xff]
      %v2516 = vld [vmem:[%s2510 + $0x38] sm:$0xff]
      %v2517 = vld [vmem:[%s2510 + $0x48] sm:$0xff]
      %v2518 = vld [vmem:[%s2510 + $0x50] sm:$0xff]
      %v2519 = vld [vmem:[%s2510 + $0x60] sm:$0xff]
      %v2520 = vld [vmem:[%s2510 + $0x68] sm:$0xff]
      %v2521 = vld [vmem:[%s2510 + $0x78] sm:$0xff]
      %v2522 = vld [vmem:[%s2510 + $0x80] sm:$0xff]
      %v2523 = vld [vmem:[%s2510 + $0x90] sm:$0xff]
      %v2524 = vld [vmem:[%s2510 + $0x98] sm:$0xff]
      %v2525 = vld [vmem:[%s2510 + $0xa8] sm:$0xff]
      %v2526 = vld [vmem:[%s2510 + $0xb0] sm:$0xff]
      %v2527 = vld [vmem:[%s2510 + $0xc0] sm:$0xff]
      %v2528 = vld [vmem:[%s2510 + $0xc8] sm:$0xff]
      %v2529 = vld [vmem:[%s2510 + $0xd8] sm:$0xff]
      %v2530 = vld [vmem:[%s2510 + $0xe0] sm:$0xff]
      %v2531 = vld [vmem:[%s2510 + $0xf0] sm:$0xff]
      %v2532 = vld [vmem:[%s2510 + $0xf8] sm:$0xff]
      %v2533 = vld [vmem:[%s2510 + $0x108] sm:$0xff]
      %v2534 = vld [vmem:[%s2510 + $0x110] sm:$0xff]
      %v2535 = vld [vmem:[%s2510 + $0x120] sm:$0xff]
      %v2536 = vld [vmem:[%s2510 + $0x128] sm:$0xff]
      %v2537 = vld [vmem:[%s2510 + $0x138] sm:$0xff]
      %v2538 = vld [vmem:[%s2510 + $0x140] sm:$0xff]
      %v2539 = vld [vmem:[%s2510 + $0x150] sm:$0xff]
      %v2540 = vld [vmem:[%s2510 + $0x158] sm:$0xff]
      %v2541 = vld [vmem:[%s2510 + $0x168] sm:$0xff]
      %v2542 = vld [vmem:[%s2510 + $0x170] sm:$0xff]
      %s2543 = scalar_lea.vmem %s1, 768
      %v2544 = vld [vmem:[%s2543] sm:$0xff]
      %v2545 = vld [vmem:[%s2543 + $0x8] sm:$0xff]
      %v2546 = vld [vmem:[%s2543 + $0x10] sm:$0xff]
      %v2547 = vld [vmem:[%s2543 + $0x18] sm:$0xff]
      %v2548 = vld [vmem:[%s2543 + $0x20] sm:$0xff]
      %v2549 = vld [vmem:[%s2543 + $0x28] sm:$0xff]
      %v2550 = vld [vmem:[%s2543 + $0x30] sm:$0xff]
      %v2551 = vld [vmem:[%s2543 + $0x38] sm:$0xff]
      %v2552 = vld [vmem:[%s2543 + $0x40] sm:$0xff]
      %v2553 = vld [vmem:[%s2543 + $0x48] sm:$0xff]
      %v2554 = vld [vmem:[%s2543 + $0x50] sm:$0xff]
      %v2555 = vld [vmem:[%s2543 + $0x58] sm:$0xff]
      %v2556 = vld [vmem:[%s2543 + $0x60] sm:$0xff]
      %v2557 = vld [vmem:[%s2543 + $0x68] sm:$0xff]
      %v2558 = vld [vmem:[%s2543 + $0x70] sm:$0xff]
      %v2559 = vld [vmem:[%s2543 + $0x78] sm:$0xff]
      %2560 = vmatprep.subr.mxu0 0.0
      %2561 = vmatpush1.msra.mxu0 %v2559
      %2562 = vmatprep.subr.mxu0 0.0
      %2563 = vmatpush1.msra.mxu0 %v2558
      %2564 = vmatprep.subr.mxu0 0.0
      %2565 = vmatpush1.msra.mxu0 %v2557
      %2566 = vmatprep.subr.mxu0 0.0
      %2567 = vmatpush1.msra.mxu0 %v2556
      %2568 = vmatprep.subr.mxu0 0.0
      %2569 = vmatpush1.msra.mxu0 %v2555
      %2570 = vmatprep.subr.mxu0 0.0
      %2571 = vmatpush1.msra.mxu0 %v2554
      %2572 = vmatprep.subr.mxu0 0.0
      %2573 = vmatpush1.msra.mxu0 %v2553
      %2574 = vmatprep.subr.mxu0 0.0
      %2575 = vmatpush1.msra.mxu0 %v2552
      %2576 = vmatprep.subr.mxu0 0.0
      %2577 = vmatpush1.msra.mxu0 %v2551
      %2578 = vmatprep.subr.mxu0 0.0
      %2579 = vmatpush1.msra.mxu0 %v2550
      %2580 = vmatprep.subr.mxu0 0.0
      %2581 = vmatpush1.msra.mxu0 %v2549
      %2582 = vmatprep.subr.mxu0 0.0
      %2583 = vmatpush1.msra.mxu0 %v2548
      %2584 = vmatprep.subr.mxu0 0.0
      %2585 = vmatpush1.msra.mxu0 %v2547
      %2586 = vmatprep.subr.mxu0 0.0
      %2587 = vmatpush1.msra.mxu0 %v2546
      %2588 = vmatprep.subr.mxu0 0.0
      %2589 = vmatpush1.msra.mxu0 %v2545
      %2590 = vmatprep.subr.mxu0 0.0
      %2591 = vmatpush1.msra.mxu0 %v2544
      %2592 = vmatprep.subr.mxu0 0.0
      %2593 = vmatpush2.msra.mxu0 0.0
      %2594 = vmatprep.subr.mxu0 0.0
      %2595 = vmatpush2.msra.mxu0 0.0
      %2596 = vmatprep.subr.mxu0 0.0
      %2597 = vmatpush2.msra.mxu0 0.0
      %2598 = vmatprep.subr.mxu0 0.0
      %2599 = vmatpush2.msra.mxu0 0.0
      %2600 = vmatprep.subr.mxu0 0.0
      %2601 = vmatpush2.msra.mxu0 0.0
      %2602 = vmatprep.subr.mxu0 0.0
      %2603 = vmatpush2.msra.mxu0 0.0
      %2604 = vmatprep.subr.mxu0 0.0
      %2605 = vmatpush2.msra.mxu0 0.0
      %2606 = vmatprep.subr.mxu0 0.0
      %2607 = vmatpush2.msra.mxu0 0.0
      %2608 = vmatprep.subr.mxu0 0.0
      %2609 = vmatpush2.msra.mxu0 0.0
      %2610 = vmatprep.subr.mxu0 0.0
      %2611 = vmatpush2.msra.mxu0 0.0
      %2612 = vmatprep.subr.mxu0 0.0
      %2613 = vmatpush2.msra.mxu0 0.0
      %2614 = vmatprep.subr.mxu0 0.0
      %2615 = vmatpush2.msra.mxu0 0.0
      %2616 = vmatprep.subr.mxu0 0.0
      %2617 = vmatpush2.msra.mxu0 0.0
      %2618 = vmatprep.subr.mxu0 0.0
      %2619 = vmatpush2.msra.mxu0 0.0
      %2620 = vmatprep.subr.mxu0 0.0
      %2621 = vmatpush2.msra.mxu0 0.0
      %2622 = vmatprep.subr.mxu0 0.0
      %2623 = vmatpush2.msra.mxu0 0.0
      %2624 = vmatprep.mubr.f32.mxu0 0.0
      %2625 = vmatmul.mubr.f32.gmra.mxu0 %v2511
      %v2626 = vpop.f32.mrf.mxu0
      %v2627 = vadd.f32 0.0, %v2626
      %v2628 = vpop.f32.mrf.mxu0
      %2629 = vmatprep.mubr.f32.mxu0 0.0
      %2630 = vmatmul.mubr.f32.gmra.mxu0 %v2512
      %v2631 = vpop.f32.mrf.mxu0
      %v2632 = vadd.f32 0.0, %v2631
      %v2633 = vpop.f32.mrf.mxu0
      %2634 = vmatprep.mubr.f32.mxu0 0.0
      %2635 = vmatmul.mubr.f32.gmra.mxu0 %v2513
      %v2636 = vpop.f32.mrf.mxu0
      %v2637 = vadd.f32 0.0, %v2636
      %v2638 = vpop.f32.mrf.mxu0
      %2639 = vmatprep.mubr.f32.mxu0 0.0
      %2640 = vmatmul.mubr.f32.gmra.mxu0 %v2514
      %v2641 = vpop.f32.mrf.mxu0
      %v2642 = vadd.f32 0.0, %v2641
      %v2643 = vpop.f32.mrf.mxu0
      %2644 = vmatprep.mubr.f32.mxu0 0.0
      %2645 = vmatmul.mubr.f32.gmra.mxu0 %v2515
      %v2646 = vpop.f32.mrf.mxu0
      %v2647 = vadd.f32 0.0, %v2646
      %v2648 = vpop.f32.mrf.mxu0
      %2649 = vmatprep.mubr.f32.mxu0 0.0
      %2650 = vmatmul.mubr.f32.gmra.mxu0 %v2516
      %v2651 = vpop.f32.mrf.mxu0
      %v2652 = vadd.f32 0.0, %v2651
      %v2653 = vpop.f32.mrf.mxu0
      %2654 = vmatprep.mubr.f32.mxu0 0.0
      %2655 = vmatmul.mubr.f32.gmra.mxu0 %v2517
      %v2656 = vpop.f32.mrf.mxu0
      %v2657 = vadd.f32 0.0, %v2656
      %v2658 = vpop.f32.mrf.mxu0
      %2659 = vmatprep.mubr.f32.mxu0 0.0
      %2660 = vmatmul.mubr.f32.gmra.mxu0 %v2518
      %v2661 = vpop.f32.mrf.mxu0
      %v2662 = vadd.f32 0.0, %v2661
      %v2663 = vpop.f32.mrf.mxu0
      %2664 = vmatprep.mubr.f32.mxu0 0.0
      %2665 = vmatmul.mubr.f32.gmra.mxu0 %v2519
      %v2666 = vpop.f32.mrf.mxu0
      %v2667 = vadd.f32 0.0, %v2666
      %v2668 = vpop.f32.mrf.mxu0
      %2669 = vmatprep.mubr.f32.mxu0 0.0
      %2670 = vmatmul.mubr.f32.gmra.mxu0 %v2520
      %v2671 = vpop.f32.mrf.mxu0
      %v2672 = vadd.f32 0.0, %v2671
      %v2673 = vpop.f32.mrf.mxu0
      %2674 = vmatprep.mubr.f32.mxu0 0.0
      %2675 = vmatmul.mubr.f32.gmra.mxu0 %v2521
      %v2676 = vpop.f32.mrf.mxu0
      %v2677 = vadd.f32 0.0, %v2676
      %v2678 = vpop.f32.mrf.mxu0
      %2679 = vmatprep.mubr.f32.mxu0 0.0
      %2680 = vmatmul.mubr.f32.gmra.mxu0 %v2522
      %v2681 = vpop.f32.mrf.mxu0
      %v2682 = vadd.f32 0.0, %v2681
      %v2683 = vpop.f32.mrf.mxu0
      %2684 = vmatprep.mubr.f32.mxu0 0.0
      %2685 = vmatmul.mubr.f32.gmra.mxu0 %v2523
      %v2686 = vpop.f32.mrf.mxu0
      %v2687 = vadd.f32 0.0, %v2686
      %v2688 = vpop.f32.mrf.mxu0
      %2689 = vmatprep.mubr.f32.mxu0 0.0
      %2690 = vmatmul.mubr.f32.gmra.mxu0 %v2524
      %v2691 = vpop.f32.mrf.mxu0
      %v2692 = vadd.f32 0.0, %v2691
      %v2693 = vpop.f32.mrf.mxu0
      %2694 = vmatprep.mubr.f32.mxu0 0.0
      %2695 = vmatmul.mubr.f32.gmra.mxu0 %v2525
      %v2696 = vpop.f32.mrf.mxu0
      %v2697 = vadd.f32 0.0, %v2696
      %v2698 = vpop.f32.mrf.mxu0
      %2699 = vmatprep.mubr.f32.mxu0 0.0
      %2700 = vmatmul.mubr.f32.gmra.mxu0 %v2526
      %v2701 = vpop.f32.mrf.mxu0
      %v2702 = vadd.f32 0.0, %v2701
      %v2703 = vpop.f32.mrf.mxu0
      %2704 = vmatprep.mubr.f32.mxu0 0.0
      %2705 = vmatmul.mubr.f32.gmra.mxu0 %v2527
      %v2706 = vpop.f32.mrf.mxu0
      %v2707 = vadd.f32 0.0, %v2706
      %v2708 = vpop.f32.mrf.mxu0
      %2709 = vmatprep.mubr.f32.mxu0 0.0
      %2710 = vmatmul.mubr.f32.gmra.mxu0 %v2528
      %v2711 = vpop.f32.mrf.mxu0
      %v2712 = vadd.f32 0.0, %v2711
      %v2713 = vpop.f32.mrf.mxu0
      %2714 = vmatprep.mubr.f32.mxu0 0.0
      %2715 = vmatmul.mubr.f32.gmra.mxu0 %v2529
      %v2716 = vpop.f32.mrf.mxu0
      %v2717 = vadd.f32 0.0, %v2716
      %v2718 = vpop.f32.mrf.mxu0
      %2719 = vmatprep.mubr.f32.mxu0 0.0
      %2720 = vmatmul.mubr.f32.gmra.mxu0 %v2530
      %v2721 = vpop.f32.mrf.mxu0
      %v2722 = vadd.f32 0.0, %v2721
      %v2723 = vpop.f32.mrf.mxu0
      %2724 = vmatprep.mubr.f32.mxu0 0.0
      %2725 = vmatmul.mubr.f32.gmra.mxu0 %v2531
      %v2726 = vpop.f32.mrf.mxu0
      %v2727 = vadd.f32 0.0, %v2726
      %v2728 = vpop.f32.mrf.mxu0
      %2729 = vmatprep.mubr.f32.mxu0 0.0
      %2730 = vmatmul.mubr.f32.gmra.mxu0 %v2532
      %v2731 = vpop.f32.mrf.mxu0
      %v2732 = vadd.f32 0.0, %v2731
      %v2733 = vpop.f32.mrf.mxu0
      %2734 = vmatprep.mubr.f32.mxu0 0.0
      %2735 = vmatmul.mubr.f32.gmra.mxu0 %v2533
      %v2736 = vpop.f32.mrf.mxu0
      %v2737 = vadd.f32 0.0, %v2736
      %v2738 = vpop.f32.mrf.mxu0
      %2739 = vmatprep.mubr.f32.mxu0 0.0
      %2740 = vmatmul.mubr.f32.gmra.mxu0 %v2534
      %v2741 = vpop.f32.mrf.mxu0
      %v2742 = vadd.f32 0.0, %v2741
      %v2743 = vpop.f32.mrf.mxu0
      %2744 = vmatprep.mubr.f32.mxu0 0.0
      %2745 = vmatmul.mubr.f32.gmra.mxu0 %v2535
      %v2746 = vpop.f32.mrf.mxu0
      %v2747 = vadd.f32 0.0, %v2746
      %v2748 = vpop.f32.mrf.mxu0
      %2749 = vmatprep.mubr.f32.mxu0 0.0
      %2750 = vmatmul.mubr.f32.gmra.mxu0 %v2536
      %v2751 = vpop.f32.mrf.mxu0
      %v2752 = vadd.f32 0.0, %v2751
      %v2753 = vpop.f32.mrf.mxu0
      %2754 = vmatprep.mubr.f32.mxu0 0.0
      %2755 = vmatmul.mubr.f32.gmra.mxu0 %v2537
      %v2756 = vpop.f32.mrf.mxu0
      %v2757 = vadd.f32 0.0, %v2756
      %v2758 = vpop.f32.mrf.mxu0
      %2759 = vmatprep.mubr.f32.mxu0 0.0
      %2760 = vmatmul.mubr.f32.gmra.mxu0 %v2538
      %v2761 = vpop.f32.mrf.mxu0
      %v2762 = vadd.f32 0.0, %v2761
      %v2763 = vpop.f32.mrf.mxu0
      %2764 = vmatprep.mubr.f32.mxu0 0.0
      %2765 = vmatmul.mubr.f32.gmra.mxu0 %v2539
      %v2766 = vpop.f32.mrf.mxu0
      %v2767 = vadd.f32 0.0, %v2766
      %v2768 = vpop.f32.mrf.mxu0
      %2769 = vmatprep.mubr.f32.mxu0 0.0
      %2770 = vmatmul.mubr.f32.gmra.mxu0 %v2540
      %v2771 = vpop.f32.mrf.mxu0
      %v2772 = vadd.f32 0.0, %v2771
      %v2773 = vpop.f32.mrf.mxu0
      %2774 = vmatprep.mubr.f32.mxu0 0.0
      %2775 = vmatmul.mubr.f32.gmra.mxu0 %v2541
      %v2776 = vpop.f32.mrf.mxu0
      %v2777 = vadd.f32 0.0, %v2776
      %v2778 = vpop.f32.mrf.mxu0
      %2779 = vmatprep.mubr.f32.mxu0 0.0
      %2780 = vmatmul.mubr.f32.gmra.mxu0 %v2542
      %v2781 = vpop.f32.mrf.mxu0
      %v2782 = vadd.f32 0.0, %v2781
      %v2783 = vpop.f32.mrf.mxu0
      %2784 = vdwg.mxu0
      %v2785 = vld [vmem:[#allocation3] sm:$0xff]
      %v2786 = vld [vmem:[#allocation3 + $0x8] sm:$0xff]
      %v2787 = vld [vmem:[#allocation3 + $0x10] sm:$0xff]
      %v2788 = vld [vmem:[#allocation3 + $0x18] sm:$0xff]
      %v2789 = vld [vmem:[#allocation3 + $0x20] sm:$0xff]
      %v2790 = vld [vmem:[#allocation3 + $0x28] sm:$0xff]
      %v2791 = vld [vmem:[#allocation3 + $0x30] sm:$0xff]
      %v2792 = vld [vmem:[#allocation3 + $0x38] sm:$0xff]
      %v2793 = vld [vmem:[#allocation3 + $0x40] sm:$0xff]
      %v2794 = vld [vmem:[#allocation3 + $0x48] sm:$0xff]
      %v2795 = vld [vmem:[#allocation3 + $0x50] sm:$0xff]
      %v2796 = vld [vmem:[#allocation3 + $0x58] sm:$0xff]
      %v2797 = vld [vmem:[#allocation3 + $0x60] sm:$0xff]
      %v2798 = vld [vmem:[#allocation3 + $0x68] sm:$0xff]
      %v2799 = vld [vmem:[#allocation3 + $0x70] sm:$0xff]
      %v2800 = vld [vmem:[#allocation3 + $0x78] sm:$0xff]
      %v2801 = vld [vmem:[#allocation3 + $0x80] sm:$0xff]
      %v2802 = vld [vmem:[#allocation3 + $0x88] sm:$0xff]
      %v2803 = vld [vmem:[#allocation3 + $0x90] sm:$0xff]
      %v2804 = vld [vmem:[#allocation3 + $0x98] sm:$0xff]
      %v2805 = vld [vmem:[#allocation3 + $0xa0] sm:$0xff]
      %v2806 = vld [vmem:[#allocation3 + $0xa8] sm:$0xff]
      %v2807 = vld [vmem:[#allocation3 + $0xb0] sm:$0xff]
      %v2808 = vld [vmem:[#allocation3 + $0xb8] sm:$0xff]
      %v2809 = vld [vmem:[#allocation3 + $0xc0] sm:$0xff]
      %v2810 = vld [vmem:[#allocation3 + $0xc8] sm:$0xff]
      %v2811 = vld [vmem:[#allocation3 + $0xd0] sm:$0xff]
      %v2812 = vld [vmem:[#allocation3 + $0xd8] sm:$0xff]
      %v2813 = vld [vmem:[#allocation3 + $0xe0] sm:$0xff]
      %v2814 = vld [vmem:[#allocation3 + $0xe8] sm:$0xff]
      %v2815 = vld [vmem:[#allocation3 + $0xf0] sm:$0xff]
      %v2816 = vld [vmem:[#allocation3 + $0xf8] sm:$0xff]
      %v2817 = vadd.f32 %v2785, %v2627
      %v2818 = vadd.f32 %v2786, %v2632
      %v2819 = vadd.f32 %v2787, %v2637
      %v2820 = vadd.f32 %v2788, %v2642
      %v2821 = vadd.f32 %v2789, %v2647
      %v2822 = vadd.f32 %v2790, %v2652
      %v2823 = vadd.f32 %v2791, %v2657
      %v2824 = vadd.f32 %v2792, %v2662
      %v2825 = vadd.f32 %v2793, %v2667
      %v2826 = vadd.f32 %v2794, %v2672
      %v2827 = vadd.f32 %v2795, %v2677
      %v2828 = vadd.f32 %v2796, %v2682
      %v2829 = vadd.f32 %v2797, %v2687
      %v2830 = vadd.f32 %v2798, %v2692
      %v2831 = vadd.f32 %v2799, %v2697
      %v2832 = vadd.f32 %v2800, %v2702
      %v2833 = vadd.f32 %v2801, %v2707
      %v2834 = vadd.f32 %v2802, %v2712
      %v2835 = vadd.f32 %v2803, %v2717
      %v2836 = vadd.f32 %v2804, %v2722
      %v2837 = vadd.f32 %v2805, %v2727
      %v2838 = vadd.f32 %v2806, %v2732
      %v2839 = vadd.f32 %v2807, %v2737
      %v2840 = vadd.f32 %v2808, %v2742
      %v2841 = vadd.f32 %v2809, %v2747
      %v2842 = vadd.f32 %v2810, %v2752
      %v2843 = vadd.f32 %v2811, %v2757
      %v2844 = vadd.f32 %v2812, %v2762
      %v2845 = vadd.f32 %v2813, %v2767
      %v2846 = vadd.f32 %v2814, %v2772
      %v2847 = vadd.f32 %v2815, %v2777
      %v2848 = vadd.f32 %v2816, %v2782
      %2849 = vst [vmem:[#allocation3] sm:$0xff] %v2817
      %2850 = vst [vmem:[#allocation3 + $0x8] sm:$0xff] %v2818
      %2851 = vst [vmem:[#allocation3 + $0x10] sm:$0xff] %v2819
      %2852 = vst [vmem:[#allocation3 + $0x18] sm:$0xff] %v2820
      %2853 = vst [vmem:[#allocation3 + $0x20] sm:$0xff] %v2821
      %2854 = vst [vmem:[#allocation3 + $0x28] sm:$0xff] %v2822
      %2855 = vst [vmem:[#allocation3 + $0x30] sm:$0xff] %v2823
      %2856 = vst [vmem:[#allocation3 + $0x38] sm:$0xff] %v2824
      %2857 = vst [vmem:[#allocation3 + $0x40] sm:$0xff] %v2825
      %2858 = vst [vmem:[#allocation3 + $0x48] sm:$0xff] %v2826
      %2859 = vst [vmem:[#allocation3 + $0x50] sm:$0xff] %v2827
      %2860 = vst [vmem:[#allocation3 + $0x58] sm:$0xff] %v2828
      %2861 = vst [vmem:[#allocation3 + $0x60] sm:$0xff] %v2829
      %2862 = vst [vmem:[#allocation3 + $0x68] sm:$0xff] %v2830
      %2863 = vst [vmem:[#allocation3 + $0x70] sm:$0xff] %v2831
      %2864 = vst [vmem:[#allocation3 + $0x78] sm:$0xff] %v2832
      %2865 = vst [vmem:[#allocation3 + $0x80] sm:$0xff] %v2833
      %2866 = vst [vmem:[#allocation3 + $0x88] sm:$0xff] %v2834
      %2867 = vst [vmem:[#allocation3 + $0x90] sm:$0xff] %v2835
      %2868 = vst [vmem:[#allocation3 + $0x98] sm:$0xff] %v2836
      %2869 = vst [vmem:[#allocation3 + $0xa0] sm:$0xff] %v2837
      %2870 = vst [vmem:[#allocation3 + $0xa8] sm:$0xff] %v2838
      %2871 = vst [vmem:[#allocation3 + $0xb0] sm:$0xff] %v2839
      %2872 = vst [vmem:[#allocation3 + $0xb8] sm:$0xff] %v2840
      %2873 = vst [vmem:[#allocation3 + $0xc0] sm:$0xff] %v2841
      %2874 = vst [vmem:[#allocation3 + $0xc8] sm:$0xff] %v2842
      %2875 = vst [vmem:[#allocation3 + $0xd0] sm:$0xff] %v2843
      %2876 = vst [vmem:[#allocation3 + $0xd8] sm:$0xff] %v2844
      %2877 = vst [vmem:[#allocation3 + $0xe0] sm:$0xff] %v2845
      %2878 = vst [vmem:[#allocation3 + $0xe8] sm:$0xff] %v2846
      %2879 = vst [vmem:[#allocation3 + $0xf0] sm:$0xff] %v2847
      %2880 = vst [vmem:[#allocation3 + $0xf8] sm:$0xff] %v2848
      %v2881 = vld [vmem:[%s2510 + $0x1] sm:$0xff]
      %v2882 = vld [vmem:[%s2510 + $0x9] sm:$0xff]
      %v2883 = vld [vmem:[%s2510 + $0x19] sm:$0xff]
      %v2884 = vld [vmem:[%s2510 + $0x21] sm:$0xff]
      %v2885 = vld [vmem:[%s2510 + $0x31] sm:$0xff]
      %v2886 = vld [vmem:[%s2510 + $0x39] sm:$0xff]
      %v2887 = vld [vmem:[%s2510 + $0x49] sm:$0xff]
      %v2888 = vld [vmem:[%s2510 + $0x51] sm:$0xff]
      %v2889 = vld [vmem:[%s2510 + $0x61] sm:$0xff]
      %v2890 = vld [vmem:[%s2510 + $0x69] sm:$0xff]
      %v2891 = vld [vmem:[%s2510 + $0x79] sm:$0xff]
      %v2892 = vld [vmem:[%s2510 + $0x81] sm:$0xff]
      %v2893 = vld [vmem:[%s2510 + $0x91] sm:$0xff]
      %v2894 = vld [vmem:[%s2510 + $0x99] sm:$0xff]
      %v2895 = vld [vmem:[%s2510 + $0xa9] sm:$0xff]
      %v2896 = vld [vmem:[%s2510 + $0xb1] sm:$0xff]
      %v2897 = vld [vmem:[%s2510 + $0xc1] sm:$0xff]
      %v2898 = vld [vmem:[%s2510 + $0xc9] sm:$0xff]
      %v2899 = vld [vmem:[%s2510 + $0xd9] sm:$0xff]
      %v2900 = vld [vmem:[%s2510 + $0xe1] sm:$0xff]
      %v2901 = vld [vmem:[%s2510 + $0xf1] sm:$0xff]
      %v2902 = vld [vmem:[%s2510 + $0xf9] sm:$0xff]
      %v2903 = vld [vmem:[%s2510 + $0x109] sm:$0xff]
      %v2904 = vld [vmem:[%s2510 + $0x111] sm:$0xff]
      %v2905 = vld [vmem:[%s2510 + $0x121] sm:$0xff]
      %v2906 = vld [vmem:[%s2510 + $0x129] sm:$0xff]
      %v2907 = vld [vmem:[%s2510 + $0x139] sm:$0xff]
      %v2908 = vld [vmem:[%s2510 + $0x141] sm:$0xff]
      %v2909 = vld [vmem:[%s2510 + $0x151] sm:$0xff]
      %v2910 = vld [vmem:[%s2510 + $0x159] sm:$0xff]
      %v2911 = vld [vmem:[%s2510 + $0x169] sm:$0xff]
      %v2912 = vld [vmem:[%s2510 + $0x171] sm:$0xff]
      %s2913 = scalar_lea.vmem %s1, 896
      %v2914 = vld [vmem:[%s2913] sm:$0xff]
      %v2915 = vld [vmem:[%s2913 + $0x8] sm:$0xff]
      %v2916 = vld [vmem:[%s2913 + $0x10] sm:$0xff]
      %v2917 = vld [vmem:[%s2913 + $0x18] sm:$0xff]
      %v2918 = vld [vmem:[%s2913 + $0x20] sm:$0xff]
      %v2919 = vld [vmem:[%s2913 + $0x28] sm:$0xff]
      %v2920 = vld [vmem:[%s2913 + $0x30] sm:$0xff]
      %v2921 = vld [vmem:[%s2913 + $0x38] sm:$0xff]
      %v2922 = vld [vmem:[%s2913 + $0x40] sm:$0xff]
      %v2923 = vld [vmem:[%s2913 + $0x48] sm:$0xff]
      %v2924 = vld [vmem:[%s2913 + $0x50] sm:$0xff]
      %v2925 = vld [vmem:[%s2913 + $0x58] sm:$0xff]
      %v2926 = vld [vmem:[%s2913 + $0x60] sm:$0xff]
      %v2927 = vld [vmem:[%s2913 + $0x68] sm:$0xff]
      %v2928 = vld [vmem:[%s2913 + $0x70] sm:$0xff]
      %v2929 = vld [vmem:[%s2913 + $0x78] sm:$0xff]
      %2930 = vmatprep.subr.mxu0 0.0
      %2931 = vmatpush1.msra.mxu0 %v2929
      %2932 = vmatprep.subr.mxu0 0.0
      %2933 = vmatpush1.msra.mxu0 %v2928
      %2934 = vmatprep.subr.mxu0 0.0
      %2935 = vmatpush1.msra.mxu0 %v2927
      %2936 = vmatprep.subr.mxu0 0.0
      %2937 = vmatpush1.msra.mxu0 %v2926
      %2938 = vmatprep.subr.mxu0 0.0
      %2939 = vmatpush1.msra.mxu0 %v2925
      %2940 = vmatprep.subr.mxu0 0.0
      %2941 = vmatpush1.msra.mxu0 %v2924
      %2942 = vmatprep.subr.mxu0 0.0
      %2943 = vmatpush1.msra.mxu0 %v2923
      %2944 = vmatprep.subr.mxu0 0.0
      %2945 = vmatpush1.msra.mxu0 %v2922
      %2946 = vmatprep.subr.mxu0 0.0
      %2947 = vmatpush1.msra.mxu0 %v2921
      %2948 = vmatprep.subr.mxu0 0.0
      %2949 = vmatpush1.msra.mxu0 %v2920
      %2950 = vmatprep.subr.mxu0 0.0
      %2951 = vmatpush1.msra.mxu0 %v2919
      %2952 = vmatprep.subr.mxu0 0.0
      %2953 = vmatpush1.msra.mxu0 %v2918
      %2954 = vmatprep.subr.mxu0 0.0
      %2955 = vmatpush1.msra.mxu0 %v2917
      %2956 = vmatprep.subr.mxu0 0.0
      %2957 = vmatpush1.msra.mxu0 %v2916
      %2958 = vmatprep.subr.mxu0 0.0
      %2959 = vmatpush1.msra.mxu0 %v2915
      %2960 = vmatprep.subr.mxu0 0.0
      %2961 = vmatpush1.msra.mxu0 %v2914
      %2962 = vmatprep.subr.mxu0 0.0
      %2963 = vmatpush2.msra.mxu0 0.0
      %2964 = vmatprep.subr.mxu0 0.0
      %2965 = vmatpush2.msra.mxu0 0.0
      %2966 = vmatprep.subr.mxu0 0.0
      %2967 = vmatpush2.msra.mxu0 0.0
      %2968 = vmatprep.subr.mxu0 0.0
      %2969 = vmatpush2.msra.mxu0 0.0
      %2970 = vmatprep.subr.mxu0 0.0
      %2971 = vmatpush2.msra.mxu0 0.0
      %2972 = vmatprep.subr.mxu0 0.0
      %2973 = vmatpush2.msra.mxu0 0.0
      %2974 = vmatprep.subr.mxu0 0.0
      %2975 = vmatpush2.msra.mxu0 0.0
      %2976 = vmatprep.subr.mxu0 0.0
      %2977 = vmatpush2.msra.mxu0 0.0
      %2978 = vmatprep.subr.mxu0 0.0
      %2979 = vmatpush2.msra.mxu0 0.0
      %2980 = vmatprep.subr.mxu0 0.0
      %2981 = vmatpush2.msra.mxu0 0.0
      %2982 = vmatprep.subr.mxu0 0.0
      %2983 = vmatpush2.msra.mxu0 0.0
      %2984 = vmatprep.subr.mxu0 0.0
      %2985 = vmatpush2.msra.mxu0 0.0
      %2986 = vmatprep.subr.mxu0 0.0
      %2987 = vmatpush2.msra.mxu0 0.0
      %2988 = vmatprep.subr.mxu0 0.0
      %2989 = vmatpush2.msra.mxu0 0.0
      %2990 = vmatprep.subr.mxu0 0.0
      %2991 = vmatpush2.msra.mxu0 0.0
      %2992 = vmatprep.subr.mxu0 0.0
      %2993 = vmatpush2.msra.mxu0 0.0
      %2994 = vmatprep.mubr.f32.mxu0 0.0
      %2995 = vmatmul.mubr.f32.gmra.mxu0 %v2881
      %v2996 = vpop.f32.mrf.mxu0
      %v2997 = vadd.f32 0.0, %v2996
      %v2998 = vpop.f32.mrf.mxu0
      %2999 = vmatprep.mubr.f32.mxu0 0.0
      %3000 = vmatmul.mubr.f32.gmra.mxu0 %v2882
      %v3001 = vpop.f32.mrf.mxu0
      %v3002 = vadd.f32 0.0, %v3001
      %v3003 = vpop.f32.mrf.mxu0
      %3004 = vmatprep.mubr.f32.mxu0 0.0
      %3005 = vmatmul.mubr.f32.gmra.mxu0 %v2883
      %v3006 = vpop.f32.mrf.mxu0
      %v3007 = vadd.f32 0.0, %v3006
      %v3008 = vpop.f32.mrf.mxu0
      %3009 = vmatprep.mubr.f32.mxu0 0.0
      %3010 = vmatmul.mubr.f32.gmra.mxu0 %v2884
      %v3011 = vpop.f32.mrf.mxu0
      %v3012 = vadd.f32 0.0, %v3011
      %v3013 = vpop.f32.mrf.mxu0
      %3014 = vmatprep.mubr.f32.mxu0 0.0
      %3015 = vmatmul.mubr.f32.gmra.mxu0 %v2885
      %v3016 = vpop.f32.mrf.mxu0
      %v3017 = vadd.f32 0.0, %v3016
      %v3018 = vpop.f32.mrf.mxu0
      %3019 = vmatprep.mubr.f32.mxu0 0.0
      %3020 = vmatmul.mubr.f32.gmra.mxu0 %v2886
      %v3021 = vpop.f32.mrf.mxu0
      %v3022 = vadd.f32 0.0, %v3021
      %v3023 = vpop.f32.mrf.mxu0
      %3024 = vmatprep.mubr.f32.mxu0 0.0
      %3025 = vmatmul.mubr.f32.gmra.mxu0 %v2887
      %v3026 = vpop.f32.mrf.mxu0
      %v3027 = vadd.f32 0.0, %v3026
      %v3028 = vpop.f32.mrf.mxu0
      %3029 = vmatprep.mubr.f32.mxu0 0.0
      %3030 = vmatmul.mubr.f32.gmra.mxu0 %v2888
      %v3031 = vpop.f32.mrf.mxu0
      %v3032 = vadd.f32 0.0, %v3031
      %v3033 = vpop.f32.mrf.mxu0
      %3034 = vmatprep.mubr.f32.mxu0 0.0
      %3035 = vmatmul.mubr.f32.gmra.mxu0 %v2889
      %v3036 = vpop.f32.mrf.mxu0
      %v3037 = vadd.f32 0.0, %v3036
      %v3038 = vpop.f32.mrf.mxu0
      %3039 = vmatprep.mubr.f32.mxu0 0.0
      %3040 = vmatmul.mubr.f32.gmra.mxu0 %v2890
      %v3041 = vpop.f32.mrf.mxu0
      %v3042 = vadd.f32 0.0, %v3041
      %v3043 = vpop.f32.mrf.mxu0
      %3044 = vmatprep.mubr.f32.mxu0 0.0
      %3045 = vmatmul.mubr.f32.gmra.mxu0 %v2891
      %v3046 = vpop.f32.mrf.mxu0
      %v3047 = vadd.f32 0.0, %v3046
      %v3048 = vpop.f32.mrf.mxu0
      %3049 = vmatprep.mubr.f32.mxu0 0.0
      %3050 = vmatmul.mubr.f32.gmra.mxu0 %v2892
      %v3051 = vpop.f32.mrf.mxu0
      %v3052 = vadd.f32 0.0, %v3051
      %v3053 = vpop.f32.mrf.mxu0
      %3054 = vmatprep.mubr.f32.mxu0 0.0
      %3055 = vmatmul.mubr.f32.gmra.mxu0 %v2893
      %v3056 = vpop.f32.mrf.mxu0
      %v3057 = vadd.f32 0.0, %v3056
      %v3058 = vpop.f32.mrf.mxu0
      %3059 = vmatprep.mubr.f32.mxu0 0.0
      %3060 = vmatmul.mubr.f32.gmra.mxu0 %v2894
      %v3061 = vpop.f32.mrf.mxu0
      %v3062 = vadd.f32 0.0, %v3061
      %v3063 = vpop.f32.mrf.mxu0
      %3064 = vmatprep.mubr.f32.mxu0 0.0
      %3065 = vmatmul.mubr.f32.gmra.mxu0 %v2895
      %v3066 = vpop.f32.mrf.mxu0
      %v3067 = vadd.f32 0.0, %v3066
      %v3068 = vpop.f32.mrf.mxu0
      %3069 = vmatprep.mubr.f32.mxu0 0.0
      %3070 = vmatmul.mubr.f32.gmra.mxu0 %v2896
      %v3071 = vpop.f32.mrf.mxu0
      %v3072 = vadd.f32 0.0, %v3071
      %v3073 = vpop.f32.mrf.mxu0
      %3074 = vmatprep.mubr.f32.mxu0 0.0
      %3075 = vmatmul.mubr.f32.gmra.mxu0 %v2897
      %v3076 = vpop.f32.mrf.mxu0
      %v3077 = vadd.f32 0.0, %v3076
      %v3078 = vpop.f32.mrf.mxu0
      %3079 = vmatprep.mubr.f32.mxu0 0.0
      %3080 = vmatmul.mubr.f32.gmra.mxu0 %v2898
      %v3081 = vpop.f32.mrf.mxu0
      %v3082 = vadd.f32 0.0, %v3081
      %v3083 = vpop.f32.mrf.mxu0
      %3084 = vmatprep.mubr.f32.mxu0 0.0
      %3085 = vmatmul.mubr.f32.gmra.mxu0 %v2899
      %v3086 = vpop.f32.mrf.mxu0
      %v3087 = vadd.f32 0.0, %v3086
      %v3088 = vpop.f32.mrf.mxu0
      %3089 = vmatprep.mubr.f32.mxu0 0.0
      %3090 = vmatmul.mubr.f32.gmra.mxu0 %v2900
      %v3091 = vpop.f32.mrf.mxu0
      %v3092 = vadd.f32 0.0, %v3091
      %v3093 = vpop.f32.mrf.mxu0
      %3094 = vmatprep.mubr.f32.mxu0 0.0
      %3095 = vmatmul.mubr.f32.gmra.mxu0 %v2901
      %v3096 = vpop.f32.mrf.mxu0
      %v3097 = vadd.f32 0.0, %v3096
      %v3098 = vpop.f32.mrf.mxu0
      %3099 = vmatprep.mubr.f32.mxu0 0.0
      %3100 = vmatmul.mubr.f32.gmra.mxu0 %v2902
      %v3101 = vpop.f32.mrf.mxu0
      %v3102 = vadd.f32 0.0, %v3101
      %v3103 = vpop.f32.mrf.mxu0
      %3104 = vmatprep.mubr.f32.mxu0 0.0
      %3105 = vmatmul.mubr.f32.gmra.mxu0 %v2903
      %v3106 = vpop.f32.mrf.mxu0
      %v3107 = vadd.f32 0.0, %v3106
      %v3108 = vpop.f32.mrf.mxu0
      %3109 = vmatprep.mubr.f32.mxu0 0.0
      %3110 = vmatmul.mubr.f32.gmra.mxu0 %v2904
      %v3111 = vpop.f32.mrf.mxu0
      %v3112 = vadd.f32 0.0, %v3111
      %v3113 = vpop.f32.mrf.mxu0
      %3114 = vmatprep.mubr.f32.mxu0 0.0
      %3115 = vmatmul.mubr.f32.gmra.mxu0 %v2905
      %v3116 = vpop.f32.mrf.mxu0
      %v3117 = vadd.f32 0.0, %v3116
      %v3118 = vpop.f32.mrf.mxu0
      %3119 = vmatprep.mubr.f32.mxu0 0.0
      %3120 = vmatmul.mubr.f32.gmra.mxu0 %v2906
      %v3121 = vpop.f32.mrf.mxu0
      %v3122 = vadd.f32 0.0, %v3121
      %v3123 = vpop.f32.mrf.mxu0
      %3124 = vmatprep.mubr.f32.mxu0 0.0
      %3125 = vmatmul.mubr.f32.gmra.mxu0 %v2907
      %v3126 = vpop.f32.mrf.mxu0
      %v3127 = vadd.f32 0.0, %v3126
      %v3128 = vpop.f32.mrf.mxu0
      %3129 = vmatprep.mubr.f32.mxu0 0.0
      %3130 = vmatmul.mubr.f32.gmra.mxu0 %v2908
      %v3131 = vpop.f32.mrf.mxu0
      %v3132 = vadd.f32 0.0, %v3131
      %v3133 = vpop.f32.mrf.mxu0
      %3134 = vmatprep.mubr.f32.mxu0 0.0
      %3135 = vmatmul.mubr.f32.gmra.mxu0 %v2909
      %v3136 = vpop.f32.mrf.mxu0
      %v3137 = vadd.f32 0.0, %v3136
      %v3138 = vpop.f32.mrf.mxu0
      %3139 = vmatprep.mubr.f32.mxu0 0.0
      %3140 = vmatmul.mubr.f32.gmra.mxu0 %v2910
      %v3141 = vpop.f32.mrf.mxu0
      %v3142 = vadd.f32 0.0, %v3141
      %v3143 = vpop.f32.mrf.mxu0
      %3144 = vmatprep.mubr.f32.mxu0 0.0
      %3145 = vmatmul.mubr.f32.gmra.mxu0 %v2911
      %v3146 = vpop.f32.mrf.mxu0
      %v3147 = vadd.f32 0.0, %v3146
      %v3148 = vpop.f32.mrf.mxu0
      %3149 = vmatprep.mubr.f32.mxu0 0.0
      %3150 = vmatmul.mubr.f32.gmra.mxu0 %v2912
      %v3151 = vpop.f32.mrf.mxu0
      %v3152 = vadd.f32 0.0, %v3151
      %v3153 = vpop.f32.mrf.mxu0
      %3154 = vdwg.mxu0
      %v3155 = vld [vmem:[#allocation3] sm:$0xff]
      %v3156 = vld [vmem:[#allocation3 + $0x8] sm:$0xff]
      %v3157 = vld [vmem:[#allocation3 + $0x10] sm:$0xff]
      %v3158 = vld [vmem:[#allocation3 + $0x18] sm:$0xff]
      %v3159 = vld [vmem:[#allocation3 + $0x20] sm:$0xff]
      %v3160 = vld [vmem:[#allocation3 + $0x28] sm:$0xff]
      %v3161 = vld [vmem:[#allocation3 + $0x30] sm:$0xff]
      %v3162 = vld [vmem:[#allocation3 + $0x38] sm:$0xff]
      %v3163 = vld [vmem:[#allocation3 + $0x40] sm:$0xff]
      %v3164 = vld [vmem:[#allocation3 + $0x48] sm:$0xff]
      %v3165 = vld [vmem:[#allocation3 + $0x50] sm:$0xff]
      %v3166 = vld [vmem:[#allocation3 + $0x58] sm:$0xff]
      %v3167 = vld [vmem:[#allocation3 + $0x60] sm:$0xff]
      %v3168 = vld [vmem:[#allocation3 + $0x68] sm:$0xff]
      %v3169 = vld [vmem:[#allocation3 + $0x70] sm:$0xff]
      %v3170 = vld [vmem:[#allocation3 + $0x78] sm:$0xff]
      %v3171 = vld [vmem:[#allocation3 + $0x80] sm:$0xff]
      %v3172 = vld [vmem:[#allocation3 + $0x88] sm:$0xff]
      %v3173 = vld [vmem:[#allocation3 + $0x90] sm:$0xff]
      %v3174 = vld [vmem:[#allocation3 + $0x98] sm:$0xff]
      %v3175 = vld [vmem:[#allocation3 + $0xa0] sm:$0xff]
      %v3176 = vld [vmem:[#allocation3 + $0xa8] sm:$0xff]
      %v3177 = vld [vmem:[#allocation3 + $0xb0] sm:$0xff]
      %v3178 = vld [vmem:[#allocation3 + $0xb8] sm:$0xff]
      %v3179 = vld [vmem:[#allocation3 + $0xc0] sm:$0xff]
      %v3180 = vld [vmem:[#allocation3 + $0xc8] sm:$0xff]
      %v3181 = vld [vmem:[#allocation3 + $0xd0] sm:$0xff]
      %v3182 = vld [vmem:[#allocation3 + $0xd8] sm:$0xff]
      %v3183 = vld [vmem:[#allocation3 + $0xe0] sm:$0xff]
      %v3184 = vld [vmem:[#allocation3 + $0xe8] sm:$0xff]
      %v3185 = vld [vmem:[#allocation3 + $0xf0] sm:$0xff]
      %v3186 = vld [vmem:[#allocation3 + $0xf8] sm:$0xff]
      %v3187 = vadd.f32 %v3155, %v2997
      %v3188 = vadd.f32 %v3156, %v3002
      %v3189 = vadd.f32 %v3157, %v3007
      %v3190 = vadd.f32 %v3158, %v3012
      %v3191 = vadd.f32 %v3159, %v3017
      %v3192 = vadd.f32 %v3160, %v3022
      %v3193 = vadd.f32 %v3161, %v3027
      %v3194 = vadd.f32 %v3162, %v3032
      %v3195 = vadd.f32 %v3163, %v3037
      %v3196 = vadd.f32 %v3164, %v3042
      %v3197 = vadd.f32 %v3165, %v3047
      %v3198 = vadd.f32 %v3166, %v3052
      %v3199 = vadd.f32 %v3167, %v3057
      %v3200 = vadd.f32 %v3168, %v3062
      %v3201 = vadd.f32 %v3169, %v3067
      %v3202 = vadd.f32 %v3170, %v3072
      %v3203 = vadd.f32 %v3171, %v3077
      %v3204 = vadd.f32 %v3172, %v3082
      %v3205 = vadd.f32 %v3173, %v3087
      %v3206 = vadd.f32 %v3174, %v3092
      %v3207 = vadd.f32 %v3175, %v3097
      %v3208 = vadd.f32 %v3176, %v3102
      %v3209 = vadd.f32 %v3177, %v3107
      %v3210 = vadd.f32 %v3178, %v3112
      %v3211 = vadd.f32 %v3179, %v3117
      %v3212 = vadd.f32 %v3180, %v3122
      %v3213 = vadd.f32 %v3181, %v3127
      %v3214 = vadd.f32 %v3182, %v3132
      %v3215 = vadd.f32 %v3183, %v3137
      %v3216 = vadd.f32 %v3184, %v3142
      %v3217 = vadd.f32 %v3185, %v3147
      %v3218 = vadd.f32 %v3186, %v3152
      %3219 = vst [vmem:[#allocation3] sm:$0xff] %v3187
      %3220 = vst [vmem:[#allocation3 + $0x8] sm:$0xff] %v3188
      %3221 = vst [vmem:[#allocation3 + $0x10] sm:$0xff] %v3189
      %3222 = vst [vmem:[#allocation3 + $0x18] sm:$0xff] %v3190
      %3223 = vst [vmem:[#allocation3 + $0x20] sm:$0xff] %v3191
      %3224 = vst [vmem:[#allocation3 + $0x28] sm:$0xff] %v3192
      %3225 = vst [vmem:[#allocation3 + $0x30] sm:$0xff] %v3193
      %3226 = vst [vmem:[#allocation3 + $0x38] sm:$0xff] %v3194
      %3227 = vst [vmem:[#allocation3 + $0x40] sm:$0xff] %v3195
      %3228 = vst [vmem:[#allocation3 + $0x48] sm:$0xff] %v3196
      %3229 = vst [vmem:[#allocation3 + $0x50] sm:$0xff] %v3197
      %3230 = vst [vmem:[#allocation3 + $0x58] sm:$0xff] %v3198
      %3231 = vst [vmem:[#allocation3 + $0x60] sm:$0xff] %v3199
      %3232 = vst [vmem:[#allocation3 + $0x68] sm:$0xff] %v3200
      %3233 = vst [vmem:[#allocation3 + $0x70] sm:$0xff] %v3201
      %3234 = vst [vmem:[#allocation3 + $0x78] sm:$0xff] %v3202
      %3235 = vst [vmem:[#allocation3 + $0x80] sm:$0xff] %v3203
      %3236 = vst [vmem:[#allocation3 + $0x88] sm:$0xff] %v3204
      %3237 = vst [vmem:[#allocation3 + $0x90] sm:$0xff] %v3205
      %3238 = vst [vmem:[#allocation3 + $0x98] sm:$0xff] %v3206
      %3239 = vst [vmem:[#allocation3 + $0xa0] sm:$0xff] %v3207
      %3240 = vst [vmem:[#allocation3 + $0xa8] sm:$0xff] %v3208
      %3241 = vst [vmem:[#allocation3 + $0xb0] sm:$0xff] %v3209
      %3242 = vst [vmem:[#allocation3 + $0xb8] sm:$0xff] %v3210
      %3243 = vst [vmem:[#allocation3 + $0xc0] sm:$0xff] %v3211
      %3244 = vst [vmem:[#allocation3 + $0xc8] sm:$0xff] %v3212
      %3245 = vst [vmem:[#allocation3 + $0xd0] sm:$0xff] %v3213
      %3246 = vst [vmem:[#allocation3 + $0xd8] sm:$0xff] %v3214
      %3247 = vst [vmem:[#allocation3 + $0xe0] sm:$0xff] %v3215
      %3248 = vst [vmem:[#allocation3 + $0xe8] sm:$0xff] %v3216
      %3249 = vst [vmem:[#allocation3 + $0xf0] sm:$0xff] %v3217
      %3250 = vst [vmem:[#allocation3 + $0xf8] sm:$0xff] %v3218
      %v3251 = vld [vmem:[%s2510 + $0x2] sm:$0xff]
      %v3252 = vld [vmem:[%s2510 + $0xa] sm:$0xff]
      %v3253 = vld [vmem:[%s2510 + $0x1a] sm:$0xff]
      %v3254 = vld [vmem:[%s2510 + $0x22] sm:$0xff]
      %v3255 = vld [vmem:[%s2510 + $0x32] sm:$0xff]
      %v3256 = vld [vmem:[%s2510 + $0x3a] sm:$0xff]
      %v3257 = vld [vmem:[%s2510 + $0x4a] sm:$0xff]
      %v3258 = vld [vmem:[%s2510 + $0x52] sm:$0xff]
      %v3259 = vld [vmem:[%s2510 + $0x62] sm:$0xff]
      %v3260 = vld [vmem:[%s2510 + $0x6a] sm:$0xff]
      %v3261 = vld [vmem:[%s2510 + $0x7a] sm:$0xff]
      %v3262 = vld [vmem:[%s2510 + $0x82] sm:$0xff]
      %v3263 = vld [vmem:[%s2510 + $0x92] sm:$0xff]
      %v3264 = vld [vmem:[%s2510 + $0x9a] sm:$0xff]
      %v3265 = vld [vmem:[%s2510 + $0xaa] sm:$0xff]
      %v3266 = vld [vmem:[%s2510 + $0xb2] sm:$0xff]
      %v3267 = vld [vmem:[%s2510 + $0xc2] sm:$0xff]
      %v3268 = vld [vmem:[%s2510 + $0xca] sm:$0xff]
      %v3269 = vld [vmem:[%s2510 + $0xda] sm:$0xff]
      %v3270 = vld [vmem:[%s2510 + $0xe2] sm:$0xff]
      %v3271 = vld [vmem:[%s2510 + $0xf2] sm:$0xff]
      %v3272 = vld [vmem:[%s2510 + $0xfa] sm:$0xff]
      %v3273 = vld [vmem:[%s2510 + $0x10a] sm:$0xff]
      %v3274 = vld [vmem:[%s2510 + $0x112] sm:$0xff]
      %v3275 = vld [vmem:[%s2510 + $0x122] sm:$0xff]
      %v3276 = vld [vmem:[%s2510 + $0x12a] sm:$0xff]
      %v3277 = vld [vmem:[%s2510 + $0x13a] sm:$0xff]
      %v3278 = vld [vmem:[%s2510 + $0x142] sm:$0xff]
      %v3279 = vld [vmem:[%s2510 + $0x152] sm:$0xff]
      %v3280 = vld [vmem:[%s2510 + $0x15a] sm:$0xff]
      %v3281 = vld [vmem:[%s2510 + $0x16a] sm:$0xff]
      %v3282 = vld [vmem:[%s2510 + $0x172] sm:$0xff]
      %s3283 = scalar_lea.vmem %s1, 1024
      %v3284 = vld [vmem:[%s3283] sm:$0xff]
      %v3285 = vld [vmem:[%s3283 + $0x8] sm:$0xff]
      %v3286 = vld [vmem:[%s3283 + $0x10] sm:$0xff]
      %v3287 = vld [vmem:[%s3283 + $0x18] sm:$0xff]
      %v3288 = vld [vmem:[%s3283 + $0x20] sm:$0xff]
      %v3289 = vld [vmem:[%s3283 + $0x28] sm:$0xff]
      %v3290 = vld [vmem:[%s3283 + $0x30] sm:$0xff]
      %v3291 = vld [vmem:[%s3283 + $0x38] sm:$0xff]
      %v3292 = vld [vmem:[%s3283 + $0x40] sm:$0xff]
      %v3293 = vld [vmem:[%s3283 + $0x48] sm:$0xff]
      %v3294 = vld [vmem:[%s3283 + $0x50] sm:$0xff]
      %v3295 = vld [vmem:[%s3283 + $0x58] sm:$0xff]
      %v3296 = vld [vmem:[%s3283 + $0x60] sm:$0xff]
      %v3297 = vld [vmem:[%s3283 + $0x68] sm:$0xff]
      %v3298 = vld [vmem:[%s3283 + $0x70] sm:$0xff]
      %v3299 = vld [vmem:[%s3283 + $0x78] sm:$0xff]
      %3300 = vmatprep.subr.mxu0 0.0
      %3301 = vmatpush1.msra.mxu0 %v3299
      %3302 = vmatprep.subr.mxu0 0.0
      %3303 = vmatpush1.msra.mxu0 %v3298
      %3304 = vmatprep.subr.mxu0 0.0
      %3305 = vmatpush1.msra.mxu0 %v3297
      %3306 = vmatprep.subr.mxu0 0.0
      %3307 = vmatpush1.msra.mxu0 %v3296
      %3308 = vmatprep.subr.mxu0 0.0
      %3309 = vmatpush1.msra.mxu0 %v3295
      %3310 = vmatprep.subr.mxu0 0.0
      %3311 = vmatpush1.msra.mxu0 %v3294
      %3312 = vmatprep.subr.mxu0 0.0
      %3313 = vmatpush1.msra.mxu0 %v3293
      %3314 = vmatprep.subr.mxu0 0.0
      %3315 = vmatpush1.msra.mxu0 %v3292
      %3316 = vmatprep.subr.mxu0 0.0
      %3317 = vmatpush1.msra.mxu0 %v3291
      %3318 = vmatprep.subr.mxu0 0.0
      %3319 = vmatpush1.msra.mxu0 %v3290
      %3320 = vmatprep.subr.mxu0 0.0
      %3321 = vmatpush1.msra.mxu0 %v3289
      %3322 = vmatprep.subr.mxu0 0.0
      %3323 = vmatpush1.msra.mxu0 %v3288
      %3324 = vmatprep.subr.mxu0 0.0
      %3325 = vmatpush1.msra.mxu0 %v3287
      %3326 = vmatprep.subr.mxu0 0.0
      %3327 = vmatpush1.msra.mxu0 %v3286
      %3328 = vmatprep.subr.mxu0 0.0
      %3329 = vmatpush1.msra.mxu0 %v3285
      %3330 = vmatprep.subr.mxu0 0.0
      %3331 = vmatpush1.msra.mxu0 %v3284
      %3332 = vmatprep.subr.mxu0 0.0
      %3333 = vmatpush2.msra.mxu0 0.0
      %3334 = vmatprep.subr.mxu0 0.0
      %3335 = vmatpush2.msra.mxu0 0.0
      %3336 = vmatprep.subr.mxu0 0.0
      %3337 = vmatpush2.msra.mxu0 0.0
      %3338 = vmatprep.subr.mxu0 0.0
      %3339 = vmatpush2.msra.mxu0 0.0
      %3340 = vmatprep.subr.mxu0 0.0
      %3341 = vmatpush2.msra.mxu0 0.0
      %3342 = vmatprep.subr.mxu0 0.0
      %3343 = vmatpush2.msra.mxu0 0.0
      %3344 = vmatprep.subr.mxu0 0.0
      %3345 = vmatpush2.msra.mxu0 0.0
      %3346 = vmatprep.subr.mxu0 0.0
      %3347 = vmatpush2.msra.mxu0 0.0
      %3348 = vmatprep.subr.mxu0 0.0
      %3349 = vmatpush2.msra.mxu0 0.0
      %3350 = vmatprep.subr.mxu0 0.0
      %3351 = vmatpush2.msra.mxu0 0.0
      %3352 = vmatprep.subr.mxu0 0.0
      %3353 = vmatpush2.msra.mxu0 0.0
      %3354 = vmatprep.subr.mxu0 0.0
      %3355 = vmatpush2.msra.mxu0 0.0
      %3356 = vmatprep.subr.mxu0 0.0
      %3357 = vmatpush2.msra.mxu0 0.0
      %3358 = vmatprep.subr.mxu0 0.0
      %3359 = vmatpush2.msra.mxu0 0.0
      %3360 = vmatprep.subr.mxu0 0.0
      %3361 = vmatpush2.msra.mxu0 0.0
      %3362 = vmatprep.subr.mxu0 0.0
      %3363 = vmatpush2.msra.mxu0 0.0
      %3364 = vmatprep.mubr.f32.mxu0 0.0
      %3365 = vmatmul.mubr.f32.gmra.mxu0 %v3251
      %v3366 = vpop.f32.mrf.mxu0
      %v3367 = vadd.f32 0.0, %v3366
      %v3368 = vpop.f32.mrf.mxu0
      %3369 = vmatprep.mubr.f32.mxu0 0.0
      %3370 = vmatmul.mubr.f32.gmra.mxu0 %v3252
      %v3371 = vpop.f32.mrf.mxu0
      %v3372 = vadd.f32 0.0, %v3371
      %v3373 = vpop.f32.mrf.mxu0
      %3374 = vmatprep.mubr.f32.mxu0 0.0
      %3375 = vmatmul.mubr.f32.gmra.mxu0 %v3253
      %v3376 = vpop.f32.mrf.mxu0
      %v3377 = vadd.f32 0.0, %v3376
      %v3378 = vpop.f32.mrf.mxu0
      %3379 = vmatprep.mubr.f32.mxu0 0.0
      %3380 = vmatmul.mubr.f32.gmra.mxu0 %v3254
      %v3381 = vpop.f32.mrf.mxu0
      %v3382 = vadd.f32 0.0, %v3381
      %v3383 = vpop.f32.mrf.mxu0
      %3384 = vmatprep.mubr.f32.mxu0 0.0
      %3385 = vmatmul.mubr.f32.gmra.mxu0 %v3255
      %v3386 = vpop.f32.mrf.mxu0
      %v3387 = vadd.f32 0.0, %v3386
      %v3388 = vpop.f32.mrf.mxu0
      %3389 = vmatprep.mubr.f32.mxu0 0.0
      %3390 = vmatmul.mubr.f32.gmra.mxu0 %v3256
      %v3391 = vpop.f32.mrf.mxu0
      %v3392 = vadd.f32 0.0, %v3391
      %v3393 = vpop.f32.mrf.mxu0
      %3394 = vmatprep.mubr.f32.mxu0 0.0
      %3395 = vmatmul.mubr.f32.gmra.mxu0 %v3257
      %v3396 = vpop.f32.mrf.mxu0
      %v3397 = vadd.f32 0.0, %v3396
      %v3398 = vpop.f32.mrf.mxu0
      %3399 = vmatprep.mubr.f32.mxu0 0.0
      %3400 = vmatmul.mubr.f32.gmra.mxu0 %v3258
      %v3401 = vpop.f32.mrf.mxu0
      %v3402 = vadd.f32 0.0, %v3401
      %v3403 = vpop.f32.mrf.mxu0
      %3404 = vmatprep.mubr.f32.mxu0 0.0
      %3405 = vmatmul.mubr.f32.gmra.mxu0 %v3259
      %v3406 = vpop.f32.mrf.mxu0
      %v3407 = vadd.f32 0.0, %v3406
      %v3408 = vpop.f32.mrf.mxu0
      %3409 = vmatprep.mubr.f32.mxu0 0.0
      %3410 = vmatmul.mubr.f32.gmra.mxu0 %v3260
      %v3411 = vpop.f32.mrf.mxu0
      %v3412 = vadd.f32 0.0, %v3411
      %v3413 = vpop.f32.mrf.mxu0
      %3414 = vmatprep.mubr.f32.mxu0 0.0
      %3415 = vmatmul.mubr.f32.gmra.mxu0 %v3261
      %v3416 = vpop.f32.mrf.mxu0
      %v3417 = vadd.f32 0.0, %v3416
      %v3418 = vpop.f32.mrf.mxu0
      %3419 = vmatprep.mubr.f32.mxu0 0.0
      %3420 = vmatmul.mubr.f32.gmra.mxu0 %v3262
      %v3421 = vpop.f32.mrf.mxu0
      %v3422 = vadd.f32 0.0, %v3421
      %v3423 = vpop.f32.mrf.mxu0
      %3424 = vmatprep.mubr.f32.mxu0 0.0
      %3425 = vmatmul.mubr.f32.gmra.mxu0 %v3263
      %v3426 = vpop.f32.mrf.mxu0
      %v3427 = vadd.f32 0.0, %v3426
      %v3428 = vpop.f32.mrf.mxu0
      %3429 = vmatprep.mubr.f32.mxu0 0.0
      %3430 = vmatmul.mubr.f32.gmra.mxu0 %v3264
      %v3431 = vpop.f32.mrf.mxu0
      %v3432 = vadd.f32 0.0, %v3431
      %v3433 = vpop.f32.mrf.mxu0
      %3434 = vmatprep.mubr.f32.mxu0 0.0
      %3435 = vmatmul.mubr.f32.gmra.mxu0 %v3265
      %v3436 = vpop.f32.mrf.mxu0
      %v3437 = vadd.f32 0.0, %v3436
      %v3438 = vpop.f32.mrf.mxu0
      %3439 = vmatprep.mubr.f32.mxu0 0.0
      %3440 = vmatmul.mubr.f32.gmra.mxu0 %v3266
      %v3441 = vpop.f32.mrf.mxu0
      %v3442 = vadd.f32 0.0, %v3441
      %v3443 = vpop.f32.mrf.mxu0
      %3444 = vmatprep.mubr.f32.mxu0 0.0
      %3445 = vmatmul.mubr.f32.gmra.mxu0 %v3267
      %v3446 = vpop.f32.mrf.mxu0
      %v3447 = vadd.f32 0.0, %v3446
      %v3448 = vpop.f32.mrf.mxu0
      %3449 = vmatprep.mubr.f32.mxu0 0.0
      %3450 = vmatmul.mubr.f32.gmra.mxu0 %v3268
      %v3451 = vpop.f32.mrf.mxu0
      %v3452 = vadd.f32 0.0, %v3451
      %v3453 = vpop.f32.mrf.mxu0
      %3454 = vmatprep.mubr.f32.mxu0 0.0
      %3455 = vmatmul.mubr.f32.gmra.mxu0 %v3269
      %v3456 = vpop.f32.mrf.mxu0
      %v3457 = vadd.f32 0.0, %v3456
      %v3458 = vpop.f32.mrf.mxu0
      %3459 = vmatprep.mubr.f32.mxu0 0.0
      %3460 = vmatmul.mubr.f32.gmra.mxu0 %v3270
      %v3461 = vpop.f32.mrf.mxu0
      %v3462 = vadd.f32 0.0, %v3461
      %v3463 = vpop.f32.mrf.mxu0
      %3464 = vmatprep.mubr.f32.mxu0 0.0
      %3465 = vmatmul.mubr.f32.gmra.mxu0 %v3271
      %v3466 = vpop.f32.mrf.mxu0
      %v3467 = vadd.f32 0.0, %v3466
      %v3468 = vpop.f32.mrf.mxu0
      %3469 = vmatprep.mubr.f32.mxu0 0.0
      %3470 = vmatmul.mubr.f32.gmra.mxu0 %v3272
      %v3471 = vpop.f32.mrf.mxu0
      %v3472 = vadd.f32 0.0, %v3471
      %v3473 = vpop.f32.mrf.mxu0
      %3474 = vmatprep.mubr.f32.mxu0 0.0
      %3475 = vmatmul.mubr.f32.gmra.mxu0 %v3273
      %v3476 = vpop.f32.mrf.mxu0
      %v3477 = vadd.f32 0.0, %v3476
      %v3478 = vpop.f32.mrf.mxu0
      %3479 = vmatprep.mubr.f32.mxu0 0.0
      %3480 = vmatmul.mubr.f32.gmra.mxu0 %v3274
      %v3481 = vpop.f32.mrf.mxu0
      %v3482 = vadd.f32 0.0, %v3481
      %v3483 = vpop.f32.mrf.mxu0
      %3484 = vmatprep.mubr.f32.mxu0 0.0
      %3485 = vmatmul.mubr.f32.gmra.mxu0 %v3275
      %v3486 = vpop.f32.mrf.mxu0
      %v3487 = vadd.f32 0.0, %v3486
      %v3488 = vpop.f32.mrf.mxu0
      %3489 = vmatprep.mubr.f32.mxu0 0.0
      %3490 = vmatmul.mubr.f32.gmra.mxu0 %v3276
      %v3491 = vpop.f32.mrf.mxu0
      %v3492 = vadd.f32 0.0, %v3491
      %v3493 = vpop.f32.mrf.mxu0
      %3494 = vmatprep.mubr.f32.mxu0 0.0
      %3495 = vmatmul.mubr.f32.gmra.mxu0 %v3277
      %v3496 = vpop.f32.mrf.mxu0
      %v3497 = vadd.f32 0.0, %v3496
      %v3498 = vpop.f32.mrf.mxu0
      %3499 = vmatprep.mubr.f32.mxu0 0.0
      %3500 = vmatmul.mubr.f32.gmra.mxu0 %v3278
      %v3501 = vpop.f32.mrf.mxu0
      %v3502 = vadd.f32 0.0, %v3501
      %v3503 = vpop.f32.mrf.mxu0
      %3504 = vmatprep.mubr.f32.mxu0 0.0
      %3505 = vmatmul.mubr.f32.gmra.mxu0 %v3279
      %v3506 = vpop.f32.mrf.mxu0
      %v3507 = vadd.f32 0.0, %v3506
      %v3508 = vpop.f32.mrf.mxu0
      %3509 = vmatprep.mubr.f32.mxu0 0.0
      %3510 = vmatmul.mubr.f32.gmra.mxu0 %v3280
      %v3511 = vpop.f32.mrf.mxu0
      %v3512 = vadd.f32 0.0, %v3511
      %v3513 = vpop.f32.mrf.mxu0
      %3514 = vmatprep.mubr.f32.mxu0 0.0
      %3515 = vmatmul.mubr.f32.gmra.mxu0 %v3281
      %v3516 = vpop.f32.mrf.mxu0
      %v3517 = vadd.f32 0.0, %v3516
      %v3518 = vpop.f32.mrf.mxu0
      %3519 = vmatprep.mubr.f32.mxu0 0.0
      %3520 = vmatmul.mubr.f32.gmra.mxu0 %v3282
      %v3521 = vpop.f32.mrf.mxu0
      %v3522 = vadd.f32 0.0, %v3521
      %v3523 = vpop.f32.mrf.mxu0
      %3524 = vdwg.mxu0
      %v3525 = vld [vmem:[#allocation3] sm:$0xff]
      %v3526 = vld [vmem:[#allocation3 + $0x8] sm:$0xff]
      %v3527 = vld [vmem:[#allocation3 + $0x10] sm:$0xff]
      %v3528 = vld [vmem:[#allocation3 + $0x18] sm:$0xff]
      %v3529 = vld [vmem:[#allocation3 + $0x20] sm:$0xff]
      %v3530 = vld [vmem:[#allocation3 + $0x28] sm:$0xff]
      %v3531 = vld [vmem:[#allocation3 + $0x30] sm:$0xff]
      %v3532 = vld [vmem:[#allocation3 + $0x38] sm:$0xff]
      %v3533 = vld [vmem:[#allocation3 + $0x40] sm:$0xff]
      %v3534 = vld [vmem:[#allocation3 + $0x48] sm:$0xff]
      %v3535 = vld [vmem:[#allocation3 + $0x50] sm:$0xff]
      %v3536 = vld [vmem:[#allocation3 + $0x58] sm:$0xff]
      %v3537 = vld [vmem:[#allocation3 + $0x60] sm:$0xff]
      %v3538 = vld [vmem:[#allocation3 + $0x68] sm:$0xff]
      %v3539 = vld [vmem:[#allocation3 + $0x70] sm:$0xff]
      %v3540 = vld [vmem:[#allocation3 + $0x78] sm:$0xff]
      %v3541 = vld [vmem:[#allocation3 + $0x80] sm:$0xff]
      %v3542 = vld [vmem:[#allocation3 + $0x88] sm:$0xff]
      %v3543 = vld [vmem:[#allocation3 + $0x90] sm:$0xff]
      %v3544 = vld [vmem:[#allocation3 + $0x98] sm:$0xff]
      %v3545 = vld [vmem:[#allocation3 + $0xa0] sm:$0xff]
      %v3546 = vld [vmem:[#allocation3 + $0xa8] sm:$0xff]
      %v3547 = vld [vmem:[#allocation3 + $0xb0] sm:$0xff]
      %v3548 = vld [vmem:[#allocation3 + $0xb8] sm:$0xff]
      %v3549 = vld [vmem:[#allocation3 + $0xc0] sm:$0xff]
      %v3550 = vld [vmem:[#allocation3 + $0xc8] sm:$0xff]
      %v3551 = vld [vmem:[#allocation3 + $0xd0] sm:$0xff]
      %v3552 = vld [vmem:[#allocation3 + $0xd8] sm:$0xff]
      %v3553 = vld [vmem:[#allocation3 + $0xe0] sm:$0xff]
      %v3554 = vld [vmem:[#allocation3 + $0xe8] sm:$0xff]
      %v3555 = vld [vmem:[#allocation3 + $0xf0] sm:$0xff]
      %v3556 = vld [vmem:[#allocation3 + $0xf8] sm:$0xff]
      %v3557 = vadd.f32 %v3525, %v3367
      %v3558 = vadd.f32 %v3526, %v3372
      %v3559 = vadd.f32 %v3527, %v3377
      %v3560 = vadd.f32 %v3528, %v3382
      %v3561 = vadd.f32 %v3529, %v3387
      %v3562 = vadd.f32 %v3530, %v3392
      %v3563 = vadd.f32 %v3531, %v3397
      %v3564 = vadd.f32 %v3532, %v3402
      %v3565 = vadd.f32 %v3533, %v3407
      %v3566 = vadd.f32 %v3534, %v3412
      %v3567 = vadd.f32 %v3535, %v3417
      %v3568 = vadd.f32 %v3536, %v3422
      %v3569 = vadd.f32 %v3537, %v3427
      %v3570 = vadd.f32 %v3538, %v3432
      %v3571 = vadd.f32 %v3539, %v3437
      %v3572 = vadd.f32 %v3540, %v3442
      %v3573 = vadd.f32 %v3541, %v3447
      %v3574 = vadd.f32 %v3542, %v3452
      %v3575 = vadd.f32 %v3543, %v3457
      %v3576 = vadd.f32 %v3544, %v3462
      %v3577 = vadd.f32 %v3545, %v3467
      %v3578 = vadd.f32 %v3546, %v3472
      %v3579 = vadd.f32 %v3547, %v3477
      %v3580 = vadd.f32 %v3548, %v3482
      %v3581 = vadd.f32 %v3549, %v3487
      %v3582 = vadd.f32 %v3550, %v3492
      %v3583 = vadd.f32 %v3551, %v3497
      %v3584 = vadd.f32 %v3552, %v3502
      %v3585 = vadd.f32 %v3553, %v3507
      %v3586 = vadd.f32 %v3554, %v3512
      %v3587 = vadd.f32 %v3555, %v3517
      %v3588 = vadd.f32 %v3556, %v3522
      %3589 = vst [vmem:[#allocation3] sm:$0xff] %v3557
      %3590 = vst [vmem:[#allocation3 + $0x8] sm:$0xff] %v3558
      %3591 = vst [vmem:[#allocation3 + $0x10] sm:$0xff] %v3559
      %3592 = vst [vmem:[#allocation3 + $0x18] sm:$0xff] %v3560
      %3593 = vst [vmem:[#allocation3 + $0x20] sm:$0xff] %v3561
      %3594 = vst [vmem:[#allocation3 + $0x28] sm:$0xff] %v3562
      %3595 = vst [vmem:[#allocation3 + $0x30] sm:$0xff] %v3563
      %3596 = vst [vmem:[#allocation3 + $0x38] sm:$0xff] %v3564
      %3597 = vst [vmem:[#allocation3 + $0x40] sm:$0xff] %v3565
      %3598 = vst [vmem:[#allocation3 + $0x48] sm:$0xff] %v3566
      %3599 = vst [vmem:[#allocation3 + $0x50] sm:$0xff] %v3567
      %3600 = vst [vmem:[#allocation3 + $0x58] sm:$0xff] %v3568
      %3601 = vst [vmem:[#allocation3 + $0x60] sm:$0xff] %v3569
      %3602 = vst [vmem:[#allocation3 + $0x68] sm:$0xff] %v3570
      %3603 = vst [vmem:[#allocation3 + $0x70] sm:$0xff] %v3571
      %3604 = vst [vmem:[#allocation3 + $0x78] sm:$0xff] %v3572
      %3605 = vst [vmem:[#allocation3 + $0x80] sm:$0xff] %v3573
      %3606 = vst [vmem:[#allocation3 + $0x88] sm:$0xff] %v3574
      %3607 = vst [vmem:[#allocation3 + $0x90] sm:$0xff] %v3575
      %3608 = vst [vmem:[#allocation3 + $0x98] sm:$0xff] %v3576
      %3609 = vst [vmem:[#allocation3 + $0xa0] sm:$0xff] %v3577
      %3610 = vst [vmem:[#allocation3 + $0xa8] sm:$0xff] %v3578
      %3611 = vst [vmem:[#allocation3 + $0xb0] sm:$0xff] %v3579
      %3612 = vst [vmem:[#allocation3 + $0xb8] sm:$0xff] %v3580
      %3613 = vst [vmem:[#allocation3 + $0xc0] sm:$0xff] %v3581
      %3614 = vst [vmem:[#allocation3 + $0xc8] sm:$0xff] %v3582
      %3615 = vst [vmem:[#allocation3 + $0xd0] sm:$0xff] %v3583
      %3616 = vst [vmem:[#allocation3 + $0xd8] sm:$0xff] %v3584
      %3617 = vst [vmem:[#allocation3 + $0xe0] sm:$0xff] %v3585
      %3618 = vst [vmem:[#allocation3 + $0xe8] sm:$0xff] %v3586
      %3619 = vst [vmem:[#allocation3 + $0xf0] sm:$0xff] %v3587
      %3620 = vst [vmem:[#allocation3 + $0xf8] sm:$0xff] %v3588
      %v3621 = vld [vmem:[#allocation3] sm:$0xff]
      %v3622 = vld [vmem:[#allocation3 + $0x8] sm:$0xff]
      %v3623 = vld [vmem:[#allocation3 + $0x10] sm:$0xff]
      %v3624 = vld [vmem:[#allocation3 + $0x18] sm:$0xff]
      %v3625 = vld [vmem:[#allocation3 + $0x20] sm:$0xff]
      %v3626 = vld [vmem:[#allocation3 + $0x28] sm:$0xff]
      %v3627 = vld [vmem:[#allocation3 + $0x30] sm:$0xff]
      %v3628 = vld [vmem:[#allocation3 + $0x38] sm:$0xff]
      %v3629 = vld [vmem:[#allocation3 + $0x40] sm:$0xff]
      %v3630 = vld [vmem:[#allocation3 + $0x48] sm:$0xff]
      %v3631 = vld [vmem:[#allocation3 + $0x50] sm:$0xff]
      %v3632 = vld [vmem:[#allocation3 + $0x58] sm:$0xff]
      %v3633 = vld [vmem:[#allocation3 + $0x60] sm:$0xff]
      %v3634 = vld [vmem:[#allocation3 + $0x68] sm:$0xff]
      %v3635 = vld [vmem:[#allocation3 + $0x70] sm:$0xff]
      %v3636 = vld [vmem:[#allocation3 + $0x78] sm:$0xff]
      %v3637 = vld [vmem:[#allocation3 + $0x80] sm:$0xff]
      %v3638 = vld [vmem:[#allocation3 + $0x88] sm:$0xff]
      %v3639 = vld [vmem:[#allocation3 + $0x90] sm:$0xff]
      %v3640 = vld [vmem:[#allocation3 + $0x98] sm:$0xff]
      %v3641 = vld [vmem:[#allocation3 + $0xa0] sm:$0xff]
      %v3642 = vld [vmem:[#allocation3 + $0xa8] sm:$0xff]
      %v3643 = vld [vmem:[#allocation3 + $0xb0] sm:$0xff]
      %v3644 = vld [vmem:[#allocation3 + $0xb8] sm:$0xff]
      %v3645 = vld [vmem:[#allocation3 + $0xc0] sm:$0xff]
      %v3646 = vld [vmem:[#allocation3 + $0xc8] sm:$0xff]
      %v3647 = vld [vmem:[#allocation3 + $0xd0] sm:$0xff]
      %v3648 = vld [vmem:[#allocation3 + $0xd8] sm:$0xff]
      %v3649 = vld [vmem:[#allocation3 + $0xe0] sm:$0xff]
      %v3650 = vld [vmem:[#allocation3 + $0xe8] sm:$0xff]
      %v3651 = vld [vmem:[#allocation3 + $0xf0] sm:$0xff]
      %v3652 = vld [vmem:[#allocation3 + $0xf8] sm:$0xff]
      %3653 = vst [vmem:[%s231] sm:$0xff] %v3621
      %3654 = vst [vmem:[%s231 + $0x8] sm:$0xff] %v3622
      %3655 = vst [vmem:[%s231 + $0x10] sm:$0xff] %v3623
      %3656 = vst [vmem:[%s231 + $0x18] sm:$0xff] %v3624
      %3657 = vst [vmem:[%s231 + $0x20] sm:$0xff] %v3625
      %3658 = vst [vmem:[%s231 + $0x28] sm:$0xff] %v3626
      %3659 = vst [vmem:[%s231 + $0x30] sm:$0xff] %v3627
      %3660 = vst [vmem:[%s231 + $0x38] sm:$0xff] %v3628
      %3661 = vst [vmem:[%s231 + $0x40] sm:$0xff] %v3629
      %3662 = vst [vmem:[%s231 + $0x48] sm:$0xff] %v3630
      %3663 = vst [vmem:[%s231 + $0x50] sm:$0xff] %v3631
      %3664 = vst [vmem:[%s231 + $0x58] sm:$0xff] %v3632
      %3665 = vst [vmem:[%s231 + $0x60] sm:$0xff] %v3633
      %3666 = vst [vmem:[%s231 + $0x68] sm:$0xff] %v3634
      %3667 = vst [vmem:[%s231 + $0x70] sm:$0xff] %v3635
      %3668 = vst [vmem:[%s231 + $0x78] sm:$0xff] %v3636
      %3669 = vst [vmem:[%s231 + $0x80] sm:$0xff] %v3637
      %3670 = vst [vmem:[%s231 + $0x88] sm:$0xff] %v3638
      %3671 = vst [vmem:[%s231 + $0x90] sm:$0xff] %v3639
      %3672 = vst [vmem:[%s231 + $0x98] sm:$0xff] %v3640
      %3673 = vst [vmem:[%s231 + $0xa0] sm:$0xff] %v3641
      %3674 = vst [vmem:[%s231 + $0xa8] sm:$0xff] %v3642
      %3675 = vst [vmem:[%s231 + $0xb0] sm:$0xff] %v3643
      %3676 = vst [vmem:[%s231 + $0xb8] sm:$0xff] %v3644
      %3677 = vst [vmem:[%s231 + $0xc0] sm:$0xff] %v3645
      %3678 = vst [vmem:[%s231 + $0xc8] sm:$0xff] %v3646
      %3679 = vst [vmem:[%s231 + $0xd0] sm:$0xff] %v3647
      %3680 = vst [vmem:[%s231 + $0xd8] sm:$0xff] %v3648
      %3681 = vst [vmem:[%s231 + $0xe0] sm:$0xff] %v3649
      %3682 = vst [vmem:[%s231 + $0xe8] sm:$0xff] %v3650
      %3683 = vst [vmem:[%s231 + $0xf0] sm:$0xff] %v3651
      %3684 = vst [vmem:[%s231 + $0xf8] sm:$0xff] %v3652
      %v3685 = vadd.f32 %v3621, %v3622
      %v3686 = vadd.f32 %v3685, %v3623
      %v3687 = vadd.f32 %v3686, %v3624
      %v3688 = vadd.f32 %v3687, %v3625
      %v3689 = vadd.f32 %v3688, %v3626
      %v3690 = vadd.f32 %v3689, %v3627
      %v3691 = vadd.f32 %v3690, %v3628
      %v3692 = vadd.f32 %v3691, %v3629
      %v3693 = vadd.f32 %v3692, %v3630
      %v3694 = vadd.f32 %v3693, %v3631
      %v3695 = vadd.f32 %v3694, %v3632
      %v3696 = vadd.f32 %v3695, %v3633
      %v3697 = vadd.f32 %v3696, %v3634
      %v3698 = vadd.f32 %v3697, %v3635
      %v3699 = vadd.f32 %v3698, %v3636
      %v3700 = vadd.f32 %v3699, %v3637
      %v3701 = vadd.f32 %v3700, %v3638
      %v3702 = vadd.f32 %v3701, %v3639
      %v3703 = vadd.f32 %v3702, %v3640
      %v3704 = vadd.f32 %v3703, %v3641
      %v3705 = vadd.f32 %v3704, %v3642
      %v3706 = vadd.f32 %v3705, %v3643
      %v3707 = vadd.f32 %v3706, %v3644
      %v3708 = vadd.f32 %v3707, %v3645
      %v3709 = vadd.f32 %v3708, %v3646
      %v3710 = vadd.f32 %v3709, %v3647
      %v3711 = vadd.f32 %v3710, %v3648
      %v3712 = vadd.f32 %v3711, %v3649
      %v3713 = vadd.f32 %v3712, %v3650
      %v3714 = vadd.f32 %v3713, %v3651
      %v3715 = vadd.f32 %v3714, %v3652
      %v3716 = vrot.slane %v3715, 4
      %v3717 = vadd.f32 %v3715, %v3716
      %v3718 = vrot.slane %v3717, 2
      %v3719 = vadd.f32 %v3717, %v3718
      %v3720 = vrot.slane %v3719, 1
      %v3721 = vadd.f32 %v3719, %v3720
      %v3722 = vmul.f32 %v3721, 0.00390625
      %v3723 = vsub.f32 %v3621, %v3722
      %v3724 = vsub.f32 %v3622, %v3722
      %v3725 = vsub.f32 %v3623, %v3722
      %v3726 = vsub.f32 %v3624, %v3722
      %v3727 = vsub.f32 %v3625, %v3722
      %v3728 = vsub.f32 %v3626, %v3722
      %v3729 = vsub.f32 %v3627, %v3722
      %v3730 = vsub.f32 %v3628, %v3722
      %v3731 = vsub.f32 %v3629, %v3722
      %v3732 = vsub.f32 %v3630, %v3722
      %v3733 = vsub.f32 %v3631, %v3722
      %v3734 = vsub.f32 %v3632, %v3722
      %v3735 = vsub.f32 %v3633, %v3722
      %v3736 = vsub.f32 %v3634, %v3722
      %v3737 = vsub.f32 %v3635, %v3722
      %v3738 = vsub.f32 %v3636, %v3722
      %v3739 = vsub.f32 %v3637, %v3722
      %v3740 = vsub.f32 %v3638, %v3722
      %v3741 = vsub.f32 %v3639, %v3722
      %v3742 = vsub.f32 %v3640, %v3722
      %v3743 = vsub.f32 %v3641, %v3722
      %v3744 = vsub.f32 %v3642, %v3722
      %v3745 = vsub.f32 %v3643, %v3722
      %v3746 = vsub.f32 %v3644, %v3722
      %v3747 = vsub.f32 %v3645, %v3722
      %v3748 = vsub.f32 %v3646, %v3722
      %v3749 = vsub.f32 %v3647, %v3722
      %v3750 = vsub.f32 %v3648, %v3722
      %v3751 = vsub.f32 %v3649, %v3722
      %v3752 = vsub.f32 %v3650, %v3722
      %v3753 = vsub.f32 %v3651, %v3722
      %v3754 = vsub.f32 %v3652, %v3722
      %v3755 = vmul.f32 %v3723, %v3723
      %v3756 = vmul.f32 %v3724, %v3724
      %v3757 = vmul.f32 %v3725, %v3725
      %v3758 = vmul.f32 %v3726, %v3726
      %v3759 = vmul.f32 %v3727, %v3727
      %v3760 = vmul.f32 %v3728, %v3728
      %v3761 = vmul.f32 %v3729, %v3729
      %v3762 = vmul.f32 %v3730, %v3730
      %v3763 = vmul.f32 %v3731, %v3731
      %v3764 = vmul.f32 %v3732, %v3732
      %v3765 = vmul.f32 %v3733, %v3733
      %v3766 = vmul.f32 %v3734, %v3734
      %v3767 = vmul.f32 %v3735, %v3735
      %v3768 = vmul.f32 %v3736, %v3736
      %v3769 = vmul.f32 %v3737, %v3737
      %v3770 = vmul.f32 %v3738, %v3738
      %v3771 = vmul.f32 %v3739, %v3739
      %v3772 = vmul.f32 %v3740, %v3740
      %v3773 = vmul.f32 %v3741, %v3741
      %v3774 = vmul.f32 %v3742, %v3742
      %v3775 = vmul.f32 %v3743, %v3743
      %v3776 = vmul.f32 %v3744, %v3744
      %v3777 = vmul.f32 %v3745, %v3745
      %v3778 = vmul.f32 %v3746, %v3746
      %v3779 = vmul.f32 %v3747, %v3747
      %v3780 = vmul.f32 %v3748, %v3748
      %v3781 = vmul.f32 %v3749, %v3749
      %v3782 = vmul.f32 %v3750, %v3750
      %v3783 = vmul.f32 %v3751, %v3751
      %v3784 = vmul.f32 %v3752, %v3752
      %v3785 = vmul.f32 %v3753, %v3753
      %v3786 = vmul.f32 %v3754, %v3754
      %v3787 = vadd.f32 %v3755, %v3756
      %v3788 = vadd.f32 %v3787, %v3757
      %v3789 = vadd.f32 %v3788, %v3758
      %v3790 = vadd.f32 %v3789, %v3759
      %v3791 = vadd.f32 %v3790, %v3760
      %v3792 = vadd.f32 %v3791, %v3761
      %v3793 = vadd.f32 %v3792, %v3762
      %v3794 = vadd.f32 %v3793, %v3763
      %v3795 = vadd.f32 %v3794, %v3764
      %v3796 = vadd.f32 %v3795, %v3765
      %v3797 = vadd.f32 %v3796, %v3766
      %v3798 = vadd.f32 %v3797, %v3767
      %v3799 = vadd.f32 %v3798, %v3768
      %v3800 = vadd.f32 %v3799, %v3769
      %v3801 = vadd.f32 %v3800, %v3770
      %v3802 = vadd.f32 %v3801, %v3771
      %v3803 = vadd.f32 %v3802, %v3772
      %v3804 = vadd.f32 %v3803, %v3773
      %v3805 = vadd.f32 %v3804, %v3774
      %v3806 = vadd.f32 %v3805, %v3775
      %v3807 = vadd.f32 %v3806, %v3776
      %v3808 = vadd.f32 %v3807, %v3777
      %v3809 = vadd.f32 %v3808, %v3778
      %v3810 = vadd.f32 %v3809, %v3779
      %v3811 = vadd.f32 %v3810, %v3780
      %v3812 = vadd.f32 %v3811, %v3781
      %v3813 = vadd.f32 %v3812, %v3782
      %v3814 = vadd.f32 %v3813, %v3783
      %v3815 = vadd.f32 %v3814, %v3784
      %v3816 = vadd.f32 %v3815, %v3785
      %v3817 = vadd.f32 %v3816, %v3786
      %v3818 = vrot.slane %v3817, 4
      %v3819 = vadd.f32 %v3817, %v3818
      %v3820 = vrot.slane %v3819, 2
      %v3821 = vadd.f32 %v3819, %v3820
      %v3822 = vrot.slane %v3821, 1
      %v3823 = vadd.f32 %v3821, %v3822
      %vm3824 = vcmask 1040384
      %v3825 = vsel %vm3824, %v3721, %v3823
      %3826 = vst [vmem:[%s235] sm:$0x3] %v3825
      %p3827 = scmp.lt.s32.totalorder %s17, 1
      %s3828 = scalar_select %p3827, %s17, 1
      %s3829 = smul.addr %s3828, 32
      %s3830 = smul.addr %s3829, 8
      %s3831 = scalar_lea.vmem %s4, %s3830
      %p3832 = scmp.lt.s32.totalorder %s17, 1
      %s3833 = scalar_select %p3832, %s17, 1
      %s3834 = smul.addr %s3833, 2
      %s3835 = scalar_lea.vmem %s5, %s3834
      // Predicated region
      $region37: #{basic_block_forward_nhwc.3} parent=35 // pred_check
        %p3836 = pneg %p124
      $region38: #{basic_block_forward_nhwc.3} parent=35 // pred_check_branch
        %3838 = sbr.rel (%p3836) target = $region40
      $region39: #{basic_block_forward_nhwc.3} parent=35 // pred_region
        _
      $region40: #{basic_block_forward_nhwc.3} parent=35 // pred_fallthru
        _
      // Predicated region
      $region41: #{basic_block_forward_nhwc.3} parent=35 // pred_check
        %p3839 = pneg %p150
      $region42: #{basic_block_forward_nhwc.3} parent=35 // pred_check_branch
        %3841 = sbr.rel (%p3839) target = $region44
      $region43: #{basic_block_forward_nhwc.3} parent=35 // pred_region
        _
      $region44: #{basic_block_forward_nhwc.3} parent=35 // pred_fallthru
        _
    $region36: #{basic_block_forward_nhwc.3} parent=5 // pred_fallthru
      _
    %p3842 = scmp.le.s32.totalorder 2, %s12
    // Predicated region
    $region45: #{basic_block_forward_nhwc.3} parent=5 // pred_check
      %p3843 = pneg %p3842
    $region46: #{basic_block_forward_nhwc.3} parent=5 // pred_check_branch
      %3845 = sbr.rel (%p3843) target = $region48
    $region47: #{basic_block_forward_nhwc.3} parent=5 // pred_region
      %s3846 = ssub.s32 %s12, 2
      // Predicated region
      $region49: #{basic_block_forward_nhwc.3} parent=47 // pred_check
        %p3847 = pneg %p130
      $region50: #{basic_block_forward_nhwc.3} parent=47 // pred_check_branch
        %3849 = sbr.rel (%p3847) target = $region52
      $region51: #{basic_block_forward_nhwc.3} parent=47 // pred_region
        %p3850 = scmp.lt.s32.totalorder %s18, 1
        %s3851 = scalar_select %p3850, %s18, 1
        %s3852 = smul.addr %s3851, 32
        %s3853 = smul.addr %s3852, 8
        %s3854 = scalar_lea.vmem %s4, %s3853
      $region52: #{basic_block_forward_nhwc.3} parent=47 // pred_fallthru
        _
      // Predicated region
      $region53: #{basic_block_forward_nhwc.3} parent=47 // pred_check
        %p3855 = pneg %p156
      $region54: #{basic_block_forward_nhwc.3} parent=47 // pred_check_branch
        %3857 = sbr.rel (%p3855) target = $region56
      $region55: #{basic_block_forward_nhwc.3} parent=47 // pred_region
        %p3858 = scmp.lt.s32.totalorder %s18, 1
        %s3859 = scalar_select %p3858, %s18, 1
        %s3860 = smul.addr %s3859, 2
        %s3861 = scalar_lea.vmem %s5, %s3860
      $region56: #{basic_block_forward_nhwc.3} parent=47 // pred_fallthru
        _
    $region48: #{basic_block_forward_nhwc.3} parent=5 // pred_fallthru
      _
  $region6: #{basic_block_forward_nhwc.3} parent=0 // loop_footer
    %s16 = sadd.s32 1, %s12
  $region7: #{basic_block_forward_nhwc.3} parent=0 // loop_footer_branch
    %11 = sbr.rel target = $region3
  $region8: #{basic_block_forward_nhwc.3} parent=0 // loop_exit
    _

// kernel: basic_block_forward_nhwc.4
$region0: #{basic_block_forward_nhwc.4}
  #allocation0 [shape = 'u32[]', space=smem, size = 0x4, offset = 0x4, fixed_abs, tag = 'smem constant byte address 0x4 - core index']
  #allocation1 [shape = 'u32[144,128]{1,0:T(1,128)}', space=vmem, size = 0x12000, scoped, tag = 'internal scratch']
  #allocation2 [shape = 'f32[18,18,128]{2,1,0:T(8,128)}', space=vmem, size = 0x36000, scoped, tag = 'scratch operand']
  #allocation3 [shape = 'f32[256,128]{1,0:T(8,128)}', space=vmem, size = 0x20000, scoped, tag = 'scratch operand']
  %s0 = inlined_call_operand.vmem [shape: f32[2,16,16,128], index: 0, kind: input, shape index: {}]
  %s1 = inlined_call_operand.vmem [shape: f32[3,3,128,128], index: 1, kind: input, shape index: {}]
  %s2 = inlined_call_operand.vmem [shape: f32[1,128], index: 2, kind: input, shape index: {}]
  %s3 = inlined_call_operand.vmem [shape: f32[1,128], index: 3, kind: input, shape index: {}]
  %s4 = inlined_call_operand.vmem [shape: f32[2,16,16,128], index: 4, kind: output, shape index: {0}]
  %s5 = inlined_call_operand.vmem [shape: f32[2,2,128], index: 5, kind: output, shape index: {1}]
  %6 = xla_tuple %s4, %s5
  %s7 = sld [smem:[#allocation0]]
  $region57: #{basic_block_forward_nhwc.4} parent=0
    _
  %s9 = ssub.s32 1, %s7
  %s10 = scalar_select 0, %s9, %s7
  loop: start=0, step=1, limit=4
  $region2: #{basic_block_forward_nhwc.4} parent=0 // loop_pre_header
    _
  $region3: #{basic_block_forward_nhwc.4} parent=0 // loop_header
    %s12 = sphi 0, %s16
    %p13 = scmp.ge.s32.totalorder %s12, 4
    %s22 = sphi 0, %s24
    %s25 = sphi 0, %s22
    %s26 = sphi 0, %s25
    %s42 = sphi 0, %s26
    %s46 = sphi 0, %s46
    %s48 = sphi 0, %s46
    %s49 = sphi 0, %s48
    %s63 = sphi 0, %s49
    %s67 = sphi 0, %s67
    %s69 = sphi 0, %s67
    %s70 = sphi 0, %s69
    %s84 = sphi 0, %s70
    %s88 = sphi 0, %s88
    %s90 = sphi 0, %s88
    %s91 = sphi 0, %s90
    %s105 = sphi 0, %s91
    %s111 = sphi 0, %s113
    %s114 = sphi 0, %s111
    %s115 = sphi 0, %s114
    %s131 = sphi 0, %s115
    %s137 = sphi 0, %s139
    %s140 = sphi 0, %s137
    %s141 = sphi 0, %s140
    %s157 = sphi 0, %s141
  $region4: #{basic_block_forward_nhwc.4} parent=0 // loop_header_branch
    %15 = sbr.rel (%p13) target = $region8
  $region5: #{basic_block_forward_nhwc.4} parent=0 // loop_body
    %s17 = ssub.s32 %s12, 1
    %s18 = ssub.s32 %s12, 2
    %s19 = sadd.s32 %s12, 1
    %s20 = ssub.s32 %s12, %s19
    %p21 = scmp.eq.s32.totalorder %s20, 0
    %s23 = sadd.s32 %s22, 1
    %s24 = scalar_select %p21, %s22, %s23
    %p27 = pneg %p21
    %p28 = scmp.eq.s32.totalorder %s12, 1
    %p29 = por %p27, %p28
    %p30 = scmp.ne.s32.totalorder %s22, %s25
    %p31 = scmp.eq.s32.totalorder %s12, 0
    %p32 = por %p30, %p31
    %p33 = scmp.ne.s32.totalorder %s22, %s25
    %p34 = scmp.eq.s32.totalorder %s17, 1
    %p35 = por %p33, %p34
    %p36 = scmp.ne.s32.totalorder %s25, %s26
    %p37 = scmp.eq.s32.totalorder %s17, 0
    %p38 = por %p36, %p37
    %p39 = scmp.ne.s32.totalorder %s25, %s26
    %p40 = scmp.eq.s32.totalorder %s18, 1
    %p41 = por %p39, %p40
    %p43 = scmp.ne.s32.totalorder %s26, %s42
    %p44 = scmp.eq.s32.totalorder %s18, 0
    %p45 = por %p43, %p44
    %s47 = sadd.s32 %s46, 1
    %p50 = scmp.eq.s32.totalorder %s12, 1
    %p51 = scmp.ne.s32.totalorder %s46, %s48
    %p52 = scmp.eq.s32.totalorder %s12, 0
    %p53 = por %p51, %p52
    %p54 = scmp.ne.s32.totalorder %s46, %s48
    %p55 = scmp.eq.s32.totalorder %s17, 1
    %p56 = por %p54, %p55
    %p57 = scmp.ne.s32.totalorder %s48, %s49
    %p58 = scmp.eq.s32.totalorder %s17, 0
    %p59 = por %p57, %p58
    %p60 = scmp.ne.s32.totalorder %s48, %s49
    %p61 = scmp.eq.s32.totalorder %s18, 1
    %p62 = por %p60, %p61
    %p64 = scmp.ne.s32.totalorder %s49, %s63
    %p65 = scmp.eq.s32.totalorder %s18, 0
    %p66 = por %p64, %p65
    %s68 = sadd.s32 %s67, 1
    %p71 = scmp.eq.s32.totalorder %s12, 1
    %p72 = scmp.ne.s32.totalorder %s67, %s69
    %p73 = scmp.eq.s32.totalorder %s12, 0
    %p74 = por %p72, %p73
    %p75 = scmp.ne.s32.totalorder %s67, %s69
    %p76 = scmp.eq.s32.totalorder %s17, 1
    %p77 = por %p75, %p76
    %p78 = scmp.ne.s32.totalorder %s69, %s70
    %p79 = scmp.eq.s32.totalorder %s17, 0
    %p80 = por %p78, %p79
    %p81 = scmp.ne.s32.totalorder %s69, %s70
    %p82 = scmp.eq.s32.totalorder %s18, 1
    %p83 = por %p81, %p82
    %p85 = scmp.ne.s32.totalorder %s70, %s84
    %p86 = scmp.eq.s32.totalorder %s18, 0
    %p87 = por %p85, %p86
    %s89 = sadd.s32 %s88, 1
    %p92 = scmp.eq.s32.totalorder %s12, 1
    %p93 = scmp.ne.s32.totalorder %s88, %s90
    %p94 = scmp.eq.s32.totalorder %s12, 0
    %p95 = por %p93, %p94
    %p96 = scmp.ne.s32.totalorder %s88, %s90
    %p97 = scmp.eq.s32.totalorder %s17, 1
    %p98 = por %p96, %p97
    %p99 = scmp.ne.s32.totalorder %s90, %s91
    %p100 = scmp.eq.s32.totalorder %s17, 0
    %p101 = por %p99, %p100
    %p102 = scmp.ne.s32.totalorder %s90, %s91
    %p103 = scmp.eq.s32.totalorder %s18, 1
    %p104 = por %p102, %p103
    %p106 = scmp.ne.s32.totalorder %s91, %s105
    %p107 = scmp.eq.s32.totalorder %s18, 0
    %p108 = por %p106, %p107
    %s109 = ssub.s32 %s12, %s19
    %p110 = scmp.eq.s32.totalorder %s109, 0
    %s112 = sadd.s32 %s111, 1
    %s113 = scalar_select %p110, %s111, %s112
    %p116 = pneg %p110
    %p117 = scmp.eq.s32.totalorder %s12, 1
    %p118 = por %p116, %p117
    %p119 = scmp.ne.s32.totalorder %s111, %s114
    %p120 = scmp.eq.s32.totalorder %s12, 0
    %p121 = por %p119, %p120
    %p122 = scmp.ne.s32.totalorder %s111, %s114
    %p123 = scmp.eq.s32.totalorder %s17, 1
    %p124 = por %p122, %p123
    %p125 = scmp.ne.s32.totalorder %s114, %s115
    %p126 = scmp.eq.s32.totalorder %s17, 0
    %p127 = por %p125, %p126
    %p128 = scmp.ne.s32.totalorder %s114, %s115
    %p129 = scmp.eq.s32.totalorder %s18, 1
    %p130 = por %p128, %p129
    %p132 = scmp.ne.s32.totalorder %s115, %s131
    %p133 = scmp.eq.s32.totalorder %s18, 0
    %p134 = por %p132, %p133
    %s135 = ssub.s32 %s12, %s19
    %p136 = scmp.eq.s32.totalorder %s135, 0
    %s138 = sadd.s32 %s137, 1
    %s139 = scalar_select %p136, %s137, %s138
    %p142 = pneg %p136
    %p143 = scmp.eq.s32.totalorder %s12, 1
    %p144 = por %p142, %p143
    %p145 = scmp.ne.s32.totalorder %s137, %s140
    %p146 = scmp.eq.s32.totalorder %s12, 0
    %p147 = por %p145, %p146
    %p148 = scmp.ne.s32.totalorder %s137, %s140
    %p149 = scmp.eq.s32.totalorder %s17, 1
    %p150 = por %p148, %p149
    %p151 = scmp.ne.s32.totalorder %s140, %s141
    %p152 = scmp.eq.s32.totalorder %s17, 0
    %p153 = por %p151, %p152
    %p154 = scmp.ne.s32.totalorder %s140, %s141
    %p155 = scmp.eq.s32.totalorder %s18, 1
    %p156 = por %p154, %p155
    %p158 = scmp.ne.s32.totalorder %s141, %s157
    %p159 = scmp.eq.s32.totalorder %s18, 0
    %p160 = por %p158, %p159
    %p161 = scmp.le.s32.totalorder 1, %s12
    %p162 = scmp.lt.s32.totalorder %s12, 3
    %p163 = pnand %p161, %p162
    %p164 = pneg %p163
    // Predicated region
    $region9: #{basic_block_forward_nhwc.4} parent=5 // pred_check
      _
    $region10: #{basic_block_forward_nhwc.4} parent=5 // pred_check_branch
      %166 = sbr.rel (%p163) target = $region12
    $region11: #{basic_block_forward_nhwc.4} parent=5 // pred_region
      %s167 = ssub.s32 %s12, 1
      // Predicated region
      $region13: #{basic_block_forward_nhwc.4} parent=11 // pred_check
        %p168 = pneg %p59
      $region14: #{basic_block_forward_nhwc.4} parent=11 // pred_check_branch
        %170 = sbr.rel (%p168) target = $region16
      $region15: #{basic_block_forward_nhwc.4} parent=11 // pred_region
        _
      $region16: #{basic_block_forward_nhwc.4} parent=11 // pred_fallthru
        _
      // Predicated region
      $region17: #{basic_block_forward_nhwc.4} parent=11 // pred_check
        %p171 = pneg %p80
      $region18: #{basic_block_forward_nhwc.4} parent=11 // pred_check_branch
        %173 = sbr.rel (%p171) target = $region20
      $region19: #{basic_block_forward_nhwc.4} parent=11 // pred_region
        _
      $region20: #{basic_block_forward_nhwc.4} parent=11 // pred_fallthru
        _
      // Predicated region
      $region21: #{basic_block_forward_nhwc.4} parent=11 // pred_check
        %p174 = pneg %p101
      $region22: #{basic_block_forward_nhwc.4} parent=11 // pred_check_branch
        %176 = sbr.rel (%p174) target = $region24
      $region23: #{basic_block_forward_nhwc.4} parent=11 // pred_region
        _
      $region24: #{basic_block_forward_nhwc.4} parent=11 // pred_fallthru
        _
    $region12: #{basic_block_forward_nhwc.4} parent=5 // pred_fallthru
      _
    %p177 = scmp.lt.s32.totalorder %s12, 2
    // Predicated region
    $region25: #{basic_block_forward_nhwc.4} parent=5 // pred_check
      %p178 = pneg %p177
    $region26: #{basic_block_forward_nhwc.4} parent=5 // pred_check_branch
      %180 = sbr.rel (%p178) target = $region28
    $region27: #{basic_block_forward_nhwc.4} parent=5 // pred_region
      // Predicated region
      $region29: #{basic_block_forward_nhwc.4} parent=27 // pred_check
        %p181 = pneg %p32
      $region30: #{basic_block_forward_nhwc.4} parent=27 // pred_check_branch
        %183 = sbr.rel (%p181) target = $region32
      $region31: #{basic_block_forward_nhwc.4} parent=27 // pred_region
        %p184 = scmp.lt.s32.totalorder %s12, 1
        %s185 = scalar_select %p184, %s12, 1
        %s186 = smul.addr %s185, 32
        %s187 = smul.addr %s186, 8
        %s188 = scalar_lea.vmem %s0, %s187
      $region32: #{basic_block_forward_nhwc.4} parent=27 // pred_fallthru
        _
    $region28: #{basic_block_forward_nhwc.4} parent=5 // pred_fallthru
      _
    %p189 = scmp.le.s32.totalorder 1, %s12
    %p190 = scmp.lt.s32.totalorder %s12, 3
    %p191 = pnand %p189, %p190
    %p192 = pneg %p191
    // Predicated region
    $region33: #{basic_block_forward_nhwc.4} parent=5 // pred_check
      _
    $region34: #{basic_block_forward_nhwc.4} parent=5 // pred_check_branch
      %194 = sbr.rel (%p191) target = $region36
    $region35: #{basic_block_forward_nhwc.4} parent=5 // pred_region
      %s195 = ssub.s32 %s12, 1
      %p196 = scmp.lt.s32.totalorder %s17, 1
      %s197 = scalar_select %p196, %s17, 1
      %s198 = smul.addr %s197, 32
      %s199 = smul.addr %s198, 8
      %s200 = scalar_lea.vmem %s0, %s199
      %p201 = pneg %p38
      %p202 = pneg %p35
      %p203 = pneg %p59
      %p204 = pneg %p56
      %p205 = pneg %p80
      %p206 = pneg %p77
      %p207 = pneg %p101
      %p208 = pneg %p98
      %p209 = pneg %p127
      %p210 = pneg %p124
      %p211 = scmp.lt.s32.totalorder %s17, 1
      %s212 = scalar_select %p211, %s17, 1
      %s213 = smul.addr %s212, 32
      %s214 = smul.addr %s213, 8
      %s215 = scalar_lea.vmem %s4, %s214
      %p216 = pneg %p153
      %p217 = pneg %p150
      %p218 = scmp.lt.s32.totalorder %s17, 1
      %s219 = scalar_select %p218, %s17, 1
      %s220 = smul.addr %s219, 2
      %s221 = scalar_lea.vmem %s5, %s220
      %p222 = scmp.lt.s32.totalorder %s17, 1
      %s223 = scalar_select %p222, %s17, 1
      %s224 = smul.addr %s223, 32
      %s225 = smul.addr %s224, 8
      %s226 = scalar_lea.vmem %s0, %s225
      %p227 = scmp.lt.s32.totalorder %s17, 1
      %s228 = scalar_select %p227, %s17, 1
      %s229 = smul.addr %s228, 32
      %s230 = smul.addr %s229, 8
      %s231 = scalar_lea.vmem %s4, %s230
      %p232 = scmp.lt.s32.totalorder %s17, 1
      %s233 = scalar_select %p232, %s17, 1
      %s234 = smul.addr %s233, 2
      %s235 = scalar_lea.vmem %s5, %s234
      %v236 = vld [vmem:[%s226] sm:$0xff]
      %v237 = vld [vmem:[%s226 + $0x8] sm:$0xff]
      %v238 = vld [vmem:[%s226 + $0x10] sm:$0xff]
      %v239 = vld [vmem:[%s226 + $0x18] sm:$0xff]
      %v240 = vld [vmem:[%s226 + $0x20] sm:$0xff]
      %v241 = vld [vmem:[%s226 + $0x28] sm:$0xff]
      %v242 = vld [vmem:[%s226 + $0x30] sm:$0xff]
      %v243 = vld [vmem:[%s226 + $0x38] sm:$0xff]
      %v244 = vld [vmem:[%s226 + $0x40] sm:$0xff]
      %v245 = vld [vmem:[%s226 + $0x48] sm:$0xff]
      %v246 = vld [vmem:[%s226 + $0x50] sm:$0xff]
      %v247 = vld [vmem:[%s226 + $0x58] sm:$0xff]
      %v248 = vld [vmem:[%s226 + $0x60] sm:$0xff]
      %v249 = vld [vmem:[%s226 + $0x68] sm:$0xff]
      %v250 = vld [vmem:[%s226 + $0x70] sm:$0xff]
      %v251 = vld [vmem:[%s226 + $0x78] sm:$0xff]
      %v252 = vld [vmem:[%s226 + $0x80] sm:$0xff]
      %v253 = vld [vmem:[%s226 + $0x88] sm:$0xff]
      %v254 = vld [vmem:[%s226 + $0x90] sm:$0xff]
      %v255 = vld [vmem:[%s226 + $0x98] sm:$0xff]
      %v256 = vld [vmem:[%s226 + $0xa0] sm:$0xff]
      %v257 = vld [vmem:[%s226 + $0xa8] sm:$0xff]
      %v258 = vld [vmem:[%s226 + $0xb0] sm:$0xff]
      %v259 = vld [vmem:[%s226 + $0xb8] sm:$0xff]
      %v260 = vld [vmem:[%s226 + $0xc0] sm:$0xff]
      %v261 = vld [vmem:[%s226 + $0xc8] sm:$0xff]
      %v262 = vld [vmem:[%s226 + $0xd0] sm:$0xff]
      %v263 = vld [vmem:[%s226 + $0xd8] sm:$0xff]
      %v264 = vld [vmem:[%s226 + $0xe0] sm:$0xff]
      %v265 = vld [vmem:[%s226 + $0xe8] sm:$0xff]
      %v266 = vld [vmem:[%s226 + $0xf0] sm:$0xff]
      %v267 = vld [vmem:[%s226 + $0xf8] sm:$0xff]
      %v268 = vld [vmem:[%s2] sm:$0x1]
      %v270 = vlaneseq
      %v271 = vshrl.u32 %v270, 7
      %v272 = vsub.s32 0, %v271
      %v273 = vrot.slane %v268, %v272
      %v275 = vmul.f32 %v236, %v273
      %v276 = vmul.f32 %v237, %v273
      %v277 = vmul.f32 %v238, %v273
      %v278 = vmul.f32 %v239, %v273
      %v279 = vmul.f32 %v240, %v273
      %v280 = vmul.f32 %v241, %v273
      %v281 = vmul.f32 %v242, %v273
      %v282 = vmul.f32 %v243, %v273
      %v283 = vmul.f32 %v244, %v273
      %v284 = vmul.f32 %v245, %v273
      %v285 = vmul.f32 %v246, %v273
      %v286 = vmul.f32 %v247, %v273
      %v287 = vmul.f32 %v248, %v273
      %v288 = vmul.f32 %v249, %v273
      %v289 = vmul.f32 %v250, %v273
      %v290 = vmul.f32 %v251, %v273
      %v291 = vmul.f32 %v252, %v273
      %v292 = vmul.f32 %v253, %v273
      %v293 = vmul.f32 %v254, %v273
      %v294 = vmul.f32 %v255, %v273
      %v295 = vmul.f32 %v256, %v273
      %v296 = vmul.f32 %v257, %v273
      %v297 = vmul.f32 %v258, %v273
      %v298 = vmul.f32 %v259, %v273
      %v299 = vmul.f32 %v260, %v273
      %v300 = vmul.f32 %v261, %v273
      %v301 = vmul.f32 %v262, %v273
      %v302 = vmul.f32 %v263, %v273
      %v303 = vmul.f32 %v264, %v273
      %v304 = vmul.f32 %v265, %v273
      %v305 = vmul.f32 %v266, %v273
      %v306 = vmul.f32 %v267, %v273
      %v307 = vld [vmem:[%s3] sm:$0x1]
      %v309 = vlaneseq
      %v310 = vshrl.u32 %v309, 7
      %v311 = vsub.s32 0, %v310
      %v312 = vrot.slane %v307, %v311
      %v314 = vadd.f32 %v275, %v312
      %v315 = vadd.f32 %v276, %v312
      %v316 = vadd.f32 %v277, %v312
      %v317 = vadd.f32 %v278, %v312
      %v318 = vadd.f32 %v279, %v312
      %v319 = vadd.f32 %v280, %v312
      %v320 = vadd.f32 %v281, %v312
      %v321 = vadd.f32 %v282, %v312
      %v322 = vadd.f32 %v283, %v312
      %v323 = vadd.f32 %v284, %v312
      %v324 = vadd.f32 %v285, %v312
      %v325 = vadd.f32 %v286, %v312
      %v326 = vadd.f32 %v287, %v312
      %v327 = vadd.f32 %v288, %v312
      %v328 = vadd.f32 %v289, %v312
      %v329 = vadd.f32 %v290, %v312
      %v330 = vadd.f32 %v291, %v312
      %v331 = vadd.f32 %v292, %v312
      %v332 = vadd.f32 %v293, %v312
      %v333 = vadd.f32 %v294, %v312
      %v334 = vadd.f32 %v295, %v312
      %v335 = vadd.f32 %v296, %v312
      %v336 = vadd.f32 %v297, %v312
      %v337 = vadd.f32 %v298, %v312
      %v338 = vadd.f32 %v299, %v312
      %v339 = vadd.f32 %v300, %v312
      %v340 = vadd.f32 %v301, %v312
      %v341 = vadd.f32 %v302, %v312
      %v342 = vadd.f32 %v303, %v312
      %v343 = vadd.f32 %v304, %v312
      %v344 = vadd.f32 %v305, %v312
      %v345 = vadd.f32 %v306, %v312
      %v346 = vmax.f32 %v314, 0.0
      %v347 = vmax.f32 %v315, 0.0
      %v348 = vmax.f32 %v316, 0.0
      %v349 = vmax.f32 %v317, 0.0
      %v350 = vmax.f32 %v318, 0.0
      %v351 = vmax.f32 %v319, 0.0
      %v352 = vmax.f32 %v320, 0.0
      %v353 = vmax.f32 %v321, 0.0
      %v354 = vmax.f32 %v322, 0.0
      %v355 = vmax.f32 %v323, 0.0
      %v356 = vmax.f32 %v324, 0.0
      %v357 = vmax.f32 %v325, 0.0
      %v358 = vmax.f32 %v326, 0.0
      %v359 = vmax.f32 %v327, 0.0
      %v360 = vmax.f32 %v328, 0.0
      %v361 = vmax.f32 %v329, 0.0
      %v362 = vmax.f32 %v330, 0.0
      %v363 = vmax.f32 %v331, 0.0
      %v364 = vmax.f32 %v332, 0.0
      %v365 = vmax.f32 %v333, 0.0
      %v366 = vmax.f32 %v334, 0.0
      %v367 = vmax.f32 %v335, 0.0
      %v368 = vmax.f32 %v336, 0.0
      %v369 = vmax.f32 %v337, 0.0
      %v370 = vmax.f32 %v338, 0.0
      %v371 = vmax.f32 %v339, 0.0
      %v372 = vmax.f32 %v340, 0.0
      %v373 = vmax.f32 %v341, 0.0
      %v374 = vmax.f32 %v342, 0.0
      %v375 = vmax.f32 %v343, 0.0
      %v376 = vmax.f32 %v344, 0.0
      %v377 = vmax.f32 %v345, 0.0
      %378 = vst [vmem:[#allocation2] sm:$0xff] 0.0
      %379 = vst [vmem:[#allocation2 + $0x8] sm:$0xff] 0.0
      %380 = vst [vmem:[#allocation2 + $0x10] sm:$0x3] 0.0
      %381 = vst [vmem:[#allocation2 + $0x18] sm:$0xff] 0.0
      %382 = vst [vmem:[#allocation2 + $0x20] sm:$0xff] 0.0
      %383 = vst [vmem:[#allocation2 + $0x28] sm:$0x3] 0.0
      %384 = vst [vmem:[#allocation2 + $0x30] sm:$0xff] 0.0
      %385 = vst [vmem:[#allocation2 + $0x38] sm:$0xff] 0.0
      %386 = vst [vmem:[#allocation2 + $0x40] sm:$0x3] 0.0
      %387 = vst [vmem:[#allocation2 + $0x48] sm:$0xff] 0.0
      %388 = vst [vmem:[#allocation2 + $0x50] sm:$0xff] 0.0
      %389 = vst [vmem:[#allocation2 + $0x58] sm:$0x3] 0.0
      %390 = vst [vmem:[#allocation2 + $0x60] sm:$0xff] 0.0
      %391 = vst [vmem:[#allocation2 + $0x68] sm:$0xff] 0.0
      %392 = vst [vmem:[#allocation2 + $0x70] sm:$0x3] 0.0
      %393 = vst [vmem:[#allocation2 + $0x78] sm:$0xff] 0.0
      %394 = vst [vmem:[#allocation2 + $0x80] sm:$0xff] 0.0
      %395 = vst [vmem:[#allocation2 + $0x88] sm:$0x3] 0.0
      %396 = vst [vmem:[#allocation2 + $0x90] sm:$0xff] 0.0
      %397 = vst [vmem:[#allocation2 + $0x98] sm:$0xff] 0.0
      %398 = vst [vmem:[#allocation2 + $0xa0] sm:$0x3] 0.0
      %399 = vst [vmem:[#allocation2 + $0xa8] sm:$0xff] 0.0
      %400 = vst [vmem:[#allocation2 + $0xb0] sm:$0xff] 0.0
      %401 = vst [vmem:[#allocation2 + $0xb8] sm:$0x3] 0.0
      %402 = vst [vmem:[#allocation2 + $0xc0] sm:$0xff] 0.0
      %403 = vst [vmem:[#allocation2 + $0xc8] sm:$0xff] 0.0
      %404 = vst [vmem:[#allocation2 + $0xd0] sm:$0x3] 0.0
      %405 = vst [vmem:[#allocation2 + $0xd8] sm:$0xff] 0.0
      %406 = vst [vmem:[#allocation2 + $0xe0] sm:$0xff] 0.0
      %407 = vst [vmem:[#allocation2 + $0xe8] sm:$0x3] 0.0
      %408 = vst [vmem:[#allocation2 + $0xf0] sm:$0xff] 0.0
      %409 = vst [vmem:[#allocation2 + $0xf8] sm:$0xff] 0.0
      %410 = vst [vmem:[#allocation2 + $0x100] sm:$0x3] 0.0
      %411 = vst [vmem:[#allocation2 + $0x108] sm:$0xff] 0.0
      %412 = vst [vmem:[#allocation2 + $0x110] sm:$0xff] 0.0
      %413 = vst [vmem:[#allocation2 + $0x118] sm:$0x3] 0.0
      %414 = vst [vmem:[#allocation2 + $0x120] sm:$0xff] 0.0
      %415 = vst [vmem:[#allocation2 + $0x128] sm:$0xff] 0.0
      %416 = vst [vmem:[#allocation2 + $0x130] sm:$0x3] 0.0
      %417 = vst [vmem:[#allocation2 + $0x138] sm:$0xff] 0.0
      %418 = vst [vmem:[#allocation2 + $0x140] sm:$0xff] 0.0
      %419 = vst [vmem:[#allocation2 + $0x148] sm:$0x3] 0.0
      %420 = vst [vmem:[#allocation2 + $0x150] sm:$0xff] 0.0
      %421 = vst [vmem:[#allocation2 + $0x158] sm:$0xff] 0.0
      %422 = vst [vmem:[#allocation2 + $0x160] sm:$0x3] 0.0
      %423 = vst [vmem:[#allocation2 + $0x168] sm:$0xff] 0.0
      %424 = vst [vmem:[#allocation2 + $0x170] sm:$0xff] 0.0
      %425 = vst [vmem:[#allocation2 + $0x178] sm:$0x3] 0.0
      %426 = vst [vmem:[#allocation2 + $0x180] sm:$0xff] 0.0
      %427 = vst [vmem:[#allocation2 + $0x188] sm:$0xff] 0.0
      %428 = vst [vmem:[#allocation2 + $0x190] sm:$0x3] 0.0
      %429 = vst [vmem:[#allocation2 + $0x198] sm:$0xff] 0.0
      %430 = vst [vmem:[#allocation2 + $0x1a0] sm:$0xff] 0.0
      %431 = vst [vmem:[#allocation2 + $0x1a8] sm:$0x3] 0.0
      %s432 = scalar_lea.vmem [#allocation2], 24
      %433 = vst [vmem:[%s432 + $0x1] sm:$0xff] %v346
      %434 = vst [vmem:[%s432 + $0x9] sm:$0xff] %v347
      %435 = vst [vmem:[%s432 + $0x19] sm:$0xff] %v348
      %436 = vst [vmem:[%s432 + $0x21] sm:$0xff] %v349
      %437 = vst [vmem:[%s432 + $0x31] sm:$0xff] %v350
      %438 = vst [vmem:[%s432 + $0x39] sm:$0xff] %v351
      %439 = vst [vmem:[%s432 + $0x49] sm:$0xff] %v352
      %440 = vst [vmem:[%s432 + $0x51] sm:$0xff] %v353
      %441 = vst [vmem:[%s432 + $0x61] sm:$0xff] %v354
      %442 = vst [vmem:[%s432 + $0x69] sm:$0xff] %v355
      %443 = vst [vmem:[%s432 + $0x79] sm:$0xff] %v356
      %444 = vst [vmem:[%s432 + $0x81] sm:$0xff] %v357
      %445 = vst [vmem:[%s432 + $0x91] sm:$0xff] %v358
      %446 = vst [vmem:[%s432 + $0x99] sm:$0xff] %v359
      %447 = vst [vmem:[%s432 + $0xa9] sm:$0xff] %v360
      %448 = vst [vmem:[%s432 + $0xb1] sm:$0xff] %v361
      %449 = vst [vmem:[%s432 + $0xc1] sm:$0xff] %v362
      %450 = vst [vmem:[%s432 + $0xc9] sm:$0xff] %v363
      %451 = vst [vmem:[%s432 + $0xd9] sm:$0xff] %v364
      %452 = vst [vmem:[%s432 + $0xe1] sm:$0xff] %v365
      %453 = vst [vmem:[%s432 + $0xf1] sm:$0xff] %v366
      %454 = vst [vmem:[%s432 + $0xf9] sm:$0xff] %v367
      %455 = vst [vmem:[%s432 + $0x109] sm:$0xff] %v368
      %456 = vst [vmem:[%s432 + $0x111] sm:$0xff] %v369
      %457 = vst [vmem:[%s432 + $0x121] sm:$0xff] %v370
      %458 = vst [vmem:[%s432 + $0x129] sm:$0xff] %v371
      %459 = vst [vmem:[%s432 + $0x139] sm:$0xff] %v372
      %460 = vst [vmem:[%s432 + $0x141] sm:$0xff] %v373
      %461 = vst [vmem:[%s432 + $0x151] sm:$0xff] %v374
      %462 = vst [vmem:[%s432 + $0x159] sm:$0xff] %v375
      %463 = vst [vmem:[%s432 + $0x169] sm:$0xff] %v376
      %464 = vst [vmem:[%s432 + $0x171] sm:$0xff] %v377
      %v465 = vld [vmem:[#allocation2] sm:$0xff]
      %v466 = vld [vmem:[#allocation2 + $0x8] sm:$0xff]
      %v467 = vld [vmem:[#allocation2 + $0x18] sm:$0xff]
      %v468 = vld [vmem:[#allocation2 + $0x20] sm:$0xff]
      %v469 = vld [vmem:[#allocation2 + $0x30] sm:$0xff]
      %v470 = vld [vmem:[#allocation2 + $0x38] sm:$0xff]
      %v471 = vld [vmem:[#allocation2 + $0x48] sm:$0xff]
      %v472 = vld [vmem:[#allocation2 + $0x50] sm:$0xff]
      %v473 = vld [vmem:[#allocation2 + $0x60] sm:$0xff]
      %v474 = vld [vmem:[#allocation2 + $0x68] sm:$0xff]
      %v475 = vld [vmem:[#allocation2 + $0x78] sm:$0xff]
      %v476 = vld [vmem:[#allocation2 + $0x80] sm:$0xff]
      %v477 = vld [vmem:[#allocation2 + $0x90] sm:$0xff]
      %v478 = vld [vmem:[#allocation2 + $0x98] sm:$0xff]
      %v479 = vld [vmem:[#allocation2 + $0xa8] sm:$0xff]
      %v480 = vld [vmem:[#allocation2 + $0xb0] sm:$0xff]
      %v481 = vld [vmem:[#allocation2 + $0xc0] sm:$0xff]
      %v482 = vld [vmem:[#allocation2 + $0xc8] sm:$0xff]
      %v483 = vld [vmem:[#allocation2 + $0xd8] sm:$0xff]
      %v484 = vld [vmem:[#allocation2 + $0xe0] sm:$0xff]
      %v485 = vld [vmem:[#allocation2 + $0xf0] sm:$0xff]
      %v486 = vld [vmem:[#allocation2 + $0xf8] sm:$0xff]
      %v487 = vld [vmem:[#allocation2 + $0x108] sm:$0xff]
      %v488 = vld [vmem:[#allocation2 + $0x110] sm:$0xff]
      %v489 = vld [vmem:[#allocation2 + $0x120] sm:$0xff]
      %v490 = vld [vmem:[#allocation2 + $0x128] sm:$0xff]
      %v491 = vld [vmem:[#allocation2 + $0x138] sm:$0xff]
      %v492 = vld [vmem:[#allocation2 + $0x140] sm:$0xff]
      %v493 = vld [vmem:[#allocation2 + $0x150] sm:$0xff]
      %v494 = vld [vmem:[#allocation2 + $0x158] sm:$0xff]
      %v495 = vld [vmem:[#allocation2 + $0x168] sm:$0xff]
      %v496 = vld [vmem:[#allocation2 + $0x170] sm:$0xff]
      %v497 = vld [vmem:[%s1] sm:$0xff]
      %v498 = vld [vmem:[%s1 + $0x8] sm:$0xff]
      %v499 = vld [vmem:[%s1 + $0x10] sm:$0xff]
      %v500 = vld [vmem:[%s1 + $0x18] sm:$0xff]
      %v501 = vld [vmem:[%s1 + $0x20] sm:$0xff]
      %v502 = vld [vmem:[%s1 + $0x28] sm:$0xff]
      %v503 = vld [vmem:[%s1 + $0x30] sm:$0xff]
      %v504 = vld [vmem:[%s1 + $0x38] sm:$0xff]
      %v505 = vld [vmem:[%s1 + $0x40] sm:$0xff]
      %v506 = vld [vmem:[%s1 + $0x48] sm:$0xff]
      %v507 = vld [vmem:[%s1 + $0x50] sm:$0xff]
      %v508 = vld [vmem:[%s1 + $0x58] sm:$0xff]
      %v509 = vld [vmem:[%s1 + $0x60] sm:$0xff]
      %v510 = vld [vmem:[%s1 + $0x68] sm:$0xff]
      %v511 = vld [vmem:[%s1 + $0x70] sm:$0xff]
      %v512 = vld [vmem:[%s1 + $0x78] sm:$0xff]
      %513 = vmatprep.subr.mxu0 0.0
      %514 = vmatpush1.msra.mxu0 %v512
      %515 = vmatprep.subr.mxu0 0.0
      %516 = vmatpush1.msra.mxu0 %v511
      %517 = vmatprep.subr.mxu0 0.0
      %518 = vmatpush1.msra.mxu0 %v510
      %519 = vmatprep.subr.mxu0 0.0
      %520 = vmatpush1.msra.mxu0 %v509
      %521 = vmatprep.subr.mxu0 0.0
      %522 = vmatpush1.msra.mxu0 %v508
      %523 = vmatprep.subr.mxu0 0.0
      %524 = vmatpush1.msra.mxu0 %v507
      %525 = vmatprep.subr.mxu0 0.0
      %526 = vmatpush1.msra.mxu0 %v506
      %527 = vmatprep.subr.mxu0 0.0
      %528 = vmatpush1.msra.mxu0 %v505
      %529 = vmatprep.subr.mxu0 0.0
      %530 = vmatpush1.msra.mxu0 %v504
      %531 = vmatprep.subr.mxu0 0.0
      %532 = vmatpush1.msra.mxu0 %v503
      %533 = vmatprep.subr.mxu0 0.0
      %534 = vmatpush1.msra.mxu0 %v502
      %535 = vmatprep.subr.mxu0 0.0
      %536 = vmatpush1.msra.mxu0 %v501
      %537 = vmatprep.subr.mxu0 0.0
      %538 = vmatpush1.msra.mxu0 %v500
      %539 = vmatprep.subr.mxu0 0.0
      %540 = vmatpush1.msra.mxu0 %v499
      %541 = vmatprep.subr.mxu0 0.0
      %542 = vmatpush1.msra.mxu0 %v498
      %543 = vmatprep.subr.mxu0 0.0
      %544 = vmatpush1.msra.mxu0 %v497
      %545 = vmatprep.subr.mxu0 0.0
      %546 = vmatpush2.msra.mxu0 0.0
      %547 = vmatprep.subr.mxu0 0.0
      %548 = vmatpush2.msra.mxu0 0.0
      %549 = vmatprep.subr.mxu0 0.0
      %550 = vmatpush2.msra.mxu0 0.0
      %551 = vmatprep.subr.mxu0 0.0
      %552 = vmatpush2.msra.mxu0 0.0
      %553 = vmatprep.subr.mxu0 0.0
      %554 = vmatpush2.msra.mxu0 0.0
      %555 = vmatprep.subr.mxu0 0.0
      %556 = vmatpush2.msra.mxu0 0.0
      %557 = vmatprep.subr.mxu0 0.0
      %558 = vmatpush2.msra.mxu0 0.0
      %559 = vmatprep.subr.mxu0 0.0
      %560 = vmatpush2.msra.mxu0 0.0
      %561 = vmatprep.subr.mxu0 0.0
      %562 = vmatpush2.msra.mxu0 0.0
      %563 = vmatprep.subr.mxu0 0.0
      %564 = vmatpush2.msra.mxu0 0.0
      %565 = vmatprep.subr.mxu0 0.0
      %566 = vmatpush2.msra.mxu0 0.0
      %567 = vmatprep.subr.mxu0 0.0
      %568 = vmatpush2.msra.mxu0 0.0
      %569 = vmatprep.subr.mxu0 0.0
      %570 = vmatpush2.msra.mxu0 0.0
      %571 = vmatprep.subr.mxu0 0.0
      %572 = vmatpush2.msra.mxu0 0.0
      %573 = vmatprep.subr.mxu0 0.0
      %574 = vmatpush2.msra.mxu0 0.0
      %575 = vmatprep.subr.mxu0 0.0
      %576 = vmatpush2.msra.mxu0 0.0
      %577 = vmatprep.mubr.f32.mxu0 0.0
      %578 = vmatmul.mubr.f32.gmra.mxu0 %v465
      %v579 = vpop.f32.mrf.mxu0
      %v580 = vadd.f32 0.0, %v579
      %v581 = vpop.f32.mrf.mxu0
      %582 = vmatprep.mubr.f32.mxu0 0.0
      %583 = vmatmul.mubr.f32.gmra.mxu0 %v466
      %v584 = vpop.f32.mrf.mxu0
      %v585 = vadd.f32 0.0, %v584
      %v586 = vpop.f32.mrf.mxu0
      %587 = vmatprep.mubr.f32.mxu0 0.0
      %588 = vmatmul.mubr.f32.gmra.mxu0 %v467
      %v589 = vpop.f32.mrf.mxu0
      %v590 = vadd.f32 0.0, %v589
      %v591 = vpop.f32.mrf.mxu0
      %592 = vmatprep.mubr.f32.mxu0 0.0
      %593 = vmatmul.mubr.f32.gmra.mxu0 %v468
      %v594 = vpop.f32.mrf.mxu0
      %v595 = vadd.f32 0.0, %v594
      %v596 = vpop.f32.mrf.mxu0
      %597 = vmatprep.mubr.f32.mxu0 0.0
      %598 = vmatmul.mubr.f32.gmra.mxu0 %v469
      %v599 = vpop.f32.mrf.mxu0
      %v600 = vadd.f32 0.0, %v599
      %v601 = vpop.f32.mrf.mxu0
      %602 = vmatprep.mubr.f32.mxu0 0.0
      %603 = vmatmul.mubr.f32.gmra.mxu0 %v470
      %v604 = vpop.f32.mrf.mxu0
      %v605 = vadd.f32 0.0, %v604
      %v606 = vpop.f32.mrf.mxu0
      %607 = vmatprep.mubr.f32.mxu0 0.0
      %608 = vmatmul.mubr.f32.gmra.mxu0 %v471
      %v609 = vpop.f32.mrf.mxu0
      %v610 = vadd.f32 0.0, %v609
      %v611 = vpop.f32.mrf.mxu0
      %612 = vmatprep.mubr.f32.mxu0 0.0
      %613 = vmatmul.mubr.f32.gmra.mxu0 %v472
      %v614 = vpop.f32.mrf.mxu0
      %v615 = vadd.f32 0.0, %v614
      %v616 = vpop.f32.mrf.mxu0
      %617 = vmatprep.mubr.f32.mxu0 0.0
      %618 = vmatmul.mubr.f32.gmra.mxu0 %v473
      %v619 = vpop.f32.mrf.mxu0
      %v620 = vadd.f32 0.0, %v619
      %v621 = vpop.f32.mrf.mxu0
      %622 = vmatprep.mubr.f32.mxu0 0.0
      %623 = vmatmul.mubr.f32.gmra.mxu0 %v474
      %v624 = vpop.f32.mrf.mxu0
      %v625 = vadd.f32 0.0, %v624
      %v626 = vpop.f32.mrf.mxu0
      %627 = vmatprep.mubr.f32.mxu0 0.0
      %628 = vmatmul.mubr.f32.gmra.mxu0 %v475
      %v629 = vpop.f32.mrf.mxu0
      %v630 = vadd.f32 0.0, %v629
      %v631 = vpop.f32.mrf.mxu0
      %632 = vmatprep.mubr.f32.mxu0 0.0
      %633 = vmatmul.mubr.f32.gmra.mxu0 %v476
      %v634 = vpop.f32.mrf.mxu0
      %v635 = vadd.f32 0.0, %v634
      %v636 = vpop.f32.mrf.mxu0
      %637 = vmatprep.mubr.f32.mxu0 0.0
      %638 = vmatmul.mubr.f32.gmra.mxu0 %v477
      %v639 = vpop.f32.mrf.mxu0
      %v640 = vadd.f32 0.0, %v639
      %v641 = vpop.f32.mrf.mxu0
      %642 = vmatprep.mubr.f32.mxu0 0.0
      %643 = vmatmul.mubr.f32.gmra.mxu0 %v478
      %v644 = vpop.f32.mrf.mxu0
      %v645 = vadd.f32 0.0, %v644
      %v646 = vpop.f32.mrf.mxu0
      %647 = vmatprep.mubr.f32.mxu0 0.0
      %648 = vmatmul.mubr.f32.gmra.mxu0 %v479
      %v649 = vpop.f32.mrf.mxu0
      %v650 = vadd.f32 0.0, %v649
      %v651 = vpop.f32.mrf.mxu0
      %652 = vmatprep.mubr.f32.mxu0 0.0
      %653 = vmatmul.mubr.f32.gmra.mxu0 %v480
      %v654 = vpop.f32.mrf.mxu0
      %v655 = vadd.f32 0.0, %v654
      %v656 = vpop.f32.mrf.mxu0
      %657 = vmatprep.mubr.f32.mxu0 0.0
      %658 = vmatmul.mubr.f32.gmra.mxu0 %v481
      %v659 = vpop.f32.mrf.mxu0
      %v660 = vadd.f32 0.0, %v659
      %v661 = vpop.f32.mrf.mxu0
      %662 = vmatprep.mubr.f32.mxu0 0.0
      %663 = vmatmul.mubr.f32.gmra.mxu0 %v482
      %v664 = vpop.f32.mrf.mxu0
      %v665 = vadd.f32 0.0, %v664
      %v666 = vpop.f32.mrf.mxu0
      %667 = vmatprep.mubr.f32.mxu0 0.0
      %668 = vmatmul.mubr.f32.gmra.mxu0 %v483
      %v669 = vpop.f32.mrf.mxu0
      %v670 = vadd.f32 0.0, %v669
      %v671 = vpop.f32.mrf.mxu0
      %672 = vmatprep.mubr.f32.mxu0 0.0
      %673 = vmatmul.mubr.f32.gmra.mxu0 %v484
      %v674 = vpop.f32.mrf.mxu0
      %v675 = vadd.f32 0.0, %v674
      %v676 = vpop.f32.mrf.mxu0
      %677 = vmatprep.mubr.f32.mxu0 0.0
      %678 = vmatmul.mubr.f32.gmra.mxu0 %v485
      %v679 = vpop.f32.mrf.mxu0
      %v680 = vadd.f32 0.0, %v679
      %v681 = vpop.f32.mrf.mxu0
      %682 = vmatprep.mubr.f32.mxu0 0.0
      %683 = vmatmul.mubr.f32.gmra.mxu0 %v486
      %v684 = vpop.f32.mrf.mxu0
      %v685 = vadd.f32 0.0, %v684
      %v686 = vpop.f32.mrf.mxu0
      %687 = vmatprep.mubr.f32.mxu0 0.0
      %688 = vmatmul.mubr.f32.gmra.mxu0 %v487
      %v689 = vpop.f32.mrf.mxu0
      %v690 = vadd.f32 0.0, %v689
      %v691 = vpop.f32.mrf.mxu0
      %692 = vmatprep.mubr.f32.mxu0 0.0
      %693 = vmatmul.mubr.f32.gmra.mxu0 %v488
      %v694 = vpop.f32.mrf.mxu0
      %v695 = vadd.f32 0.0, %v694
      %v696 = vpop.f32.mrf.mxu0
      %697 = vmatprep.mubr.f32.mxu0 0.0
      %698 = vmatmul.mubr.f32.gmra.mxu0 %v489
      %v699 = vpop.f32.mrf.mxu0
      %v700 = vadd.f32 0.0, %v699
      %v701 = vpop.f32.mrf.mxu0
      %702 = vmatprep.mubr.f32.mxu0 0.0
      %703 = vmatmul.mubr.f32.gmra.mxu0 %v490
      %v704 = vpop.f32.mrf.mxu0
      %v705 = vadd.f32 0.0, %v704
      %v706 = vpop.f32.mrf.mxu0
      %707 = vmatprep.mubr.f32.mxu0 0.0
      %708 = vmatmul.mubr.f32.gmra.mxu0 %v491
      %v709 = vpop.f32.mrf.mxu0
      %v710 = vadd.f32 0.0, %v709
      %v711 = vpop.f32.mrf.mxu0
      %712 = vmatprep.mubr.f32.mxu0 0.0
      %713 = vmatmul.mubr.f32.gmra.mxu0 %v492
      %v714 = vpop.f32.mrf.mxu0
      %v715 = vadd.f32 0.0, %v714
      %v716 = vpop.f32.mrf.mxu0
      %717 = vmatprep.mubr.f32.mxu0 0.0
      %718 = vmatmul.mubr.f32.gmra.mxu0 %v493
      %v719 = vpop.f32.mrf.mxu0
      %v720 = vadd.f32 0.0, %v719
      %v721 = vpop.f32.mrf.mxu0
      %722 = vmatprep.mubr.f32.mxu0 0.0
      %723 = vmatmul.mubr.f32.gmra.mxu0 %v494
      %v724 = vpop.f32.mrf.mxu0
      %v725 = vadd.f32 0.0, %v724
      %v726 = vpop.f32.mrf.mxu0
      %727 = vmatprep.mubr.f32.mxu0 0.0
      %728 = vmatmul.mubr.f32.gmra.mxu0 %v495
      %v729 = vpop.f32.mrf.mxu0
      %v730 = vadd.f32 0.0, %v729
      %v731 = vpop.f32.mrf.mxu0
      %732 = vmatprep.mubr.f32.mxu0 0.0
      %733 = vmatmul.mubr.f32.gmra.mxu0 %v496
      %v734 = vpop.f32.mrf.mxu0
      %v735 = vadd.f32 0.0, %v734
      %v736 = vpop.f32.mrf.mxu0
      %737 = vdwg.mxu0
      %738 = vst [vmem:[#allocation3] sm:$0xff] %v580
      %739 = vst [vmem:[#allocation3 + $0x8] sm:$0xff] %v585
      %740 = vst [vmem:[#allocation3 + $0x10] sm:$0xff] %v590
      %741 = vst [vmem:[#allocation3 + $0x18] sm:$0xff] %v595
      %742 = vst [vmem:[#allocation3 + $0x20] sm:$0xff] %v600
      %743 = vst [vmem:[#allocation3 + $0x28] sm:$0xff] %v605
      %744 = vst [vmem:[#allocation3 + $0x30] sm:$0xff] %v610
      %745 = vst [vmem:[#allocation3 + $0x38] sm:$0xff] %v615
      %746 = vst [vmem:[#allocation3 + $0x40] sm:$0xff] %v620
      %747 = vst [vmem:[#allocation3 + $0x48] sm:$0xff] %v625
      %748 = vst [vmem:[#allocation3 + $0x50] sm:$0xff] %v630
      %749 = vst [vmem:[#allocation3 + $0x58] sm:$0xff] %v635
      %750 = vst [vmem:[#allocation3 + $0x60] sm:$0xff] %v640
      %751 = vst [vmem:[#allocation3 + $0x68] sm:$0xff] %v645
      %752 = vst [vmem:[#allocation3 + $0x70] sm:$0xff] %v650
      %753 = vst [vmem:[#allocation3 + $0x78] sm:$0xff] %v655
      %754 = vst [vmem:[#allocation3 + $0x80] sm:$0xff] %v660
      %755 = vst [vmem:[#allocation3 + $0x88] sm:$0xff] %v665
      %756 = vst [vmem:[#allocation3 + $0x90] sm:$0xff] %v670
      %757 = vst [vmem:[#allocation3 + $0x98] sm:$0xff] %v675
      %758 = vst [vmem:[#allocation3 + $0xa0] sm:$0xff] %v680
      %759 = vst [vmem:[#allocation3 + $0xa8] sm:$0xff] %v685
      %760 = vst [vmem:[#allocation3 + $0xb0] sm:$0xff] %v690
      %761 = vst [vmem:[#allocation3 + $0xb8] sm:$0xff] %v695
      %762 = vst [vmem:[#allocation3 + $0xc0] sm:$0xff] %v700
      %763 = vst [vmem:[#allocation3 + $0xc8] sm:$0xff] %v705
      %764 = vst [vmem:[#allocation3 + $0xd0] sm:$0xff] %v710
      %765 = vst [vmem:[#allocation3 + $0xd8] sm:$0xff] %v715
      %766 = vst [vmem:[#allocation3 + $0xe0] sm:$0xff] %v720
      %767 = vst [vmem:[#allocation3 + $0xe8] sm:$0xff] %v725
      %768 = vst [vmem:[#allocation3 + $0xf0] sm:$0xff] %v730
      %769 = vst [vmem:[#allocation3 + $0xf8] sm:$0xff] %v735
      %v770 = vld [vmem:[#allocation2 + $0x1] sm:$0xff]
      %v771 = vld [vmem:[#allocation2 + $0x9] sm:$0xff]
      %v772 = vld [vmem:[#allocation2 + $0x19] sm:$0xff]
      %v773 = vld [vmem:[#allocation2 + $0x21] sm:$0xff]
      %v774 = vld [vmem:[#allocation2 + $0x31] sm:$0xff]
      %v775 = vld [vmem:[#allocation2 + $0x39] sm:$0xff]
      %v776 = vld [vmem:[#allocation2 + $0x49] sm:$0xff]
      %v777 = vld [vmem:[#allocation2 + $0x51] sm:$0xff]
      %v778 = vld [vmem:[#allocation2 + $0x61] sm:$0xff]
      %v779 = vld [vmem:[#allocation2 + $0x69] sm:$0xff]
      %v780 = vld [vmem:[#allocation2 + $0x79] sm:$0xff]
      %v781 = vld [vmem:[#allocation2 + $0x81] sm:$0xff]
      %v782 = vld [vmem:[#allocation2 + $0x91] sm:$0xff]
      %v783 = vld [vmem:[#allocation2 + $0x99] sm:$0xff]
      %v784 = vld [vmem:[#allocation2 + $0xa9] sm:$0xff]
      %v785 = vld [vmem:[#allocation2 + $0xb1] sm:$0xff]
      %v786 = vld [vmem:[#allocation2 + $0xc1] sm:$0xff]
      %v787 = vld [vmem:[#allocation2 + $0xc9] sm:$0xff]
      %v788 = vld [vmem:[#allocation2 + $0xd9] sm:$0xff]
      %v789 = vld [vmem:[#allocation2 + $0xe1] sm:$0xff]
      %v790 = vld [vmem:[#allocation2 + $0xf1] sm:$0xff]
      %v791 = vld [vmem:[#allocation2 + $0xf9] sm:$0xff]
      %v792 = vld [vmem:[#allocation2 + $0x109] sm:$0xff]
      %v793 = vld [vmem:[#allocation2 + $0x111] sm:$0xff]
      %v794 = vld [vmem:[#allocation2 + $0x121] sm:$0xff]
      %v795 = vld [vmem:[#allocation2 + $0x129] sm:$0xff]
      %v796 = vld [vmem:[#allocation2 + $0x139] sm:$0xff]
      %v797 = vld [vmem:[#allocation2 + $0x141] sm:$0xff]
      %v798 = vld [vmem:[#allocation2 + $0x151] sm:$0xff]
      %v799 = vld [vmem:[#allocation2 + $0x159] sm:$0xff]
      %v800 = vld [vmem:[#allocation2 + $0x169] sm:$0xff]
      %v801 = vld [vmem:[#allocation2 + $0x171] sm:$0xff]
      %s802 = scalar_lea.vmem %s1, 128
      %v803 = vld [vmem:[%s802] sm:$0xff]
      %v804 = vld [vmem:[%s802 + $0x8] sm:$0xff]
      %v805 = vld [vmem:[%s802 + $0x10] sm:$0xff]
      %v806 = vld [vmem:[%s802 + $0x18] sm:$0xff]
      %v807 = vld [vmem:[%s802 + $0x20] sm:$0xff]
      %v808 = vld [vmem:[%s802 + $0x28] sm:$0xff]
      %v809 = vld [vmem:[%s802 + $0x30] sm:$0xff]
      %v810 = vld [vmem:[%s802 + $0x38] sm:$0xff]
      %v811 = vld [vmem:[%s802 + $0x40] sm:$0xff]
      %v812 = vld [vmem:[%s802 + $0x48] sm:$0xff]
      %v813 = vld [vmem:[%s802 + $0x50] sm:$0xff]
      %v814 = vld [vmem:[%s802 + $0x58] sm:$0xff]
      %v815 = vld [vmem:[%s802 + $0x60] sm:$0xff]
      %v816 = vld [vmem:[%s802 + $0x68] sm:$0xff]
      %v817 = vld [vmem:[%s802 + $0x70] sm:$0xff]
      %v818 = vld [vmem:[%s802 + $0x78] sm:$0xff]
      %819 = vmatprep.subr.mxu0 0.0
      %820 = vmatpush1.msra.mxu0 %v818
      %821 = vmatprep.subr.mxu0 0.0
      %822 = vmatpush1.msra.mxu0 %v817
      %823 = vmatprep.subr.mxu0 0.0
      %824 = vmatpush1.msra.mxu0 %v816
      %825 = vmatprep.subr.mxu0 0.0
      %826 = vmatpush1.msra.mxu0 %v815
      %827 = vmatprep.subr.mxu0 0.0
      %828 = vmatpush1.msra.mxu0 %v814
      %829 = vmatprep.subr.mxu0 0.0
      %830 = vmatpush1.msra.mxu0 %v813
      %831 = vmatprep.subr.mxu0 0.0
      %832 = vmatpush1.msra.mxu0 %v812
      %833 = vmatprep.subr.mxu0 0.0
      %834 = vmatpush1.msra.mxu0 %v811
      %835 = vmatprep.subr.mxu0 0.0
      %836 = vmatpush1.msra.mxu0 %v810
      %837 = vmatprep.subr.mxu0 0.0
      %838 = vmatpush1.msra.mxu0 %v809
      %839 = vmatprep.subr.mxu0 0.0
      %840 = vmatpush1.msra.mxu0 %v808
      %841 = vmatprep.subr.mxu0 0.0
      %842 = vmatpush1.msra.mxu0 %v807
      %843 = vmatprep.subr.mxu0 0.0
      %844 = vmatpush1.msra.mxu0 %v806
      %845 = vmatprep.subr.mxu0 0.0
      %846 = vmatpush1.msra.mxu0 %v805
      %847 = vmatprep.subr.mxu0 0.0
      %848 = vmatpush1.msra.mxu0 %v804
      %849 = vmatprep.subr.mxu0 0.0
      %850 = vmatpush1.msra.mxu0 %v803
      %851 = vmatprep.subr.mxu0 0.0
      %852 = vmatpush2.msra.mxu0 0.0
      %853 = vmatprep.subr.mxu0 0.0
      %854 = vmatpush2.msra.mxu0 0.0
      %855 = vmatprep.subr.mxu0 0.0
      %856 = vmatpush2.msra.mxu0 0.0
      %857 = vmatprep.subr.mxu0 0.0
      %858 = vmatpush2.msra.mxu0 0.0
      %859 = vmatprep.subr.mxu0 0.0
      %860 = vmatpush2.msra.mxu0 0.0
      %861 = vmatprep.subr.mxu0 0.0
      %862 = vmatpush2.msra.mxu0 0.0
      %863 = vmatprep.subr.mxu0 0.0
      %864 = vmatpush2.msra.mxu0 0.0
      %865 = vmatprep.subr.mxu0 0.0
      %866 = vmatpush2.msra.mxu0 0.0
      %867 = vmatprep.subr.mxu0 0.0
      %868 = vmatpush2.msra.mxu0 0.0
      %869 = vmatprep.subr.mxu0 0.0
      %870 = vmatpush2.msra.mxu0 0.0
      %871 = vmatprep.subr.mxu0 0.0
      %872 = vmatpush2.msra.mxu0 0.0
      %873 = vmatprep.subr.mxu0 0.0
      %874 = vmatpush2.msra.mxu0 0.0
      %875 = vmatprep.subr.mxu0 0.0
      %876 = vmatpush2.msra.mxu0 0.0
      %877 = vmatprep.subr.mxu0 0.0
      %878 = vmatpush2.msra.mxu0 0.0
      %879 = vmatprep.subr.mxu0 0.0
      %880 = vmatpush2.msra.mxu0 0.0
      %881 = vmatprep.subr.mxu0 0.0
      %882 = vmatpush2.msra.mxu0 0.0
      %883 = vmatprep.mubr.f32.mxu0 0.0
      %884 = vmatmul.mubr.f32.gmra.mxu0 %v770
      %v885 = vpop.f32.mrf.mxu0
      %v886 = vadd.f32 0.0, %v885
      %v887 = vpop.f32.mrf.mxu0
      %888 = vmatprep.mubr.f32.mxu0 0.0
      %889 = vmatmul.mubr.f32.gmra.mxu0 %v771
      %v890 = vpop.f32.mrf.mxu0
      %v891 = vadd.f32 0.0, %v890
      %v892 = vpop.f32.mrf.mxu0
      %893 = vmatprep.mubr.f32.mxu0 0.0
      %894 = vmatmul.mubr.f32.gmra.mxu0 %v772
      %v895 = vpop.f32.mrf.mxu0
      %v896 = vadd.f32 0.0, %v895
      %v897 = vpop.f32.mrf.mxu0
      %898 = vmatprep.mubr.f32.mxu0 0.0
      %899 = vmatmul.mubr.f32.gmra.mxu0 %v773
      %v900 = vpop.f32.mrf.mxu0
      %v901 = vadd.f32 0.0, %v900
      %v902 = vpop.f32.mrf.mxu0
      %903 = vmatprep.mubr.f32.mxu0 0.0
      %904 = vmatmul.mubr.f32.gmra.mxu0 %v774
      %v905 = vpop.f32.mrf.mxu0
      %v906 = vadd.f32 0.0, %v905
      %v907 = vpop.f32.mrf.mxu0
      %908 = vmatprep.mubr.f32.mxu0 0.0
      %909 = vmatmul.mubr.f32.gmra.mxu0 %v775
      %v910 = vpop.f32.mrf.mxu0
      %v911 = vadd.f32 0.0, %v910
      %v912 = vpop.f32.mrf.mxu0
      %913 = vmatprep.mubr.f32.mxu0 0.0
      %914 = vmatmul.mubr.f32.gmra.mxu0 %v776
      %v915 = vpop.f32.mrf.mxu0
      %v916 = vadd.f32 0.0, %v915
      %v917 = vpop.f32.mrf.mxu0
      %918 = vmatprep.mubr.f32.mxu0 0.0
      %919 = vmatmul.mubr.f32.gmra.mxu0 %v777
      %v920 = vpop.f32.mrf.mxu0
      %v921 = vadd.f32 0.0, %v920
      %v922 = vpop.f32.mrf.mxu0
      %923 = vmatprep.mubr.f32.mxu0 0.0
      %924 = vmatmul.mubr.f32.gmra.mxu0 %v778
      %v925 = vpop.f32.mrf.mxu0
      %v926 = vadd.f32 0.0, %v925
      %v927 = vpop.f32.mrf.mxu0
      %928 = vmatprep.mubr.f32.mxu0 0.0
      %929 = vmatmul.mubr.f32.gmra.mxu0 %v779
      %v930 = vpop.f32.mrf.mxu0
      %v931 = vadd.f32 0.0, %v930
      %v932 = vpop.f32.mrf.mxu0
      %933 = vmatprep.mubr.f32.mxu0 0.0
      %934 = vmatmul.mubr.f32.gmra.mxu0 %v780
      %v935 = vpop.f32.mrf.mxu0
      %v936 = vadd.f32 0.0, %v935
      %v937 = vpop.f32.mrf.mxu0
      %938 = vmatprep.mubr.f32.mxu0 0.0
      %939 = vmatmul.mubr.f32.gmra.mxu0 %v781
      %v940 = vpop.f32.mrf.mxu0
      %v941 = vadd.f32 0.0, %v940
      %v942 = vpop.f32.mrf.mxu0
      %943 = vmatprep.mubr.f32.mxu0 0.0
      %944 = vmatmul.mubr.f32.gmra.mxu0 %v782
      %v945 = vpop.f32.mrf.mxu0
      %v946 = vadd.f32 0.0, %v945
      %v947 = vpop.f32.mrf.mxu0
      %948 = vmatprep.mubr.f32.mxu0 0.0
      %949 = vmatmul.mubr.f32.gmra.mxu0 %v783
      %v950 = vpop.f32.mrf.mxu0
      %v951 = vadd.f32 0.0, %v950
      %v952 = vpop.f32.mrf.mxu0
      %953 = vmatprep.mubr.f32.mxu0 0.0
      %954 = vmatmul.mubr.f32.gmra.mxu0 %v784
      %v955 = vpop.f32.mrf.mxu0
      %v956 = vadd.f32 0.0, %v955
      %v957 = vpop.f32.mrf.mxu0
      %958 = vmatprep.mubr.f32.mxu0 0.0
      %959 = vmatmul.mubr.f32.gmra.mxu0 %v785
      %v960 = vpop.f32.mrf.mxu0
      %v961 = vadd.f32 0.0, %v960
      %v962 = vpop.f32.mrf.mxu0
      %963 = vmatprep.mubr.f32.mxu0 0.0
      %964 = vmatmul.mubr.f32.gmra.mxu0 %v786
      %v965 = vpop.f32.mrf.mxu0
      %v966 = vadd.f32 0.0, %v965
      %v967 = vpop.f32.mrf.mxu0
      %968 = vmatprep.mubr.f32.mxu0 0.0
      %969 = vmatmul.mubr.f32.gmra.mxu0 %v787
      %v970 = vpop.f32.mrf.mxu0
      %v971 = vadd.f32 0.0, %v970
      %v972 = vpop.f32.mrf.mxu0
      %973 = vmatprep.mubr.f32.mxu0 0.0
      %974 = vmatmul.mubr.f32.gmra.mxu0 %v788
      %v975 = vpop.f32.mrf.mxu0
      %v976 = vadd.f32 0.0, %v975
      %v977 = vpop.f32.mrf.mxu0
      %978 = vmatprep.mubr.f32.mxu0 0.0
      %979 = vmatmul.mubr.f32.gmra.mxu0 %v789
      %v980 = vpop.f32.mrf.mxu0
      %v981 = vadd.f32 0.0, %v980
      %v982 = vpop.f32.mrf.mxu0
      %983 = vmatprep.mubr.f32.mxu0 0.0
      %984 = vmatmul.mubr.f32.gmra.mxu0 %v790
      %v985 = vpop.f32.mrf.mxu0
      %v986 = vadd.f32 0.0, %v985
      %v987 = vpop.f32.mrf.mxu0
      %988 = vmatprep.mubr.f32.mxu0 0.0
      %989 = vmatmul.mubr.f32.gmra.mxu0 %v791
      %v990 = vpop.f32.mrf.mxu0
      %v991 = vadd.f32 0.0, %v990
      %v992 = vpop.f32.mrf.mxu0
      %993 = vmatprep.mubr.f32.mxu0 0.0
      %994 = vmatmul.mubr.f32.gmra.mxu0 %v792
      %v995 = vpop.f32.mrf.mxu0
      %v996 = vadd.f32 0.0, %v995
      %v997 = vpop.f32.mrf.mxu0
      %998 = vmatprep.mubr.f32.mxu0 0.0
      %999 = vmatmul.mubr.f32.gmra.mxu0 %v793
      %v1000 = vpop.f32.mrf.mxu0
      %v1001 = vadd.f32 0.0, %v1000
      %v1002 = vpop.f32.mrf.mxu0
      %1003 = vmatprep.mubr.f32.mxu0 0.0
      %1004 = vmatmul.mubr.f32.gmra.mxu0 %v794
      %v1005 = vpop.f32.mrf.mxu0
      %v1006 = vadd.f32 0.0, %v1005
      %v1007 = vpop.f32.mrf.mxu0
      %1008 = vmatprep.mubr.f32.mxu0 0.0
      %1009 = vmatmul.mubr.f32.gmra.mxu0 %v795
      %v1010 = vpop.f32.mrf.mxu0
      %v1011 = vadd.f32 0.0, %v1010
      %v1012 = vpop.f32.mrf.mxu0
      %1013 = vmatprep.mubr.f32.mxu0 0.0
      %1014 = vmatmul.mubr.f32.gmra.mxu0 %v796
      %v1015 = vpop.f32.mrf.mxu0
      %v1016 = vadd.f32 0.0, %v1015
      %v1017 = vpop.f32.mrf.mxu0
      %1018 = vmatprep.mubr.f32.mxu0 0.0
      %1019 = vmatmul.mubr.f32.gmra.mxu0 %v797
      %v1020 = vpop.f32.mrf.mxu0
      %v1021 = vadd.f32 0.0, %v1020
      %v1022 = vpop.f32.mrf.mxu0
      %1023 = vmatprep.mubr.f32.mxu0 0.0
      %1024 = vmatmul.mubr.f32.gmra.mxu0 %v798
      %v1025 = vpop.f32.mrf.mxu0
      %v1026 = vadd.f32 0.0, %v1025
      %v1027 = vpop.f32.mrf.mxu0
      %1028 = vmatprep.mubr.f32.mxu0 0.0
      %1029 = vmatmul.mubr.f32.gmra.mxu0 %v799
      %v1030 = vpop.f32.mrf.mxu0
      %v1031 = vadd.f32 0.0, %v1030
      %v1032 = vpop.f32.mrf.mxu0
      %1033 = vmatprep.mubr.f32.mxu0 0.0
      %1034 = vmatmul.mubr.f32.gmra.mxu0 %v800
      %v1035 = vpop.f32.mrf.mxu0
      %v1036 = vadd.f32 0.0, %v1035
      %v1037 = vpop.f32.mrf.mxu0
      %1038 = vmatprep.mubr.f32.mxu0 0.0
      %1039 = vmatmul.mubr.f32.gmra.mxu0 %v801
      %v1040 = vpop.f32.mrf.mxu0
      %v1041 = vadd.f32 0.0, %v1040
      %v1042 = vpop.f32.mrf.mxu0
      %1043 = vdwg.mxu0
      %v1044 = vld [vmem:[#allocation3] sm:$0xff]
      %v1045 = vld [vmem:[#allocation3 + $0x8] sm:$0xff]
      %v1046 = vld [vmem:[#allocation3 + $0x10] sm:$0xff]
      %v1047 = vld [vmem:[#allocation3 + $0x18] sm:$0xff]
      %v1048 = vld [vmem:[#allocation3 + $0x20] sm:$0xff]
      %v1049 = vld [vmem:[#allocation3 + $0x28] sm:$0xff]
      %v1050 = vld [vmem:[#allocation3 + $0x30] sm:$0xff]
      %v1051 = vld [vmem:[#allocation3 + $0x38] sm:$0xff]
      %v1052 = vld [vmem:[#allocation3 + $0x40] sm:$0xff]
      %v1053 = vld [vmem:[#allocation3 + $0x48] sm:$0xff]
      %v1054 = vld [vmem:[#allocation3 + $0x50] sm:$0xff]
      %v1055 = vld [vmem:[#allocation3 + $0x58] sm:$0xff]
      %v1056 = vld [vmem:[#allocation3 + $0x60] sm:$0xff]
      %v1057 = vld [vmem:[#allocation3 + $0x68] sm:$0xff]
      %v1058 = vld [vmem:[#allocation3 + $0x70] sm:$0xff]
      %v1059 = vld [vmem:[#allocation3 + $0x78] sm:$0xff]
      %v1060 = vld [vmem:[#allocation3 + $0x80] sm:$0xff]
      %v1061 = vld [vmem:[#allocation3 + $0x88] sm:$0xff]
      %v1062 = vld [vmem:[#allocation3 + $0x90] sm:$0xff]
      %v1063 = vld [vmem:[#allocation3 + $0x98] sm:$0xff]
      %v1064 = vld [vmem:[#allocation3 + $0xa0] sm:$0xff]
      %v1065 = vld [vmem:[#allocation3 + $0xa8] sm:$0xff]
      %v1066 = vld [vmem:[#allocation3 + $0xb0] sm:$0xff]
      %v1067 = vld [vmem:[#allocation3 + $0xb8] sm:$0xff]
      %v1068 = vld [vmem:[#allocation3 + $0xc0] sm:$0xff]
      %v1069 = vld [vmem:[#allocation3 + $0xc8] sm:$0xff]
      %v1070 = vld [vmem:[#allocation3 + $0xd0] sm:$0xff]
      %v1071 = vld [vmem:[#allocation3 + $0xd8] sm:$0xff]
      %v1072 = vld [vmem:[#allocation3 + $0xe0] sm:$0xff]
      %v1073 = vld [vmem:[#allocation3 + $0xe8] sm:$0xff]
      %v1074 = vld [vmem:[#allocation3 + $0xf0] sm:$0xff]
      %v1075 = vld [vmem:[#allocation3 + $0xf8] sm:$0xff]
      %v1076 = vadd.f32 %v1044, %v886
      %v1077 = vadd.f32 %v1045, %v891
      %v1078 = vadd.f32 %v1046, %v896
      %v1079 = vadd.f32 %v1047, %v901
      %v1080 = vadd.f32 %v1048, %v906
      %v1081 = vadd.f32 %v1049, %v911
      %v1082 = vadd.f32 %v1050, %v916
      %v1083 = vadd.f32 %v1051, %v921
      %v1084 = vadd.f32 %v1052, %v926
      %v1085 = vadd.f32 %v1053, %v931
      %v1086 = vadd.f32 %v1054, %v936
      %v1087 = vadd.f32 %v1055, %v941
      %v1088 = vadd.f32 %v1056, %v946
      %v1089 = vadd.f32 %v1057, %v951
      %v1090 = vadd.f32 %v1058, %v956
      %v1091 = vadd.f32 %v1059, %v961
      %v1092 = vadd.f32 %v1060, %v966
      %v1093 = vadd.f32 %v1061, %v971
      %v1094 = vadd.f32 %v1062, %v976
      %v1095 = vadd.f32 %v1063, %v981
      %v1096 = vadd.f32 %v1064, %v986
      %v1097 = vadd.f32 %v1065, %v991
      %v1098 = vadd.f32 %v1066, %v996
      %v1099 = vadd.f32 %v1067, %v1001
      %v1100 = vadd.f32 %v1068, %v1006
      %v1101 = vadd.f32 %v1069, %v1011
      %v1102 = vadd.f32 %v1070, %v1016
      %v1103 = vadd.f32 %v1071, %v1021
      %v1104 = vadd.f32 %v1072, %v1026
      %v1105 = vadd.f32 %v1073, %v1031
      %v1106 = vadd.f32 %v1074, %v1036
      %v1107 = vadd.f32 %v1075, %v1041
      %1108 = vst [vmem:[#allocation3] sm:$0xff] %v1076
      %1109 = vst [vmem:[#allocation3 + $0x8] sm:$0xff] %v1077
      %1110 = vst [vmem:[#allocation3 + $0x10] sm:$0xff] %v1078
      %1111 = vst [vmem:[#allocation3 + $0x18] sm:$0xff] %v1079
      %1112 = vst [vmem:[#allocation3 + $0x20] sm:$0xff] %v1080
      %1113 = vst [vmem:[#allocation3 + $0x28] sm:$0xff] %v1081
      %1114 = vst [vmem:[#allocation3 + $0x30] sm:$0xff] %v1082
      %1115 = vst [vmem:[#allocation3 + $0x38] sm:$0xff] %v1083
      %1116 = vst [vmem:[#allocation3 + $0x40] sm:$0xff] %v1084
      %1117 = vst [vmem:[#allocation3 + $0x48] sm:$0xff] %v1085
      %1118 = vst [vmem:[#allocation3 + $0x50] sm:$0xff] %v1086
      %1119 = vst [vmem:[#allocation3 + $0x58] sm:$0xff] %v1087
      %1120 = vst [vmem:[#allocation3 + $0x60] sm:$0xff] %v1088
      %1121 = vst [vmem:[#allocation3 + $0x68] sm:$0xff] %v1089
      %1122 = vst [vmem:[#allocation3 + $0x70] sm:$0xff] %v1090
      %1123 = vst [vmem:[#allocation3 + $0x78] sm:$0xff] %v1091
      %1124 = vst [vmem:[#allocation3 + $0x80] sm:$0xff] %v1092
      %1125 = vst [vmem:[#allocation3 + $0x88] sm:$0xff] %v1093
      %1126 = vst [vmem:[#allocation3 + $0x90] sm:$0xff] %v1094
      %1127 = vst [vmem:[#allocation3 + $0x98] sm:$0xff] %v1095
      %1128 = vst [vmem:[#allocation3 + $0xa0] sm:$0xff] %v1096
      %1129 = vst [vmem:[#allocation3 + $0xa8] sm:$0xff] %v1097
      %1130 = vst [vmem:[#allocation3 + $0xb0] sm:$0xff] %v1098
      %1131 = vst [vmem:[#allocation3 + $0xb8] sm:$0xff] %v1099
      %1132 = vst [vmem:[#allocation3 + $0xc0] sm:$0xff] %v1100
      %1133 = vst [vmem:[#allocation3 + $0xc8] sm:$0xff] %v1101
      %1134 = vst [vmem:[#allocation3 + $0xd0] sm:$0xff] %v1102
      %1135 = vst [vmem:[#allocation3 + $0xd8] sm:$0xff] %v1103
      %1136 = vst [vmem:[#allocation3 + $0xe0] sm:$0xff] %v1104
      %1137 = vst [vmem:[#allocation3 + $0xe8] sm:$0xff] %v1105
      %1138 = vst [vmem:[#allocation3 + $0xf0] sm:$0xff] %v1106
      %1139 = vst [vmem:[#allocation3 + $0xf8] sm:$0xff] %v1107
      %v1140 = vld [vmem:[#allocation2 + $0x2] sm:$0xff]
      %v1141 = vld [vmem:[#allocation2 + $0xa] sm:$0xff]
      %v1142 = vld [vmem:[#allocation2 + $0x1a] sm:$0xff]
      %v1143 = vld [vmem:[#allocation2 + $0x22] sm:$0xff]
      %v1144 = vld [vmem:[#allocation2 + $0x32] sm:$0xff]
      %v1145 = vld [vmem:[#allocation2 + $0x3a] sm:$0xff]
      %v1146 = vld [vmem:[#allocation2 + $0x4a] sm:$0xff]
      %v1147 = vld [vmem:[#allocation2 + $0x52] sm:$0xff]
      %v1148 = vld [vmem:[#allocation2 + $0x62] sm:$0xff]
      %v1149 = vld [vmem:[#allocation2 + $0x6a] sm:$0xff]
      %v1150 = vld [vmem:[#allocation2 + $0x7a] sm:$0xff]
      %v1151 = vld [vmem:[#allocation2 + $0x82] sm:$0xff]
      %v1152 = vld [vmem:[#allocation2 + $0x92] sm:$0xff]
      %v1153 = vld [vmem:[#allocation2 + $0x9a] sm:$0xff]
      %v1154 = vld [vmem:[#allocation2 + $0xaa] sm:$0xff]
      %v1155 = vld [vmem:[#allocation2 + $0xb2] sm:$0xff]
      %v1156 = vld [vmem:[#allocation2 + $0xc2] sm:$0xff]
      %v1157 = vld [vmem:[#allocation2 + $0xca] sm:$0xff]
      %v1158 = vld [vmem:[#allocation2 + $0xda] sm:$0xff]
      %v1159 = vld [vmem:[#allocation2 + $0xe2] sm:$0xff]
      %v1160 = vld [vmem:[#allocation2 + $0xf2] sm:$0xff]
      %v1161 = vld [vmem:[#allocation2 + $0xfa] sm:$0xff]
      %v1162 = vld [vmem:[#allocation2 + $0x10a] sm:$0xff]
      %v1163 = vld [vmem:[#allocation2 + $0x112] sm:$0xff]
      %v1164 = vld [vmem:[#allocation2 + $0x122] sm:$0xff]
      %v1165 = vld [vmem:[#allocation2 + $0x12a] sm:$0xff]
      %v1166 = vld [vmem:[#allocation2 + $0x13a] sm:$0xff]
      %v1167 = vld [vmem:[#allocation2 + $0x142] sm:$0xff]
      %v1168 = vld [vmem:[#allocation2 + $0x152] sm:$0xff]
      %v1169 = vld [vmem:[#allocation2 + $0x15a] sm:$0xff]
      %v1170 = vld [vmem:[#allocation2 + $0x16a] sm:$0xff]
      %v1171 = vld [vmem:[#allocation2 + $0x172] sm:$0xff]
      %s1172 = scalar_lea.vmem %s1, 256
      %v1173 = vld [vmem:[%s1172] sm:$0xff]
      %v1174 = vld [vmem:[%s1172 + $0x8] sm:$0xff]
      %v1175 = vld [vmem:[%s1172 + $0x10] sm:$0xff]
      %v1176 = vld [vmem:[%s1172 + $0x18] sm:$0xff]
      %v1177 = vld [vmem:[%s1172 + $0x20] sm:$0xff]
      %v1178 = vld [vmem:[%s1172 + $0x28] sm:$0xff]
      %v1179 = vld [vmem:[%s1172 + $0x30] sm:$0xff]
      %v1180 = vld [vmem:[%s1172 + $0x38] sm:$0xff]
      %v1181 = vld [vmem:[%s1172 + $0x40] sm:$0xff]
      %v1182 = vld [vmem:[%s1172 + $0x48] sm:$0xff]
      %v1183 = vld [vmem:[%s1172 + $0x50] sm:$0xff]
      %v1184 = vld [vmem:[%s1172 + $0x58] sm:$0xff]
      %v1185 = vld [vmem:[%s1172 + $0x60] sm:$0xff]
      %v1186 = vld [vmem:[%s1172 + $0x68] sm:$0xff]
      %v1187 = vld [vmem:[%s1172 + $0x70] sm:$0xff]
      %v1188 = vld [vmem:[%s1172 + $0x78] sm:$0xff]
      %1189 = vmatprep.subr.mxu0 0.0
      %1190 = vmatpush1.msra.mxu0 %v1188
      %1191 = vmatprep.subr.mxu0 0.0
      %1192 = vmatpush1.msra.mxu0 %v1187
      %1193 = vmatprep.subr.mxu0 0.0
      %1194 = vmatpush1.msra.mxu0 %v1186
      %1195 = vmatprep.subr.mxu0 0.0
      %1196 = vmatpush1.msra.mxu0 %v1185
      %1197 = vmatprep.subr.mxu0 0.0
      %1198 = vmatpush1.msra.mxu0 %v1184
      %1199 = vmatprep.subr.mxu0 0.0
      %1200 = vmatpush1.msra.mxu0 %v1183
      %1201 = vmatprep.subr.mxu0 0.0
      %1202 = vmatpush1.msra.mxu0 %v1182
      %1203 = vmatprep.subr.mxu0 0.0
      %1204 = vmatpush1.msra.mxu0 %v1181
      %1205 = vmatprep.subr.mxu0 0.0
      %1206 = vmatpush1.msra.mxu0 %v1180
      %1207 = vmatprep.subr.mxu0 0.0
      %1208 = vmatpush1.msra.mxu0 %v1179
      %1209 = vmatprep.subr.mxu0 0.0
      %1210 = vmatpush1.msra.mxu0 %v1178
      %1211 = vmatprep.subr.mxu0 0.0
      %1212 = vmatpush1.msra.mxu0 %v1177
      %1213 = vmatprep.subr.mxu0 0.0
      %1214 = vmatpush1.msra.mxu0 %v1176
      %1215 = vmatprep.subr.mxu0 0.0
      %1216 = vmatpush1.msra.mxu0 %v1175
      %1217 = vmatprep.subr.mxu0 0.0
      %1218 = vmatpush1.msra.mxu0 %v1174
      %1219 = vmatprep.subr.mxu0 0.0
      %1220 = vmatpush1.msra.mxu0 %v1173
      %1221 = vmatprep.subr.mxu0 0.0
      %1222 = vmatpush2.msra.mxu0 0.0
      %1223 = vmatprep.subr.mxu0 0.0
      %1224 = vmatpush2.msra.mxu0 0.0
      %1225 = vmatprep.subr.mxu0 0.0
      %1226 = vmatpush2.msra.mxu0 0.0
      %1227 = vmatprep.subr.mxu0 0.0
      %1228 = vmatpush2.msra.mxu0 0.0
      %1229 = vmatprep.subr.mxu0 0.0
      %1230 = vmatpush2.msra.mxu0 0.0
      %1231 = vmatprep.subr.mxu0 0.0
      %1232 = vmatpush2.msra.mxu0 0.0
      %1233 = vmatprep.subr.mxu0 0.0
      %1234 = vmatpush2.msra.mxu0 0.0
      %1235 = vmatprep.subr.mxu0 0.0
      %1236 = vmatpush2.msra.mxu0 0.0
      %1237 = vmatprep.subr.mxu0 0.0
      %1238 = vmatpush2.msra.mxu0 0.0
      %1239 = vmatprep.subr.mxu0 0.0
      %1240 = vmatpush2.msra.mxu0 0.0
      %1241 = vmatprep.subr.mxu0 0.0
      %1242 = vmatpush2.msra.mxu0 0.0
      %1243 = vmatprep.subr.mxu0 0.0
      %1244 = vmatpush2.msra.mxu0 0.0
      %1245 = vmatprep.subr.mxu0 0.0
      %1246 = vmatpush2.msra.mxu0 0.0
      %1247 = vmatprep.subr.mxu0 0.0
      %1248 = vmatpush2.msra.mxu0 0.0
      %1249 = vmatprep.subr.mxu0 0.0
      %1250 = vmatpush2.msra.mxu0 0.0
      %1251 = vmatprep.subr.mxu0 0.0
      %1252 = vmatpush2.msra.mxu0 0.0
      %1253 = vmatprep.mubr.f32.mxu0 0.0
      %1254 = vmatmul.mubr.f32.gmra.mxu0 %v1140
      %v1255 = vpop.f32.mrf.mxu0
      %v1256 = vadd.f32 0.0, %v1255
      %v1257 = vpop.f32.mrf.mxu0
      %1258 = vmatprep.mubr.f32.mxu0 0.0
      %1259 = vmatmul.mubr.f32.gmra.mxu0 %v1141
      %v1260 = vpop.f32.mrf.mxu0
      %v1261 = vadd.f32 0.0, %v1260
      %v1262 = vpop.f32.mrf.mxu0
      %1263 = vmatprep.mubr.f32.mxu0 0.0
      %1264 = vmatmul.mubr.f32.gmra.mxu0 %v1142
      %v1265 = vpop.f32.mrf.mxu0
      %v1266 = vadd.f32 0.0, %v1265
      %v1267 = vpop.f32.mrf.mxu0
      %1268 = vmatprep.mubr.f32.mxu0 0.0
      %1269 = vmatmul.mubr.f32.gmra.mxu0 %v1143
      %v1270 = vpop.f32.mrf.mxu0
      %v1271 = vadd.f32 0.0, %v1270
      %v1272 = vpop.f32.mrf.mxu0
      %1273 = vmatprep.mubr.f32.mxu0 0.0
      %1274 = vmatmul.mubr.f32.gmra.mxu0 %v1144
      %v1275 = vpop.f32.mrf.mxu0
      %v1276 = vadd.f32 0.0, %v1275
      %v1277 = vpop.f32.mrf.mxu0
      %1278 = vmatprep.mubr.f32.mxu0 0.0
      %1279 = vmatmul.mubr.f32.gmra.mxu0 %v1145
      %v1280 = vpop.f32.mrf.mxu0
      %v1281 = vadd.f32 0.0, %v1280
      %v1282 = vpop.f32.mrf.mxu0
      %1283 = vmatprep.mubr.f32.mxu0 0.0
      %1284 = vmatmul.mubr.f32.gmra.mxu0 %v1146
      %v1285 = vpop.f32.mrf.mxu0
      %v1286 = vadd.f32 0.0, %v1285
      %v1287 = vpop.f32.mrf.mxu0
      %1288 = vmatprep.mubr.f32.mxu0 0.0
      %1289 = vmatmul.mubr.f32.gmra.mxu0 %v1147
      %v1290 = vpop.f32.mrf.mxu0
      %v1291 = vadd.f32 0.0, %v1290
      %v1292 = vpop.f32.mrf.mxu0
      %1293 = vmatprep.mubr.f32.mxu0 0.0
      %1294 = vmatmul.mubr.f32.gmra.mxu0 %v1148
      %v1295 = vpop.f32.mrf.mxu0
      %v1296 = vadd.f32 0.0, %v1295
      %v1297 = vpop.f32.mrf.mxu0
      %1298 = vmatprep.mubr.f32.mxu0 0.0
      %1299 = vmatmul.mubr.f32.gmra.mxu0 %v1149
      %v1300 = vpop.f32.mrf.mxu0
      %v1301 = vadd.f32 0.0, %v1300
      %v1302 = vpop.f32.mrf.mxu0
      %1303 = vmatprep.mubr.f32.mxu0 0.0
      %1304 = vmatmul.mubr.f32.gmra.mxu0 %v1150
      %v1305 = vpop.f32.mrf.mxu0
      %v1306 = vadd.f32 0.0, %v1305
      %v1307 = vpop.f32.mrf.mxu0
      %1308 = vmatprep.mubr.f32.mxu0 0.0
      %1309 = vmatmul.mubr.f32.gmra.mxu0 %v1151
      %v1310 = vpop.f32.mrf.mxu0
      %v1311 = vadd.f32 0.0, %v1310
      %v1312 = vpop.f32.mrf.mxu0
      %1313 = vmatprep.mubr.f32.mxu0 0.0
      %1314 = vmatmul.mubr.f32.gmra.mxu0 %v1152
      %v1315 = vpop.f32.mrf.mxu0
      %v1316 = vadd.f32 0.0, %v1315
      %v1317 = vpop.f32.mrf.mxu0
      %1318 = vmatprep.mubr.f32.mxu0 0.0
      %1319 = vmatmul.mubr.f32.gmra.mxu0 %v1153
      %v1320 = vpop.f32.mrf.mxu0
      %v1321 = vadd.f32 0.0, %v1320
      %v1322 = vpop.f32.mrf.mxu0
      %1323 = vmatprep.mubr.f32.mxu0 0.0
      %1324 = vmatmul.mubr.f32.gmra.mxu0 %v1154
      %v1325 = vpop.f32.mrf.mxu0
      %v1326 = vadd.f32 0.0, %v1325
      %v1327 = vpop.f32.mrf.mxu0
      %1328 = vmatprep.mubr.f32.mxu0 0.0
      %1329 = vmatmul.mubr.f32.gmra.mxu0 %v1155
      %v1330 = vpop.f32.mrf.mxu0
      %v1331 = vadd.f32 0.0, %v1330
      %v1332 = vpop.f32.mrf.mxu0
      %1333 = vmatprep.mubr.f32.mxu0 0.0
      %1334 = vmatmul.mubr.f32.gmra.mxu0 %v1156
      %v1335 = vpop.f32.mrf.mxu0
      %v1336 = vadd.f32 0.0, %v1335
      %v1337 = vpop.f32.mrf.mxu0
      %1338 = vmatprep.mubr.f32.mxu0 0.0
      %1339 = vmatmul.mubr.f32.gmra.mxu0 %v1157
      %v1340 = vpop.f32.mrf.mxu0
      %v1341 = vadd.f32 0.0, %v1340
      %v1342 = vpop.f32.mrf.mxu0
      %1343 = vmatprep.mubr.f32.mxu0 0.0
      %1344 = vmatmul.mubr.f32.gmra.mxu0 %v1158
      %v1345 = vpop.f32.mrf.mxu0
      %v1346 = vadd.f32 0.0, %v1345
      %v1347 = vpop.f32.mrf.mxu0
      %1348 = vmatprep.mubr.f32.mxu0 0.0
      %1349 = vmatmul.mubr.f32.gmra.mxu0 %v1159
      %v1350 = vpop.f32.mrf.mxu0
      %v1351 = vadd.f32 0.0, %v1350
      %v1352 = vpop.f32.mrf.mxu0
      %1353 = vmatprep.mubr.f32.mxu0 0.0
      %1354 = vmatmul.mubr.f32.gmra.mxu0 %v1160
      %v1355 = vpop.f32.mrf.mxu0
      %v1356 = vadd.f32 0.0, %v1355
      %v1357 = vpop.f32.mrf.mxu0
      %1358 = vmatprep.mubr.f32.mxu0 0.0
      %1359 = vmatmul.mubr.f32.gmra.mxu0 %v1161
      %v1360 = vpop.f32.mrf.mxu0
      %v1361 = vadd.f32 0.0, %v1360
      %v1362 = vpop.f32.mrf.mxu0
      %1363 = vmatprep.mubr.f32.mxu0 0.0
      %1364 = vmatmul.mubr.f32.gmra.mxu0 %v1162
      %v1365 = vpop.f32.mrf.mxu0
      %v1366 = vadd.f32 0.0, %v1365
      %v1367 = vpop.f32.mrf.mxu0
      %1368 = vmatprep.mubr.f32.mxu0 0.0
      %1369 = vmatmul.mubr.f32.gmra.mxu0 %v1163
      %v1370 = vpop.f32.mrf.mxu0
      %v1371 = vadd.f32 0.0, %v1370
      %v1372 = vpop.f32.mrf.mxu0
      %1373 = vmatprep.mubr.f32.mxu0 0.0
      %1374 = vmatmul.mubr.f32.gmra.mxu0 %v1164
      %v1375 = vpop.f32.mrf.mxu0
      %v1376 = vadd.f32 0.0, %v1375
      %v1377 = vpop.f32.mrf.mxu0
      %1378 = vmatprep.mubr.f32.mxu0 0.0
      %1379 = vmatmul.mubr.f32.gmra.mxu0 %v1165
      %v1380 = vpop.f32.mrf.mxu0
      %v1381 = vadd.f32 0.0, %v1380
      %v1382 = vpop.f32.mrf.mxu0
      %1383 = vmatprep.mubr.f32.mxu0 0.0
      %1384 = vmatmul.mubr.f32.gmra.mxu0 %v1166
      %v1385 = vpop.f32.mrf.mxu0
      %v1386 = vadd.f32 0.0, %v1385
      %v1387 = vpop.f32.mrf.mxu0
      %1388 = vmatprep.mubr.f32.mxu0 0.0
      %1389 = vmatmul.mubr.f32.gmra.mxu0 %v1167
      %v1390 = vpop.f32.mrf.mxu0
      %v1391 = vadd.f32 0.0, %v1390
      %v1392 = vpop.f32.mrf.mxu0
      %1393 = vmatprep.mubr.f32.mxu0 0.0
      %1394 = vmatmul.mubr.f32.gmra.mxu0 %v1168
      %v1395 = vpop.f32.mrf.mxu0
      %v1396 = vadd.f32 0.0, %v1395
      %v1397 = vpop.f32.mrf.mxu0
      %1398 = vmatprep.mubr.f32.mxu0 0.0
      %1399 = vmatmul.mubr.f32.gmra.mxu0 %v1169
      %v1400 = vpop.f32.mrf.mxu0
      %v1401 = vadd.f32 0.0, %v1400
      %v1402 = vpop.f32.mrf.mxu0
      %1403 = vmatprep.mubr.f32.mxu0 0.0
      %1404 = vmatmul.mubr.f32.gmra.mxu0 %v1170
      %v1405 = vpop.f32.mrf.mxu0
      %v1406 = vadd.f32 0.0, %v1405
      %v1407 = vpop.f32.mrf.mxu0
      %1408 = vmatprep.mubr.f32.mxu0 0.0
      %1409 = vmatmul.mubr.f32.gmra.mxu0 %v1171
      %v1410 = vpop.f32.mrf.mxu0
      %v1411 = vadd.f32 0.0, %v1410
      %v1412 = vpop.f32.mrf.mxu0
      %1413 = vdwg.mxu0
      %v1414 = vld [vmem:[#allocation3] sm:$0xff]
      %v1415 = vld [vmem:[#allocation3 + $0x8] sm:$0xff]
      %v1416 = vld [vmem:[#allocation3 + $0x10] sm:$0xff]
      %v1417 = vld [vmem:[#allocation3 + $0x18] sm:$0xff]
      %v1418 = vld [vmem:[#allocation3 + $0x20] sm:$0xff]
      %v1419 = vld [vmem:[#allocation3 + $0x28] sm:$0xff]
      %v1420 = vld [vmem:[#allocation3 + $0x30] sm:$0xff]
      %v1421 = vld [vmem:[#allocation3 + $0x38] sm:$0xff]
      %v1422 = vld [vmem:[#allocation3 + $0x40] sm:$0xff]
      %v1423 = vld [vmem:[#allocation3 + $0x48] sm:$0xff]
      %v1424 = vld [vmem:[#allocation3 + $0x50] sm:$0xff]
      %v1425 = vld [vmem:[#allocation3 + $0x58] sm:$0xff]
      %v1426 = vld [vmem:[#allocation3 + $0x60] sm:$0xff]
      %v1427 = vld [vmem:[#allocation3 + $0x68] sm:$0xff]
      %v1428 = vld [vmem:[#allocation3 + $0x70] sm:$0xff]
      %v1429 = vld [vmem:[#allocation3 + $0x78] sm:$0xff]
      %v1430 = vld [vmem:[#allocation3 + $0x80] sm:$0xff]
      %v1431 = vld [vmem:[#allocation3 + $0x88] sm:$0xff]
      %v1432 = vld [vmem:[#allocation3 + $0x90] sm:$0xff]
      %v1433 = vld [vmem:[#allocation3 + $0x98] sm:$0xff]
      %v1434 = vld [vmem:[#allocation3 + $0xa0] sm:$0xff]
      %v1435 = vld [vmem:[#allocation3 + $0xa8] sm:$0xff]
      %v1436 = vld [vmem:[#allocation3 + $0xb0] sm:$0xff]
      %v1437 = vld [vmem:[#allocation3 + $0xb8] sm:$0xff]
      %v1438 = vld [vmem:[#allocation3 + $0xc0] sm:$0xff]
      %v1439 = vld [vmem:[#allocation3 + $0xc8] sm:$0xff]
      %v1440 = vld [vmem:[#allocation3 + $0xd0] sm:$0xff]
      %v1441 = vld [vmem:[#allocation3 + $0xd8] sm:$0xff]
      %v1442 = vld [vmem:[#allocation3 + $0xe0] sm:$0xff]
      %v1443 = vld [vmem:[#allocation3 + $0xe8] sm:$0xff]
      %v1444 = vld [vmem:[#allocation3 + $0xf0] sm:$0xff]
      %v1445 = vld [vmem:[#allocation3 + $0xf8] sm:$0xff]
      %v1446 = vadd.f32 %v1414, %v1256
      %v1447 = vadd.f32 %v1415, %v1261
      %v1448 = vadd.f32 %v1416, %v1266
      %v1449 = vadd.f32 %v1417, %v1271
      %v1450 = vadd.f32 %v1418, %v1276
      %v1451 = vadd.f32 %v1419, %v1281
      %v1452 = vadd.f32 %v1420, %v1286
      %v1453 = vadd.f32 %v1421, %v1291
      %v1454 = vadd.f32 %v1422, %v1296
      %v1455 = vadd.f32 %v1423, %v1301
      %v1456 = vadd.f32 %v1424, %v1306
      %v1457 = vadd.f32 %v1425, %v1311
      %v1458 = vadd.f32 %v1426, %v1316
      %v1459 = vadd.f32 %v1427, %v1321
      %v1460 = vadd.f32 %v1428, %v1326
      %v1461 = vadd.f32 %v1429, %v1331
      %v1462 = vadd.f32 %v1430, %v1336
      %v1463 = vadd.f32 %v1431, %v1341
      %v1464 = vadd.f32 %v1432, %v1346
      %v1465 = vadd.f32 %v1433, %v1351
      %v1466 = vadd.f32 %v1434, %v1356
      %v1467 = vadd.f32 %v1435, %v1361
      %v1468 = vadd.f32 %v1436, %v1366
      %v1469 = vadd.f32 %v1437, %v1371
      %v1470 = vadd.f32 %v1438, %v1376
      %v1471 = vadd.f32 %v1439, %v1381
      %v1472 = vadd.f32 %v1440, %v1386
      %v1473 = vadd.f32 %v1441, %v1391
      %v1474 = vadd.f32 %v1442, %v1396
      %v1475 = vadd.f32 %v1443, %v1401
      %v1476 = vadd.f32 %v1444, %v1406
      %v1477 = vadd.f32 %v1445, %v1411
      %1478 = vst [vmem:[#allocation3] sm:$0xff] %v1446
      %1479 = vst [vmem:[#allocation3 + $0x8] sm:$0xff] %v1447
      %1480 = vst [vmem:[#allocation3 + $0x10] sm:$0xff] %v1448
      %1481 = vst [vmem:[#allocation3 + $0x18] sm:$0xff] %v1449
      %1482 = vst [vmem:[#allocation3 + $0x20] sm:$0xff] %v1450
      %1483 = vst [vmem:[#allocation3 + $0x28] sm:$0xff] %v1451
      %1484 = vst [vmem:[#allocation3 + $0x30] sm:$0xff] %v1452
      %1485 = vst [vmem:[#allocation3 + $0x38] sm:$0xff] %v1453
      %1486 = vst [vmem:[#allocation3 + $0x40] sm:$0xff] %v1454
      %1487 = vst [vmem:[#allocation3 + $0x48] sm:$0xff] %v1455
      %1488 = vst [vmem:[#allocation3 + $0x50] sm:$0xff] %v1456
      %1489 = vst [vmem:[#allocation3 + $0x58] sm:$0xff] %v1457
      %1490 = vst [vmem:[#allocation3 + $0x60] sm:$0xff] %v1458
      %1491 = vst [vmem:[#allocation3 + $0x68] sm:$0xff] %v1459
      %1492 = vst [vmem:[#allocation3 + $0x70] sm:$0xff] %v1460
      %1493 = vst [vmem:[#allocation3 + $0x78] sm:$0xff] %v1461
      %1494 = vst [vmem:[#allocation3 + $0x80] sm:$0xff] %v1462
      %1495 = vst [vmem:[#allocation3 + $0x88] sm:$0xff] %v1463
      %1496 = vst [vmem:[#allocation3 + $0x90] sm:$0xff] %v1464
      %1497 = vst [vmem:[#allocation3 + $0x98] sm:$0xff] %v1465
      %1498 = vst [vmem:[#allocation3 + $0xa0] sm:$0xff] %v1466
      %1499 = vst [vmem:[#allocation3 + $0xa8] sm:$0xff] %v1467
      %1500 = vst [vmem:[#allocation3 + $0xb0] sm:$0xff] %v1468
      %1501 = vst [vmem:[#allocation3 + $0xb8] sm:$0xff] %v1469
      %1502 = vst [vmem:[#allocation3 + $0xc0] sm:$0xff] %v1470
      %1503 = vst [vmem:[#allocation3 + $0xc8] sm:$0xff] %v1471
      %1504 = vst [vmem:[#allocation3 + $0xd0] sm:$0xff] %v1472
      %1505 = vst [vmem:[#allocation3 + $0xd8] sm:$0xff] %v1473
      %1506 = vst [vmem:[#allocation3 + $0xe0] sm:$0xff] %v1474
      %1507 = vst [vmem:[#allocation3 + $0xe8] sm:$0xff] %v1475
      %1508 = vst [vmem:[#allocation3 + $0xf0] sm:$0xff] %v1476
      %1509 = vst [vmem:[#allocation3 + $0xf8] sm:$0xff] %v1477
      %v1510 = vld [vmem:[%s432] sm:$0xff]
      %v1511 = vld [vmem:[%s432 + $0x8] sm:$0xff]
      %v1512 = vld [vmem:[%s432 + $0x18] sm:$0xff]
      %v1513 = vld [vmem:[%s432 + $0x20] sm:$0xff]
      %v1514 = vld [vmem:[%s432 + $0x30] sm:$0xff]
      %v1515 = vld [vmem:[%s432 + $0x38] sm:$0xff]
      %v1516 = vld [vmem:[%s432 + $0x48] sm:$0xff]
      %v1517 = vld [vmem:[%s432 + $0x50] sm:$0xff]
      %v1518 = vld [vmem:[%s432 + $0x60] sm:$0xff]
      %v1519 = vld [vmem:[%s432 + $0x68] sm:$0xff]
      %v1520 = vld [vmem:[%s432 + $0x78] sm:$0xff]
      %v1521 = vld [vmem:[%s432 + $0x80] sm:$0xff]
      %v1522 = vld [vmem:[%s432 + $0x90] sm:$0xff]
      %v1523 = vld [vmem:[%s432 + $0x98] sm:$0xff]
      %v1524 = vld [vmem:[%s432 + $0xa8] sm:$0xff]
      %v1525 = vld [vmem:[%s432 + $0xb0] sm:$0xff]
      %v1526 = vld [vmem:[%s432 + $0xc0] sm:$0xff]
      %v1527 = vld [vmem:[%s432 + $0xc8] sm:$0xff]
      %v1528 = vld [vmem:[%s432 + $0xd8] sm:$0xff]
      %v1529 = vld [vmem:[%s432 + $0xe0] sm:$0xff]
      %v1530 = vld [vmem:[%s432 + $0xf0] sm:$0xff]
      %v1531 = vld [vmem:[%s432 + $0xf8] sm:$0xff]
      %v1532 = vld [vmem:[%s432 + $0x108] sm:$0xff]
      %v1533 = vld [vmem:[%s432 + $0x110] sm:$0xff]
      %v1534 = vld [vmem:[%s432 + $0x120] sm:$0xff]
      %v1535 = vld [vmem:[%s432 + $0x128] sm:$0xff]
      %v1536 = vld [vmem:[%s432 + $0x138] sm:$0xff]
      %v1537 = vld [vmem:[%s432 + $0x140] sm:$0xff]
      %v1538 = vld [vmem:[%s432 + $0x150] sm:$0xff]
      %v1539 = vld [vmem:[%s432 + $0x158] sm:$0xff]
      %v1540 = vld [vmem:[%s432 + $0x168] sm:$0xff]
      %v1541 = vld [vmem:[%s432 + $0x170] sm:$0xff]
      %s1542 = scalar_lea.vmem %s1, 384
      %v1543 = vld [vmem:[%s1542] sm:$0xff]
      %v1544 = vld [vmem:[%s1542 + $0x8] sm:$0xff]
      %v1545 = vld [vmem:[%s1542 + $0x10] sm:$0xff]
      %v1546 = vld [vmem:[%s1542 + $0x18] sm:$0xff]
      %v1547 = vld [vmem:[%s1542 + $0x20] sm:$0xff]
      %v1548 = vld [vmem:[%s1542 + $0x28] sm:$0xff]
      %v1549 = vld [vmem:[%s1542 + $0x30] sm:$0xff]
      %v1550 = vld [vmem:[%s1542 + $0x38] sm:$0xff]
      %v1551 = vld [vmem:[%s1542 + $0x40] sm:$0xff]
      %v1552 = vld [vmem:[%s1542 + $0x48] sm:$0xff]
      %v1553 = vld [vmem:[%s1542 + $0x50] sm:$0xff]
      %v1554 = vld [vmem:[%s1542 + $0x58] sm:$0xff]
      %v1555 = vld [vmem:[%s1542 + $0x60] sm:$0xff]
      %v1556 = vld [vmem:[%s1542 + $0x68] sm:$0xff]
      %v1557 = vld [vmem:[%s1542 + $0x70] sm:$0xff]
      %v1558 = vld [vmem:[%s1542 + $0x78] sm:$0xff]
      %1559 = vmatprep.subr.mxu0 0.0
      %1560 = vmatpush1.msra.mxu0 %v1558
      %1561 = vmatprep.subr.mxu0 0.0
      %1562 = vmatpush1.msra.mxu0 %v1557
      %1563 = vmatprep.subr.mxu0 0.0
      %1564 = vmatpush1.msra.mxu0 %v1556
      %1565 = vmatprep.subr.mxu0 0.0
      %1566 = vmatpush1.msra.mxu0 %v1555
      %1567 = vmatprep.subr.mxu0 0.0
      %1568 = vmatpush1.msra.mxu0 %v1554
      %1569 = vmatprep.subr.mxu0 0.0
      %1570 = vmatpush1.msra.mxu0 %v1553
      %1571 = vmatprep.subr.mxu0 0.0
      %1572 = vmatpush1.msra.mxu0 %v1552
      %1573 = vmatprep.subr.mxu0 0.0
      %1574 = vmatpush1.msra.mxu0 %v1551
      %1575 = vmatprep.subr.mxu0 0.0
      %1576 = vmatpush1.msra.mxu0 %v1550
      %1577 = vmatprep.subr.mxu0 0.0
      %1578 = vmatpush1.msra.mxu0 %v1549
      %1579 = vmatprep.subr.mxu0 0.0
      %1580 = vmatpush1.msra.mxu0 %v1548
      %1581 = vmatprep.subr.mxu0 0.0
      %1582 = vmatpush1.msra.mxu0 %v1547
      %1583 = vmatprep.subr.mxu0 0.0
      %1584 = vmatpush1.msra.mxu0 %v1546
      %1585 = vmatprep.subr.mxu0 0.0
      %1586 = vmatpush1.msra.mxu0 %v1545
      %1587 = vmatprep.subr.mxu0 0.0
      %1588 = vmatpush1.msra.mxu0 %v1544
      %1589 = vmatprep.subr.mxu0 0.0
      %1590 = vmatpush1.msra.mxu0 %v1543
      %1591 = vmatprep.subr.mxu0 0.0
      %1592 = vmatpush2.msra.mxu0 0.0
      %1593 = vmatprep.subr.mxu0 0.0
      %1594 = vmatpush2.msra.mxu0 0.0
      %1595 = vmatprep.subr.mxu0 0.0
      %1596 = vmatpush2.msra.mxu0 0.0
      %1597 = vmatprep.subr.mxu0 0.0
      %1598 = vmatpush2.msra.mxu0 0.0
      %1599 = vmatprep.subr.mxu0 0.0
      %1600 = vmatpush2.msra.mxu0 0.0
      %1601 = vmatprep.subr.mxu0 0.0
      %1602 = vmatpush2.msra.mxu0 0.0
      %1603 = vmatprep.subr.mxu0 0.0
      %1604 = vmatpush2.msra.mxu0 0.0
      %1605 = vmatprep.subr.mxu0 0.0
      %1606 = vmatpush2.msra.mxu0 0.0
      %1607 = vmatprep.subr.mxu0 0.0
      %1608 = vmatpush2.msra.mxu0 0.0
      %1609 = vmatprep.subr.mxu0 0.0
      %1610 = vmatpush2.msra.mxu0 0.0
      %1611 = vmatprep.subr.mxu0 0.0
      %1612 = vmatpush2.msra.mxu0 0.0
      %1613 = vmatprep.subr.mxu0 0.0
      %1614 = vmatpush2.msra.mxu0 0.0
      %1615 = vmatprep.subr.mxu0 0.0
      %1616 = vmatpush2.msra.mxu0 0.0
      %1617 = vmatprep.subr.mxu0 0.0
      %1618 = vmatpush2.msra.mxu0 0.0
      %1619 = vmatprep.subr.mxu0 0.0
      %1620 = vmatpush2.msra.mxu0 0.0
      %1621 = vmatprep.subr.mxu0 0.0
      %1622 = vmatpush2.msra.mxu0 0.0
      %1623 = vmatprep.mubr.f32.mxu0 0.0
      %1624 = vmatmul.mubr.f32.gmra.mxu0 %v1510
      %v1625 = vpop.f32.mrf.mxu0
      %v1626 = vadd.f32 0.0, %v1625
      %v1627 = vpop.f32.mrf.mxu0
      %1628 = vmatprep.mubr.f32.mxu0 0.0
      %1629 = vmatmul.mubr.f32.gmra.mxu0 %v1511
      %v1630 = vpop.f32.mrf.mxu0
      %v1631 = vadd.f32 0.0, %v1630
      %v1632 = vpop.f32.mrf.mxu0
      %1633 = vmatprep.mubr.f32.mxu0 0.0
      %1634 = vmatmul.mubr.f32.gmra.mxu0 %v1512
      %v1635 = vpop.f32.mrf.mxu0
      %v1636 = vadd.f32 0.0, %v1635
      %v1637 = vpop.f32.mrf.mxu0
      %1638 = vmatprep.mubr.f32.mxu0 0.0
      %1639 = vmatmul.mubr.f32.gmra.mxu0 %v1513
      %v1640 = vpop.f32.mrf.mxu0
      %v1641 = vadd.f32 0.0, %v1640
      %v1642 = vpop.f32.mrf.mxu0
      %1643 = vmatprep.mubr.f32.mxu0 0.0
      %1644 = vmatmul.mubr.f32.gmra.mxu0 %v1514
      %v1645 = vpop.f32.mrf.mxu0
      %v1646 = vadd.f32 0.0, %v1645
      %v1647 = vpop.f32.mrf.mxu0
      %1648 = vmatprep.mubr.f32.mxu0 0.0
      %1649 = vmatmul.mubr.f32.gmra.mxu0 %v1515
      %v1650 = vpop.f32.mrf.mxu0
      %v1651 = vadd.f32 0.0, %v1650
      %v1652 = vpop.f32.mrf.mxu0
      %1653 = vmatprep.mubr.f32.mxu0 0.0
      %1654 = vmatmul.mubr.f32.gmra.mxu0 %v1516
      %v1655 = vpop.f32.mrf.mxu0
      %v1656 = vadd.f32 0.0, %v1655
      %v1657 = vpop.f32.mrf.mxu0
      %1658 = vmatprep.mubr.f32.mxu0 0.0
      %1659 = vmatmul.mubr.f32.gmra.mxu0 %v1517
      %v1660 = vpop.f32.mrf.mxu0
      %v1661 = vadd.f32 0.0, %v1660
      %v1662 = vpop.f32.mrf.mxu0
      %1663 = vmatprep.mubr.f32.mxu0 0.0
      %1664 = vmatmul.mubr.f32.gmra.mxu0 %v1518
      %v1665 = vpop.f32.mrf.mxu0
      %v1666 = vadd.f32 0.0, %v1665
      %v1667 = vpop.f32.mrf.mxu0
      %1668 = vmatprep.mubr.f32.mxu0 0.0
      %1669 = vmatmul.mubr.f32.gmra.mxu0 %v1519
      %v1670 = vpop.f32.mrf.mxu0
      %v1671 = vadd.f32 0.0, %v1670
      %v1672 = vpop.f32.mrf.mxu0
      %1673 = vmatprep.mubr.f32.mxu0 0.0
      %1674 = vmatmul.mubr.f32.gmra.mxu0 %v1520
      %v1675 = vpop.f32.mrf.mxu0
      %v1676 = vadd.f32 0.0, %v1675
      %v1677 = vpop.f32.mrf.mxu0
      %1678 = vmatprep.mubr.f32.mxu0 0.0
      %1679 = vmatmul.mubr.f32.gmra.mxu0 %v1521
      %v1680 = vpop.f32.mrf.mxu0
      %v1681 = vadd.f32 0.0, %v1680
      %v1682 = vpop.f32.mrf.mxu0
      %1683 = vmatprep.mubr.f32.mxu0 0.0
      %1684 = vmatmul.mubr.f32.gmra.mxu0 %v1522
      %v1685 = vpop.f32.mrf.mxu0
      %v1686 = vadd.f32 0.0, %v1685
      %v1687 = vpop.f32.mrf.mxu0
      %1688 = vmatprep.mubr.f32.mxu0 0.0
      %1689 = vmatmul.mubr.f32.gmra.mxu0 %v1523
      %v1690 = vpop.f32.mrf.mxu0
      %v1691 = vadd.f32 0.0, %v1690
      %v1692 = vpop.f32.mrf.mxu0
      %1693 = vmatprep.mubr.f32.mxu0 0.0
      %1694 = vmatmul.mubr.f32.gmra.mxu0 %v1524
      %v1695 = vpop.f32.mrf.mxu0
      %v1696 = vadd.f32 0.0, %v1695
      %v1697 = vpop.f32.mrf.mxu0
      %1698 = vmatprep.mubr.f32.mxu0 0.0
      %1699 = vmatmul.mubr.f32.gmra.mxu0 %v1525
      %v1700 = vpop.f32.mrf.mxu0
      %v1701 = vadd.f32 0.0, %v1700
      %v1702 = vpop.f32.mrf.mxu0
      %1703 = vmatprep.mubr.f32.mxu0 0.0
      %1704 = vmatmul.mubr.f32.gmra.mxu0 %v1526
      %v1705 = vpop.f32.mrf.mxu0
      %v1706 = vadd.f32 0.0, %v1705
      %v1707 = vpop.f32.mrf.mxu0
      %1708 = vmatprep.mubr.f32.mxu0 0.0
      %1709 = vmatmul.mubr.f32.gmra.mxu0 %v1527
      %v1710 = vpop.f32.mrf.mxu0
      %v1711 = vadd.f32 0.0, %v1710
      %v1712 = vpop.f32.mrf.mxu0
      %1713 = vmatprep.mubr.f32.mxu0 0.0
      %1714 = vmatmul.mubr.f32.gmra.mxu0 %v1528
      %v1715 = vpop.f32.mrf.mxu0
      %v1716 = vadd.f32 0.0, %v1715
      %v1717 = vpop.f32.mrf.mxu0
      %1718 = vmatprep.mubr.f32.mxu0 0.0
      %1719 = vmatmul.mubr.f32.gmra.mxu0 %v1529
      %v1720 = vpop.f32.mrf.mxu0
      %v1721 = vadd.f32 0.0, %v1720
      %v1722 = vpop.f32.mrf.mxu0
      %1723 = vmatprep.mubr.f32.mxu0 0.0
      %1724 = vmatmul.mubr.f32.gmra.mxu0 %v1530
      %v1725 = vpop.f32.mrf.mxu0
      %v1726 = vadd.f32 0.0, %v1725
      %v1727 = vpop.f32.mrf.mxu0
      %1728 = vmatprep.mubr.f32.mxu0 0.0
      %1729 = vmatmul.mubr.f32.gmra.mxu0 %v1531
      %v1730 = vpop.f32.mrf.mxu0
      %v1731 = vadd.f32 0.0, %v1730
      %v1732 = vpop.f32.mrf.mxu0
      %1733 = vmatprep.mubr.f32.mxu0 0.0
      %1734 = vmatmul.mubr.f32.gmra.mxu0 %v1532
      %v1735 = vpop.f32.mrf.mxu0
      %v1736 = vadd.f32 0.0, %v1735
      %v1737 = vpop.f32.mrf.mxu0
      %1738 = vmatprep.mubr.f32.mxu0 0.0
      %1739 = vmatmul.mubr.f32.gmra.mxu0 %v1533
      %v1740 = vpop.f32.mrf.mxu0
      %v1741 = vadd.f32 0.0, %v1740
      %v1742 = vpop.f32.mrf.mxu0
      %1743 = vmatprep.mubr.f32.mxu0 0.0
      %1744 = vmatmul.mubr.f32.gmra.mxu0 %v1534
      %v1745 = vpop.f32.mrf.mxu0
      %v1746 = vadd.f32 0.0, %v1745
      %v1747 = vpop.f32.mrf.mxu0
      %1748 = vmatprep.mubr.f32.mxu0 0.0
      %1749 = vmatmul.mubr.f32.gmra.mxu0 %v1535
      %v1750 = vpop.f32.mrf.mxu0
      %v1751 = vadd.f32 0.0, %v1750
      %v1752 = vpop.f32.mrf.mxu0
      %1753 = vmatprep.mubr.f32.mxu0 0.0
      %1754 = vmatmul.mubr.f32.gmra.mxu0 %v1536
      %v1755 = vpop.f32.mrf.mxu0
      %v1756 = vadd.f32 0.0, %v1755
      %v1757 = vpop.f32.mrf.mxu0
      %1758 = vmatprep.mubr.f32.mxu0 0.0
      %1759 = vmatmul.mubr.f32.gmra.mxu0 %v1537
      %v1760 = vpop.f32.mrf.mxu0
      %v1761 = vadd.f32 0.0, %v1760
      %v1762 = vpop.f32.mrf.mxu0
      %1763 = vmatprep.mubr.f32.mxu0 0.0
      %1764 = vmatmul.mubr.f32.gmra.mxu0 %v1538
      %v1765 = vpop.f32.mrf.mxu0
      %v1766 = vadd.f32 0.0, %v1765
      %v1767 = vpop.f32.mrf.mxu0
      %1768 = vmatprep.mubr.f32.mxu0 0.0
      %1769 = vmatmul.mubr.f32.gmra.mxu0 %v1539
      %v1770 = vpop.f32.mrf.mxu0
      %v1771 = vadd.f32 0.0, %v1770
      %v1772 = vpop.f32.mrf.mxu0
      %1773 = vmatprep.mubr.f32.mxu0 0.0
      %1774 = vmatmul.mubr.f32.gmra.mxu0 %v1540
      %v1775 = vpop.f32.mrf.mxu0
      %v1776 = vadd.f32 0.0, %v1775
      %v1777 = vpop.f32.mrf.mxu0
      %1778 = vmatprep.mubr.f32.mxu0 0.0
      %1779 = vmatmul.mubr.f32.gmra.mxu0 %v1541
      %v1780 = vpop.f32.mrf.mxu0
      %v1781 = vadd.f32 0.0, %v1780
      %v1782 = vpop.f32.mrf.mxu0
      %1783 = vdwg.mxu0
      %v1784 = vld [vmem:[#allocation3] sm:$0xff]
      %v1785 = vld [vmem:[#allocation3 + $0x8] sm:$0xff]
      %v1786 = vld [vmem:[#allocation3 + $0x10] sm:$0xff]
      %v1787 = vld [vmem:[#allocation3 + $0x18] sm:$0xff]
      %v1788 = vld [vmem:[#allocation3 + $0x20] sm:$0xff]
      %v1789 = vld [vmem:[#allocation3 + $0x28] sm:$0xff]
      %v1790 = vld [vmem:[#allocation3 + $0x30] sm:$0xff]
      %v1791 = vld [vmem:[#allocation3 + $0x38] sm:$0xff]
      %v1792 = vld [vmem:[#allocation3 + $0x40] sm:$0xff]
      %v1793 = vld [vmem:[#allocation3 + $0x48] sm:$0xff]
      %v1794 = vld [vmem:[#allocation3 + $0x50] sm:$0xff]
      %v1795 = vld [vmem:[#allocation3 + $0x58] sm:$0xff]
      %v1796 = vld [vmem:[#allocation3 + $0x60] sm:$0xff]
      %v1797 = vld [vmem:[#allocation3 + $0x68] sm:$0xff]
      %v1798 = vld [vmem:[#allocation3 + $0x70] sm:$0xff]
      %v1799 = vld [vmem:[#allocation3 + $0x78] sm:$0xff]
      %v1800 = vld [vmem:[#allocation3 + $0x80] sm:$0xff]
      %v1801 = vld [vmem:[#allocation3 + $0x88] sm:$0xff]
      %v1802 = vld [vmem:[#allocation3 + $0x90] sm:$0xff]
      %v1803 = vld [vmem:[#allocation3 + $0x98] sm:$0xff]
      %v1804 = vld [vmem:[#allocation3 + $0xa0] sm:$0xff]
      %v1805 = vld [vmem:[#allocation3 + $0xa8] sm:$0xff]
      %v1806 = vld [vmem:[#allocation3 + $0xb0] sm:$0xff]
      %v1807 = vld [vmem:[#allocation3 + $0xb8] sm:$0xff]
      %v1808 = vld [vmem:[#allocation3 + $0xc0] sm:$0xff]
      %v1809 = vld [vmem:[#allocation3 + $0xc8] sm:$0xff]
      %v1810 = vld [vmem:[#allocation3 + $0xd0] sm:$0xff]
      %v1811 = vld [vmem:[#allocation3 + $0xd8] sm:$0xff]
      %v1812 = vld [vmem:[#allocation3 + $0xe0] sm:$0xff]
      %v1813 = vld [vmem:[#allocation3 + $0xe8] sm:$0xff]
      %v1814 = vld [vmem:[#allocation3 + $0xf0] sm:$0xff]
      %v1815 = vld [vmem:[#allocation3 + $0xf8] sm:$0xff]
      %v1816 = vadd.f32 %v1784, %v1626
      %v1817 = vadd.f32 %v1785, %v1631
      %v1818 = vadd.f32 %v1786, %v1636
      %v1819 = vadd.f32 %v1787, %v1641
      %v1820 = vadd.f32 %v1788, %v1646
      %v1821 = vadd.f32 %v1789, %v1651
      %v1822 = vadd.f32 %v1790, %v1656
      %v1823 = vadd.f32 %v1791, %v1661
      %v1824 = vadd.f32 %v1792, %v1666
      %v1825 = vadd.f32 %v1793, %v1671
      %v1826 = vadd.f32 %v1794, %v1676
      %v1827 = vadd.f32 %v1795, %v1681
      %v1828 = vadd.f32 %v1796, %v1686
      %v1829 = vadd.f32 %v1797, %v1691
      %v1830 = vadd.f32 %v1798, %v1696
      %v1831 = vadd.f32 %v1799, %v1701
      %v1832 = vadd.f32 %v1800, %v1706
      %v1833 = vadd.f32 %v1801, %v1711
      %v1834 = vadd.f32 %v1802, %v1716
      %v1835 = vadd.f32 %v1803, %v1721
      %v1836 = vadd.f32 %v1804, %v1726
      %v1837 = vadd.f32 %v1805, %v1731
      %v1838 = vadd.f32 %v1806, %v1736
      %v1839 = vadd.f32 %v1807, %v1741
      %v1840 = vadd.f32 %v1808, %v1746
      %v1841 = vadd.f32 %v1809, %v1751
      %v1842 = vadd.f32 %v1810, %v1756
      %v1843 = vadd.f32 %v1811, %v1761
      %v1844 = vadd.f32 %v1812, %v1766
      %v1845 = vadd.f32 %v1813, %v1771
      %v1846 = vadd.f32 %v1814, %v1776
      %v1847 = vadd.f32 %v1815, %v1781
      %1848 = vst [vmem:[#allocation3] sm:$0xff] %v1816
      %1849 = vst [vmem:[#allocation3 + $0x8] sm:$0xff] %v1817
      %1850 = vst [vmem:[#allocation3 + $0x10] sm:$0xff] %v1818
      %1851 = vst [vmem:[#allocation3 + $0x18] sm:$0xff] %v1819
      %1852 = vst [vmem:[#allocation3 + $0x20] sm:$0xff] %v1820
      %1853 = vst [vmem:[#allocation3 + $0x28] sm:$0xff] %v1821
      %1854 = vst [vmem:[#allocation3 + $0x30] sm:$0xff] %v1822
      %1855 = vst [vmem:[#allocation3 + $0x38] sm:$0xff] %v1823
      %1856 = vst [vmem:[#allocation3 + $0x40] sm:$0xff] %v1824
      %1857 = vst [vmem:[#allocation3 + $0x48] sm:$0xff] %v1825
      %1858 = vst [vmem:[#allocation3 + $0x50] sm:$0xff] %v1826
      %1859 = vst [vmem:[#allocation3 + $0x58] sm:$0xff] %v1827
      %1860 = vst [vmem:[#allocation3 + $0x60] sm:$0xff] %v1828
      %1861 = vst [vmem:[#allocation3 + $0x68] sm:$0xff] %v1829
      %1862 = vst [vmem:[#allocation3 + $0x70] sm:$0xff] %v1830
      %1863 = vst [vmem:[#allocation3 + $0x78] sm:$0xff] %v1831
      %1864 = vst [vmem:[#allocation3 + $0x80] sm:$0xff] %v1832
      %1865 = vst [vmem:[#allocation3 + $0x88] sm:$0xff] %v1833
      %1866 = vst [vmem:[#allocation3 + $0x90] sm:$0xff] %v1834
      %1867 = vst [vmem:[#allocation3 + $0x98] sm:$0xff] %v1835
      %1868 = vst [vmem:[#allocation3 + $0xa0] sm:$0xff] %v1836
      %1869 = vst [vmem:[#allocation3 + $0xa8] sm:$0xff] %v1837
      %1870 = vst [vmem:[#allocation3 + $0xb0] sm:$0xff] %v1838
      %1871 = vst [vmem:[#allocation3 + $0xb8] sm:$0xff] %v1839
      %1872 = vst [vmem:[#allocation3 + $0xc0] sm:$0xff] %v1840
      %1873 = vst [vmem:[#allocation3 + $0xc8] sm:$0xff] %v1841
      %1874 = vst [vmem:[#allocation3 + $0xd0] sm:$0xff] %v1842
      %1875 = vst [vmem:[#allocation3 + $0xd8] sm:$0xff] %v1843
      %1876 = vst [vmem:[#allocation3 + $0xe0] sm:$0xff] %v1844
      %1877 = vst [vmem:[#allocation3 + $0xe8] sm:$0xff] %v1845
      %1878 = vst [vmem:[#allocation3 + $0xf0] sm:$0xff] %v1846
      %1879 = vst [vmem:[#allocation3 + $0xf8] sm:$0xff] %v1847
      %v1880 = vld [vmem:[%s432 + $0x1] sm:$0xff]
      %v1881 = vld [vmem:[%s432 + $0x9] sm:$0xff]
      %v1882 = vld [vmem:[%s432 + $0x19] sm:$0xff]
      %v1883 = vld [vmem:[%s432 + $0x21] sm:$0xff]
      %v1884 = vld [vmem:[%s432 + $0x31] sm:$0xff]
      %v1885 = vld [vmem:[%s432 + $0x39] sm:$0xff]
      %v1886 = vld [vmem:[%s432 + $0x49] sm:$0xff]
      %v1887 = vld [vmem:[%s432 + $0x51] sm:$0xff]
      %v1888 = vld [vmem:[%s432 + $0x61] sm:$0xff]
      %v1889 = vld [vmem:[%s432 + $0x69] sm:$0xff]
      %v1890 = vld [vmem:[%s432 + $0x79] sm:$0xff]
      %v1891 = vld [vmem:[%s432 + $0x81] sm:$0xff]
      %v1892 = vld [vmem:[%s432 + $0x91] sm:$0xff]
      %v1893 = vld [vmem:[%s432 + $0x99] sm:$0xff]
      %v1894 = vld [vmem:[%s432 + $0xa9] sm:$0xff]
      %v1895 = vld [vmem:[%s432 + $0xb1] sm:$0xff]
      %v1896 = vld [vmem:[%s432 + $0xc1] sm:$0xff]
      %v1897 = vld [vmem:[%s432 + $0xc9] sm:$0xff]
      %v1898 = vld [vmem:[%s432 + $0xd9] sm:$0xff]
      %v1899 = vld [vmem:[%s432 + $0xe1] sm:$0xff]
      %v1900 = vld [vmem:[%s432 + $0xf1] sm:$0xff]
      %v1901 = vld [vmem:[%s432 + $0xf9] sm:$0xff]
      %v1902 = vld [vmem:[%s432 + $0x109] sm:$0xff]
      %v1903 = vld [vmem:[%s432 + $0x111] sm:$0xff]
      %v1904 = vld [vmem:[%s432 + $0x121] sm:$0xff]
      %v1905 = vld [vmem:[%s432 + $0x129] sm:$0xff]
      %v1906 = vld [vmem:[%s432 + $0x139] sm:$0xff]
      %v1907 = vld [vmem:[%s432 + $0x141] sm:$0xff]
      %v1908 = vld [vmem:[%s432 + $0x151] sm:$0xff]
      %v1909 = vld [vmem:[%s432 + $0x159] sm:$0xff]
      %v1910 = vld [vmem:[%s432 + $0x169] sm:$0xff]
      %v1911 = vld [vmem:[%s432 + $0x171] sm:$0xff]
      %s1912 = scalar_lea.vmem %s1, 512
      %v1913 = vld [vmem:[%s1912] sm:$0xff]
      %v1914 = vld [vmem:[%s1912 + $0x8] sm:$0xff]
      %v1915 = vld [vmem:[%s1912 + $0x10] sm:$0xff]
      %v1916 = vld [vmem:[%s1912 + $0x18] sm:$0xff]
      %v1917 = vld [vmem:[%s1912 + $0x20] sm:$0xff]
      %v1918 = vld [vmem:[%s1912 + $0x28] sm:$0xff]
      %v1919 = vld [vmem:[%s1912 + $0x30] sm:$0xff]
      %v1920 = vld [vmem:[%s1912 + $0x38] sm:$0xff]
      %v1921 = vld [vmem:[%s1912 + $0x40] sm:$0xff]
      %v1922 = vld [vmem:[%s1912 + $0x48] sm:$0xff]
      %v1923 = vld [vmem:[%s1912 + $0x50] sm:$0xff]
      %v1924 = vld [vmem:[%s1912 + $0x58] sm:$0xff]
      %v1925 = vld [vmem:[%s1912 + $0x60] sm:$0xff]
      %v1926 = vld [vmem:[%s1912 + $0x68] sm:$0xff]
      %v1927 = vld [vmem:[%s1912 + $0x70] sm:$0xff]
      %v1928 = vld [vmem:[%s1912 + $0x78] sm:$0xff]
      %1929 = vmatprep.subr.mxu0 0.0
      %1930 = vmatpush1.msra.mxu0 %v1928
      %1931 = vmatprep.subr.mxu0 0.0
      %1932 = vmatpush1.msra.mxu0 %v1927
      %1933 = vmatprep.subr.mxu0 0.0
      %1934 = vmatpush1.msra.mxu0 %v1926
      %1935 = vmatprep.subr.mxu0 0.0
      %1936 = vmatpush1.msra.mxu0 %v1925
      %1937 = vmatprep.subr.mxu0 0.0
      %1938 = vmatpush1.msra.mxu0 %v1924
      %1939 = vmatprep.subr.mxu0 0.0
      %1940 = vmatpush1.msra.mxu0 %v1923
      %1941 = vmatprep.subr.mxu0 0.0
      %1942 = vmatpush1.msra.mxu0 %v1922
      %1943 = vmatprep.subr.mxu0 0.0
      %1944 = vmatpush1.msra.mxu0 %v1921
      %1945 = vmatprep.subr.mxu0 0.0
      %1946 = vmatpush1.msra.mxu0 %v1920
      %1947 = vmatprep.subr.mxu0 0.0
      %1948 = vmatpush1.msra.mxu0 %v1919
      %1949 = vmatprep.subr.mxu0 0.0
      %1950 = vmatpush1.msra.mxu0 %v1918
      %1951 = vmatprep.subr.mxu0 0.0
      %1952 = vmatpush1.msra.mxu0 %v1917
      %1953 = vmatprep.subr.mxu0 0.0
      %1954 = vmatpush1.msra.mxu0 %v1916
      %1955 = vmatprep.subr.mxu0 0.0
      %1956 = vmatpush1.msra.mxu0 %v1915
      %1957 = vmatprep.subr.mxu0 0.0
      %1958 = vmatpush1.msra.mxu0 %v1914
      %1959 = vmatprep.subr.mxu0 0.0
      %1960 = vmatpush1.msra.mxu0 %v1913
      %1961 = vmatprep.subr.mxu0 0.0
      %1962 = vmatpush2.msra.mxu0 0.0
      %1963 = vmatprep.subr.mxu0 0.0
      %1964 = vmatpush2.msra.mxu0 0.0
      %1965 = vmatprep.subr.mxu0 0.0
      %1966 = vmatpush2.msra.mxu0 0.0
      %1967 = vmatprep.subr.mxu0 0.0
      %1968 = vmatpush2.msra.mxu0 0.0
      %1969 = vmatprep.subr.mxu0 0.0
      %1970 = vmatpush2.msra.mxu0 0.0
      %1971 = vmatprep.subr.mxu0 0.0
      %1972 = vmatpush2.msra.mxu0 0.0
      %1973 = vmatprep.subr.mxu0 0.0
      %1974 = vmatpush2.msra.mxu0 0.0
      %1975 = vmatprep.subr.mxu0 0.0
      %1976 = vmatpush2.msra.mxu0 0.0
      %1977 = vmatprep.subr.mxu0 0.0
      %1978 = vmatpush2.msra.mxu0 0.0
      %1979 = vmatprep.subr.mxu0 0.0
      %1980 = vmatpush2.msra.mxu0 0.0
      %1981 = vmatprep.subr.mxu0 0.0
      %1982 = vmatpush2.msra.mxu0 0.0
      %1983 = vmatprep.subr.mxu0 0.0
      %1984 = vmatpush2.msra.mxu0 0.0
      %1985 = vmatprep.subr.mxu0 0.0
      %1986 = vmatpush2.msra.mxu0 0.0
      %1987 = vmatprep.subr.mxu0 0.0
      %1988 = vmatpush2.msra.mxu0 0.0
      %1989 = vmatprep.subr.mxu0 0.0
      %1990 = vmatpush2.msra.mxu0 0.0
      %1991 = vmatprep.subr.mxu0 0.0
      %1992 = vmatpush2.msra.mxu0 0.0
      %1993 = vmatprep.mubr.f32.mxu0 0.0
      %1994 = vmatmul.mubr.f32.gmra.mxu0 %v1880
      %v1995 = vpop.f32.mrf.mxu0
      %v1996 = vadd.f32 0.0, %v1995
      %v1997 = vpop.f32.mrf.mxu0
      %1998 = vmatprep.mubr.f32.mxu0 0.0
      %1999 = vmatmul.mubr.f32.gmra.mxu0 %v1881
      %v2000 = vpop.f32.mrf.mxu0
      %v2001 = vadd.f32 0.0, %v2000
      %v2002 = vpop.f32.mrf.mxu0
      %2003 = vmatprep.mubr.f32.mxu0 0.0
      %2004 = vmatmul.mubr.f32.gmra.mxu0 %v1882
      %v2005 = vpop.f32.mrf.mxu0
      %v2006 = vadd.f32 0.0, %v2005
      %v2007 = vpop.f32.mrf.mxu0
      %2008 = vmatprep.mubr.f32.mxu0 0.0
      %2009 = vmatmul.mubr.f32.gmra.mxu0 %v1883
      %v2010 = vpop.f32.mrf.mxu0
      %v2011 = vadd.f32 0.0, %v2010
      %v2012 = vpop.f32.mrf.mxu0
      %2013 = vmatprep.mubr.f32.mxu0 0.0
      %2014 = vmatmul.mubr.f32.gmra.mxu0 %v1884
      %v2015 = vpop.f32.mrf.mxu0
      %v2016 = vadd.f32 0.0, %v2015
      %v2017 = vpop.f32.mrf.mxu0
      %2018 = vmatprep.mubr.f32.mxu0 0.0
      %2019 = vmatmul.mubr.f32.gmra.mxu0 %v1885
      %v2020 = vpop.f32.mrf.mxu0
      %v2021 = vadd.f32 0.0, %v2020
      %v2022 = vpop.f32.mrf.mxu0
      %2023 = vmatprep.mubr.f32.mxu0 0.0
      %2024 = vmatmul.mubr.f32.gmra.mxu0 %v1886
      %v2025 = vpop.f32.mrf.mxu0
      %v2026 = vadd.f32 0.0, %v2025
      %v2027 = vpop.f32.mrf.mxu0
      %2028 = vmatprep.mubr.f32.mxu0 0.0
      %2029 = vmatmul.mubr.f32.gmra.mxu0 %v1887
      %v2030 = vpop.f32.mrf.mxu0
      %v2031 = vadd.f32 0.0, %v2030
      %v2032 = vpop.f32.mrf.mxu0
      %2033 = vmatprep.mubr.f32.mxu0 0.0
      %2034 = vmatmul.mubr.f32.gmra.mxu0 %v1888
      %v2035 = vpop.f32.mrf.mxu0
      %v2036 = vadd.f32 0.0, %v2035
      %v2037 = vpop.f32.mrf.mxu0
      %2038 = vmatprep.mubr.f32.mxu0 0.0
      %2039 = vmatmul.mubr.f32.gmra.mxu0 %v1889
      %v2040 = vpop.f32.mrf.mxu0
      %v2041 = vadd.f32 0.0, %v2040
      %v2042 = vpop.f32.mrf.mxu0
      %2043 = vmatprep.mubr.f32.mxu0 0.0
      %2044 = vmatmul.mubr.f32.gmra.mxu0 %v1890
      %v2045 = vpop.f32.mrf.mxu0
      %v2046 = vadd.f32 0.0, %v2045
      %v2047 = vpop.f32.mrf.mxu0
      %2048 = vmatprep.mubr.f32.mxu0 0.0
      %2049 = vmatmul.mubr.f32.gmra.mxu0 %v1891
      %v2050 = vpop.f32.mrf.mxu0
      %v2051 = vadd.f32 0.0, %v2050
      %v2052 = vpop.f32.mrf.mxu0
      %2053 = vmatprep.mubr.f32.mxu0 0.0
      %2054 = vmatmul.mubr.f32.gmra.mxu0 %v1892
      %v2055 = vpop.f32.mrf.mxu0
      %v2056 = vadd.f32 0.0, %v2055
      %v2057 = vpop.f32.mrf.mxu0
      %2058 = vmatprep.mubr.f32.mxu0 0.0
      %2059 = vmatmul.mubr.f32.gmra.mxu0 %v1893
      %v2060 = vpop.f32.mrf.mxu0
      %v2061 = vadd.f32 0.0, %v2060
      %v2062 = vpop.f32.mrf.mxu0
      %2063 = vmatprep.mubr.f32.mxu0 0.0
      %2064 = vmatmul.mubr.f32.gmra.mxu0 %v1894
      %v2065 = vpop.f32.mrf.mxu0
      %v2066 = vadd.f32 0.0, %v2065
      %v2067 = vpop.f32.mrf.mxu0
      %2068 = vmatprep.mubr.f32.mxu0 0.0
      %2069 = vmatmul.mubr.f32.gmra.mxu0 %v1895
      %v2070 = vpop.f32.mrf.mxu0
      %v2071 = vadd.f32 0.0, %v2070
      %v2072 = vpop.f32.mrf.mxu0
      %2073 = vmatprep.mubr.f32.mxu0 0.0
      %2074 = vmatmul.mubr.f32.gmra.mxu0 %v1896
      %v2075 = vpop.f32.mrf.mxu0
      %v2076 = vadd.f32 0.0, %v2075
      %v2077 = vpop.f32.mrf.mxu0
      %2078 = vmatprep.mubr.f32.mxu0 0.0
      %2079 = vmatmul.mubr.f32.gmra.mxu0 %v1897
      %v2080 = vpop.f32.mrf.mxu0
      %v2081 = vadd.f32 0.0, %v2080
      %v2082 = vpop.f32.mrf.mxu0
      %2083 = vmatprep.mubr.f32.mxu0 0.0
      %2084 = vmatmul.mubr.f32.gmra.mxu0 %v1898
      %v2085 = vpop.f32.mrf.mxu0
      %v2086 = vadd.f32 0.0, %v2085
      %v2087 = vpop.f32.mrf.mxu0
      %2088 = vmatprep.mubr.f32.mxu0 0.0
      %2089 = vmatmul.mubr.f32.gmra.mxu0 %v1899
      %v2090 = vpop.f32.mrf.mxu0
      %v2091 = vadd.f32 0.0, %v2090
      %v2092 = vpop.f32.mrf.mxu0
      %2093 = vmatprep.mubr.f32.mxu0 0.0
      %2094 = vmatmul.mubr.f32.gmra.mxu0 %v1900
      %v2095 = vpop.f32.mrf.mxu0
      %v2096 = vadd.f32 0.0, %v2095
      %v2097 = vpop.f32.mrf.mxu0
      %2098 = vmatprep.mubr.f32.mxu0 0.0
      %2099 = vmatmul.mubr.f32.gmra.mxu0 %v1901
      %v2100 = vpop.f32.mrf.mxu0
      %v2101 = vadd.f32 0.0, %v2100
      %v2102 = vpop.f32.mrf.mxu0
      %2103 = vmatprep.mubr.f32.mxu0 0.0
      %2104 = vmatmul.mubr.f32.gmra.mxu0 %v1902
      %v2105 = vpop.f32.mrf.mxu0
      %v2106 = vadd.f32 0.0, %v2105
      %v2107 = vpop.f32.mrf.mxu0
      %2108 = vmatprep.mubr.f32.mxu0 0.0
      %2109 = vmatmul.mubr.f32.gmra.mxu0 %v1903
      %v2110 = vpop.f32.mrf.mxu0
      %v2111 = vadd.f32 0.0, %v2110
      %v2112 = vpop.f32.mrf.mxu0
      %2113 = vmatprep.mubr.f32.mxu0 0.0
      %2114 = vmatmul.mubr.f32.gmra.mxu0 %v1904
      %v2115 = vpop.f32.mrf.mxu0
      %v2116 = vadd.f32 0.0, %v2115
      %v2117 = vpop.f32.mrf.mxu0
      %2118 = vmatprep.mubr.f32.mxu0 0.0
      %2119 = vmatmul.mubr.f32.gmra.mxu0 %v1905
      %v2120 = vpop.f32.mrf.mxu0
      %v2121 = vadd.f32 0.0, %v2120
      %v2122 = vpop.f32.mrf.mxu0
      %2123 = vmatprep.mubr.f32.mxu0 0.0
      %2124 = vmatmul.mubr.f32.gmra.mxu0 %v1906
      %v2125 = vpop.f32.mrf.mxu0
      %v2126 = vadd.f32 0.0, %v2125
      %v2127 = vpop.f32.mrf.mxu0
      %2128 = vmatprep.mubr.f32.mxu0 0.0
      %2129 = vmatmul.mubr.f32.gmra.mxu0 %v1907
      %v2130 = vpop.f32.mrf.mxu0
      %v2131 = vadd.f32 0.0, %v2130
      %v2132 = vpop.f32.mrf.mxu0
      %2133 = vmatprep.mubr.f32.mxu0 0.0
      %2134 = vmatmul.mubr.f32.gmra.mxu0 %v1908
      %v2135 = vpop.f32.mrf.mxu0
      %v2136 = vadd.f32 0.0, %v2135
      %v2137 = vpop.f32.mrf.mxu0
      %2138 = vmatprep.mubr.f32.mxu0 0.0
      %2139 = vmatmul.mubr.f32.gmra.mxu0 %v1909
      %v2140 = vpop.f32.mrf.mxu0
      %v2141 = vadd.f32 0.0, %v2140
      %v2142 = vpop.f32.mrf.mxu0
      %2143 = vmatprep.mubr.f32.mxu0 0.0
      %2144 = vmatmul.mubr.f32.gmra.mxu0 %v1910
      %v2145 = vpop.f32.mrf.mxu0
      %v2146 = vadd.f32 0.0, %v2145
      %v2147 = vpop.f32.mrf.mxu0
      %2148 = vmatprep.mubr.f32.mxu0 0.0
      %2149 = vmatmul.mubr.f32.gmra.mxu0 %v1911
      %v2150 = vpop.f32.mrf.mxu0
      %v2151 = vadd.f32 0.0, %v2150
      %v2152 = vpop.f32.mrf.mxu0
      %2153 = vdwg.mxu0
      %v2154 = vld [vmem:[#allocation3] sm:$0xff]
      %v2155 = vld [vmem:[#allocation3 + $0x8] sm:$0xff]
      %v2156 = vld [vmem:[#allocation3 + $0x10] sm:$0xff]
      %v2157 = vld [vmem:[#allocation3 + $0x18] sm:$0xff]
      %v2158 = vld [vmem:[#allocation3 + $0x20] sm:$0xff]
      %v2159 = vld [vmem:[#allocation3 + $0x28] sm:$0xff]
      %v2160 = vld [vmem:[#allocation3 + $0x30] sm:$0xff]
      %v2161 = vld [vmem:[#allocation3 + $0x38] sm:$0xff]
      %v2162 = vld [vmem:[#allocation3 + $0x40] sm:$0xff]
      %v2163 = vld [vmem:[#allocation3 + $0x48] sm:$0xff]
      %v2164 = vld [vmem:[#allocation3 + $0x50] sm:$0xff]
      %v2165 = vld [vmem:[#allocation3 + $0x58] sm:$0xff]
      %v2166 = vld [vmem:[#allocation3 + $0x60] sm:$0xff]
      %v2167 = vld [vmem:[#allocation3 + $0x68] sm:$0xff]
      %v2168 = vld [vmem:[#allocation3 + $0x70] sm:$0xff]
      %v2169 = vld [vmem:[#allocation3 + $0x78] sm:$0xff]
      %v2170 = vld [vmem:[#allocation3 + $0x80] sm:$0xff]
      %v2171 = vld [vmem:[#allocation3 + $0x88] sm:$0xff]
      %v2172 = vld [vmem:[#allocation3 + $0x90] sm:$0xff]
      %v2173 = vld [vmem:[#allocation3 + $0x98] sm:$0xff]
      %v2174 = vld [vmem:[#allocation3 + $0xa0] sm:$0xff]
      %v2175 = vld [vmem:[#allocation3 + $0xa8] sm:$0xff]
      %v2176 = vld [vmem:[#allocation3 + $0xb0] sm:$0xff]
      %v2177 = vld [vmem:[#allocation3 + $0xb8] sm:$0xff]
      %v2178 = vld [vmem:[#allocation3 + $0xc0] sm:$0xff]
      %v2179 = vld [vmem:[#allocation3 + $0xc8] sm:$0xff]
      %v2180 = vld [vmem:[#allocation3 + $0xd0] sm:$0xff]
      %v2181 = vld [vmem:[#allocation3 + $0xd8] sm:$0xff]
      %v2182 = vld [vmem:[#allocation3 + $0xe0] sm:$0xff]
      %v2183 = vld [vmem:[#allocation3 + $0xe8] sm:$0xff]
      %v2184 = vld [vmem:[#allocation3 + $0xf0] sm:$0xff]
      %v2185 = vld [vmem:[#allocation3 + $0xf8] sm:$0xff]
      %v2186 = vadd.f32 %v2154, %v1996
      %v2187 = vadd.f32 %v2155, %v2001
      %v2188 = vadd.f32 %v2156, %v2006
      %v2189 = vadd.f32 %v2157, %v2011
      %v2190 = vadd.f32 %v2158, %v2016
      %v2191 = vadd.f32 %v2159, %v2021
      %v2192 = vadd.f32 %v2160, %v2026
      %v2193 = vadd.f32 %v2161, %v2031
      %v2194 = vadd.f32 %v2162, %v2036
      %v2195 = vadd.f32 %v2163, %v2041
      %v2196 = vadd.f32 %v2164, %v2046
      %v2197 = vadd.f32 %v2165, %v2051
      %v2198 = vadd.f32 %v2166, %v2056
      %v2199 = vadd.f32 %v2167, %v2061
      %v2200 = vadd.f32 %v2168, %v2066
      %v2201 = vadd.f32 %v2169, %v2071
      %v2202 = vadd.f32 %v2170, %v2076
      %v2203 = vadd.f32 %v2171, %v2081
      %v2204 = vadd.f32 %v2172, %v2086
      %v2205 = vadd.f32 %v2173, %v2091
      %v2206 = vadd.f32 %v2174, %v2096
      %v2207 = vadd.f32 %v2175, %v2101
      %v2208 = vadd.f32 %v2176, %v2106
      %v2209 = vadd.f32 %v2177, %v2111
      %v2210 = vadd.f32 %v2178, %v2116
      %v2211 = vadd.f32 %v2179, %v2121
      %v2212 = vadd.f32 %v2180, %v2126
      %v2213 = vadd.f32 %v2181, %v2131
      %v2214 = vadd.f32 %v2182, %v2136
      %v2215 = vadd.f32 %v2183, %v2141
      %v2216 = vadd.f32 %v2184, %v2146
      %v2217 = vadd.f32 %v2185, %v2151
      %2218 = vst [vmem:[#allocation3] sm:$0xff] %v2186
      %2219 = vst [vmem:[#allocation3 + $0x8] sm:$0xff] %v2187
      %2220 = vst [vmem:[#allocation3 + $0x10] sm:$0xff] %v2188
      %2221 = vst [vmem:[#allocation3 + $0x18] sm:$0xff] %v2189
      %2222 = vst [vmem:[#allocation3 + $0x20] sm:$0xff] %v2190
      %2223 = vst [vmem:[#allocation3 + $0x28] sm:$0xff] %v2191
      %2224 = vst [vmem:[#allocation3 + $0x30] sm:$0xff] %v2192
      %2225 = vst [vmem:[#allocation3 + $0x38] sm:$0xff] %v2193
      %2226 = vst [vmem:[#allocation3 + $0x40] sm:$0xff] %v2194
      %2227 = vst [vmem:[#allocation3 + $0x48] sm:$0xff] %v2195
      %2228 = vst [vmem:[#allocation3 + $0x50] sm:$0xff] %v2196
      %2229 = vst [vmem:[#allocation3 + $0x58] sm:$0xff] %v2197
      %2230 = vst [vmem:[#allocation3 + $0x60] sm:$0xff] %v2198
      %2231 = vst [vmem:[#allocation3 + $0x68] sm:$0xff] %v2199
      %2232 = vst [vmem:[#allocation3 + $0x70] sm:$0xff] %v2200
      %2233 = vst [vmem:[#allocation3 + $0x78] sm:$0xff] %v2201
      %2234 = vst [vmem:[#allocation3 + $0x80] sm:$0xff] %v2202
      %2235 = vst [vmem:[#allocation3 + $0x88] sm:$0xff] %v2203
      %2236 = vst [vmem:[#allocation3 + $0x90] sm:$0xff] %v2204
      %2237 = vst [vmem:[#allocation3 + $0x98] sm:$0xff] %v2205
      %2238 = vst [vmem:[#allocation3 + $0xa0] sm:$0xff] %v2206
      %2239 = vst [vmem:[#allocation3 + $0xa8] sm:$0xff] %v2207
      %2240 = vst [vmem:[#allocation3 + $0xb0] sm:$0xff] %v2208
      %2241 = vst [vmem:[#allocation3 + $0xb8] sm:$0xff] %v2209
      %2242 = vst [vmem:[#allocation3 + $0xc0] sm:$0xff] %v2210
      %2243 = vst [vmem:[#allocation3 + $0xc8] sm:$0xff] %v2211
      %2244 = vst [vmem:[#allocation3 + $0xd0] sm:$0xff] %v2212
      %2245 = vst [vmem:[#allocation3 + $0xd8] sm:$0xff] %v2213
      %2246 = vst [vmem:[#allocation3 + $0xe0] sm:$0xff] %v2214
      %2247 = vst [vmem:[#allocation3 + $0xe8] sm:$0xff] %v2215
      %2248 = vst [vmem:[#allocation3 + $0xf0] sm:$0xff] %v2216
      %2249 = vst [vmem:[#allocation3 + $0xf8] sm:$0xff] %v2217
      %v2250 = vld [vmem:[%s432 + $0x2] sm:$0xff]
      %v2251 = vld [vmem:[%s432 + $0xa] sm:$0xff]
      %v2252 = vld [vmem:[%s432 + $0x1a] sm:$0xff]
      %v2253 = vld [vmem:[%s432 + $0x22] sm:$0xff]
      %v2254 = vld [vmem:[%s432 + $0x32] sm:$0xff]
      %v2255 = vld [vmem:[%s432 + $0x3a] sm:$0xff]
      %v2256 = vld [vmem:[%s432 + $0x4a] sm:$0xff]
      %v2257 = vld [vmem:[%s432 + $0x52] sm:$0xff]
      %v2258 = vld [vmem:[%s432 + $0x62] sm:$0xff]
      %v2259 = vld [vmem:[%s432 + $0x6a] sm:$0xff]
      %v2260 = vld [vmem:[%s432 + $0x7a] sm:$0xff]
      %v2261 = vld [vmem:[%s432 + $0x82] sm:$0xff]
      %v2262 = vld [vmem:[%s432 + $0x92] sm:$0xff]
      %v2263 = vld [vmem:[%s432 + $0x9a] sm:$0xff]
      %v2264 = vld [vmem:[%s432 + $0xaa] sm:$0xff]
      %v2265 = vld [vmem:[%s432 + $0xb2] sm:$0xff]
      %v2266 = vld [vmem:[%s432 + $0xc2] sm:$0xff]
      %v2267 = vld [vmem:[%s432 + $0xca] sm:$0xff]
      %v2268 = vld [vmem:[%s432 + $0xda] sm:$0xff]
      %v2269 = vld [vmem:[%s432 + $0xe2] sm:$0xff]
      %v2270 = vld [vmem:[%s432 + $0xf2] sm:$0xff]
      %v2271 = vld [vmem:[%s432 + $0xfa] sm:$0xff]
      %v2272 = vld [vmem:[%s432 + $0x10a] sm:$0xff]
      %v2273 = vld [vmem:[%s432 + $0x112] sm:$0xff]
      %v2274 = vld [vmem:[%s432 + $0x122] sm:$0xff]
      %v2275 = vld [vmem:[%s432 + $0x12a] sm:$0xff]
      %v2276 = vld [vmem:[%s432 + $0x13a] sm:$0xff]
      %v2277 = vld [vmem:[%s432 + $0x142] sm:$0xff]
      %v2278 = vld [vmem:[%s432 + $0x152] sm:$0xff]
      %v2279 = vld [vmem:[%s432 + $0x15a] sm:$0xff]
      %v2280 = vld [vmem:[%s432 + $0x16a] sm:$0xff]
      %v2281 = vld [vmem:[%s432 + $0x172] sm:$0xff]
      %s2282 = scalar_lea.vmem %s1, 640
      %v2283 = vld [vmem:[%s2282] sm:$0xff]
      %v2284 = vld [vmem:[%s2282 + $0x8] sm:$0xff]
      %v2285 = vld [vmem:[%s2282 + $0x10] sm:$0xff]
      %v2286 = vld [vmem:[%s2282 + $0x18] sm:$0xff]
      %v2287 = vld [vmem:[%s2282 + $0x20] sm:$0xff]
      %v2288 = vld [vmem:[%s2282 + $0x28] sm:$0xff]
      %v2289 = vld [vmem:[%s2282 + $0x30] sm:$0xff]
      %v2290 = vld [vmem:[%s2282 + $0x38] sm:$0xff]
      %v2291 = vld [vmem:[%s2282 + $0x40] sm:$0xff]
      %v2292 = vld [vmem:[%s2282 + $0x48] sm:$0xff]
      %v2293 = vld [vmem:[%s2282 + $0x50] sm:$0xff]
      %v2294 = vld [vmem:[%s2282 + $0x58] sm:$0xff]
      %v2295 = vld [vmem:[%s2282 + $0x60] sm:$0xff]
      %v2296 = vld [vmem:[%s2282 + $0x68] sm:$0xff]
      %v2297 = vld [vmem:[%s2282 + $0x70] sm:$0xff]
      %v2298 = vld [vmem:[%s2282 + $0x78] sm:$0xff]
      %2299 = vmatprep.subr.mxu0 0.0
      %2300 = vmatpush1.msra.mxu0 %v2298
      %2301 = vmatprep.subr.mxu0 0.0
      %2302 = vmatpush1.msra.mxu0 %v2297
      %2303 = vmatprep.subr.mxu0 0.0
      %2304 = vmatpush1.msra.mxu0 %v2296
      %2305 = vmatprep.subr.mxu0 0.0
      %2306 = vmatpush1.msra.mxu0 %v2295
      %2307 = vmatprep.subr.mxu0 0.0
      %2308 = vmatpush1.msra.mxu0 %v2294
      %2309 = vmatprep.subr.mxu0 0.0
      %2310 = vmatpush1.msra.mxu0 %v2293
      %2311 = vmatprep.subr.mxu0 0.0
      %2312 = vmatpush1.msra.mxu0 %v2292
      %2313 = vmatprep.subr.mxu0 0.0
      %2314 = vmatpush1.msra.mxu0 %v2291
      %2315 = vmatprep.subr.mxu0 0.0
      %2316 = vmatpush1.msra.mxu0 %v2290
      %2317 = vmatprep.subr.mxu0 0.0
      %2318 = vmatpush1.msra.mxu0 %v2289
      %2319 = vmatprep.subr.mxu0 0.0
      %2320 = vmatpush1.msra.mxu0 %v2288
      %2321 = vmatprep.subr.mxu0 0.0
      %2322 = vmatpush1.msra.mxu0 %v2287
      %2323 = vmatprep.subr.mxu0 0.0
      %2324 = vmatpush1.msra.mxu0 %v2286
      %2325 = vmatprep.subr.mxu0 0.0
      %2326 = vmatpush1.msra.mxu0 %v2285
      %2327 = vmatprep.subr.mxu0 0.0
      %2328 = vmatpush1.msra.mxu0 %v2284
      %2329 = vmatprep.subr.mxu0 0.0
      %2330 = vmatpush1.msra.mxu0 %v2283
      %2331 = vmatprep.subr.mxu0 0.0
      %2332 = vmatpush2.msra.mxu0 0.0
      %2333 = vmatprep.subr.mxu0 0.0
      %2334 = vmatpush2.msra.mxu0 0.0
      %2335 = vmatprep.subr.mxu0 0.0
      %2336 = vmatpush2.msra.mxu0 0.0
      %2337 = vmatprep.subr.mxu0 0.0
      %2338 = vmatpush2.msra.mxu0 0.0
      %2339 = vmatprep.subr.mxu0 0.0
      %2340 = vmatpush2.msra.mxu0 0.0
      %2341 = vmatprep.subr.mxu0 0.0
      %2342 = vmatpush2.msra.mxu0 0.0
      %2343 = vmatprep.subr.mxu0 0.0
      %2344 = vmatpush2.msra.mxu0 0.0
      %2345 = vmatprep.subr.mxu0 0.0
      %2346 = vmatpush2.msra.mxu0 0.0
      %2347 = vmatprep.subr.mxu0 0.0
      %2348 = vmatpush2.msra.mxu0 0.0
      %2349 = vmatprep.subr.mxu0 0.0
      %2350 = vmatpush2.msra.mxu0 0.0
      %2351 = vmatprep.subr.mxu0 0.0
      %2352 = vmatpush2.msra.mxu0 0.0
      %2353 = vmatprep.subr.mxu0 0.0
      %2354 = vmatpush2.msra.mxu0 0.0
      %2355 = vmatprep.subr.mxu0 0.0
      %2356 = vmatpush2.msra.mxu0 0.0
      %2357 = vmatprep.subr.mxu0 0.0
      %2358 = vmatpush2.msra.mxu0 0.0
      %2359 = vmatprep.subr.mxu0 0.0
      %2360 = vmatpush2.msra.mxu0 0.0
      %2361 = vmatprep.subr.mxu0 0.0
      %2362 = vmatpush2.msra.mxu0 0.0
      %2363 = vmatprep.mubr.f32.mxu0 0.0
      %2364 = vmatmul.mubr.f32.gmra.mxu0 %v2250
      %v2365 = vpop.f32.mrf.mxu0
      %v2366 = vadd.f32 0.0, %v2365
      %v2367 = vpop.f32.mrf.mxu0
      %2368 = vmatprep.mubr.f32.mxu0 0.0
      %2369 = vmatmul.mubr.f32.gmra.mxu0 %v2251
      %v2370 = vpop.f32.mrf.mxu0
      %v2371 = vadd.f32 0.0, %v2370
      %v2372 = vpop.f32.mrf.mxu0
      %2373 = vmatprep.mubr.f32.mxu0 0.0
      %2374 = vmatmul.mubr.f32.gmra.mxu0 %v2252
      %v2375 = vpop.f32.mrf.mxu0
      %v2376 = vadd.f32 0.0, %v2375
      %v2377 = vpop.f32.mrf.mxu0
      %2378 = vmatprep.mubr.f32.mxu0 0.0
      %2379 = vmatmul.mubr.f32.gmra.mxu0 %v2253
      %v2380 = vpop.f32.mrf.mxu0
      %v2381 = vadd.f32 0.0, %v2380
      %v2382 = vpop.f32.mrf.mxu0
      %2383 = vmatprep.mubr.f32.mxu0 0.0
      %2384 = vmatmul.mubr.f32.gmra.mxu0 %v2254
      %v2385 = vpop.f32.mrf.mxu0
      %v2386 = vadd.f32 0.0, %v2385
      %v2387 = vpop.f32.mrf.mxu0
      %2388 = vmatprep.mubr.f32.mxu0 0.0
      %2389 = vmatmul.mubr.f32.gmra.mxu0 %v2255
      %v2390 = vpop.f32.mrf.mxu0
      %v2391 = vadd.f32 0.0, %v2390
      %v2392 = vpop.f32.mrf.mxu0
      %2393 = vmatprep.mubr.f32.mxu0 0.0
      %2394 = vmatmul.mubr.f32.gmra.mxu0 %v2256
      %v2395 = vpop.f32.mrf.mxu0
      %v2396 = vadd.f32 0.0, %v2395
      %v2397 = vpop.f32.mrf.mxu0
      %2398 = vmatprep.mubr.f32.mxu0 0.0
      %2399 = vmatmul.mubr.f32.gmra.mxu0 %v2257
      %v2400 = vpop.f32.mrf.mxu0
      %v2401 = vadd.f32 0.0, %v2400
      %v2402 = vpop.f32.mrf.mxu0
      %2403 = vmatprep.mubr.f32.mxu0 0.0
      %2404 = vmatmul.mubr.f32.gmra.mxu0 %v2258
      %v2405 = vpop.f32.mrf.mxu0
      %v2406 = vadd.f32 0.0, %v2405
      %v2407 = vpop.f32.mrf.mxu0
      %2408 = vmatprep.mubr.f32.mxu0 0.0
      %2409 = vmatmul.mubr.f32.gmra.mxu0 %v2259
      %v2410 = vpop.f32.mrf.mxu0
      %v2411 = vadd.f32 0.0, %v2410
      %v2412 = vpop.f32.mrf.mxu0
      %2413 = vmatprep.mubr.f32.mxu0 0.0
      %2414 = vmatmul.mubr.f32.gmra.mxu0 %v2260
      %v2415 = vpop.f32.mrf.mxu0
      %v2416 = vadd.f32 0.0, %v2415
      %v2417 = vpop.f32.mrf.mxu0
      %2418 = vmatprep.mubr.f32.mxu0 0.0
      %2419 = vmatmul.mubr.f32.gmra.mxu0 %v2261
      %v2420 = vpop.f32.mrf.mxu0
      %v2421 = vadd.f32 0.0, %v2420
      %v2422 = vpop.f32.mrf.mxu0
      %2423 = vmatprep.mubr.f32.mxu0 0.0
      %2424 = vmatmul.mubr.f32.gmra.mxu0 %v2262
      %v2425 = vpop.f32.mrf.mxu0
      %v2426 = vadd.f32 0.0, %v2425
      %v2427 = vpop.f32.mrf.mxu0
      %2428 = vmatprep.mubr.f32.mxu0 0.0
      %2429 = vmatmul.mubr.f32.gmra.mxu0 %v2263
      %v2430 = vpop.f32.mrf.mxu0
      %v2431 = vadd.f32 0.0, %v2430
      %v2432 = vpop.f32.mrf.mxu0
      %2433 = vmatprep.mubr.f32.mxu0 0.0
      %2434 = vmatmul.mubr.f32.gmra.mxu0 %v2264
      %v2435 = vpop.f32.mrf.mxu0
      %v2436 = vadd.f32 0.0, %v2435
      %v2437 = vpop.f32.mrf.mxu0
      %2438 = vmatprep.mubr.f32.mxu0 0.0
      %2439 = vmatmul.mubr.f32.gmra.mxu0 %v2265
      %v2440 = vpop.f32.mrf.mxu0
      %v2441 = vadd.f32 0.0, %v2440
      %v2442 = vpop.f32.mrf.mxu0
      %2443 = vmatprep.mubr.f32.mxu0 0.0
      %2444 = vmatmul.mubr.f32.gmra.mxu0 %v2266
      %v2445 = vpop.f32.mrf.mxu0
      %v2446 = vadd.f32 0.0, %v2445
      %v2447 = vpop.f32.mrf.mxu0
      %2448 = vmatprep.mubr.f32.mxu0 0.0
      %2449 = vmatmul.mubr.f32.gmra.mxu0 %v2267
      %v2450 = vpop.f32.mrf.mxu0
      %v2451 = vadd.f32 0.0, %v2450
      %v2452 = vpop.f32.mrf.mxu0
      %2453 = vmatprep.mubr.f32.mxu0 0.0
      %2454 = vmatmul.mubr.f32.gmra.mxu0 %v2268
      %v2455 = vpop.f32.mrf.mxu0
      %v2456 = vadd.f32 0.0, %v2455
      %v2457 = vpop.f32.mrf.mxu0
      %2458 = vmatprep.mubr.f32.mxu0 0.0
      %2459 = vmatmul.mubr.f32.gmra.mxu0 %v2269
      %v2460 = vpop.f32.mrf.mxu0
      %v2461 = vadd.f32 0.0, %v2460
      %v2462 = vpop.f32.mrf.mxu0
      %2463 = vmatprep.mubr.f32.mxu0 0.0
      %2464 = vmatmul.mubr.f32.gmra.mxu0 %v2270
      %v2465 = vpop.f32.mrf.mxu0
      %v2466 = vadd.f32 0.0, %v2465
      %v2467 = vpop.f32.mrf.mxu0
      %2468 = vmatprep.mubr.f32.mxu0 0.0
      %2469 = vmatmul.mubr.f32.gmra.mxu0 %v2271
      %v2470 = vpop.f32.mrf.mxu0
      %v2471 = vadd.f32 0.0, %v2470
      %v2472 = vpop.f32.mrf.mxu0
      %2473 = vmatprep.mubr.f32.mxu0 0.0
      %2474 = vmatmul.mubr.f32.gmra.mxu0 %v2272
      %v2475 = vpop.f32.mrf.mxu0
      %v2476 = vadd.f32 0.0, %v2475
      %v2477 = vpop.f32.mrf.mxu0
      %2478 = vmatprep.mubr.f32.mxu0 0.0
      %2479 = vmatmul.mubr.f32.gmra.mxu0 %v2273
      %v2480 = vpop.f32.mrf.mxu0
      %v2481 = vadd.f32 0.0, %v2480
      %v2482 = vpop.f32.mrf.mxu0
      %2483 = vmatprep.mubr.f32.mxu0 0.0
      %2484 = vmatmul.mubr.f32.gmra.mxu0 %v2274
      %v2485 = vpop.f32.mrf.mxu0
      %v2486 = vadd.f32 0.0, %v2485
      %v2487 = vpop.f32.mrf.mxu0
      %2488 = vmatprep.mubr.f32.mxu0 0.0
      %2489 = vmatmul.mubr.f32.gmra.mxu0 %v2275
      %v2490 = vpop.f32.mrf.mxu0
      %v2491 = vadd.f32 0.0, %v2490
      %v2492 = vpop.f32.mrf.mxu0
      %2493 = vmatprep.mubr.f32.mxu0 0.0
      %2494 = vmatmul.mubr.f32.gmra.mxu0 %v2276
      %v2495 = vpop.f32.mrf.mxu0
      %v2496 = vadd.f32 0.0, %v2495
      %v2497 = vpop.f32.mrf.mxu0
      %2498 = vmatprep.mubr.f32.mxu0 0.0
      %2499 = vmatmul.mubr.f32.gmra.mxu0 %v2277
      %v2500 = vpop.f32.mrf.mxu0
      %v2501 = vadd.f32 0.0, %v2500
      %v2502 = vpop.f32.mrf.mxu0
      %2503 = vmatprep.mubr.f32.mxu0 0.0
      %2504 = vmatmul.mubr.f32.gmra.mxu0 %v2278
      %v2505 = vpop.f32.mrf.mxu0
      %v2506 = vadd.f32 0.0, %v2505
      %v2507 = vpop.f32.mrf.mxu0
      %2508 = vmatprep.mubr.f32.mxu0 0.0
      %2509 = vmatmul.mubr.f32.gmra.mxu0 %v2279
      %v2510 = vpop.f32.mrf.mxu0
      %v2511 = vadd.f32 0.0, %v2510
      %v2512 = vpop.f32.mrf.mxu0
      %2513 = vmatprep.mubr.f32.mxu0 0.0
      %2514 = vmatmul.mubr.f32.gmra.mxu0 %v2280
      %v2515 = vpop.f32.mrf.mxu0
      %v2516 = vadd.f32 0.0, %v2515
      %v2517 = vpop.f32.mrf.mxu0
      %2518 = vmatprep.mubr.f32.mxu0 0.0
      %2519 = vmatmul.mubr.f32.gmra.mxu0 %v2281
      %v2520 = vpop.f32.mrf.mxu0
      %v2521 = vadd.f32 0.0, %v2520
      %v2522 = vpop.f32.mrf.mxu0
      %2523 = vdwg.mxu0
      %v2524 = vld [vmem:[#allocation3] sm:$0xff]
      %v2525 = vld [vmem:[#allocation3 + $0x8] sm:$0xff]
      %v2526 = vld [vmem:[#allocation3 + $0x10] sm:$0xff]
      %v2527 = vld [vmem:[#allocation3 + $0x18] sm:$0xff]
      %v2528 = vld [vmem:[#allocation3 + $0x20] sm:$0xff]
      %v2529 = vld [vmem:[#allocation3 + $0x28] sm:$0xff]
      %v2530 = vld [vmem:[#allocation3 + $0x30] sm:$0xff]
      %v2531 = vld [vmem:[#allocation3 + $0x38] sm:$0xff]
      %v2532 = vld [vmem:[#allocation3 + $0x40] sm:$0xff]
      %v2533 = vld [vmem:[#allocation3 + $0x48] sm:$0xff]
      %v2534 = vld [vmem:[#allocation3 + $0x50] sm:$0xff]
      %v2535 = vld [vmem:[#allocation3 + $0x58] sm:$0xff]
      %v2536 = vld [vmem:[#allocation3 + $0x60] sm:$0xff]
      %v2537 = vld [vmem:[#allocation3 + $0x68] sm:$0xff]
      %v2538 = vld [vmem:[#allocation3 + $0x70] sm:$0xff]
      %v2539 = vld [vmem:[#allocation3 + $0x78] sm:$0xff]
      %v2540 = vld [vmem:[#allocation3 + $0x80] sm:$0xff]
      %v2541 = vld [vmem:[#allocation3 + $0x88] sm:$0xff]
      %v2542 = vld [vmem:[#allocation3 + $0x90] sm:$0xff]
      %v2543 = vld [vmem:[#allocation3 + $0x98] sm:$0xff]
      %v2544 = vld [vmem:[#allocation3 + $0xa0] sm:$0xff]
      %v2545 = vld [vmem:[#allocation3 + $0xa8] sm:$0xff]
      %v2546 = vld [vmem:[#allocation3 + $0xb0] sm:$0xff]
      %v2547 = vld [vmem:[#allocation3 + $0xb8] sm:$0xff]
      %v2548 = vld [vmem:[#allocation3 + $0xc0] sm:$0xff]
      %v2549 = vld [vmem:[#allocation3 + $0xc8] sm:$0xff]
      %v2550 = vld [vmem:[#allocation3 + $0xd0] sm:$0xff]
      %v2551 = vld [vmem:[#allocation3 + $0xd8] sm:$0xff]
      %v2552 = vld [vmem:[#allocation3 + $0xe0] sm:$0xff]
      %v2553 = vld [vmem:[#allocation3 + $0xe8] sm:$0xff]
      %v2554 = vld [vmem:[#allocation3 + $0xf0] sm:$0xff]
      %v2555 = vld [vmem:[#allocation3 + $0xf8] sm:$0xff]
      %v2556 = vadd.f32 %v2524, %v2366
      %v2557 = vadd.f32 %v2525, %v2371
      %v2558 = vadd.f32 %v2526, %v2376
      %v2559 = vadd.f32 %v2527, %v2381
      %v2560 = vadd.f32 %v2528, %v2386
      %v2561 = vadd.f32 %v2529, %v2391
      %v2562 = vadd.f32 %v2530, %v2396
      %v2563 = vadd.f32 %v2531, %v2401
      %v2564 = vadd.f32 %v2532, %v2406
      %v2565 = vadd.f32 %v2533, %v2411
      %v2566 = vadd.f32 %v2534, %v2416
      %v2567 = vadd.f32 %v2535, %v2421
      %v2568 = vadd.f32 %v2536, %v2426
      %v2569 = vadd.f32 %v2537, %v2431
      %v2570 = vadd.f32 %v2538, %v2436
      %v2571 = vadd.f32 %v2539, %v2441
      %v2572 = vadd.f32 %v2540, %v2446
      %v2573 = vadd.f32 %v2541, %v2451
      %v2574 = vadd.f32 %v2542, %v2456
      %v2575 = vadd.f32 %v2543, %v2461
      %v2576 = vadd.f32 %v2544, %v2466
      %v2577 = vadd.f32 %v2545, %v2471
      %v2578 = vadd.f32 %v2546, %v2476
      %v2579 = vadd.f32 %v2547, %v2481
      %v2580 = vadd.f32 %v2548, %v2486
      %v2581 = vadd.f32 %v2549, %v2491
      %v2582 = vadd.f32 %v2550, %v2496
      %v2583 = vadd.f32 %v2551, %v2501
      %v2584 = vadd.f32 %v2552, %v2506
      %v2585 = vadd.f32 %v2553, %v2511
      %v2586 = vadd.f32 %v2554, %v2516
      %v2587 = vadd.f32 %v2555, %v2521
      %2588 = vst [vmem:[#allocation3] sm:$0xff] %v2556
      %2589 = vst [vmem:[#allocation3 + $0x8] sm:$0xff] %v2557
      %2590 = vst [vmem:[#allocation3 + $0x10] sm:$0xff] %v2558
      %2591 = vst [vmem:[#allocation3 + $0x18] sm:$0xff] %v2559
      %2592 = vst [vmem:[#allocation3 + $0x20] sm:$0xff] %v2560
      %2593 = vst [vmem:[#allocation3 + $0x28] sm:$0xff] %v2561
      %2594 = vst [vmem:[#allocation3 + $0x30] sm:$0xff] %v2562
      %2595 = vst [vmem:[#allocation3 + $0x38] sm:$0xff] %v2563
      %2596 = vst [vmem:[#allocation3 + $0x40] sm:$0xff] %v2564
      %2597 = vst [vmem:[#allocation3 + $0x48] sm:$0xff] %v2565
      %2598 = vst [vmem:[#allocation3 + $0x50] sm:$0xff] %v2566
      %2599 = vst [vmem:[#allocation3 + $0x58] sm:$0xff] %v2567
      %2600 = vst [vmem:[#allocation3 + $0x60] sm:$0xff] %v2568
      %2601 = vst [vmem:[#allocation3 + $0x68] sm:$0xff] %v2569
      %2602 = vst [vmem:[#allocation3 + $0x70] sm:$0xff] %v2570
      %2603 = vst [vmem:[#allocation3 + $0x78] sm:$0xff] %v2571
      %2604 = vst [vmem:[#allocation3 + $0x80] sm:$0xff] %v2572
      %2605 = vst [vmem:[#allocation3 + $0x88] sm:$0xff] %v2573
      %2606 = vst [vmem:[#allocation3 + $0x90] sm:$0xff] %v2574
      %2607 = vst [vmem:[#allocation3 + $0x98] sm:$0xff] %v2575
      %2608 = vst [vmem:[#allocation3 + $0xa0] sm:$0xff] %v2576
      %2609 = vst [vmem:[#allocation3 + $0xa8] sm:$0xff] %v2577
      %2610 = vst [vmem:[#allocation3 + $0xb0] sm:$0xff] %v2578
      %2611 = vst [vmem:[#allocation3 + $0xb8] sm:$0xff] %v2579
      %2612 = vst [vmem:[#allocation3 + $0xc0] sm:$0xff] %v2580
      %2613 = vst [vmem:[#allocation3 + $0xc8] sm:$0xff] %v2581
      %2614 = vst [vmem:[#allocation3 + $0xd0] sm:$0xff] %v2582
      %2615 = vst [vmem:[#allocation3 + $0xd8] sm:$0xff] %v2583
      %2616 = vst [vmem:[#allocation3 + $0xe0] sm:$0xff] %v2584
      %2617 = vst [vmem:[#allocation3 + $0xe8] sm:$0xff] %v2585
      %2618 = vst [vmem:[#allocation3 + $0xf0] sm:$0xff] %v2586
      %2619 = vst [vmem:[#allocation3 + $0xf8] sm:$0xff] %v2587
      %s2620 = scalar_lea.vmem [#allocation2], 48
      %v2621 = vld [vmem:[%s2620] sm:$0xff]
      %v2622 = vld [vmem:[%s2620 + $0x8] sm:$0xff]
      %v2623 = vld [vmem:[%s2620 + $0x18] sm:$0xff]
      %v2624 = vld [vmem:[%s2620 + $0x20] sm:$0xff]
      %v2625 = vld [vmem:[%s2620 + $0x30] sm:$0xff]
      %v2626 = vld [vmem:[%s2620 + $0x38] sm:$0xff]
      %v2627 = vld [vmem:[%s2620 + $0x48] sm:$0xff]
      %v2628 = vld [vmem:[%s2620 + $0x50] sm:$0xff]
      %v2629 = vld [vmem:[%s2620 + $0x60] sm:$0xff]
      %v2630 = vld [vmem:[%s2620 + $0x68] sm:$0xff]
      %v2631 = vld [vmem:[%s2620 + $0x78] sm:$0xff]
      %v2632 = vld [vmem:[%s2620 + $0x80] sm:$0xff]
      %v2633 = vld [vmem:[%s2620 + $0x90] sm:$0xff]
      %v2634 = vld [vmem:[%s2620 + $0x98] sm:$0xff]
      %v2635 = vld [vmem:[%s2620 + $0xa8] sm:$0xff]
      %v2636 = vld [vmem:[%s2620 + $0xb0] sm:$0xff]
      %v2637 = vld [vmem:[%s2620 + $0xc0] sm:$0xff]
      %v2638 = vld [vmem:[%s2620 + $0xc8] sm:$0xff]
      %v2639 = vld [vmem:[%s2620 + $0xd8] sm:$0xff]
      %v2640 = vld [vmem:[%s2620 + $0xe0] sm:$0xff]
      %v2641 = vld [vmem:[%s2620 + $0xf0] sm:$0xff]
      %v2642 = vld [vmem:[%s2620 + $0xf8] sm:$0xff]
      %v2643 = vld [vmem:[%s2620 + $0x108] sm:$0xff]
      %v2644 = vld [vmem:[%s2620 + $0x110] sm:$0xff]
      %v2645 = vld [vmem:[%s2620 + $0x120] sm:$0xff]
      %v2646 = vld [vmem:[%s2620 + $0x128] sm:$0xff]
      %v2647 = vld [vmem:[%s2620 + $0x138] sm:$0xff]
      %v2648 = vld [vmem:[%s2620 + $0x140] sm:$0xff]
      %v2649 = vld [vmem:[%s2620 + $0x150] sm:$0xff]
      %v2650 = vld [vmem:[%s2620 + $0x158] sm:$0xff]
      %v2651 = vld [vmem:[%s2620 + $0x168] sm:$0xff]
      %v2652 = vld [vmem:[%s2620 + $0x170] sm:$0xff]
      %s2653 = scalar_lea.vmem %s1, 768
      %v2654 = vld [vmem:[%s2653] sm:$0xff]
      %v2655 = vld [vmem:[%s2653 + $0x8] sm:$0xff]
      %v2656 = vld [vmem:[%s2653 + $0x10] sm:$0xff]
      %v2657 = vld [vmem:[%s2653 + $0x18] sm:$0xff]
      %v2658 = vld [vmem:[%s2653 + $0x20] sm:$0xff]
      %v2659 = vld [vmem:[%s2653 + $0x28] sm:$0xff]
      %v2660 = vld [vmem:[%s2653 + $0x30] sm:$0xff]
      %v2661 = vld [vmem:[%s2653 + $0x38] sm:$0xff]
      %v2662 = vld [vmem:[%s2653 + $0x40] sm:$0xff]
      %v2663 = vld [vmem:[%s2653 + $0x48] sm:$0xff]
      %v2664 = vld [vmem:[%s2653 + $0x50] sm:$0xff]
      %v2665 = vld [vmem:[%s2653 + $0x58] sm:$0xff]
      %v2666 = vld [vmem:[%s2653 + $0x60] sm:$0xff]
      %v2667 = vld [vmem:[%s2653 + $0x68] sm:$0xff]
      %v2668 = vld [vmem:[%s2653 + $0x70] sm:$0xff]
      %v2669 = vld [vmem:[%s2653 + $0x78] sm:$0xff]
      %2670 = vmatprep.subr.mxu0 0.0
      %2671 = vmatpush1.msra.mxu0 %v2669
      %2672 = vmatprep.subr.mxu0 0.0
      %2673 = vmatpush1.msra.mxu0 %v2668
      %2674 = vmatprep.subr.mxu0 0.0
      %2675 = vmatpush1.msra.mxu0 %v2667
      %2676 = vmatprep.subr.mxu0 0.0
      %2677 = vmatpush1.msra.mxu0 %v2666
      %2678 = vmatprep.subr.mxu0 0.0
      %2679 = vmatpush1.msra.mxu0 %v2665
      %2680 = vmatprep.subr.mxu0 0.0
      %2681 = vmatpush1.msra.mxu0 %v2664
      %2682 = vmatprep.subr.mxu0 0.0
      %2683 = vmatpush1.msra.mxu0 %v2663
      %2684 = vmatprep.subr.mxu0 0.0
      %2685 = vmatpush1.msra.mxu0 %v2662
      %2686 = vmatprep.subr.mxu0 0.0
      %2687 = vmatpush1.msra.mxu0 %v2661
      %2688 = vmatprep.subr.mxu0 0.0
      %2689 = vmatpush1.msra.mxu0 %v2660
      %2690 = vmatprep.subr.mxu0 0.0
      %2691 = vmatpush1.msra.mxu0 %v2659
      %2692 = vmatprep.subr.mxu0 0.0
      %2693 = vmatpush1.msra.mxu0 %v2658
      %2694 = vmatprep.subr.mxu0 0.0
      %2695 = vmatpush1.msra.mxu0 %v2657
      %2696 = vmatprep.subr.mxu0 0.0
      %2697 = vmatpush1.msra.mxu0 %v2656
      %2698 = vmatprep.subr.mxu0 0.0
      %2699 = vmatpush1.msra.mxu0 %v2655
      %2700 = vmatprep.subr.mxu0 0.0
      %2701 = vmatpush1.msra.mxu0 %v2654
      %2702 = vmatprep.subr.mxu0 0.0
      %2703 = vmatpush2.msra.mxu0 0.0
      %2704 = vmatprep.subr.mxu0 0.0
      %2705 = vmatpush2.msra.mxu0 0.0
      %2706 = vmatprep.subr.mxu0 0.0
      %2707 = vmatpush2.msra.mxu0 0.0
      %2708 = vmatprep.subr.mxu0 0.0
      %2709 = vmatpush2.msra.mxu0 0.0
      %2710 = vmatprep.subr.mxu0 0.0
      %2711 = vmatpush2.msra.mxu0 0.0
      %2712 = vmatprep.subr.mxu0 0.0
      %2713 = vmatpush2.msra.mxu0 0.0
      %2714 = vmatprep.subr.mxu0 0.0
      %2715 = vmatpush2.msra.mxu0 0.0
      %2716 = vmatprep.subr.mxu0 0.0
      %2717 = vmatpush2.msra.mxu0 0.0
      %2718 = vmatprep.subr.mxu0 0.0
      %2719 = vmatpush2.msra.mxu0 0.0
      %2720 = vmatprep.subr.mxu0 0.0
      %2721 = vmatpush2.msra.mxu0 0.0
      %2722 = vmatprep.subr.mxu0 0.0
      %2723 = vmatpush2.msra.mxu0 0.0
      %2724 = vmatprep.subr.mxu0 0.0
      %2725 = vmatpush2.msra.mxu0 0.0
      %2726 = vmatprep.subr.mxu0 0.0
      %2727 = vmatpush2.msra.mxu0 0.0
      %2728 = vmatprep.subr.mxu0 0.0
      %2729 = vmatpush2.msra.mxu0 0.0
      %2730 = vmatprep.subr.mxu0 0.0
      %2731 = vmatpush2.msra.mxu0 0.0
      %2732 = vmatprep.subr.mxu0 0.0
      %2733 = vmatpush2.msra.mxu0 0.0
      %2734 = vmatprep.mubr.f32.mxu0 0.0
      %2735 = vmatmul.mubr.f32.gmra.mxu0 %v2621
      %v2736 = vpop.f32.mrf.mxu0
      %v2737 = vadd.f32 0.0, %v2736
      %v2738 = vpop.f32.mrf.mxu0
      %2739 = vmatprep.mubr.f32.mxu0 0.0
      %2740 = vmatmul.mubr.f32.gmra.mxu0 %v2622
      %v2741 = vpop.f32.mrf.mxu0
      %v2742 = vadd.f32 0.0, %v2741
      %v2743 = vpop.f32.mrf.mxu0
      %2744 = vmatprep.mubr.f32.mxu0 0.0
      %2745 = vmatmul.mubr.f32.gmra.mxu0 %v2623
      %v2746 = vpop.f32.mrf.mxu0
      %v2747 = vadd.f32 0.0, %v2746
      %v2748 = vpop.f32.mrf.mxu0
      %2749 = vmatprep.mubr.f32.mxu0 0.0
      %2750 = vmatmul.mubr.f32.gmra.mxu0 %v2624
      %v2751 = vpop.f32.mrf.mxu0
      %v2752 = vadd.f32 0.0, %v2751
      %v2753 = vpop.f32.mrf.mxu0
      %2754 = vmatprep.mubr.f32.mxu0 0.0
      %2755 = vmatmul.mubr.f32.gmra.mxu0 %v2625
      %v2756 = vpop.f32.mrf.mxu0
      %v2757 = vadd.f32 0.0, %v2756
      %v2758 = vpop.f32.mrf.mxu0
      %2759 = vmatprep.mubr.f32.mxu0 0.0
      %2760 = vmatmul.mubr.f32.gmra.mxu0 %v2626
      %v2761 = vpop.f32.mrf.mxu0
      %v2762 = vadd.f32 0.0, %v2761
      %v2763 = vpop.f32.mrf.mxu0
      %2764 = vmatprep.mubr.f32.mxu0 0.0
      %2765 = vmatmul.mubr.f32.gmra.mxu0 %v2627
      %v2766 = vpop.f32.mrf.mxu0
      %v2767 = vadd.f32 0.0, %v2766
      %v2768 = vpop.f32.mrf.mxu0
      %2769 = vmatprep.mubr.f32.mxu0 0.0
      %2770 = vmatmul.mubr.f32.gmra.mxu0 %v2628
      %v2771 = vpop.f32.mrf.mxu0
      %v2772 = vadd.f32 0.0, %v2771
      %v2773 = vpop.f32.mrf.mxu0
      %2774 = vmatprep.mubr.f32.mxu0 0.0
      %2775 = vmatmul.mubr.f32.gmra.mxu0 %v2629
      %v2776 = vpop.f32.mrf.mxu0
      %v2777 = vadd.f32 0.0, %v2776
      %v2778 = vpop.f32.mrf.mxu0
      %2779 = vmatprep.mubr.f32.mxu0 0.0
      %2780 = vmatmul.mubr.f32.gmra.mxu0 %v2630
      %v2781 = vpop.f32.mrf.mxu0
      %v2782 = vadd.f32 0.0, %v2781
      %v2783 = vpop.f32.mrf.mxu0
      %2784 = vmatprep.mubr.f32.mxu0 0.0
      %2785 = vmatmul.mubr.f32.gmra.mxu0 %v2631
      %v2786 = vpop.f32.mrf.mxu0
      %v2787 = vadd.f32 0.0, %v2786
      %v2788 = vpop.f32.mrf.mxu0
      %2789 = vmatprep.mubr.f32.mxu0 0.0
      %2790 = vmatmul.mubr.f32.gmra.mxu0 %v2632
      %v2791 = vpop.f32.mrf.mxu0
      %v2792 = vadd.f32 0.0, %v2791
      %v2793 = vpop.f32.mrf.mxu0
      %2794 = vmatprep.mubr.f32.mxu0 0.0
      %2795 = vmatmul.mubr.f32.gmra.mxu0 %v2633
      %v2796 = vpop.f32.mrf.mxu0
      %v2797 = vadd.f32 0.0, %v2796
      %v2798 = vpop.f32.mrf.mxu0
      %2799 = vmatprep.mubr.f32.mxu0 0.0
      %2800 = vmatmul.mubr.f32.gmra.mxu0 %v2634
      %v2801 = vpop.f32.mrf.mxu0
      %v2802 = vadd.f32 0.0, %v2801
      %v2803 = vpop.f32.mrf.mxu0
      %2804 = vmatprep.mubr.f32.mxu0 0.0
      %2805 = vmatmul.mubr.f32.gmra.mxu0 %v2635
      %v2806 = vpop.f32.mrf.mxu0
      %v2807 = vadd.f32 0.0, %v2806
      %v2808 = vpop.f32.mrf.mxu0
      %2809 = vmatprep.mubr.f32.mxu0 0.0
      %2810 = vmatmul.mubr.f32.gmra.mxu0 %v2636
      %v2811 = vpop.f32.mrf.mxu0
      %v2812 = vadd.f32 0.0, %v2811
      %v2813 = vpop.f32.mrf.mxu0
      %2814 = vmatprep.mubr.f32.mxu0 0.0
      %2815 = vmatmul.mubr.f32.gmra.mxu0 %v2637
      %v2816 = vpop.f32.mrf.mxu0
      %v2817 = vadd.f32 0.0, %v2816
      %v2818 = vpop.f32.mrf.mxu0
      %2819 = vmatprep.mubr.f32.mxu0 0.0
      %2820 = vmatmul.mubr.f32.gmra.mxu0 %v2638
      %v2821 = vpop.f32.mrf.mxu0
      %v2822 = vadd.f32 0.0, %v2821
      %v2823 = vpop.f32.mrf.mxu0
      %2824 = vmatprep.mubr.f32.mxu0 0.0
      %2825 = vmatmul.mubr.f32.gmra.mxu0 %v2639
      %v2826 = vpop.f32.mrf.mxu0
      %v2827 = vadd.f32 0.0, %v2826
      %v2828 = vpop.f32.mrf.mxu0
      %2829 = vmatprep.mubr.f32.mxu0 0.0
      %2830 = vmatmul.mubr.f32.gmra.mxu0 %v2640
      %v2831 = vpop.f32.mrf.mxu0
      %v2832 = vadd.f32 0.0, %v2831
      %v2833 = vpop.f32.mrf.mxu0
      %2834 = vmatprep.mubr.f32.mxu0 0.0
      %2835 = vmatmul.mubr.f32.gmra.mxu0 %v2641
      %v2836 = vpop.f32.mrf.mxu0
      %v2837 = vadd.f32 0.0, %v2836
      %v2838 = vpop.f32.mrf.mxu0
      %2839 = vmatprep.mubr.f32.mxu0 0.0
      %2840 = vmatmul.mubr.f32.gmra.mxu0 %v2642
      %v2841 = vpop.f32.mrf.mxu0
      %v2842 = vadd.f32 0.0, %v2841
      %v2843 = vpop.f32.mrf.mxu0
      %2844 = vmatprep.mubr.f32.mxu0 0.0
      %2845 = vmatmul.mubr.f32.gmra.mxu0 %v2643
      %v2846 = vpop.f32.mrf.mxu0
      %v2847 = vadd.f32 0.0, %v2846
      %v2848 = vpop.f32.mrf.mxu0
      %2849 = vmatprep.mubr.f32.mxu0 0.0
      %2850 = vmatmul.mubr.f32.gmra.mxu0 %v2644
      %v2851 = vpop.f32.mrf.mxu0
      %v2852 = vadd.f32 0.0, %v2851
      %v2853 = vpop.f32.mrf.mxu0
      %2854 = vmatprep.mubr.f32.mxu0 0.0
      %2855 = vmatmul.mubr.f32.gmra.mxu0 %v2645
      %v2856 = vpop.f32.mrf.mxu0
      %v2857 = vadd.f32 0.0, %v2856
      %v2858 = vpop.f32.mrf.mxu0
      %2859 = vmatprep.mubr.f32.mxu0 0.0
      %2860 = vmatmul.mubr.f32.gmra.mxu0 %v2646
      %v2861 = vpop.f32.mrf.mxu0
      %v2862 = vadd.f32 0.0, %v2861
      %v2863 = vpop.f32.mrf.mxu0
      %2864 = vmatprep.mubr.f32.mxu0 0.0
      %2865 = vmatmul.mubr.f32.gmra.mxu0 %v2647
      %v2866 = vpop.f32.mrf.mxu0
      %v2867 = vadd.f32 0.0, %v2866
      %v2868 = vpop.f32.mrf.mxu0
      %2869 = vmatprep.mubr.f32.mxu0 0.0
      %2870 = vmatmul.mubr.f32.gmra.mxu0 %v2648
      %v2871 = vpop.f32.mrf.mxu0
      %v2872 = vadd.f32 0.0, %v2871
      %v2873 = vpop.f32.mrf.mxu0
      %2874 = vmatprep.mubr.f32.mxu0 0.0
      %2875 = vmatmul.mubr.f32.gmra.mxu0 %v2649
      %v2876 = vpop.f32.mrf.mxu0
      %v2877 = vadd.f32 0.0, %v2876
      %v2878 = vpop.f32.mrf.mxu0
      %2879 = vmatprep.mubr.f32.mxu0 0.0
      %2880 = vmatmul.mubr.f32.gmra.mxu0 %v2650
      %v2881 = vpop.f32.mrf.mxu0
      %v2882 = vadd.f32 0.0, %v2881
      %v2883 = vpop.f32.mrf.mxu0
      %2884 = vmatprep.mubr.f32.mxu0 0.0
      %2885 = vmatmul.mubr.f32.gmra.mxu0 %v2651
      %v2886 = vpop.f32.mrf.mxu0
      %v2887 = vadd.f32 0.0, %v2886
      %v2888 = vpop.f32.mrf.mxu0
      %2889 = vmatprep.mubr.f32.mxu0 0.0
      %2890 = vmatmul.mubr.f32.gmra.mxu0 %v2652
      %v2891 = vpop.f32.mrf.mxu0
      %v2892 = vadd.f32 0.0, %v2891
      %v2893 = vpop.f32.mrf.mxu0
      %2894 = vdwg.mxu0
      %v2895 = vld [vmem:[#allocation3] sm:$0xff]
      %v2896 = vld [vmem:[#allocation3 + $0x8] sm:$0xff]
      %v2897 = vld [vmem:[#allocation3 + $0x10] sm:$0xff]
      %v2898 = vld [vmem:[#allocation3 + $0x18] sm:$0xff]
      %v2899 = vld [vmem:[#allocation3 + $0x20] sm:$0xff]
      %v2900 = vld [vmem:[#allocation3 + $0x28] sm:$0xff]
      %v2901 = vld [vmem:[#allocation3 + $0x30] sm:$0xff]
      %v2902 = vld [vmem:[#allocation3 + $0x38] sm:$0xff]
      %v2903 = vld [vmem:[#allocation3 + $0x40] sm:$0xff]
      %v2904 = vld [vmem:[#allocation3 + $0x48] sm:$0xff]
      %v2905 = vld [vmem:[#allocation3 + $0x50] sm:$0xff]
      %v2906 = vld [vmem:[#allocation3 + $0x58] sm:$0xff]
      %v2907 = vld [vmem:[#allocation3 + $0x60] sm:$0xff]
      %v2908 = vld [vmem:[#allocation3 + $0x68] sm:$0xff]
      %v2909 = vld [vmem:[#allocation3 + $0x70] sm:$0xff]
      %v2910 = vld [vmem:[#allocation3 + $0x78] sm:$0xff]
      %v2911 = vld [vmem:[#allocation3 + $0x80] sm:$0xff]
      %v2912 = vld [vmem:[#allocation3 + $0x88] sm:$0xff]
      %v2913 = vld [vmem:[#allocation3 + $0x90] sm:$0xff]
      %v2914 = vld [vmem:[#allocation3 + $0x98] sm:$0xff]
      %v2915 = vld [vmem:[#allocation3 + $0xa0] sm:$0xff]
      %v2916 = vld [vmem:[#allocation3 + $0xa8] sm:$0xff]
      %v2917 = vld [vmem:[#allocation3 + $0xb0] sm:$0xff]
      %v2918 = vld [vmem:[#allocation3 + $0xb8] sm:$0xff]
      %v2919 = vld [vmem:[#allocation3 + $0xc0] sm:$0xff]
      %v2920 = vld [vmem:[#allocation3 + $0xc8] sm:$0xff]
      %v2921 = vld [vmem:[#allocation3 + $0xd0] sm:$0xff]
      %v2922 = vld [vmem:[#allocation3 + $0xd8] sm:$0xff]
      %v2923 = vld [vmem:[#allocation3 + $0xe0] sm:$0xff]
      %v2924 = vld [vmem:[#allocation3 + $0xe8] sm:$0xff]
      %v2925 = vld [vmem:[#allocation3 + $0xf0] sm:$0xff]
      %v2926 = vld [vmem:[#allocation3 + $0xf8] sm:$0xff]
      %v2927 = vadd.f32 %v2895, %v2737
      %v2928 = vadd.f32 %v2896, %v2742
      %v2929 = vadd.f32 %v2897, %v2747
      %v2930 = vadd.f32 %v2898, %v2752
      %v2931 = vadd.f32 %v2899, %v2757
      %v2932 = vadd.f32 %v2900, %v2762
      %v2933 = vadd.f32 %v2901, %v2767
      %v2934 = vadd.f32 %v2902, %v2772
      %v2935 = vadd.f32 %v2903, %v2777
      %v2936 = vadd.f32 %v2904, %v2782
      %v2937 = vadd.f32 %v2905, %v2787
      %v2938 = vadd.f32 %v2906, %v2792
      %v2939 = vadd.f32 %v2907, %v2797
      %v2940 = vadd.f32 %v2908, %v2802
      %v2941 = vadd.f32 %v2909, %v2807
      %v2942 = vadd.f32 %v2910, %v2812
      %v2943 = vadd.f32 %v2911, %v2817
      %v2944 = vadd.f32 %v2912, %v2822
      %v2945 = vadd.f32 %v2913, %v2827
      %v2946 = vadd.f32 %v2914, %v2832
      %v2947 = vadd.f32 %v2915, %v2837
      %v2948 = vadd.f32 %v2916, %v2842
      %v2949 = vadd.f32 %v2917, %v2847
      %v2950 = vadd.f32 %v2918, %v2852
      %v2951 = vadd.f32 %v2919, %v2857
      %v2952 = vadd.f32 %v2920, %v2862
      %v2953 = vadd.f32 %v2921, %v2867
      %v2954 = vadd.f32 %v2922, %v2872
      %v2955 = vadd.f32 %v2923, %v2877
      %v2956 = vadd.f32 %v2924, %v2882
      %v2957 = vadd.f32 %v2925, %v2887
      %v2958 = vadd.f32 %v2926, %v2892
      %2959 = vst [vmem:[#allocation3] sm:$0xff] %v2927
      %2960 = vst [vmem:[#allocation3 + $0x8] sm:$0xff] %v2928
      %2961 = vst [vmem:[#allocation3 + $0x10] sm:$0xff] %v2929
      %2962 = vst [vmem:[#allocation3 + $0x18] sm:$0xff] %v2930
      %2963 = vst [vmem:[#allocation3 + $0x20] sm:$0xff] %v2931
      %2964 = vst [vmem:[#allocation3 + $0x28] sm:$0xff] %v2932
      %2965 = vst [vmem:[#allocation3 + $0x30] sm:$0xff] %v2933
      %2966 = vst [vmem:[#allocation3 + $0x38] sm:$0xff] %v2934
      %2967 = vst [vmem:[#allocation3 + $0x40] sm:$0xff] %v2935
      %2968 = vst [vmem:[#allocation3 + $0x48] sm:$0xff] %v2936
      %2969 = vst [vmem:[#allocation3 + $0x50] sm:$0xff] %v2937
      %2970 = vst [vmem:[#allocation3 + $0x58] sm:$0xff] %v2938
      %2971 = vst [vmem:[#allocation3 + $0x60] sm:$0xff] %v2939
      %2972 = vst [vmem:[#allocation3 + $0x68] sm:$0xff] %v2940
      %2973 = vst [vmem:[#allocation3 + $0x70] sm:$0xff] %v2941
      %2974 = vst [vmem:[#allocation3 + $0x78] sm:$0xff] %v2942
      %2975 = vst [vmem:[#allocation3 + $0x80] sm:$0xff] %v2943
      %2976 = vst [vmem:[#allocation3 + $0x88] sm:$0xff] %v2944
      %2977 = vst [vmem:[#allocation3 + $0x90] sm:$0xff] %v2945
      %2978 = vst [vmem:[#allocation3 + $0x98] sm:$0xff] %v2946
      %2979 = vst [vmem:[#allocation3 + $0xa0] sm:$0xff] %v2947
      %2980 = vst [vmem:[#allocation3 + $0xa8] sm:$0xff] %v2948
      %2981 = vst [vmem:[#allocation3 + $0xb0] sm:$0xff] %v2949
      %2982 = vst [vmem:[#allocation3 + $0xb8] sm:$0xff] %v2950
      %2983 = vst [vmem:[#allocation3 + $0xc0] sm:$0xff] %v2951
      %2984 = vst [vmem:[#allocation3 + $0xc8] sm:$0xff] %v2952
      %2985 = vst [vmem:[#allocation3 + $0xd0] sm:$0xff] %v2953
      %2986 = vst [vmem:[#allocation3 + $0xd8] sm:$0xff] %v2954
      %2987 = vst [vmem:[#allocation3 + $0xe0] sm:$0xff] %v2955
      %2988 = vst [vmem:[#allocation3 + $0xe8] sm:$0xff] %v2956
      %2989 = vst [vmem:[#allocation3 + $0xf0] sm:$0xff] %v2957
      %2990 = vst [vmem:[#allocation3 + $0xf8] sm:$0xff] %v2958
      %v2991 = vld [vmem:[%s2620 + $0x1] sm:$0xff]
      %v2992 = vld [vmem:[%s2620 + $0x9] sm:$0xff]
      %v2993 = vld [vmem:[%s2620 + $0x19] sm:$0xff]
      %v2994 = vld [vmem:[%s2620 + $0x21] sm:$0xff]
      %v2995 = vld [vmem:[%s2620 + $0x31] sm:$0xff]
      %v2996 = vld [vmem:[%s2620 + $0x39] sm:$0xff]
      %v2997 = vld [vmem:[%s2620 + $0x49] sm:$0xff]
      %v2998 = vld [vmem:[%s2620 + $0x51] sm:$0xff]
      %v2999 = vld [vmem:[%s2620 + $0x61] sm:$0xff]
      %v3000 = vld [vmem:[%s2620 + $0x69] sm:$0xff]
      %v3001 = vld [vmem:[%s2620 + $0x79] sm:$0xff]
      %v3002 = vld [vmem:[%s2620 + $0x81] sm:$0xff]
      %v3003 = vld [vmem:[%s2620 + $0x91] sm:$0xff]
      %v3004 = vld [vmem:[%s2620 + $0x99] sm:$0xff]
      %v3005 = vld [vmem:[%s2620 + $0xa9] sm:$0xff]
      %v3006 = vld [vmem:[%s2620 + $0xb1] sm:$0xff]
      %v3007 = vld [vmem:[%s2620 + $0xc1] sm:$0xff]
      %v3008 = vld [vmem:[%s2620 + $0xc9] sm:$0xff]
      %v3009 = vld [vmem:[%s2620 + $0xd9] sm:$0xff]
      %v3010 = vld [vmem:[%s2620 + $0xe1] sm:$0xff]
      %v3011 = vld [vmem:[%s2620 + $0xf1] sm:$0xff]
      %v3012 = vld [vmem:[%s2620 + $0xf9] sm:$0xff]
      %v3013 = vld [vmem:[%s2620 + $0x109] sm:$0xff]
      %v3014 = vld [vmem:[%s2620 + $0x111] sm:$0xff]
      %v3015 = vld [vmem:[%s2620 + $0x121] sm:$0xff]
      %v3016 = vld [vmem:[%s2620 + $0x129] sm:$0xff]
      %v3017 = vld [vmem:[%s2620 + $0x139] sm:$0xff]
      %v3018 = vld [vmem:[%s2620 + $0x141] sm:$0xff]
      %v3019 = vld [vmem:[%s2620 + $0x151] sm:$0xff]
      %v3020 = vld [vmem:[%s2620 + $0x159] sm:$0xff]
      %v3021 = vld [vmem:[%s2620 + $0x169] sm:$0xff]
      %v3022 = vld [vmem:[%s2620 + $0x171] sm:$0xff]
      %s3023 = scalar_lea.vmem %s1, 896
      %v3024 = vld [vmem:[%s3023] sm:$0xff]
      %v3025 = vld [vmem:[%s3023 + $0x8] sm:$0xff]
      %v3026 = vld [vmem:[%s3023 + $0x10] sm:$0xff]
      %v3027 = vld [vmem:[%s3023 + $0x18] sm:$0xff]
      %v3028 = vld [vmem:[%s3023 + $0x20] sm:$0xff]
      %v3029 = vld [vmem:[%s3023 + $0x28] sm:$0xff]
      %v3030 = vld [vmem:[%s3023 + $0x30] sm:$0xff]
      %v3031 = vld [vmem:[%s3023 + $0x38] sm:$0xff]
      %v3032 = vld [vmem:[%s3023 + $0x40] sm:$0xff]
      %v3033 = vld [vmem:[%s3023 + $0x48] sm:$0xff]
      %v3034 = vld [vmem:[%s3023 + $0x50] sm:$0xff]
      %v3035 = vld [vmem:[%s3023 + $0x58] sm:$0xff]
      %v3036 = vld [vmem:[%s3023 + $0x60] sm:$0xff]
      %v3037 = vld [vmem:[%s3023 + $0x68] sm:$0xff]
      %v3038 = vld [vmem:[%s3023 + $0x70] sm:$0xff]
      %v3039 = vld [vmem:[%s3023 + $0x78] sm:$0xff]
      %3040 = vmatprep.subr.mxu0 0.0
      %3041 = vmatpush1.msra.mxu0 %v3039
      %3042 = vmatprep.subr.mxu0 0.0
      %3043 = vmatpush1.msra.mxu0 %v3038
      %3044 = vmatprep.subr.mxu0 0.0
      %3045 = vmatpush1.msra.mxu0 %v3037
      %3046 = vmatprep.subr.mxu0 0.0
      %3047 = vmatpush1.msra.mxu0 %v3036
      %3048 = vmatprep.subr.mxu0 0.0
      %3049 = vmatpush1.msra.mxu0 %v3035
      %3050 = vmatprep.subr.mxu0 0.0
      %3051 = vmatpush1.msra.mxu0 %v3034
      %3052 = vmatprep.subr.mxu0 0.0
      %3053 = vmatpush1.msra.mxu0 %v3033
      %3054 = vmatprep.subr.mxu0 0.0
      %3055 = vmatpush1.msra.mxu0 %v3032
      %3056 = vmatprep.subr.mxu0 0.0
      %3057 = vmatpush1.msra.mxu0 %v3031
      %3058 = vmatprep.subr.mxu0 0.0
      %3059 = vmatpush1.msra.mxu0 %v3030
      %3060 = vmatprep.subr.mxu0 0.0
      %3061 = vmatpush1.msra.mxu0 %v3029
      %3062 = vmatprep.subr.mxu0 0.0
      %3063 = vmatpush1.msra.mxu0 %v3028
      %3064 = vmatprep.subr.mxu0 0.0
      %3065 = vmatpush1.msra.mxu0 %v3027
      %3066 = vmatprep.subr.mxu0 0.0
      %3067 = vmatpush1.msra.mxu0 %v3026
      %3068 = vmatprep.subr.mxu0 0.0
      %3069 = vmatpush1.msra.mxu0 %v3025
      %3070 = vmatprep.subr.mxu0 0.0
      %3071 = vmatpush1.msra.mxu0 %v3024
      %3072 = vmatprep.subr.mxu0 0.0
      %3073 = vmatpush2.msra.mxu0 0.0
      %3074 = vmatprep.subr.mxu0 0.0
      %3075 = vmatpush2.msra.mxu0 0.0
      %3076 = vmatprep.subr.mxu0 0.0
      %3077 = vmatpush2.msra.mxu0 0.0
      %3078 = vmatprep.subr.mxu0 0.0
      %3079 = vmatpush2.msra.mxu0 0.0
      %3080 = vmatprep.subr.mxu0 0.0
      %3081 = vmatpush2.msra.mxu0 0.0
      %3082 = vmatprep.subr.mxu0 0.0
      %3083 = vmatpush2.msra.mxu0 0.0
      %3084 = vmatprep.subr.mxu0 0.0
      %3085 = vmatpush2.msra.mxu0 0.0
      %3086 = vmatprep.subr.mxu0 0.0
      %3087 = vmatpush2.msra.mxu0 0.0
      %3088 = vmatprep.subr.mxu0 0.0
      %3089 = vmatpush2.msra.mxu0 0.0
      %3090 = vmatprep.subr.mxu0 0.0
      %3091 = vmatpush2.msra.mxu0 0.0
      %3092 = vmatprep.subr.mxu0 0.0
      %3093 = vmatpush2.msra.mxu0 0.0
      %3094 = vmatprep.subr.mxu0 0.0
      %3095 = vmatpush2.msra.mxu0 0.0
      %3096 = vmatprep.subr.mxu0 0.0
      %3097 = vmatpush2.msra.mxu0 0.0
      %3098 = vmatprep.subr.mxu0 0.0
      %3099 = vmatpush2.msra.mxu0 0.0
      %3100 = vmatprep.subr.mxu0 0.0
      %3101 = vmatpush2.msra.mxu0 0.0
      %3102 = vmatprep.subr.mxu0 0.0
      %3103 = vmatpush2.msra.mxu0 0.0
      %3104 = vmatprep.mubr.f32.mxu0 0.0
      %3105 = vmatmul.mubr.f32.gmra.mxu0 %v2991
      %v3106 = vpop.f32.mrf.mxu0
      %v3107 = vadd.f32 0.0, %v3106
      %v3108 = vpop.f32.mrf.mxu0
      %3109 = vmatprep.mubr.f32.mxu0 0.0
      %3110 = vmatmul.mubr.f32.gmra.mxu0 %v2992
      %v3111 = vpop.f32.mrf.mxu0
      %v3112 = vadd.f32 0.0, %v3111
      %v3113 = vpop.f32.mrf.mxu0
      %3114 = vmatprep.mubr.f32.mxu0 0.0
      %3115 = vmatmul.mubr.f32.gmra.mxu0 %v2993
      %v3116 = vpop.f32.mrf.mxu0
      %v3117 = vadd.f32 0.0, %v3116
      %v3118 = vpop.f32.mrf.mxu0
      %3119 = vmatprep.mubr.f32.mxu0 0.0
      %3120 = vmatmul.mubr.f32.gmra.mxu0 %v2994
      %v3121 = vpop.f32.mrf.mxu0
      %v3122 = vadd.f32 0.0, %v3121
      %v3123 = vpop.f32.mrf.mxu0
      %3124 = vmatprep.mubr.f32.mxu0 0.0
      %3125 = vmatmul.mubr.f32.gmra.mxu0 %v2995
      %v3126 = vpop.f32.mrf.mxu0
      %v3127 = vadd.f32 0.0, %v3126
      %v3128 = vpop.f32.mrf.mxu0
      %3129 = vmatprep.mubr.f32.mxu0 0.0
      %3130 = vmatmul.mubr.f32.gmra.mxu0 %v2996
      %v3131 = vpop.f32.mrf.mxu0
      %v3132 = vadd.f32 0.0, %v3131
      %v3133 = vpop.f32.mrf.mxu0
      %3134 = vmatprep.mubr.f32.mxu0 0.0
      %3135 = vmatmul.mubr.f32.gmra.mxu0 %v2997
      %v3136 = vpop.f32.mrf.mxu0
      %v3137 = vadd.f32 0.0, %v3136
      %v3138 = vpop.f32.mrf.mxu0
      %3139 = vmatprep.mubr.f32.mxu0 0.0
      %3140 = vmatmul.mubr.f32.gmra.mxu0 %v2998
      %v3141 = vpop.f32.mrf.mxu0
      %v3142 = vadd.f32 0.0, %v3141
      %v3143 = vpop.f32.mrf.mxu0
      %3144 = vmatprep.mubr.f32.mxu0 0.0
      %3145 = vmatmul.mubr.f32.gmra.mxu0 %v2999
      %v3146 = vpop.f32.mrf.mxu0
      %v3147 = vadd.f32 0.0, %v3146
      %v3148 = vpop.f32.mrf.mxu0
      %3149 = vmatprep.mubr.f32.mxu0 0.0
      %3150 = vmatmul.mubr.f32.gmra.mxu0 %v3000
      %v3151 = vpop.f32.mrf.mxu0
      %v3152 = vadd.f32 0.0, %v3151
      %v3153 = vpop.f32.mrf.mxu0
      %3154 = vmatprep.mubr.f32.mxu0 0.0
      %3155 = vmatmul.mubr.f32.gmra.mxu0 %v3001
      %v3156 = vpop.f32.mrf.mxu0
      %v3157 = vadd.f32 0.0, %v3156
      %v3158 = vpop.f32.mrf.mxu0
      %3159 = vmatprep.mubr.f32.mxu0 0.0
      %3160 = vmatmul.mubr.f32.gmra.mxu0 %v3002
      %v3161 = vpop.f32.mrf.mxu0
      %v3162 = vadd.f32 0.0, %v3161
      %v3163 = vpop.f32.mrf.mxu0
      %3164 = vmatprep.mubr.f32.mxu0 0.0
      %3165 = vmatmul.mubr.f32.gmra.mxu0 %v3003
      %v3166 = vpop.f32.mrf.mxu0
      %v3167 = vadd.f32 0.0, %v3166
      %v3168 = vpop.f32.mrf.mxu0
      %3169 = vmatprep.mubr.f32.mxu0 0.0
      %3170 = vmatmul.mubr.f32.gmra.mxu0 %v3004
      %v3171 = vpop.f32.mrf.mxu0
      %v3172 = vadd.f32 0.0, %v3171
      %v3173 = vpop.f32.mrf.mxu0
      %3174 = vmatprep.mubr.f32.mxu0 0.0
      %3175 = vmatmul.mubr.f32.gmra.mxu0 %v3005
      %v3176 = vpop.f32.mrf.mxu0
      %v3177 = vadd.f32 0.0, %v3176
      %v3178 = vpop.f32.mrf.mxu0
      %3179 = vmatprep.mubr.f32.mxu0 0.0
      %3180 = vmatmul.mubr.f32.gmra.mxu0 %v3006
      %v3181 = vpop.f32.mrf.mxu0
      %v3182 = vadd.f32 0.0, %v3181
      %v3183 = vpop.f32.mrf.mxu0
      %3184 = vmatprep.mubr.f32.mxu0 0.0
      %3185 = vmatmul.mubr.f32.gmra.mxu0 %v3007
      %v3186 = vpop.f32.mrf.mxu0
      %v3187 = vadd.f32 0.0, %v3186
      %v3188 = vpop.f32.mrf.mxu0
      %3189 = vmatprep.mubr.f32.mxu0 0.0
      %3190 = vmatmul.mubr.f32.gmra.mxu0 %v3008
      %v3191 = vpop.f32.mrf.mxu0
      %v3192 = vadd.f32 0.0, %v3191
      %v3193 = vpop.f32.mrf.mxu0
      %3194 = vmatprep.mubr.f32.mxu0 0.0
      %3195 = vmatmul.mubr.f32.gmra.mxu0 %v3009
      %v3196 = vpop.f32.mrf.mxu0
      %v3197 = vadd.f32 0.0, %v3196
      %v3198 = vpop.f32.mrf.mxu0
      %3199 = vmatprep.mubr.f32.mxu0 0.0
      %3200 = vmatmul.mubr.f32.gmra.mxu0 %v3010
      %v3201 = vpop.f32.mrf.mxu0
      %v3202 = vadd.f32 0.0, %v3201
      %v3203 = vpop.f32.mrf.mxu0
      %3204 = vmatprep.mubr.f32.mxu0 0.0
      %3205 = vmatmul.mubr.f32.gmra.mxu0 %v3011
      %v3206 = vpop.f32.mrf.mxu0
      %v3207 = vadd.f32 0.0, %v3206
      %v3208 = vpop.f32.mrf.mxu0
      %3209 = vmatprep.mubr.f32.mxu0 0.0
      %3210 = vmatmul.mubr.f32.gmra.mxu0 %v3012
      %v3211 = vpop.f32.mrf.mxu0
      %v3212 = vadd.f32 0.0, %v3211
      %v3213 = vpop.f32.mrf.mxu0
      %3214 = vmatprep.mubr.f32.mxu0 0.0
      %3215 = vmatmul.mubr.f32.gmra.mxu0 %v3013
      %v3216 = vpop.f32.mrf.mxu0
      %v3217 = vadd.f32 0.0, %v3216
      %v3218 = vpop.f32.mrf.mxu0
      %3219 = vmatprep.mubr.f32.mxu0 0.0
      %3220 = vmatmul.mubr.f32.gmra.mxu0 %v3014
      %v3221 = vpop.f32.mrf.mxu0
      %v3222 = vadd.f32 0.0, %v3221
      %v3223 = vpop.f32.mrf.mxu0
      %3224 = vmatprep.mubr.f32.mxu0 0.0
      %3225 = vmatmul.mubr.f32.gmra.mxu0 %v3015
      %v3226 = vpop.f32.mrf.mxu0
      %v3227 = vadd.f32 0.0, %v3226
      %v3228 = vpop.f32.mrf.mxu0
      %3229 = vmatprep.mubr.f32.mxu0 0.0
      %3230 = vmatmul.mubr.f32.gmra.mxu0 %v3016
      %v3231 = vpop.f32.mrf.mxu0
      %v3232 = vadd.f32 0.0, %v3231
      %v3233 = vpop.f32.mrf.mxu0
      %3234 = vmatprep.mubr.f32.mxu0 0.0
      %3235 = vmatmul.mubr.f32.gmra.mxu0 %v3017
      %v3236 = vpop.f32.mrf.mxu0
      %v3237 = vadd.f32 0.0, %v3236
      %v3238 = vpop.f32.mrf.mxu0
      %3239 = vmatprep.mubr.f32.mxu0 0.0
      %3240 = vmatmul.mubr.f32.gmra.mxu0 %v3018
      %v3241 = vpop.f32.mrf.mxu0
      %v3242 = vadd.f32 0.0, %v3241
      %v3243 = vpop.f32.mrf.mxu0
      %3244 = vmatprep.mubr.f32.mxu0 0.0
      %3245 = vmatmul.mubr.f32.gmra.mxu0 %v3019
      %v3246 = vpop.f32.mrf.mxu0
      %v3247 = vadd.f32 0.0, %v3246
      %v3248 = vpop.f32.mrf.mxu0
      %3249 = vmatprep.mubr.f32.mxu0 0.0
      %3250 = vmatmul.mubr.f32.gmra.mxu0 %v3020
      %v3251 = vpop.f32.mrf.mxu0
      %v3252 = vadd.f32 0.0, %v3251
      %v3253 = vpop.f32.mrf.mxu0
      %3254 = vmatprep.mubr.f32.mxu0 0.0
      %3255 = vmatmul.mubr.f32.gmra.mxu0 %v3021
      %v3256 = vpop.f32.mrf.mxu0
      %v3257 = vadd.f32 0.0, %v3256
      %v3258 = vpop.f32.mrf.mxu0
      %3259 = vmatprep.mubr.f32.mxu0 0.0
      %3260 = vmatmul.mubr.f32.gmra.mxu0 %v3022
      %v3261 = vpop.f32.mrf.mxu0
      %v3262 = vadd.f32 0.0, %v3261
      %v3263 = vpop.f32.mrf.mxu0
      %3264 = vdwg.mxu0
      %v3265 = vld [vmem:[#allocation3] sm:$0xff]
      %v3266 = vld [vmem:[#allocation3 + $0x8] sm:$0xff]
      %v3267 = vld [vmem:[#allocation3 + $0x10] sm:$0xff]
      %v3268 = vld [vmem:[#allocation3 + $0x18] sm:$0xff]
      %v3269 = vld [vmem:[#allocation3 + $0x20] sm:$0xff]
      %v3270 = vld [vmem:[#allocation3 + $0x28] sm:$0xff]
      %v3271 = vld [vmem:[#allocation3 + $0x30] sm:$0xff]
      %v3272 = vld [vmem:[#allocation3 + $0x38] sm:$0xff]
      %v3273 = vld [vmem:[#allocation3 + $0x40] sm:$0xff]
      %v3274 = vld [vmem:[#allocation3 + $0x48] sm:$0xff]
      %v3275 = vld [vmem:[#allocation3 + $0x50] sm:$0xff]
      %v3276 = vld [vmem:[#allocation3 + $0x58] sm:$0xff]
      %v3277 = vld [vmem:[#allocation3 + $0x60] sm:$0xff]
      %v3278 = vld [vmem:[#allocation3 + $0x68] sm:$0xff]
      %v3279 = vld [vmem:[#allocation3 + $0x70] sm:$0xff]
      %v3280 = vld [vmem:[#allocation3 + $0x78] sm:$0xff]
      %v3281 = vld [vmem:[#allocation3 + $0x80] sm:$0xff]
      %v3282 = vld [vmem:[#allocation3 + $0x88] sm:$0xff]
      %v3283 = vld [vmem:[#allocation3 + $0x90] sm:$0xff]
      %v3284 = vld [vmem:[#allocation3 + $0x98] sm:$0xff]
      %v3285 = vld [vmem:[#allocation3 + $0xa0] sm:$0xff]
      %v3286 = vld [vmem:[#allocation3 + $0xa8] sm:$0xff]
      %v3287 = vld [vmem:[#allocation3 + $0xb0] sm:$0xff]
      %v3288 = vld [vmem:[#allocation3 + $0xb8] sm:$0xff]
      %v3289 = vld [vmem:[#allocation3 + $0xc0] sm:$0xff]
      %v3290 = vld [vmem:[#allocation3 + $0xc8] sm:$0xff]
      %v3291 = vld [vmem:[#allocation3 + $0xd0] sm:$0xff]
      %v3292 = vld [vmem:[#allocation3 + $0xd8] sm:$0xff]
      %v3293 = vld [vmem:[#allocation3 + $0xe0] sm:$0xff]
      %v3294 = vld [vmem:[#allocation3 + $0xe8] sm:$0xff]
      %v3295 = vld [vmem:[#allocation3 + $0xf0] sm:$0xff]
      %v3296 = vld [vmem:[#allocation3 + $0xf8] sm:$0xff]
      %v3297 = vadd.f32 %v3265, %v3107
      %v3298 = vadd.f32 %v3266, %v3112
      %v3299 = vadd.f32 %v3267, %v3117
      %v3300 = vadd.f32 %v3268, %v3122
      %v3301 = vadd.f32 %v3269, %v3127
      %v3302 = vadd.f32 %v3270, %v3132
      %v3303 = vadd.f32 %v3271, %v3137
      %v3304 = vadd.f32 %v3272, %v3142
      %v3305 = vadd.f32 %v3273, %v3147
      %v3306 = vadd.f32 %v3274, %v3152
      %v3307 = vadd.f32 %v3275, %v3157
      %v3308 = vadd.f32 %v3276, %v3162
      %v3309 = vadd.f32 %v3277, %v3167
      %v3310 = vadd.f32 %v3278, %v3172
      %v3311 = vadd.f32 %v3279, %v3177
      %v3312 = vadd.f32 %v3280, %v3182
      %v3313 = vadd.f32 %v3281, %v3187
      %v3314 = vadd.f32 %v3282, %v3192
      %v3315 = vadd.f32 %v3283, %v3197
      %v3316 = vadd.f32 %v3284, %v3202
      %v3317 = vadd.f32 %v3285, %v3207
      %v3318 = vadd.f32 %v3286, %v3212
      %v3319 = vadd.f32 %v3287, %v3217
      %v3320 = vadd.f32 %v3288, %v3222
      %v3321 = vadd.f32 %v3289, %v3227
      %v3322 = vadd.f32 %v3290, %v3232
      %v3323 = vadd.f32 %v3291, %v3237
      %v3324 = vadd.f32 %v3292, %v3242
      %v3325 = vadd.f32 %v3293, %v3247
      %v3326 = vadd.f32 %v3294, %v3252
      %v3327 = vadd.f32 %v3295, %v3257
      %v3328 = vadd.f32 %v3296, %v3262
      %3329 = vst [vmem:[#allocation3] sm:$0xff] %v3297
      %3330 = vst [vmem:[#allocation3 + $0x8] sm:$0xff] %v3298
      %3331 = vst [vmem:[#allocation3 + $0x10] sm:$0xff] %v3299
      %3332 = vst [vmem:[#allocation3 + $0x18] sm:$0xff] %v3300
      %3333 = vst [vmem:[#allocation3 + $0x20] sm:$0xff] %v3301
      %3334 = vst [vmem:[#allocation3 + $0x28] sm:$0xff] %v3302
      %3335 = vst [vmem:[#allocation3 + $0x30] sm:$0xff] %v3303
      %3336 = vst [vmem:[#allocation3 + $0x38] sm:$0xff] %v3304
      %3337 = vst [vmem:[#allocation3 + $0x40] sm:$0xff] %v3305
      %3338 = vst [vmem:[#allocation3 + $0x48] sm:$0xff] %v3306
      %3339 = vst [vmem:[#allocation3 + $0x50] sm:$0xff] %v3307
      %3340 = vst [vmem:[#allocation3 + $0x58] sm:$0xff] %v3308
      %3341 = vst [vmem:[#allocation3 + $0x60] sm:$0xff] %v3309
      %3342 = vst [vmem:[#allocation3 + $0x68] sm:$0xff] %v3310
      %3343 = vst [vmem:[#allocation3 + $0x70] sm:$0xff] %v3311
      %3344 = vst [vmem:[#allocation3 + $0x78] sm:$0xff] %v3312
      %3345 = vst [vmem:[#allocation3 + $0x80] sm:$0xff] %v3313
      %3346 = vst [vmem:[#allocation3 + $0x88] sm:$0xff] %v3314
      %3347 = vst [vmem:[#allocation3 + $0x90] sm:$0xff] %v3315
      %3348 = vst [vmem:[#allocation3 + $0x98] sm:$0xff] %v3316
      %3349 = vst [vmem:[#allocation3 + $0xa0] sm:$0xff] %v3317
      %3350 = vst [vmem:[#allocation3 + $0xa8] sm:$0xff] %v3318
      %3351 = vst [vmem:[#allocation3 + $0xb0] sm:$0xff] %v3319
      %3352 = vst [vmem:[#allocation3 + $0xb8] sm:$0xff] %v3320
      %3353 = vst [vmem:[#allocation3 + $0xc0] sm:$0xff] %v3321
      %3354 = vst [vmem:[#allocation3 + $0xc8] sm:$0xff] %v3322
      %3355 = vst [vmem:[#allocation3 + $0xd0] sm:$0xff] %v3323
      %3356 = vst [vmem:[#allocation3 + $0xd8] sm:$0xff] %v3324
      %3357 = vst [vmem:[#allocation3 + $0xe0] sm:$0xff] %v3325
      %3358 = vst [vmem:[#allocation3 + $0xe8] sm:$0xff] %v3326
      %3359 = vst [vmem:[#allocation3 + $0xf0] sm:$0xff] %v3327
      %3360 = vst [vmem:[#allocation3 + $0xf8] sm:$0xff] %v3328
      %v3361 = vld [vmem:[%s2620 + $0x2] sm:$0xff]
      %v3362 = vld [vmem:[%s2620 + $0xa] sm:$0xff]
      %v3363 = vld [vmem:[%s2620 + $0x1a] sm:$0xff]
      %v3364 = vld [vmem:[%s2620 + $0x22] sm:$0xff]
      %v3365 = vld [vmem:[%s2620 + $0x32] sm:$0xff]
      %v3366 = vld [vmem:[%s2620 + $0x3a] sm:$0xff]
      %v3367 = vld [vmem:[%s2620 + $0x4a] sm:$0xff]
      %v3368 = vld [vmem:[%s2620 + $0x52] sm:$0xff]
      %v3369 = vld [vmem:[%s2620 + $0x62] sm:$0xff]
      %v3370 = vld [vmem:[%s2620 + $0x6a] sm:$0xff]
      %v3371 = vld [vmem:[%s2620 + $0x7a] sm:$0xff]
      %v3372 = vld [vmem:[%s2620 + $0x82] sm:$0xff]
      %v3373 = vld [vmem:[%s2620 + $0x92] sm:$0xff]
      %v3374 = vld [vmem:[%s2620 + $0x9a] sm:$0xff]
      %v3375 = vld [vmem:[%s2620 + $0xaa] sm:$0xff]
      %v3376 = vld [vmem:[%s2620 + $0xb2] sm:$0xff]
      %v3377 = vld [vmem:[%s2620 + $0xc2] sm:$0xff]
      %v3378 = vld [vmem:[%s2620 + $0xca] sm:$0xff]
      %v3379 = vld [vmem:[%s2620 + $0xda] sm:$0xff]
      %v3380 = vld [vmem:[%s2620 + $0xe2] sm:$0xff]
      %v3381 = vld [vmem:[%s2620 + $0xf2] sm:$0xff]
      %v3382 = vld [vmem:[%s2620 + $0xfa] sm:$0xff]
      %v3383 = vld [vmem:[%s2620 + $0x10a] sm:$0xff]
      %v3384 = vld [vmem:[%s2620 + $0x112] sm:$0xff]
      %v3385 = vld [vmem:[%s2620 + $0x122] sm:$0xff]
      %v3386 = vld [vmem:[%s2620 + $0x12a] sm:$0xff]
      %v3387 = vld [vmem:[%s2620 + $0x13a] sm:$0xff]
      %v3388 = vld [vmem:[%s2620 + $0x142] sm:$0xff]
      %v3389 = vld [vmem:[%s2620 + $0x152] sm:$0xff]
      %v3390 = vld [vmem:[%s2620 + $0x15a] sm:$0xff]
      %v3391 = vld [vmem:[%s2620 + $0x16a] sm:$0xff]
      %v3392 = vld [vmem:[%s2620 + $0x172] sm:$0xff]
      %s3393 = scalar_lea.vmem %s1, 1024
      %v3394 = vld [vmem:[%s3393] sm:$0xff]
      %v3395 = vld [vmem:[%s3393 + $0x8] sm:$0xff]
      %v3396 = vld [vmem:[%s3393 + $0x10] sm:$0xff]
      %v3397 = vld [vmem:[%s3393 + $0x18] sm:$0xff]
      %v3398 = vld [vmem:[%s3393 + $0x20] sm:$0xff]
      %v3399 = vld [vmem:[%s3393 + $0x28] sm:$0xff]
      %v3400 = vld [vmem:[%s3393 + $0x30] sm:$0xff]
      %v3401 = vld [vmem:[%s3393 + $0x38] sm:$0xff]
      %v3402 = vld [vmem:[%s3393 + $0x40] sm:$0xff]
      %v3403 = vld [vmem:[%s3393 + $0x48] sm:$0xff]
      %v3404 = vld [vmem:[%s3393 + $0x50] sm:$0xff]
      %v3405 = vld [vmem:[%s3393 + $0x58] sm:$0xff]
      %v3406 = vld [vmem:[%s3393 + $0x60] sm:$0xff]
      %v3407 = vld [vmem:[%s3393 + $0x68] sm:$0xff]
      %v3408 = vld [vmem:[%s3393 + $0x70] sm:$0xff]
      %v3409 = vld [vmem:[%s3393 + $0x78] sm:$0xff]
      %3410 = vmatprep.subr.mxu0 0.0
      %3411 = vmatpush1.msra.mxu0 %v3409
      %3412 = vmatprep.subr.mxu0 0.0
      %3413 = vmatpush1.msra.mxu0 %v3408
      %3414 = vmatprep.subr.mxu0 0.0
      %3415 = vmatpush1.msra.mxu0 %v3407
      %3416 = vmatprep.subr.mxu0 0.0
      %3417 = vmatpush1.msra.mxu0 %v3406
      %3418 = vmatprep.subr.mxu0 0.0
      %3419 = vmatpush1.msra.mxu0 %v3405
      %3420 = vmatprep.subr.mxu0 0.0
      %3421 = vmatpush1.msra.mxu0 %v3404
      %3422 = vmatprep.subr.mxu0 0.0
      %3423 = vmatpush1.msra.mxu0 %v3403
      %3424 = vmatprep.subr.mxu0 0.0
      %3425 = vmatpush1.msra.mxu0 %v3402
      %3426 = vmatprep.subr.mxu0 0.0
      %3427 = vmatpush1.msra.mxu0 %v3401
      %3428 = vmatprep.subr.mxu0 0.0
      %3429 = vmatpush1.msra.mxu0 %v3400
      %3430 = vmatprep.subr.mxu0 0.0
      %3431 = vmatpush1.msra.mxu0 %v3399
      %3432 = vmatprep.subr.mxu0 0.0
      %3433 = vmatpush1.msra.mxu0 %v3398
      %3434 = vmatprep.subr.mxu0 0.0
      %3435 = vmatpush1.msra.mxu0 %v3397
      %3436 = vmatprep.subr.mxu0 0.0
      %3437 = vmatpush1.msra.mxu0 %v3396
      %3438 = vmatprep.subr.mxu0 0.0
      %3439 = vmatpush1.msra.mxu0 %v3395
      %3440 = vmatprep.subr.mxu0 0.0
      %3441 = vmatpush1.msra.mxu0 %v3394
      %3442 = vmatprep.subr.mxu0 0.0
      %3443 = vmatpush2.msra.mxu0 0.0
      %3444 = vmatprep.subr.mxu0 0.0
      %3445 = vmatpush2.msra.mxu0 0.0
      %3446 = vmatprep.subr.mxu0 0.0
      %3447 = vmatpush2.msra.mxu0 0.0
      %3448 = vmatprep.subr.mxu0 0.0
      %3449 = vmatpush2.msra.mxu0 0.0
      %3450 = vmatprep.subr.mxu0 0.0
      %3451 = vmatpush2.msra.mxu0 0.0
      %3452 = vmatprep.subr.mxu0 0.0
      %3453 = vmatpush2.msra.mxu0 0.0
      %3454 = vmatprep.subr.mxu0 0.0
      %3455 = vmatpush2.msra.mxu0 0.0
      %3456 = vmatprep.subr.mxu0 0.0
      %3457 = vmatpush2.msra.mxu0 0.0
      %3458 = vmatprep.subr.mxu0 0.0
      %3459 = vmatpush2.msra.mxu0 0.0
      %3460 = vmatprep.subr.mxu0 0.0
      %3461 = vmatpush2.msra.mxu0 0.0
      %3462 = vmatprep.subr.mxu0 0.0
      %3463 = vmatpush2.msra.mxu0 0.0
      %3464 = vmatprep.subr.mxu0 0.0
      %3465 = vmatpush2.msra.mxu0 0.0
      %3466 = vmatprep.subr.mxu0 0.0
      %3467 = vmatpush2.msra.mxu0 0.0
      %3468 = vmatprep.subr.mxu0 0.0
      %3469 = vmatpush2.msra.mxu0 0.0
      %3470 = vmatprep.subr.mxu0 0.0
      %3471 = vmatpush2.msra.mxu0 0.0
      %3472 = vmatprep.subr.mxu0 0.0
      %3473 = vmatpush2.msra.mxu0 0.0
      %3474 = vmatprep.mubr.f32.mxu0 0.0
      %3475 = vmatmul.mubr.f32.gmra.mxu0 %v3361
      %v3476 = vpop.f32.mrf.mxu0
      %v3477 = vadd.f32 0.0, %v3476
      %v3478 = vpop.f32.mrf.mxu0
      %3479 = vmatprep.mubr.f32.mxu0 0.0
      %3480 = vmatmul.mubr.f32.gmra.mxu0 %v3362
      %v3481 = vpop.f32.mrf.mxu0
      %v3482 = vadd.f32 0.0, %v3481
      %v3483 = vpop.f32.mrf.mxu0
      %3484 = vmatprep.mubr.f32.mxu0 0.0
      %3485 = vmatmul.mubr.f32.gmra.mxu0 %v3363
      %v3486 = vpop.f32.mrf.mxu0
      %v3487 = vadd.f32 0.0, %v3486
      %v3488 = vpop.f32.mrf.mxu0
      %3489 = vmatprep.mubr.f32.mxu0 0.0
      %3490 = vmatmul.mubr.f32.gmra.mxu0 %v3364
      %v3491 = vpop.f32.mrf.mxu0
      %v3492 = vadd.f32 0.0, %v3491
      %v3493 = vpop.f32.mrf.mxu0
      %3494 = vmatprep.mubr.f32.mxu0 0.0
      %3495 = vmatmul.mubr.f32.gmra.mxu0 %v3365
      %v3496 = vpop.f32.mrf.mxu0
      %v3497 = vadd.f32 0.0, %v3496
      %v3498 = vpop.f32.mrf.mxu0
      %3499 = vmatprep.mubr.f32.mxu0 0.0
      %3500 = vmatmul.mubr.f32.gmra.mxu0 %v3366
      %v3501 = vpop.f32.mrf.mxu0
      %v3502 = vadd.f32 0.0, %v3501
      %v3503 = vpop.f32.mrf.mxu0
      %3504 = vmatprep.mubr.f32.mxu0 0.0
      %3505 = vmatmul.mubr.f32.gmra.mxu0 %v3367
      %v3506 = vpop.f32.mrf.mxu0
      %v3507 = vadd.f32 0.0, %v3506
      %v3508 = vpop.f32.mrf.mxu0
      %3509 = vmatprep.mubr.f32.mxu0 0.0
      %3510 = vmatmul.mubr.f32.gmra.mxu0 %v3368
      %v3511 = vpop.f32.mrf.mxu0
      %v3512 = vadd.f32 0.0, %v3511
      %v3513 = vpop.f32.mrf.mxu0
      %3514 = vmatprep.mubr.f32.mxu0 0.0
      %3515 = vmatmul.mubr.f32.gmra.mxu0 %v3369
      %v3516 = vpop.f32.mrf.mxu0
      %v3517 = vadd.f32 0.0, %v3516
      %v3518 = vpop.f32.mrf.mxu0
      %3519 = vmatprep.mubr.f32.mxu0 0.0
      %3520 = vmatmul.mubr.f32.gmra.mxu0 %v3370
      %v3521 = vpop.f32.mrf.mxu0
      %v3522 = vadd.f32 0.0, %v3521
      %v3523 = vpop.f32.mrf.mxu0
      %3524 = vmatprep.mubr.f32.mxu0 0.0
      %3525 = vmatmul.mubr.f32.gmra.mxu0 %v3371
      %v3526 = vpop.f32.mrf.mxu0
      %v3527 = vadd.f32 0.0, %v3526
      %v3528 = vpop.f32.mrf.mxu0
      %3529 = vmatprep.mubr.f32.mxu0 0.0
      %3530 = vmatmul.mubr.f32.gmra.mxu0 %v3372
      %v3531 = vpop.f32.mrf.mxu0
      %v3532 = vadd.f32 0.0, %v3531
      %v3533 = vpop.f32.mrf.mxu0
      %3534 = vmatprep.mubr.f32.mxu0 0.0
      %3535 = vmatmul.mubr.f32.gmra.mxu0 %v3373
      %v3536 = vpop.f32.mrf.mxu0
      %v3537 = vadd.f32 0.0, %v3536
      %v3538 = vpop.f32.mrf.mxu0
      %3539 = vmatprep.mubr.f32.mxu0 0.0
      %3540 = vmatmul.mubr.f32.gmra.mxu0 %v3374
      %v3541 = vpop.f32.mrf.mxu0
      %v3542 = vadd.f32 0.0, %v3541
      %v3543 = vpop.f32.mrf.mxu0
      %3544 = vmatprep.mubr.f32.mxu0 0.0
      %3545 = vmatmul.mubr.f32.gmra.mxu0 %v3375
      %v3546 = vpop.f32.mrf.mxu0
      %v3547 = vadd.f32 0.0, %v3546
      %v3548 = vpop.f32.mrf.mxu0
      %3549 = vmatprep.mubr.f32.mxu0 0.0
      %3550 = vmatmul.mubr.f32.gmra.mxu0 %v3376
      %v3551 = vpop.f32.mrf.mxu0
      %v3552 = vadd.f32 0.0, %v3551
      %v3553 = vpop.f32.mrf.mxu0
      %3554 = vmatprep.mubr.f32.mxu0 0.0
      %3555 = vmatmul.mubr.f32.gmra.mxu0 %v3377
      %v3556 = vpop.f32.mrf.mxu0
      %v3557 = vadd.f32 0.0, %v3556
      %v3558 = vpop.f32.mrf.mxu0
      %3559 = vmatprep.mubr.f32.mxu0 0.0
      %3560 = vmatmul.mubr.f32.gmra.mxu0 %v3378
      %v3561 = vpop.f32.mrf.mxu0
      %v3562 = vadd.f32 0.0, %v3561
      %v3563 = vpop.f32.mrf.mxu0
      %3564 = vmatprep.mubr.f32.mxu0 0.0
      %3565 = vmatmul.mubr.f32.gmra.mxu0 %v3379
      %v3566 = vpop.f32.mrf.mxu0
      %v3567 = vadd.f32 0.0, %v3566
      %v3568 = vpop.f32.mrf.mxu0
      %3569 = vmatprep.mubr.f32.mxu0 0.0
      %3570 = vmatmul.mubr.f32.gmra.mxu0 %v3380
      %v3571 = vpop.f32.mrf.mxu0
      %v3572 = vadd.f32 0.0, %v3571
      %v3573 = vpop.f32.mrf.mxu0
      %3574 = vmatprep.mubr.f32.mxu0 0.0
      %3575 = vmatmul.mubr.f32.gmra.mxu0 %v3381
      %v3576 = vpop.f32.mrf.mxu0
      %v3577 = vadd.f32 0.0, %v3576
      %v3578 = vpop.f32.mrf.mxu0
      %3579 = vmatprep.mubr.f32.mxu0 0.0
      %3580 = vmatmul.mubr.f32.gmra.mxu0 %v3382
      %v3581 = vpop.f32.mrf.mxu0
      %v3582 = vadd.f32 0.0, %v3581
      %v3583 = vpop.f32.mrf.mxu0
      %3584 = vmatprep.mubr.f32.mxu0 0.0
      %3585 = vmatmul.mubr.f32.gmra.mxu0 %v3383
      %v3586 = vpop.f32.mrf.mxu0
      %v3587 = vadd.f32 0.0, %v3586
      %v3588 = vpop.f32.mrf.mxu0
      %3589 = vmatprep.mubr.f32.mxu0 0.0
      %3590 = vmatmul.mubr.f32.gmra.mxu0 %v3384
      %v3591 = vpop.f32.mrf.mxu0
      %v3592 = vadd.f32 0.0, %v3591
      %v3593 = vpop.f32.mrf.mxu0
      %3594 = vmatprep.mubr.f32.mxu0 0.0
      %3595 = vmatmul.mubr.f32.gmra.mxu0 %v3385
      %v3596 = vpop.f32.mrf.mxu0
      %v3597 = vadd.f32 0.0, %v3596
      %v3598 = vpop.f32.mrf.mxu0
      %3599 = vmatprep.mubr.f32.mxu0 0.0
      %3600 = vmatmul.mubr.f32.gmra.mxu0 %v3386
      %v3601 = vpop.f32.mrf.mxu0
      %v3602 = vadd.f32 0.0, %v3601
      %v3603 = vpop.f32.mrf.mxu0
      %3604 = vmatprep.mubr.f32.mxu0 0.0
      %3605 = vmatmul.mubr.f32.gmra.mxu0 %v3387
      %v3606 = vpop.f32.mrf.mxu0
      %v3607 = vadd.f32 0.0, %v3606
      %v3608 = vpop.f32.mrf.mxu0
      %3609 = vmatprep.mubr.f32.mxu0 0.0
      %3610 = vmatmul.mubr.f32.gmra.mxu0 %v3388
      %v3611 = vpop.f32.mrf.mxu0
      %v3612 = vadd.f32 0.0, %v3611
      %v3613 = vpop.f32.mrf.mxu0
      %3614 = vmatprep.mubr.f32.mxu0 0.0
      %3615 = vmatmul.mubr.f32.gmra.mxu0 %v3389
      %v3616 = vpop.f32.mrf.mxu0
      %v3617 = vadd.f32 0.0, %v3616
      %v3618 = vpop.f32.mrf.mxu0
      %3619 = vmatprep.mubr.f32.mxu0 0.0
      %3620 = vmatmul.mubr.f32.gmra.mxu0 %v3390
      %v3621 = vpop.f32.mrf.mxu0
      %v3622 = vadd.f32 0.0, %v3621
      %v3623 = vpop.f32.mrf.mxu0
      %3624 = vmatprep.mubr.f32.mxu0 0.0
      %3625 = vmatmul.mubr.f32.gmra.mxu0 %v3391
      %v3626 = vpop.f32.mrf.mxu0
      %v3627 = vadd.f32 0.0, %v3626
      %v3628 = vpop.f32.mrf.mxu0
      %3629 = vmatprep.mubr.f32.mxu0 0.0
      %3630 = vmatmul.mubr.f32.gmra.mxu0 %v3392
      %v3631 = vpop.f32.mrf.mxu0
      %v3632 = vadd.f32 0.0, %v3631
      %v3633 = vpop.f32.mrf.mxu0
      %3634 = vdwg.mxu0
      %v3635 = vld [vmem:[#allocation3] sm:$0xff]
      %v3636 = vld [vmem:[#allocation3 + $0x8] sm:$0xff]
      %v3637 = vld [vmem:[#allocation3 + $0x10] sm:$0xff]
      %v3638 = vld [vmem:[#allocation3 + $0x18] sm:$0xff]
      %v3639 = vld [vmem:[#allocation3 + $0x20] sm:$0xff]
      %v3640 = vld [vmem:[#allocation3 + $0x28] sm:$0xff]
      %v3641 = vld [vmem:[#allocation3 + $0x30] sm:$0xff]
      %v3642 = vld [vmem:[#allocation3 + $0x38] sm:$0xff]
      %v3643 = vld [vmem:[#allocation3 + $0x40] sm:$0xff]
      %v3644 = vld [vmem:[#allocation3 + $0x48] sm:$0xff]
      %v3645 = vld [vmem:[#allocation3 + $0x50] sm:$0xff]
      %v3646 = vld [vmem:[#allocation3 + $0x58] sm:$0xff]
      %v3647 = vld [vmem:[#allocation3 + $0x60] sm:$0xff]
      %v3648 = vld [vmem:[#allocation3 + $0x68] sm:$0xff]
      %v3649 = vld [vmem:[#allocation3 + $0x70] sm:$0xff]
      %v3650 = vld [vmem:[#allocation3 + $0x78] sm:$0xff]
      %v3651 = vld [vmem:[#allocation3 + $0x80] sm:$0xff]
      %v3652 = vld [vmem:[#allocation3 + $0x88] sm:$0xff]
      %v3653 = vld [vmem:[#allocation3 + $0x90] sm:$0xff]
      %v3654 = vld [vmem:[#allocation3 + $0x98] sm:$0xff]
      %v3655 = vld [vmem:[#allocation3 + $0xa0] sm:$0xff]
      %v3656 = vld [vmem:[#allocation3 + $0xa8] sm:$0xff]
      %v3657 = vld [vmem:[#allocation3 + $0xb0] sm:$0xff]
      %v3658 = vld [vmem:[#allocation3 + $0xb8] sm:$0xff]
      %v3659 = vld [vmem:[#allocation3 + $0xc0] sm:$0xff]
      %v3660 = vld [vmem:[#allocation3 + $0xc8] sm:$0xff]
      %v3661 = vld [vmem:[#allocation3 + $0xd0] sm:$0xff]
      %v3662 = vld [vmem:[#allocation3 + $0xd8] sm:$0xff]
      %v3663 = vld [vmem:[#allocation3 + $0xe0] sm:$0xff]
      %v3664 = vld [vmem:[#allocation3 + $0xe8] sm:$0xff]
      %v3665 = vld [vmem:[#allocation3 + $0xf0] sm:$0xff]
      %v3666 = vld [vmem:[#allocation3 + $0xf8] sm:$0xff]
      %v3667 = vadd.f32 %v3635, %v3477
      %v3668 = vadd.f32 %v3636, %v3482
      %v3669 = vadd.f32 %v3637, %v3487
      %v3670 = vadd.f32 %v3638, %v3492
      %v3671 = vadd.f32 %v3639, %v3497
      %v3672 = vadd.f32 %v3640, %v3502
      %v3673 = vadd.f32 %v3641, %v3507
      %v3674 = vadd.f32 %v3642, %v3512
      %v3675 = vadd.f32 %v3643, %v3517
      %v3676 = vadd.f32 %v3644, %v3522
      %v3677 = vadd.f32 %v3645, %v3527
      %v3678 = vadd.f32 %v3646, %v3532
      %v3679 = vadd.f32 %v3647, %v3537
      %v3680 = vadd.f32 %v3648, %v3542
      %v3681 = vadd.f32 %v3649, %v3547
      %v3682 = vadd.f32 %v3650, %v3552
      %v3683 = vadd.f32 %v3651, %v3557
      %v3684 = vadd.f32 %v3652, %v3562
      %v3685 = vadd.f32 %v3653, %v3567
      %v3686 = vadd.f32 %v3654, %v3572
      %v3687 = vadd.f32 %v3655, %v3577
      %v3688 = vadd.f32 %v3656, %v3582
      %v3689 = vadd.f32 %v3657, %v3587
      %v3690 = vadd.f32 %v3658, %v3592
      %v3691 = vadd.f32 %v3659, %v3597
      %v3692 = vadd.f32 %v3660, %v3602
      %v3693 = vadd.f32 %v3661, %v3607
      %v3694 = vadd.f32 %v3662, %v3612
      %v3695 = vadd.f32 %v3663, %v3617
      %v3696 = vadd.f32 %v3664, %v3622
      %v3697 = vadd.f32 %v3665, %v3627
      %v3698 = vadd.f32 %v3666, %v3632
      %3699 = vst [vmem:[#allocation3] sm:$0xff] %v3667
      %3700 = vst [vmem:[#allocation3 + $0x8] sm:$0xff] %v3668
      %3701 = vst [vmem:[#allocation3 + $0x10] sm:$0xff] %v3669
      %3702 = vst [vmem:[#allocation3 + $0x18] sm:$0xff] %v3670
      %3703 = vst [vmem:[#allocation3 + $0x20] sm:$0xff] %v3671
      %3704 = vst [vmem:[#allocation3 + $0x28] sm:$0xff] %v3672
      %3705 = vst [vmem:[#allocation3 + $0x30] sm:$0xff] %v3673
      %3706 = vst [vmem:[#allocation3 + $0x38] sm:$0xff] %v3674
      %3707 = vst [vmem:[#allocation3 + $0x40] sm:$0xff] %v3675
      %3708 = vst [vmem:[#allocation3 + $0x48] sm:$0xff] %v3676
      %3709 = vst [vmem:[#allocation3 + $0x50] sm:$0xff] %v3677
      %3710 = vst [vmem:[#allocation3 + $0x58] sm:$0xff] %v3678
      %3711 = vst [vmem:[#allocation3 + $0x60] sm:$0xff] %v3679
      %3712 = vst [vmem:[#allocation3 + $0x68] sm:$0xff] %v3680
      %3713 = vst [vmem:[#allocation3 + $0x70] sm:$0xff] %v3681
      %3714 = vst [vmem:[#allocation3 + $0x78] sm:$0xff] %v3682
      %3715 = vst [vmem:[#allocation3 + $0x80] sm:$0xff] %v3683
      %3716 = vst [vmem:[#allocation3 + $0x88] sm:$0xff] %v3684
      %3717 = vst [vmem:[#allocation3 + $0x90] sm:$0xff] %v3685
      %3718 = vst [vmem:[#allocation3 + $0x98] sm:$0xff] %v3686
      %3719 = vst [vmem:[#allocation3 + $0xa0] sm:$0xff] %v3687
      %3720 = vst [vmem:[#allocation3 + $0xa8] sm:$0xff] %v3688
      %3721 = vst [vmem:[#allocation3 + $0xb0] sm:$0xff] %v3689
      %3722 = vst [vmem:[#allocation3 + $0xb8] sm:$0xff] %v3690
      %3723 = vst [vmem:[#allocation3 + $0xc0] sm:$0xff] %v3691
      %3724 = vst [vmem:[#allocation3 + $0xc8] sm:$0xff] %v3692
      %3725 = vst [vmem:[#allocation3 + $0xd0] sm:$0xff] %v3693
      %3726 = vst [vmem:[#allocation3 + $0xd8] sm:$0xff] %v3694
      %3727 = vst [vmem:[#allocation3 + $0xe0] sm:$0xff] %v3695
      %3728 = vst [vmem:[#allocation3 + $0xe8] sm:$0xff] %v3696
      %3729 = vst [vmem:[#allocation3 + $0xf0] sm:$0xff] %v3697
      %3730 = vst [vmem:[#allocation3 + $0xf8] sm:$0xff] %v3698
      %v3731 = vld [vmem:[#allocation3] sm:$0xff]
      %v3732 = vld [vmem:[#allocation3 + $0x8] sm:$0xff]
      %v3733 = vld [vmem:[#allocation3 + $0x10] sm:$0xff]
      %v3734 = vld [vmem:[#allocation3 + $0x18] sm:$0xff]
      %v3735 = vld [vmem:[#allocation3 + $0x20] sm:$0xff]
      %v3736 = vld [vmem:[#allocation3 + $0x28] sm:$0xff]
      %v3737 = vld [vmem:[#allocation3 + $0x30] sm:$0xff]
      %v3738 = vld [vmem:[#allocation3 + $0x38] sm:$0xff]
      %v3739 = vld [vmem:[#allocation3 + $0x40] sm:$0xff]
      %v3740 = vld [vmem:[#allocation3 + $0x48] sm:$0xff]
      %v3741 = vld [vmem:[#allocation3 + $0x50] sm:$0xff]
      %v3742 = vld [vmem:[#allocation3 + $0x58] sm:$0xff]
      %v3743 = vld [vmem:[#allocation3 + $0x60] sm:$0xff]
      %v3744 = vld [vmem:[#allocation3 + $0x68] sm:$0xff]
      %v3745 = vld [vmem:[#allocation3 + $0x70] sm:$0xff]
      %v3746 = vld [vmem:[#allocation3 + $0x78] sm:$0xff]
      %v3747 = vld [vmem:[#allocation3 + $0x80] sm:$0xff]
      %v3748 = vld [vmem:[#allocation3 + $0x88] sm:$0xff]
      %v3749 = vld [vmem:[#allocation3 + $0x90] sm:$0xff]
      %v3750 = vld [vmem:[#allocation3 + $0x98] sm:$0xff]
      %v3751 = vld [vmem:[#allocation3 + $0xa0] sm:$0xff]
      %v3752 = vld [vmem:[#allocation3 + $0xa8] sm:$0xff]
      %v3753 = vld [vmem:[#allocation3 + $0xb0] sm:$0xff]
      %v3754 = vld [vmem:[#allocation3 + $0xb8] sm:$0xff]
      %v3755 = vld [vmem:[#allocation3 + $0xc0] sm:$0xff]
      %v3756 = vld [vmem:[#allocation3 + $0xc8] sm:$0xff]
      %v3757 = vld [vmem:[#allocation3 + $0xd0] sm:$0xff]
      %v3758 = vld [vmem:[#allocation3 + $0xd8] sm:$0xff]
      %v3759 = vld [vmem:[#allocation3 + $0xe0] sm:$0xff]
      %v3760 = vld [vmem:[#allocation3 + $0xe8] sm:$0xff]
      %v3761 = vld [vmem:[#allocation3 + $0xf0] sm:$0xff]
      %v3762 = vld [vmem:[#allocation3 + $0xf8] sm:$0xff]
      %3763 = vst [vmem:[%s231] sm:$0xff] %v3731
      %3764 = vst [vmem:[%s231 + $0x8] sm:$0xff] %v3732
      %3765 = vst [vmem:[%s231 + $0x10] sm:$0xff] %v3733
      %3766 = vst [vmem:[%s231 + $0x18] sm:$0xff] %v3734
      %3767 = vst [vmem:[%s231 + $0x20] sm:$0xff] %v3735
      %3768 = vst [vmem:[%s231 + $0x28] sm:$0xff] %v3736
      %3769 = vst [vmem:[%s231 + $0x30] sm:$0xff] %v3737
      %3770 = vst [vmem:[%s231 + $0x38] sm:$0xff] %v3738
      %3771 = vst [vmem:[%s231 + $0x40] sm:$0xff] %v3739
      %3772 = vst [vmem:[%s231 + $0x48] sm:$0xff] %v3740
      %3773 = vst [vmem:[%s231 + $0x50] sm:$0xff] %v3741
      %3774 = vst [vmem:[%s231 + $0x58] sm:$0xff] %v3742
      %3775 = vst [vmem:[%s231 + $0x60] sm:$0xff] %v3743
      %3776 = vst [vmem:[%s231 + $0x68] sm:$0xff] %v3744
      %3777 = vst [vmem:[%s231 + $0x70] sm:$0xff] %v3745
      %3778 = vst [vmem:[%s231 + $0x78] sm:$0xff] %v3746
      %3779 = vst [vmem:[%s231 + $0x80] sm:$0xff] %v3747
      %3780 = vst [vmem:[%s231 + $0x88] sm:$0xff] %v3748
      %3781 = vst [vmem:[%s231 + $0x90] sm:$0xff] %v3749
      %3782 = vst [vmem:[%s231 + $0x98] sm:$0xff] %v3750
      %3783 = vst [vmem:[%s231 + $0xa0] sm:$0xff] %v3751
      %3784 = vst [vmem:[%s231 + $0xa8] sm:$0xff] %v3752
      %3785 = vst [vmem:[%s231 + $0xb0] sm:$0xff] %v3753
      %3786 = vst [vmem:[%s231 + $0xb8] sm:$0xff] %v3754
      %3787 = vst [vmem:[%s231 + $0xc0] sm:$0xff] %v3755
      %3788 = vst [vmem:[%s231 + $0xc8] sm:$0xff] %v3756
      %3789 = vst [vmem:[%s231 + $0xd0] sm:$0xff] %v3757
      %3790 = vst [vmem:[%s231 + $0xd8] sm:$0xff] %v3758
      %3791 = vst [vmem:[%s231 + $0xe0] sm:$0xff] %v3759
      %3792 = vst [vmem:[%s231 + $0xe8] sm:$0xff] %v3760
      %3793 = vst [vmem:[%s231 + $0xf0] sm:$0xff] %v3761
      %3794 = vst [vmem:[%s231 + $0xf8] sm:$0xff] %v3762
      %v3795 = vadd.f32 %v3731, %v3732
      %v3796 = vadd.f32 %v3795, %v3733
      %v3797 = vadd.f32 %v3796, %v3734
      %v3798 = vadd.f32 %v3797, %v3735
      %v3799 = vadd.f32 %v3798, %v3736
      %v3800 = vadd.f32 %v3799, %v3737
      %v3801 = vadd.f32 %v3800, %v3738
      %v3802 = vadd.f32 %v3801, %v3739
      %v3803 = vadd.f32 %v3802, %v3740
      %v3804 = vadd.f32 %v3803, %v3741
      %v3805 = vadd.f32 %v3804, %v3742
      %v3806 = vadd.f32 %v3805, %v3743
      %v3807 = vadd.f32 %v3806, %v3744
      %v3808 = vadd.f32 %v3807, %v3745
      %v3809 = vadd.f32 %v3808, %v3746
      %v3810 = vadd.f32 %v3809, %v3747
      %v3811 = vadd.f32 %v3810, %v3748
      %v3812 = vadd.f32 %v3811, %v3749
      %v3813 = vadd.f32 %v3812, %v3750
      %v3814 = vadd.f32 %v3813, %v3751
      %v3815 = vadd.f32 %v3814, %v3752
      %v3816 = vadd.f32 %v3815, %v3753
      %v3817 = vadd.f32 %v3816, %v3754
      %v3818 = vadd.f32 %v3817, %v3755
      %v3819 = vadd.f32 %v3818, %v3756
      %v3820 = vadd.f32 %v3819, %v3757
      %v3821 = vadd.f32 %v3820, %v3758
      %v3822 = vadd.f32 %v3821, %v3759
      %v3823 = vadd.f32 %v3822, %v3760
      %v3824 = vadd.f32 %v3823, %v3761
      %v3825 = vadd.f32 %v3824, %v3762
      %v3826 = vrot.slane %v3825, 4
      %v3827 = vadd.f32 %v3825, %v3826
      %v3828 = vrot.slane %v3827, 2
      %v3829 = vadd.f32 %v3827, %v3828
      %v3830 = vrot.slane %v3829, 1
      %v3831 = vadd.f32 %v3829, %v3830
      %v3832 = vmul.f32 %v3831, 0.00390625
      %v3833 = vsub.f32 %v3731, %v3832
      %v3834 = vsub.f32 %v3732, %v3832
      %v3835 = vsub.f32 %v3733, %v3832
      %v3836 = vsub.f32 %v3734, %v3832
      %v3837 = vsub.f32 %v3735, %v3832
      %v3838 = vsub.f32 %v3736, %v3832
      %v3839 = vsub.f32 %v3737, %v3832
      %v3840 = vsub.f32 %v3738, %v3832
      %v3841 = vsub.f32 %v3739, %v3832
      %v3842 = vsub.f32 %v3740, %v3832
      %v3843 = vsub.f32 %v3741, %v3832
      %v3844 = vsub.f32 %v3742, %v3832
      %v3845 = vsub.f32 %v3743, %v3832
      %v3846 = vsub.f32 %v3744, %v3832
      %v3847 = vsub.f32 %v3745, %v3832
      %v3848 = vsub.f32 %v3746, %v3832
      %v3849 = vsub.f32 %v3747, %v3832
      %v3850 = vsub.f32 %v3748, %v3832
      %v3851 = vsub.f32 %v3749, %v3832
      %v3852 = vsub.f32 %v3750, %v3832
      %v3853 = vsub.f32 %v3751, %v3832
      %v3854 = vsub.f32 %v3752, %v3832
      %v3855 = vsub.f32 %v3753, %v3832
      %v3856 = vsub.f32 %v3754, %v3832
      %v3857 = vsub.f32 %v3755, %v3832
      %v3858 = vsub.f32 %v3756, %v3832
      %v3859 = vsub.f32 %v3757, %v3832
      %v3860 = vsub.f32 %v3758, %v3832
      %v3861 = vsub.f32 %v3759, %v3832
      %v3862 = vsub.f32 %v3760, %v3832
      %v3863 = vsub.f32 %v3761, %v3832
      %v3864 = vsub.f32 %v3762, %v3832
      %v3865 = vmul.f32 %v3833, %v3833
      %v3866 = vmul.f32 %v3834, %v3834
      %v3867 = vmul.f32 %v3835, %v3835
      %v3868 = vmul.f32 %v3836, %v3836
      %v3869 = vmul.f32 %v3837, %v3837
      %v3870 = vmul.f32 %v3838, %v3838
      %v3871 = vmul.f32 %v3839, %v3839
      %v3872 = vmul.f32 %v3840, %v3840
      %v3873 = vmul.f32 %v3841, %v3841
      %v3874 = vmul.f32 %v3842, %v3842
      %v3875 = vmul.f32 %v3843, %v3843
      %v3876 = vmul.f32 %v3844, %v3844
      %v3877 = vmul.f32 %v3845, %v3845
      %v3878 = vmul.f32 %v3846, %v3846
      %v3879 = vmul.f32 %v3847, %v3847
      %v3880 = vmul.f32 %v3848, %v3848
      %v3881 = vmul.f32 %v3849, %v3849
      %v3882 = vmul.f32 %v3850, %v3850
      %v3883 = vmul.f32 %v3851, %v3851
      %v3884 = vmul.f32 %v3852, %v3852
      %v3885 = vmul.f32 %v3853, %v3853
      %v3886 = vmul.f32 %v3854, %v3854
      %v3887 = vmul.f32 %v3855, %v3855
      %v3888 = vmul.f32 %v3856, %v3856
      %v3889 = vmul.f32 %v3857, %v3857
      %v3890 = vmul.f32 %v3858, %v3858
      %v3891 = vmul.f32 %v3859, %v3859
      %v3892 = vmul.f32 %v3860, %v3860
      %v3893 = vmul.f32 %v3861, %v3861
      %v3894 = vmul.f32 %v3862, %v3862
      %v3895 = vmul.f32 %v3863, %v3863
      %v3896 = vmul.f32 %v3864, %v3864
      %v3897 = vadd.f32 %v3865, %v3866
      %v3898 = vadd.f32 %v3897, %v3867
      %v3899 = vadd.f32 %v3898, %v3868
      %v3900 = vadd.f32 %v3899, %v3869
      %v3901 = vadd.f32 %v3900, %v3870
      %v3902 = vadd.f32 %v3901, %v3871
      %v3903 = vadd.f32 %v3902, %v3872
      %v3904 = vadd.f32 %v3903, %v3873
      %v3905 = vadd.f32 %v3904, %v3874
      %v3906 = vadd.f32 %v3905, %v3875
      %v3907 = vadd.f32 %v3906, %v3876
      %v3908 = vadd.f32 %v3907, %v3877
      %v3909 = vadd.f32 %v3908, %v3878
      %v3910 = vadd.f32 %v3909, %v3879
      %v3911 = vadd.f32 %v3910, %v3880
      %v3912 = vadd.f32 %v3911, %v3881
      %v3913 = vadd.f32 %v3912, %v3882
      %v3914 = vadd.f32 %v3913, %v3883
      %v3915 = vadd.f32 %v3914, %v3884
      %v3916 = vadd.f32 %v3915, %v3885
      %v3917 = vadd.f32 %v3916, %v3886
      %v3918 = vadd.f32 %v3917, %v3887
      %v3919 = vadd.f32 %v3918, %v3888
      %v3920 = vadd.f32 %v3919, %v3889
      %v3921 = vadd.f32 %v3920, %v3890
      %v3922 = vadd.f32 %v3921, %v3891
      %v3923 = vadd.f32 %v3922, %v3892
      %v3924 = vadd.f32 %v3923, %v3893
      %v3925 = vadd.f32 %v3924, %v3894
      %v3926 = vadd.f32 %v3925, %v3895
      %v3927 = vadd.f32 %v3926, %v3896
      %v3928 = vrot.slane %v3927, 4
      %v3929 = vadd.f32 %v3927, %v3928
      %v3930 = vrot.slane %v3929, 2
      %v3931 = vadd.f32 %v3929, %v3930
      %v3932 = vrot.slane %v3931, 1
      %v3933 = vadd.f32 %v3931, %v3932
      %vm3934 = vcmask 1040384
      %v3935 = vsel %vm3934, %v3831, %v3933
      %3936 = vst [vmem:[%s235] sm:$0x3] %v3935
      %p3937 = scmp.lt.s32.totalorder %s17, 1
      %s3938 = scalar_select %p3937, %s17, 1
      %s3939 = smul.addr %s3938, 32
      %s3940 = smul.addr %s3939, 8
      %s3941 = scalar_lea.vmem %s4, %s3940
      %p3942 = scmp.lt.s32.totalorder %s17, 1
      %s3943 = scalar_select %p3942, %s17, 1
      %s3944 = smul.addr %s3943, 2
      %s3945 = scalar_lea.vmem %s5, %s3944
      // Predicated region
      $region37: #{basic_block_forward_nhwc.4} parent=35 // pred_check
        %p3946 = pneg %p124
      $region38: #{basic_block_forward_nhwc.4} parent=35 // pred_check_branch
        %3948 = sbr.rel (%p3946) target = $region40
      $region39: #{basic_block_forward_nhwc.4} parent=35 // pred_region
        _
      $region40: #{basic_block_forward_nhwc.4} parent=35 // pred_fallthru
        _
      // Predicated region
      $region41: #{basic_block_forward_nhwc.4} parent=35 // pred_check
        %p3949 = pneg %p150
      $region42: #{basic_block_forward_nhwc.4} parent=35 // pred_check_branch
        %3951 = sbr.rel (%p3949) target = $region44
      $region43: #{basic_block_forward_nhwc.4} parent=35 // pred_region
        _
      $region44: #{basic_block_forward_nhwc.4} parent=35 // pred_fallthru
        _
    $region36: #{basic_block_forward_nhwc.4} parent=5 // pred_fallthru
      _
    %p3952 = scmp.le.s32.totalorder 2, %s12
    // Predicated region
    $region45: #{basic_block_forward_nhwc.4} parent=5 // pred_check
      %p3953 = pneg %p3952
    $region46: #{basic_block_forward_nhwc.4} parent=5 // pred_check_branch
      %3955 = sbr.rel (%p3953) target = $region48
    $region47: #{basic_block_forward_nhwc.4} parent=5 // pred_region
      %s3956 = ssub.s32 %s12, 2
      // Predicated region
      $region49: #{basic_block_forward_nhwc.4} parent=47 // pred_check
        %p3957 = pneg %p130
      $region50: #{basic_block_forward_nhwc.4} parent=47 // pred_check_branch
        %3959 = sbr.rel (%p3957) target = $region52
      $region51: #{basic_block_forward_nhwc.4} parent=47 // pred_region
        %p3960 = scmp.lt.s32.totalorder %s18, 1
        %s3961 = scalar_select %p3960, %s18, 1
        %s3962 = smul.addr %s3961, 32
        %s3963 = smul.addr %s3962, 8
        %s3964 = scalar_lea.vmem %s4, %s3963
      $region52: #{basic_block_forward_nhwc.4} parent=47 // pred_fallthru
        _
      // Predicated region
      $region53: #{basic_block_forward_nhwc.4} parent=47 // pred_check
        %p3965 = pneg %p156
      $region54: #{basic_block_forward_nhwc.4} parent=47 // pred_check_branch
        %3967 = sbr.rel (%p3965) target = $region56
      $region55: #{basic_block_forward_nhwc.4} parent=47 // pred_region
        %p3968 = scmp.lt.s32.totalorder %s18, 1
        %s3969 = scalar_select %p3968, %s18, 1
        %s3970 = smul.addr %s3969, 2
        %s3971 = scalar_lea.vmem %s5, %s3970
      $region56: #{basic_block_forward_nhwc.4} parent=47 // pred_fallthru
        _
    $region48: #{basic_block_forward_nhwc.4} parent=5 // pred_fallthru
      _
  $region6: #{basic_block_forward_nhwc.4} parent=0 // loop_footer
    %s16 = sadd.s32 1, %s12
  $region7: #{basic_block_forward_nhwc.4} parent=0 // loop_footer_branch
    %11 = sbr.rel target = $region3
  $region8: #{basic_block_forward_nhwc.4} parent=0 // loop_exit
    _

</llo_original>
